<compile_context>
chip_gen: v6e
topology: v6e:2x2x1
jax: 0.10.0
libtpu: 0.0.40
codegen_flags: <defaults>
</compile_context>

<pallas_src>
import math
from functools import partial

import jax
import jax.numpy as jnp
from jax import lax
from jax.experimental import pallas as pl
from jax.experimental.pallas import tpu as pltpu


def _vmrnn_kernel(x_ref, h_ref, c_ref, w_ref, b_ref, h_out_ref, c_out_ref,
                  pad_scr, col_scr, *, Bt, H, W, Cin, Ch):
    """One grid step: Bt images -> halo pad -> im2col -> one MXU matmul ->
    LSTM gating -> pixel-major stores.

    x_ref   : (Bt, H, W, Cin)          input dtype
    h_ref   : (Bt, H, W, Ch)           input dtype
    c_ref   : (Bt, H*W, Ch)            input dtype (pixel-major cell state)
    w_ref   : (9*(Cin+Ch), 4*Ch)       MXU dtype, im2col-flattened fused weight
    b_ref   : (1, 4*Ch)                f32, b_ih + b_hh
    h_out   : (Bt, H*W, Ch)            input dtype
    c_out   : (Bt, H*W, Ch)            input dtype
    pad_scr : (Bt, H+2, W+2, Cin+Ch)   f32 scratch (zero halo, fused x/h chans)
    col_scr : (Bt, H, W, 9*(Cin+Ch))   f32 scratch (im2col matrix)
    """
    C = Cin + Ch
    M = Bt * H * W
    cdt = pad_scr.dtype

    # ---- halo + interior fill (the in-kernel "concatenate") ----------------
    for bi in range(Bt):
        # Zero ONLY the border strips; the interior is fully overwritten below
        # on every grid step, so no full-scratch re-zeroing is needed.  Done
        # every step (not pid==0) so it is correct when the grid is sharded
        # across TensorCores (VMEM scratch is per-core).
        pad_scr[bi, 0:1, :, :] = jnp.zeros((1, W + 2, C), cdt)
        pad_scr[bi, H + 1:H + 2, :, :] = jnp.zeros((1, W + 2, C), cdt)
        pad_scr[bi, 1:H + 1, 0:1, :] = jnp.zeros((H, 1, C), cdt)
        pad_scr[bi, 1:H + 1, W + 1:W + 2, :] = jnp.zeros((H, 1, C), cdt)
        # x / h_prev go into adjacent channel stripes; no wrapper-side
        # concatenated copy of the activations ever touches HBM.
        pad_scr[bi, 1:H + 1, 1:W + 1, 0:Cin] = x_ref[bi].astype(cdt)
        pad_scr[bi, 1:H + 1, 1:W + 1, Cin:C] = h_ref[bi].astype(cdt)

    # ---- im2col: pack the 9 shifted 3x3 windows once ------------------------
    for bi in range(Bt):
        for ky in range(3):
            for kx in range(3):
                t = ky * 3 + kx
                col_scr[bi, :, :, t * C:(t + 1) * C] = (
                    pad_scr[bi, ky:ky + H, kx:kx + W, :])

    # ---- single fused-conv MXU matmul, f32 accumulation ---------------------
    # (Bt, H, W, 9C) -> (Bt*H*W, 9C): minor dim unchanged, merged dims are
    # multiples of the sublane tile => layout-preserving reshape.
    lhs = col_scr[...].reshape(M, 9 * C).astype(w_ref.dtype)
    acc = jnp.dot(lhs, w_ref[...], preferred_element_type=jnp.float32)
    acc = acc + b_ref[...]

    # ---- LSTM gating (chunk order i, f, g, o -- matches the PyTorch module) -
    i_g = jax.nn.sigmoid(acc[:, 0 * Ch:1 * Ch])
    f_g = jax.nn.sigmoid(acc[:, 1 * Ch:2 * Ch])
    g_g = jnp.tanh(acc[:, 2 * Ch:3 * Ch])
    o_g = jax.nn.sigmoid(acc[:, 3 * Ch:4 * Ch])

    # Cell update in the same pixel-major (M, Ch) layout as the matmul output
    # -- no per-gate relayout is needed before the stores.
    c_prev = c_ref[...].reshape(M, Ch).astype(jnp.float32)
    c_new = f_g * c_prev + i_g * g_g
    h_new = o_g * jnp.tanh(c_new)

    c_out_ref[...] = c_new.reshape(Bt, H * W, Ch).astype(c_out_ref.dtype)
    h_out_ref[...] = h_new.reshape(Bt, H * W, Ch).astype(h_out_ref.dtype)


def prepare_weights(w_ih, b_ih, w_hh, b_hh, *, mxu_dtype=jnp.bfloat16):
    """Fuse + im2col-flatten the conv weights for the kernel.

    Call ONCE per layer, outside any time loop -- the result is reused by
    every vmrnn_cell() invocation (review item: hoist weight preprocessing).

    w_ih : (3, 3, Cin, 4*Ch)  HWIO   (from PyTorch OIHW: w.transpose(2,3,1,0))
    w_hh : (3, 3, Ch,  4*Ch)  HWIO
    mxu_dtype : bf16 (default) for MXU throughput, or f32 for strict parity
                with the f32 PyTorch forward.
    """
    kh, kw, cin, c4 = w_ih.shape
    ch = w_hh.shape[2]
    assert (kh, kw) == (3, 3) and w_hh.shape == (3, 3, ch, c4) and c4 == 4 * ch
    w_fused = jnp.concatenate([w_ih, w_hh], axis=2)          # (3,3,Cin+Ch,4Ch)
    w_flat = w_fused.reshape(kh * kw * (cin + ch), c4).astype(mxu_dtype)
    bias = (b_ih + b_hh).reshape(1, c4).astype(jnp.float32)
    return w_flat, bias


@partial(jax.jit, static_argnames=("batch_block",))
def vmrnn_cell(x, h_prev, c_prev, w_flat, bias, *, batch_block=None):
    """VMRNNCell forward.

    x, h_prev, c_prev are NHWC; (w_flat, bias) come from prepare_weights().
    Returns (h_new, c_new) in NHWC with the dtype of x.
    """
    B, H, W, Cin = x.shape
    Ch = h_prev.shape[-1]
    C = Cin + Ch
    K, C4 = w_flat.shape
    assert h_prev.shape == (B, H, W, Ch) and c_prev.shape == (B, H, W, Ch)
    assert K == 9 * C and C4 == 4 * Ch

    # Fold the whole batch into one matmul by default (amortizes per-grid-step
    # overhead).  On v7x pass batch_block=B//2 so both TensorCores get a grid
    # step, and re-derive the working set against its 64 MiB physical VMEM.
    Bt = B if batch_block is None else int(batch_block)
    assert B % Bt == 0
    grid = (B // Bt,)
    out_dtype = x.dtype

    # Pixel-major (B, H*W, Ch) layout for cell state / outputs: row-major
    # reshape => metadata-only in XLA, no extra HBM pass.
    c_pm = c_prev.reshape(B, H * W, Ch)

    kernel = partial(_vmrnn_kernel, Bt=Bt, H=H, W=W, Cin=Cin, Ch=Ch)

    # Explicit VMEM budget (double-buffered blocks + scratch, with headroom
    # for (8,128) tile padding).  32 MiB floor is within every generation's
    # default-scoped VMEM (incl. v7x).
    def nbytes(shape, dt):
        return math.prod(shape) * jnp.dtype(dt).itemsize
    block_bytes = (nbytes((Bt, H, W, Cin), x.dtype)
                   + nbytes((Bt, H, W, Ch), h_prev.dtype)
                   + nbytes((Bt, H * W, Ch), c_pm.dtype)
                   + nbytes((K, C4), w_flat.dtype)
                   + nbytes((1, C4), jnp.float32)
                   + 2 * nbytes((Bt, H * W, Ch), out_dtype))
    scratch_bytes = (nbytes((Bt, H + 2, W + 2, C), jnp.float32)
                     + nbytes((Bt, H, W, K), jnp.float32))
    vmem_limit = int(max(32 * 1024 * 1024, 4 * block_bytes + 2 * scratch_bytes))

    grid_spec = pltpu.PrefetchScalarGridSpec(
        num_scalar_prefetch=0,
        grid=grid,
        in_specs=[
            pl.BlockSpec((Bt, H, W, Cin), lambda b: (b, 0, 0, 0)),   # x
            pl.BlockSpec((Bt, H, W, Ch), lambda b: (b, 0, 0, 0)),    # h_prev
            pl.BlockSpec((Bt, H * W, Ch), lambda b: (b, 0, 0)),      # c_prev
            pl.BlockSpec((K, C4), lambda b: (0, 0)),                 # weights
            pl.BlockSpec((1, C4), lambda b: (0, 0)),                 # bias
        ],
        out_specs=(
            pl.BlockSpec((Bt, H * W, Ch), lambda b: (b, 0, 0)),      # h_new
            pl.BlockSpec((Bt, H * W, Ch), lambda b: (b, 0, 0)),      # c_new
        ),
        scratch_shapes=[
            pltpu.VMEM((Bt, H + 2, W + 2, C), jnp.float32),          # halo pad
            pltpu.VMEM((Bt, H, W, K), jnp.float32),                  # im2col
        ],
    )

    h_new, c_new = pl.pallas_call(
        kernel,
        out_shape=(
            jax.ShapeDtypeStruct((B, H * W, Ch), out_dtype),
            jax.ShapeDtypeStruct((B, H * W, Ch), out_dtype),
        ),
        grid_spec=grid_spec,
        compiler_params=pltpu.CompilerParams(
            dimension_semantics=("parallel",),
            vmem_limit_bytes=vmem_limit),
    )(x, h_prev, c_pm, w_flat, bias)

    return (h_new.reshape(B, H, W, Ch), c_new.reshape(B, H, W, Ch))


def _reference(x, h_prev, c_prev, w_ih, b_ih, w_hh, b_hh,
               operand_dtype=jnp.float32):
    """Pure-JAX NHWC reference mirroring the PyTorch forward.

    With operand_dtype=bf16 the conv operands are rounded exactly like the
    kernel's MXU path (accumulation and gating stay f32)."""
    dn = ("NHWC", "HWIO", "NHWC")
    f32 = jnp.float32
    xx = x.astype(operand_dtype).astype(f32)
    hh = h_prev.astype(operand_dtype).astype(f32)
    wi = w_ih.astype(operand_dtype).astype(f32)
    wh = w_hh.astype(operand_dtype).astype(f32)
    gates = (
        lax.conv_general_dilated(xx, wi, (1, 1), "SAME", dimension_numbers=dn,
                                 precision=lax.Precision.HIGHEST)
        + lax.conv_general_dilated(hh, wh, (1, 1), "SAME",
                                   dimension_numbers=dn,
                                   precision=lax.Precision.HIGHEST)
        + (b_ih + b_hh)[None, None, None, :]
    )
    Ch = h_prev.shape[-1]
    i = jax.nn.sigmoid(gates[..., 0 * Ch:1 * Ch])
    f = jax.nn.sigmoid(gates[..., 1 * Ch:2 * Ch])
    g = jnp.tanh(gates[..., 2 * Ch:3 * Ch])
    o = jax.nn.sigmoid(gates[..., 3 * Ch:4 * Ch])
    c_new = f * c_prev.astype(f32) + i * g
    h_new = o * jnp.tanh(c_new)
    return h_new, c_new


if __name__ == "__main__":
    # Small shapes: batch=2, input channels=4, hidden=32, spatial 16x16.
    # hidden=32 -> the fused gate matmul N = 4*Ch = 128 (lane / MXU aligned).
    B, H, W = 2, 16, 16
    Cin, Ch = 4, 32
    k = 3

    key = jax.random.PRNGKey(0)
    kx_, kh_, kc_, kwi, kwh, kbi, kbh = jax.random.split(key, 7)

    x = jax.random.normal(kx_, (B, H, W, Cin), jnp.float32)
    h_prev = jax.random.normal(kh_, (B, H, W, Ch), jnp.float32)
    c_prev = jax.random.normal(kc_, (B, H, W, Ch), jnp.float32)

    w_ih = 0.1 * jax.random.normal(kwi, (k, k, Cin, 4 * Ch), jnp.float32)
    w_hh = 0.1 * jax.random.normal(kwh, (k, k, Ch, 4 * Ch), jnp.float32)
    b_ih = 0.1 * jax.random.normal(kbi, (4 * Ch,), jnp.float32)
    b_hh = 0.1 * jax.random.normal(kbh, (4 * Ch,), jnp.float32)

    # Hoisted weight prep: for a recurrent net do this ONCE per layer, not per
    # timestep.
    w_flat, bias = prepare_weights(w_ih, b_ih, w_hh, b_hh,
                                   mxu_dtype=jnp.bfloat16)

    h_new, c_new = vmrnn_cell(x, h_prev, c_prev, w_flat, bias)
    jax.block_until_ready((h_new, c_new))

    # Tight check against a reference whose conv operands are rounded to bf16
    # exactly like the kernel's MXU path (f32 accumulation + f32 gating both).
    h_rb, c_rb = _reference(x, h_prev, c_prev, w_ih, b_ih, w_hh, b_hh,
                            operand_dtype=jnp.bfloat16)
    assert jnp.allclose(h_new, h_rb, atol=1e-2, rtol=1e-2), \
        float(jnp.max(jnp.abs(h_new - h_rb)))
    assert jnp.allclose(c_new, c_rb, atol=1e-2, rtol=1e-2), \
        float(jnp.max(jnp.abs(c_new - c_rb)))

    # Looser sanity check against the full-f32 PyTorch-equivalent forward
    # (bf16 MXU operands introduce ~1e-2 absolute error in pre-activations).
    h_rf, c_rf = _reference(x, h_prev, c_prev, w_ih, b_ih, w_hh, b_hh)
    assert jnp.allclose(h_new, h_rf, atol=1e-1, rtol=1e-1)
    assert jnp.allclose(c_new, c_rf, atol=1e-1, rtol=1e-1)

    print("KERNEL_OK")
</pallas_src>

<mosaic_0001>
module attributes {stable_mosaic.version = 11 : i64} {
  func.func @_vmrnn_kernel(%arg0: i32, %arg1: memref<2x16x16x4xf32, #tpu.memory_space<vmem>>, %arg2: memref<2x16x16x32xf32, #tpu.memory_space<vmem>>, %arg3: memref<2x256x32xf32, #tpu.memory_space<vmem>>, %arg4: memref<324x128xbf16, #tpu.memory_space<vmem>>, %arg5: memref<1x128xf32, #tpu.memory_space<vmem>>, %arg6: memref<2x256x32xf32, #tpu.memory_space<vmem>>, %arg7: memref<2x256x32xf32, #tpu.memory_space<vmem>>, %arg8: memref<2x18x18x36xf32, #tpu.memory_space<vmem>>, %arg9: memref<2x16x16x324xf32, #tpu.memory_space<vmem>>) attributes {dimension_semantics = [#tpu.dimension_semantics<parallel>], iteration_bounds = array<i64: 1>, scalar_prefetch = 0 : i64, scratch_operands = 2 : i64, tpu.core_type = #tpu.core_type<tc>, window_params = [{transform_indices = @transform_0, window_bounds = array<i64: 2, 16, 16, 4>}, {transform_indices = @transform_1, window_bounds = array<i64: 2, 16, 16, 32>}, {transform_indices = @transform_2, window_bounds = array<i64: 2, 256, 32>}, {pipeline_mode = #tpu.pipeline_mode<synchronous>, transform_indices = @transform_3, window_bounds = array<i64: 324, 128>}, {pipeline_mode = #tpu.pipeline_mode<synchronous>, transform_indices = @transform_4, window_bounds = array<i64: 1, 128>}, {transform_indices = @transform_5, window_bounds = array<i64: 2, 256, 32>}, {transform_indices = @transform_6, window_bounds = array<i64: 2, 256, 32>}]} {
    %cst = arith.constant 0.000000e+00 : f32
    %0 = vector.broadcast %cst : f32 to vector<1x18x36xf32>
    %c0 = arith.constant 0 : index
    %c0_0 = arith.constant 0 : index
    %c0_1 = arith.constant 0 : index
    %c0_2 = arith.constant 0 : index
    %1 = vector.load %arg8[%c0, %c0_0, %c0_1, %c0_2] : memref<2x18x18x36xf32, #tpu.memory_space<vmem>>, vector<1x1x18x36xf32>
    %2 = vector.shape_cast %1 : vector<1x1x18x36xf32> to vector<1x18x36xf32>
    %3 = vector.shape_cast %0 : vector<1x18x36xf32> to vector<1x1x18x36xf32>
    tpu.vector_store %arg8[%c0, %c0_0, %c0_1, %c0_2], %3 {strides = array<i32>} : memref<2x18x18x36xf32, #tpu.memory_space<vmem>>, vector<1x1x18x36xf32>,
    %cst_3 = arith.constant 0.000000e+00 : f32
    %4 = vector.broadcast %cst_3 : f32 to vector<1x18x36xf32>
    %c0_4 = arith.constant 0 : index
    %c17 = arith.constant 17 : index
    %c0_5 = arith.constant 0 : index
    %c0_6 = arith.constant 0 : index
    %5 = vector.load %arg8[%c0_4, %c17, %c0_5, %c0_6] : memref<2x18x18x36xf32, #tpu.memory_space<vmem>>, vector<1x1x18x36xf32>
    %6 = vector.shape_cast %5 : vector<1x1x18x36xf32> to vector<1x18x36xf32>
    %7 = vector.shape_cast %4 : vector<1x18x36xf32> to vector<1x1x18x36xf32>
    tpu.vector_store %arg8[%c0_4, %c17, %c0_5, %c0_6], %7 {strides = array<i32>} : memref<2x18x18x36xf32, #tpu.memory_space<vmem>>, vector<1x1x18x36xf32>,
    %cst_7 = arith.constant 0.000000e+00 : f32
    %8 = vector.broadcast %cst_7 : f32 to vector<16x1x36xf32>
    %c0_8 = arith.constant 0 : index
    %c1 = arith.constant 1 : index
    %c0_9 = arith.constant 0 : index
    %c0_10 = arith.constant 0 : index
    %9 = vector.load %arg8[%c0_8, %c1, %c0_9, %c0_10] : memref<2x18x18x36xf32, #tpu.memory_space<vmem>>, vector<1x16x1x36xf32>
    %10 = vector.shape_cast %9 : vector<1x16x1x36xf32> to vector<16x1x36xf32>
    %11 = vector.shape_cast %8 : vector<16x1x36xf32> to vector<1x16x1x36xf32>
    tpu.vector_store %arg8[%c0_8, %c1, %c0_9, %c0_10], %11 {strides = array<i32>} : memref<2x18x18x36xf32, #tpu.memory_space<vmem>>, vector<1x16x1x36xf32>,
    %cst_11 = arith.constant 0.000000e+00 : f32
    %12 = vector.broadcast %cst_11 : f32 to vector<16x1x36xf32>
    %c0_12 = arith.constant 0 : index
    %c1_13 = arith.constant 1 : index
    %c17_14 = arith.constant 17 : index
    %c0_15 = arith.constant 0 : index
    %13 = vector.load %arg8[%c0_12, %c1_13, %c17_14, %c0_15] : memref<2x18x18x36xf32, #tpu.memory_space<vmem>>, vector<1x16x1x36xf32>
    %14 = vector.shape_cast %13 : vector<1x16x1x36xf32> to vector<16x1x36xf32>
    %15 = vector.shape_cast %12 : vector<16x1x36xf32> to vector<1x16x1x36xf32>
    tpu.vector_store %arg8[%c0_12, %c1_13, %c17_14, %c0_15], %15 {strides = array<i32>} : memref<2x18x18x36xf32, #tpu.memory_space<vmem>>, vector<1x16x1x36xf32>,
    %c0_16 = arith.constant 0 : index
    %c0_17 = arith.constant 0 : index
    %c0_18 = arith.constant 0 : index
    %c0_19 = arith.constant 0 : index
    %16 = vector.load %arg1[%c0_16, %c0_17, %c0_18, %c0_19] : memref<2x16x16x4xf32, #tpu.memory_space<vmem>>, vector<1x16x16x4xf32>
    %17 = vector.shape_cast %16 : vector<1x16x16x4xf32> to vector<16x16x4xf32>
    %c0_20 = arith.constant 0 : index
    %c1_21 = arith.constant 1 : index
    %c1_22 = arith.constant 1 : index
    %c0_23 = arith.constant 0 : index
    %18 = vector.load %arg8[%c0_20, %c1_21, %c1_22, %c0_23] : memref<2x18x18x36xf32, #tpu.memory_space<vmem>>, vector<1x16x16x4xf32>
    %19 = vector.shape_cast %18 : vector<1x16x16x4xf32> to vector<16x16x4xf32>
    %20 = vector.shape_cast %17 : vector<16x16x4xf32> to vector<1x16x16x4xf32>
    tpu.vector_store %arg8[%c0_20, %c1_21, %c1_22, %c0_23], %20 {strides = array<i32>} : memref<2x18x18x36xf32, #tpu.memory_space<vmem>>, vector<1x16x16x4xf32>,
    %c0_24 = arith.constant 0 : index
    %c0_25 = arith.constant 0 : index
    %c0_26 = arith.constant 0 : index
    %c0_27 = arith.constant 0 : index
    %21 = vector.load %arg2[%c0_24, %c0_25, %c0_26, %c0_27] : memref<2x16x16x32xf32, #tpu.memory_space<vmem>>, vector<1x16x16x32xf32>
    %22 = vector.shape_cast %21 : vector<1x16x16x32xf32> to vector<16x16x32xf32>
    %c0_28 = arith.constant 0 : index
    %c1_29 = arith.constant 1 : index
    %c1_30 = arith.constant 1 : index
    %c4 = arith.constant 4 : index
    %23 = vector.load %arg8[%c0_28, %c1_29, %c1_30, %c4] : memref<2x18x18x36xf32, #tpu.memory_space<vmem>>, vector<1x16x16x32xf32>
    %24 = vector.shape_cast %23 : vector<1x16x16x32xf32> to vector<16x16x32xf32>
    %25 = vector.shape_cast %22 : vector<16x16x32xf32> to vector<1x16x16x32xf32>
    tpu.vector_store %arg8[%c0_28, %c1_29, %c1_30, %c4], %25 {strides = array<i32>} : memref<2x18x18x36xf32, #tpu.memory_space<vmem>>, vector<1x16x16x32xf32>,
    %cst_31 = arith.constant 0.000000e+00 : f32
    %26 = vector.broadcast %cst_31 : f32 to vector<1x18x36xf32>
    %c1_32 = arith.constant 1 : index
    %c0_33 = arith.constant 0 : index
    %c0_34 = arith.constant 0 : index
    %c0_35 = arith.constant 0 : index
    %27 = vector.load %arg8[%c1_32, %c0_33, %c0_34, %c0_35] : memref<2x18x18x36xf32, #tpu.memory_space<vmem>>, vector<1x1x18x36xf32>
    %28 = vector.shape_cast %27 : vector<1x1x18x36xf32> to vector<1x18x36xf32>
    %29 = vector.shape_cast %26 : vector<1x18x36xf32> to vector<1x1x18x36xf32>
    tpu.vector_store %arg8[%c1_32, %c0_33, %c0_34, %c0_35], %29 {strides = array<i32>} : memref<2x18x18x36xf32, #tpu.memory_space<vmem>>, vector<1x1x18x36xf32>,
    %cst_36 = arith.constant 0.000000e+00 : f32
    %30 = vector.broadcast %cst_36 : f32 to vector<1x18x36xf32>
    %c1_37 = arith.constant 1 : index
    %c17_38 = arith.constant 17 : index
    %c0_39 = arith.constant 0 : index
    %c0_40 = arith.constant 0 : index
    %31 = vector.load %arg8[%c1_37, %c17_38, %c0_39, %c0_40] : memref<2x18x18x36xf32, #tpu.memory_space<vmem>>, vector<1x1x18x36xf32>
    %32 = vector.shape_cast %31 : vector<1x1x18x36xf32> to vector<1x18x36xf32>
    %33 = vector.shape_cast %30 : vector<1x18x36xf32> to vector<1x1x18x36xf32>
    tpu.vector_store %arg8[%c1_37, %c17_38, %c0_39, %c0_40], %33 {strides = array<i32>} : memref<2x18x18x36xf32, #tpu.memory_space<vmem>>, vector<1x1x18x36xf32>,
    %cst_41 = arith.constant 0.000000e+00 : f32
    %34 = vector.broadcast %cst_41 : f32 to vector<16x1x36xf32>
    %c1_42 = arith.constant 1 : index
    %c1_43 = arith.constant 1 : index
    %c0_44 = arith.constant 0 : index
    %c0_45 = arith.constant 0 : index
    %35 = vector.load %arg8[%c1_42, %c1_43, %c0_44, %c0_45] : memref<2x18x18x36xf32, #tpu.memory_space<vmem>>, vector<1x16x1x36xf32>
    %36 = vector.shape_cast %35 : vector<1x16x1x36xf32> to vector<16x1x36xf32>
    %37 = vector.shape_cast %34 : vector<16x1x36xf32> to vector<1x16x1x36xf32>
    tpu.vector_store %arg8[%c1_42, %c1_43, %c0_44, %c0_45], %37 {strides = array<i32>} : memref<2x18x18x36xf32, #tpu.memory_space<vmem>>, vector<1x16x1x36xf32>,
    %cst_46 = arith.constant 0.000000e+00 : f32
    %38 = vector.broadcast %cst_46 : f32 to vector<16x1x36xf32>
    %c1_47 = arith.constant 1 : index
    %c1_48 = arith.constant 1 : index
    %c17_49 = arith.constant 17 : index
    %c0_50 = arith.constant 0 : index
    %39 = vector.load %arg8[%c1_47, %c1_48, %c17_49, %c0_50] : memref<2x18x18x36xf32, #tpu.memory_space<vmem>>, vector<1x16x1x36xf32>
    %40 = vector.shape_cast %39 : vector<1x16x1x36xf32> to vector<16x1x36xf32>
    %41 = vector.shape_cast %38 : vector<16x1x36xf32> to vector<1x16x1x36xf32>
    tpu.vector_store %arg8[%c1_47, %c1_48, %c17_49, %c0_50], %41 {strides = array<i32>} : memref<2x18x18x36xf32, #tpu.memory_space<vmem>>, vector<1x16x1x36xf32>,
    %c1_51 = arith.constant 1 : index
    %c0_52 = arith.constant 0 : index
    %c0_53 = arith.constant 0 : index
    %c0_54 = arith.constant 0 : index
    %42 = vector.load %arg1[%c1_51, %c0_52, %c0_53, %c0_54] : memref<2x16x16x4xf32, #tpu.memory_space<vmem>>, vector<1x16x16x4xf32>
    %43 = vector.shape_cast %42 : vector<1x16x16x4xf32> to vector<16x16x4xf32>
    %c1_55 = arith.constant 1 : index
    %c1_56 = arith.constant 1 : index
    %c1_57 = arith.constant 1 : index
    %c0_58 = arith.constant 0 : index
    %44 = vector.load %arg8[%c1_55, %c1_56, %c1_57, %c0_58] : memref<2x18x18x36xf32, #tpu.memory_space<vmem>>, vector<1x16x16x4xf32>
    %45 = vector.shape_cast %44 : vector<1x16x16x4xf32> to vector<16x16x4xf32>
    %46 = vector.shape_cast %43 : vector<16x16x4xf32> to vector<1x16x16x4xf32>
    tpu.vector_store %arg8[%c1_55, %c1_56, %c1_57, %c0_58], %46 {strides = array<i32>} : memref<2x18x18x36xf32, #tpu.memory_space<vmem>>, vector<1x16x16x4xf32>,
    %c1_59 = arith.constant 1 : index
    %c0_60 = arith.constant 0 : index
    %c0_61 = arith.constant 0 : index
    %c0_62 = arith.constant 0 : index
    %47 = vector.load %arg2[%c1_59, %c0_60, %c0_61, %c0_62] : memref<2x16x16x32xf32, #tpu.memory_space<vmem>>, vector<1x16x16x32xf32>
    %48 = vector.shape_cast %47 : vector<1x16x16x32xf32> to vector<16x16x32xf32>
    %c1_63 = arith.constant 1 : index
    %c1_64 = arith.constant 1 : index
    %c1_65 = arith.constant 1 : index
    %c4_66 = arith.constant 4 : index
    %49 = vector.load %arg8[%c1_63, %c1_64, %c1_65, %c4_66] : memref<2x18x18x36xf32, #tpu.memory_space<vmem>>, vector<1x16x16x32xf32>
    %50 = vector.shape_cast %49 : vector<1x16x16x32xf32> to vector<16x16x32xf32>
    %51 = vector.shape_cast %48 : vector<16x16x32xf32> to vector<1x16x16x32xf32>
    tpu.vector_store %arg8[%c1_63, %c1_64, %c1_65, %c4_66], %51 {strides = array<i32>} : memref<2x18x18x36xf32, #tpu.memory_space<vmem>>, vector<1x16x16x32xf32>,
    %c0_67 = arith.constant 0 : index
    %c0_68 = arith.constant 0 : index
    %c0_69 = arith.constant 0 : index
    %c0_70 = arith.constant 0 : index
    %52 = vector.load %arg8[%c0_67, %c0_68, %c0_69, %c0_70] : memref<2x18x18x36xf32, #tpu.memory_space<vmem>>, vector<1x16x16x36xf32>
    %53 = vector.shape_cast %52 : vector<1x16x16x36xf32> to vector<16x16x36xf32>
    %c0_71 = arith.constant 0 : index
    %c0_72 = arith.constant 0 : index
    %c0_73 = arith.constant 0 : index
    %c0_74 = arith.constant 0 : index
    %54 = vector.load %arg9[%c0_71, %c0_72, %c0_73, %c0_74] : memref<2x16x16x324xf32, #tpu.memory_space<vmem>>, vector<1x16x16x36xf32>
    %55 = vector.shape_cast %54 : vector<1x16x16x36xf32> to vector<16x16x36xf32>
    %56 = vector.shape_cast %53 : vector<16x16x36xf32> to vector<1x16x16x36xf32>
    tpu.vector_store %arg9[%c0_71, %c0_72, %c0_73, %c0_74], %56 {strides = array<i32>} : memref<2x16x16x324xf32, #tpu.memory_space<vmem>>, vector<1x16x16x36xf32>,
    %c0_75 = arith.constant 0 : index
    %c0_76 = arith.constant 0 : index
    %c1_77 = arith.constant 1 : index
    %c0_78 = arith.constant 0 : index
    %57 = vector.load %arg8[%c0_75, %c0_76, %c1_77, %c0_78] : memref<2x18x18x36xf32, #tpu.memory_space<vmem>>, vector<1x16x16x36xf32>
    %58 = vector.shape_cast %57 : vector<1x16x16x36xf32> to vector<16x16x36xf32>
    %c0_79 = arith.constant 0 : index
    %c0_80 = arith.constant 0 : index
    %c0_81 = arith.constant 0 : index
    %c36 = arith.constant 36 : index
    %59 = vector.load %arg9[%c0_79, %c0_80, %c0_81, %c36] : memref<2x16x16x324xf32, #tpu.memory_space<vmem>>, vector<1x16x16x36xf32>
    %60 = vector.shape_cast %59 : vector<1x16x16x36xf32> to vector<16x16x36xf32>
    %61 = vector.shape_cast %58 : vector<16x16x36xf32> to vector<1x16x16x36xf32>
    tpu.vector_store %arg9[%c0_79, %c0_80, %c0_81, %c36], %61 {strides = array<i32>} : memref<2x16x16x324xf32, #tpu.memory_space<vmem>>, vector<1x16x16x36xf32>,
    %c0_82 = arith.constant 0 : index
    %c0_83 = arith.constant 0 : index
    %c2 = arith.constant 2 : index
    %c0_84 = arith.constant 0 : index
    %62 = vector.load %arg8[%c0_82, %c0_83, %c2, %c0_84] : memref<2x18x18x36xf32, #tpu.memory_space<vmem>>, vector<1x16x16x36xf32>
    %63 = vector.shape_cast %62 : vector<1x16x16x36xf32> to vector<16x16x36xf32>
    %c0_85 = arith.constant 0 : index
    %c0_86 = arith.constant 0 : index
    %c0_87 = arith.constant 0 : index
    %c72 = arith.constant 72 : index
    %64 = vector.load %arg9[%c0_85, %c0_86, %c0_87, %c72] : memref<2x16x16x324xf32, #tpu.memory_space<vmem>>, vector<1x16x16x36xf32>
    %65 = vector.shape_cast %64 : vector<1x16x16x36xf32> to vector<16x16x36xf32>
    %66 = vector.shape_cast %63 : vector<16x16x36xf32> to vector<1x16x16x36xf32>
    tpu.vector_store %arg9[%c0_85, %c0_86, %c0_87, %c72], %66 {strides = array<i32>} : memref<2x16x16x324xf32, #tpu.memory_space<vmem>>, vector<1x16x16x36xf32>,
    %c0_88 = arith.constant 0 : index
    %c1_89 = arith.constant 1 : index
    %c0_90 = arith.constant 0 : index
    %c0_91 = arith.constant 0 : index
    %67 = vector.load %arg8[%c0_88, %c1_89, %c0_90, %c0_91] : memref<2x18x18x36xf32, #tpu.memory_space<vmem>>, vector<1x16x16x36xf32>
    %68 = vector.shape_cast %67 : vector<1x16x16x36xf32> to vector<16x16x36xf32>
    %c0_92 = arith.constant 0 : index
    %c0_93 = arith.constant 0 : index
    %c0_94 = arith.constant 0 : index
    %c108 = arith.constant 108 : index
    %69 = vector.load %arg9[%c0_92, %c0_93, %c0_94, %c108] : memref<2x16x16x324xf32, #tpu.memory_space<vmem>>, vector<1x16x16x36xf32>
    %70 = vector.shape_cast %69 : vector<1x16x16x36xf32> to vector<16x16x36xf32>
    %71 = vector.shape_cast %68 : vector<16x16x36xf32> to vector<1x16x16x36xf32>
    tpu.vector_store %arg9[%c0_92, %c0_93, %c0_94, %c108], %71 {strides = array<i32>} : memref<2x16x16x324xf32, #tpu.memory_space<vmem>>, vector<1x16x16x36xf32>,
    %c0_95 = arith.constant 0 : index
    %c1_96 = arith.constant 1 : index
    %c1_97 = arith.constant 1 : index
    %c0_98 = arith.constant 0 : index
    %72 = vector.load %arg8[%c0_95, %c1_96, %c1_97, %c0_98] : memref<2x18x18x36xf32, #tpu.memory_space<vmem>>, vector<1x16x16x36xf32>
    %73 = vector.shape_cast %72 : vector<1x16x16x36xf32> to vector<16x16x36xf32>
    %c0_99 = arith.constant 0 : index
    %c0_100 = arith.constant 0 : index
    %c0_101 = arith.constant 0 : index
    %c144 = arith.constant 144 : index
    %74 = vector.load %arg9[%c0_99, %c0_100, %c0_101, %c144] : memref<2x16x16x324xf32, #tpu.memory_space<vmem>>, vector<1x16x16x36xf32>
    %75 = vector.shape_cast %74 : vector<1x16x16x36xf32> to vector<16x16x36xf32>
    %76 = vector.shape_cast %73 : vector<16x16x36xf32> to vector<1x16x16x36xf32>
    tpu.vector_store %arg9[%c0_99, %c0_100, %c0_101, %c144], %76 {strides = array<i32>} : memref<2x16x16x324xf32, #tpu.memory_space<vmem>>, vector<1x16x16x36xf32>,
    %c0_102 = arith.constant 0 : index
    %c1_103 = arith.constant 1 : index
    %c2_104 = arith.constant 2 : index
    %c0_105 = arith.constant 0 : index
    %77 = vector.load %arg8[%c0_102, %c1_103, %c2_104, %c0_105] : memref<2x18x18x36xf32, #tpu.memory_space<vmem>>, vector<1x16x16x36xf32>
    %78 = vector.shape_cast %77 : vector<1x16x16x36xf32> to vector<16x16x36xf32>
    %c0_106 = arith.constant 0 : index
    %c0_107 = arith.constant 0 : index
    %c0_108 = arith.constant 0 : index
    %c180 = arith.constant 180 : index
    %79 = vector.load %arg9[%c0_106, %c0_107, %c0_108, %c180] : memref<2x16x16x324xf32, #tpu.memory_space<vmem>>, vector<1x16x16x36xf32>
    %80 = vector.shape_cast %79 : vector<1x16x16x36xf32> to vector<16x16x36xf32>
    %81 = vector.shape_cast %78 : vector<16x16x36xf32> to vector<1x16x16x36xf32>
    tpu.vector_store %arg9[%c0_106, %c0_107, %c0_108, %c180], %81 {strides = array<i32>} : memref<2x16x16x324xf32, #tpu.memory_space<vmem>>, vector<1x16x16x36xf32>,
    %c0_109 = arith.constant 0 : index
    %c2_110 = arith.constant 2 : index
    %c0_111 = arith.constant 0 : index
    %c0_112 = arith.constant 0 : index
    %82 = vector.load %arg8[%c0_109, %c2_110, %c0_111, %c0_112] : memref<2x18x18x36xf32, #tpu.memory_space<vmem>>, vector<1x16x16x36xf32>
    %83 = vector.shape_cast %82 : vector<1x16x16x36xf32> to vector<16x16x36xf32>
    %c0_113 = arith.constant 0 : index
    %c0_114 = arith.constant 0 : index
    %c0_115 = arith.constant 0 : index
    %c216 = arith.constant 216 : index
    %84 = vector.load %arg9[%c0_113, %c0_114, %c0_115, %c216] : memref<2x16x16x324xf32, #tpu.memory_space<vmem>>, vector<1x16x16x36xf32>
    %85 = vector.shape_cast %84 : vector<1x16x16x36xf32> to vector<16x16x36xf32>
    %86 = vector.shape_cast %83 : vector<16x16x36xf32> to vector<1x16x16x36xf32>
    tpu.vector_store %arg9[%c0_113, %c0_114, %c0_115, %c216], %86 {strides = array<i32>} : memref<2x16x16x324xf32, #tpu.memory_space<vmem>>, vector<1x16x16x36xf32>,
    %c0_116 = arith.constant 0 : index
    %c2_117 = arith.constant 2 : index
    %c1_118 = arith.constant 1 : index
    %c0_119 = arith.constant 0 : index
    %87 = vector.load %arg8[%c0_116, %c2_117, %c1_118, %c0_119] : memref<2x18x18x36xf32, #tpu.memory_space<vmem>>, vector<1x16x16x36xf32>
    %88 = vector.shape_cast %87 : vector<1x16x16x36xf32> to vector<16x16x36xf32>
    %c0_120 = arith.constant 0 : index
    %c0_121 = arith.constant 0 : index
    %c0_122 = arith.constant 0 : index
    %c252 = arith.constant 252 : index
    %89 = vector.load %arg9[%c0_120, %c0_121, %c0_122, %c252] : memref<2x16x16x324xf32, #tpu.memory_space<vmem>>, vector<1x16x16x36xf32>
    %90 = vector.shape_cast %89 : vector<1x16x16x36xf32> to vector<16x16x36xf32>
    %91 = vector.shape_cast %88 : vector<16x16x36xf32> to vector<1x16x16x36xf32>
    tpu.vector_store %arg9[%c0_120, %c0_121, %c0_122, %c252], %91 {strides = array<i32>} : memref<2x16x16x324xf32, #tpu.memory_space<vmem>>, vector<1x16x16x36xf32>,
    %c0_123 = arith.constant 0 : index
    %c2_124 = arith.constant 2 : index
    %c2_125 = arith.constant 2 : index
    %c0_126 = arith.constant 0 : index
    %92 = vector.load %arg8[%c0_123, %c2_124, %c2_125, %c0_126] : memref<2x18x18x36xf32, #tpu.memory_space<vmem>>, vector<1x16x16x36xf32>
    %93 = vector.shape_cast %92 : vector<1x16x16x36xf32> to vector<16x16x36xf32>
    %c0_127 = arith.constant 0 : index
    %c0_128 = arith.constant 0 : index
    %c0_129 = arith.constant 0 : index
    %c288 = arith.constant 288 : index
    %94 = vector.load %arg9[%c0_127, %c0_128, %c0_129, %c288] : memref<2x16x16x324xf32, #tpu.memory_space<vmem>>, vector<1x16x16x36xf32>
    %95 = vector.shape_cast %94 : vector<1x16x16x36xf32> to vector<16x16x36xf32>
    %96 = vector.shape_cast %93 : vector<16x16x36xf32> to vector<1x16x16x36xf32>
    tpu.vector_store %arg9[%c0_127, %c0_128, %c0_129, %c288], %96 {strides = array<i32>} : memref<2x16x16x324xf32, #tpu.memory_space<vmem>>, vector<1x16x16x36xf32>,
    %c1_130 = arith.constant 1 : index
    %c0_131 = arith.constant 0 : index
    %c0_132 = arith.constant 0 : index
    %c0_133 = arith.constant 0 : index
    %97 = vector.load %arg8[%c1_130, %c0_131, %c0_132, %c0_133] : memref<2x18x18x36xf32, #tpu.memory_space<vmem>>, vector<1x16x16x36xf32>
    %98 = vector.shape_cast %97 : vector<1x16x16x36xf32> to vector<16x16x36xf32>
    %c1_134 = arith.constant 1 : index
    %c0_135 = arith.constant 0 : index
    %c0_136 = arith.constant 0 : index
    %c0_137 = arith.constant 0 : index
    %99 = vector.load %arg9[%c1_134, %c0_135, %c0_136, %c0_137] : memref<2x16x16x324xf32, #tpu.memory_space<vmem>>, vector<1x16x16x36xf32>
    %100 = vector.shape_cast %99 : vector<1x16x16x36xf32> to vector<16x16x36xf32>
    %101 = vector.shape_cast %98 : vector<16x16x36xf32> to vector<1x16x16x36xf32>
    tpu.vector_store %arg9[%c1_134, %c0_135, %c0_136, %c0_137], %101 {strides = array<i32>} : memref<2x16x16x324xf32, #tpu.memory_space<vmem>>, vector<1x16x16x36xf32>,
    %c1_138 = arith.constant 1 : index
    %c0_139 = arith.constant 0 : index
    %c1_140 = arith.constant 1 : index
    %c0_141 = arith.constant 0 : index
    %102 = vector.load %arg8[%c1_138, %c0_139, %c1_140, %c0_141] : memref<2x18x18x36xf32, #tpu.memory_space<vmem>>, vector<1x16x16x36xf32>
    %103 = vector.shape_cast %102 : vector<1x16x16x36xf32> to vector<16x16x36xf32>
    %c1_142 = arith.constant 1 : index
    %c0_143 = arith.constant 0 : index
    %c0_144 = arith.constant 0 : index
    %c36_145 = arith.constant 36 : index
    %104 = vector.load %arg9[%c1_142, %c0_143, %c0_144, %c36_145] : memref<2x16x16x324xf32, #tpu.memory_space<vmem>>, vector<1x16x16x36xf32>
    %105 = vector.shape_cast %104 : vector<1x16x16x36xf32> to vector<16x16x36xf32>
    %106 = vector.shape_cast %103 : vector<16x16x36xf32> to vector<1x16x16x36xf32>
    tpu.vector_store %arg9[%c1_142, %c0_143, %c0_144, %c36_145], %106 {strides = array<i32>} : memref<2x16x16x324xf32, #tpu.memory_space<vmem>>, vector<1x16x16x36xf32>,
    %c1_146 = arith.constant 1 : index
    %c0_147 = arith.constant 0 : index
    %c2_148 = arith.constant 2 : index
    %c0_149 = arith.constant 0 : index
    %107 = vector.load %arg8[%c1_146, %c0_147, %c2_148, %c0_149] : memref<2x18x18x36xf32, #tpu.memory_space<vmem>>, vector<1x16x16x36xf32>
    %108 = vector.shape_cast %107 : vector<1x16x16x36xf32> to vector<16x16x36xf32>
    %c1_150 = arith.constant 1 : index
    %c0_151 = arith.constant 0 : index
    %c0_152 = arith.constant 0 : index
    %c72_153 = arith.constant 72 : index
    %109 = vector.load %arg9[%c1_150, %c0_151, %c0_152, %c72_153] : memref<2x16x16x324xf32, #tpu.memory_space<vmem>>, vector<1x16x16x36xf32>
    %110 = vector.shape_cast %109 : vector<1x16x16x36xf32> to vector<16x16x36xf32>
    %111 = vector.shape_cast %108 : vector<16x16x36xf32> to vector<1x16x16x36xf32>
    tpu.vector_store %arg9[%c1_150, %c0_151, %c0_152, %c72_153], %111 {strides = array<i32>} : memref<2x16x16x324xf32, #tpu.memory_space<vmem>>, vector<1x16x16x36xf32>,
    %c1_154 = arith.constant 1 : index
    %c1_155 = arith.constant 1 : index
    %c0_156 = arith.constant 0 : index
    %c0_157 = arith.constant 0 : index
    %112 = vector.load %arg8[%c1_154, %c1_155, %c0_156, %c0_157] : memref<2x18x18x36xf32, #tpu.memory_space<vmem>>, vector<1x16x16x36xf32>
    %113 = vector.shape_cast %112 : vector<1x16x16x36xf32> to vector<16x16x36xf32>
    %c1_158 = arith.constant 1 : index
    %c0_159 = arith.constant 0 : index
    %c0_160 = arith.constant 0 : index
    %c108_161 = arith.constant 108 : index
    %114 = vector.load %arg9[%c1_158, %c0_159, %c0_160, %c108_161] : memref<2x16x16x324xf32, #tpu.memory_space<vmem>>, vector<1x16x16x36xf32>
    %115 = vector.shape_cast %114 : vector<1x16x16x36xf32> to vector<16x16x36xf32>
    %116 = vector.shape_cast %113 : vector<16x16x36xf32> to vector<1x16x16x36xf32>
    tpu.vector_store %arg9[%c1_158, %c0_159, %c0_160, %c108_161], %116 {strides = array<i32>} : memref<2x16x16x324xf32, #tpu.memory_space<vmem>>, vector<1x16x16x36xf32>,
    %c1_162 = arith.constant 1 : index
    %c1_163 = arith.constant 1 : index
    %c1_164 = arith.constant 1 : index
    %c0_165 = arith.constant 0 : index
    %117 = vector.load %arg8[%c1_162, %c1_163, %c1_164, %c0_165] : memref<2x18x18x36xf32, #tpu.memory_space<vmem>>, vector<1x16x16x36xf32>
    %118 = vector.shape_cast %117 : vector<1x16x16x36xf32> to vector<16x16x36xf32>
    %c1_166 = arith.constant 1 : index
    %c0_167 = arith.constant 0 : index
    %c0_168 = arith.constant 0 : index
    %c144_169 = arith.constant 144 : index
    %119 = vector.load %arg9[%c1_166, %c0_167, %c0_168, %c144_169] : memref<2x16x16x324xf32, #tpu.memory_space<vmem>>, vector<1x16x16x36xf32>
    %120 = vector.shape_cast %119 : vector<1x16x16x36xf32> to vector<16x16x36xf32>
    %121 = vector.shape_cast %118 : vector<16x16x36xf32> to vector<1x16x16x36xf32>
    tpu.vector_store %arg9[%c1_166, %c0_167, %c0_168, %c144_169], %121 {strides = array<i32>} : memref<2x16x16x324xf32, #tpu.memory_space<vmem>>, vector<1x16x16x36xf32>,
    %c1_170 = arith.constant 1 : index
    %c1_171 = arith.constant 1 : index
    %c2_172 = arith.constant 2 : index
    %c0_173 = arith.constant 0 : index
    %122 = vector.load %arg8[%c1_170, %c1_171, %c2_172, %c0_173] : memref<2x18x18x36xf32, #tpu.memory_space<vmem>>, vector<1x16x16x36xf32>
    %123 = vector.shape_cast %122 : vector<1x16x16x36xf32> to vector<16x16x36xf32>
    %c1_174 = arith.constant 1 : index
    %c0_175 = arith.constant 0 : index
    %c0_176 = arith.constant 0 : index
    %c180_177 = arith.constant 180 : index
    %124 = vector.load %arg9[%c1_174, %c0_175, %c0_176, %c180_177] : memref<2x16x16x324xf32, #tpu.memory_space<vmem>>, vector<1x16x16x36xf32>
    %125 = vector.shape_cast %124 : vector<1x16x16x36xf32> to vector<16x16x36xf32>
    %126 = vector.shape_cast %123 : vector<16x16x36xf32> to vector<1x16x16x36xf32>
    tpu.vector_store %arg9[%c1_174, %c0_175, %c0_176, %c180_177], %126 {strides = array<i32>} : memref<2x16x16x324xf32, #tpu.memory_space<vmem>>, vector<1x16x16x36xf32>,
    %c1_178 = arith.constant 1 : index
    %c2_179 = arith.constant 2 : index
    %c0_180 = arith.constant 0 : index
    %c0_181 = arith.constant 0 : index
    %127 = vector.load %arg8[%c1_178, %c2_179, %c0_180, %c0_181] : memref<2x18x18x36xf32, #tpu.memory_space<vmem>>, vector<1x16x16x36xf32>
    %128 = vector.shape_cast %127 : vector<1x16x16x36xf32> to vector<16x16x36xf32>
    %c1_182 = arith.constant 1 : index
    %c0_183 = arith.constant 0 : index
    %c0_184 = arith.constant 0 : index
    %c216_185 = arith.constant 216 : index
    %129 = vector.load %arg9[%c1_182, %c0_183, %c0_184, %c216_185] : memref<2x16x16x324xf32, #tpu.memory_space<vmem>>, vector<1x16x16x36xf32>
    %130 = vector.shape_cast %129 : vector<1x16x16x36xf32> to vector<16x16x36xf32>
    %131 = vector.shape_cast %128 : vector<16x16x36xf32> to vector<1x16x16x36xf32>
    tpu.vector_store %arg9[%c1_182, %c0_183, %c0_184, %c216_185], %131 {strides = array<i32>} : memref<2x16x16x324xf32, #tpu.memory_space<vmem>>, vector<1x16x16x36xf32>,
    %c1_186 = arith.constant 1 : index
    %c2_187 = arith.constant 2 : index
    %c1_188 = arith.constant 1 : index
    %c0_189 = arith.constant 0 : index
    %132 = vector.load %arg8[%c1_186, %c2_187, %c1_188, %c0_189] : memref<2x18x18x36xf32, #tpu.memory_space<vmem>>, vector<1x16x16x36xf32>
    %133 = vector.shape_cast %132 : vector<1x16x16x36xf32> to vector<16x16x36xf32>
    %c1_190 = arith.constant 1 : index
    %c0_191 = arith.constant 0 : index
    %c0_192 = arith.constant 0 : index
    %c252_193 = arith.constant 252 : index
    %134 = vector.load %arg9[%c1_190, %c0_191, %c0_192, %c252_193] : memref<2x16x16x324xf32, #tpu.memory_space<vmem>>, vector<1x16x16x36xf32>
    %135 = vector.shape_cast %134 : vector<1x16x16x36xf32> to vector<16x16x36xf32>
    %136 = vector.shape_cast %133 : vector<16x16x36xf32> to vector<1x16x16x36xf32>
    tpu.vector_store %arg9[%c1_190, %c0_191, %c0_192, %c252_193], %136 {strides = array<i32>} : memref<2x16x16x324xf32, #tpu.memory_space<vmem>>, vector<1x16x16x36xf32>,
    %c1_194 = arith.constant 1 : index
    %c2_195 = arith.constant 2 : index
    %c2_196 = arith.constant 2 : index
    %c0_197 = arith.constant 0 : index
    %137 = vector.load %arg8[%c1_194, %c2_195, %c2_196, %c0_197] : memref<2x18x18x36xf32, #tpu.memory_space<vmem>>, vector<1x16x16x36xf32>
    %138 = vector.shape_cast %137 : vector<1x16x16x36xf32> to vector<16x16x36xf32>
    %c1_198 = arith.constant 1 : index
    %c0_199 = arith.constant 0 : index
    %c0_200 = arith.constant 0 : index
    %c288_201 = arith.constant 288 : index
    %139 = vector.load %arg9[%c1_198, %c0_199, %c0_200, %c288_201] : memref<2x16x16x324xf32, #tpu.memory_space<vmem>>, vector<1x16x16x36xf32>
    %140 = vector.shape_cast %139 : vector<1x16x16x36xf32> to vector<16x16x36xf32>
    %141 = vector.shape_cast %138 : vector<16x16x36xf32> to vector<1x16x16x36xf32>
    tpu.vector_store %arg9[%c1_198, %c0_199, %c0_200, %c288_201], %141 {strides = array<i32>} : memref<2x16x16x324xf32, #tpu.memory_space<vmem>>, vector<1x16x16x36xf32>,
    %c0_202 = arith.constant 0 : index
    %c0_203 = arith.constant 0 : index
    %c0_204 = arith.constant 0 : index
    %c0_205 = arith.constant 0 : index
    %142 = vector.load %arg9[%c0_202, %c0_203, %c0_204, %c0_205] : memref<2x16x16x324xf32, #tpu.memory_space<vmem>>, vector<2x16x16x324xf32>
    %143 = vector.shape_cast %142 : vector<2x16x16x324xf32> to vector<512x324xf32>
    %144 = arith.truncf %143 : vector<512x324xf32> to vector<512x324xbf16>
    %c0_206 = arith.constant 0 : index
    %c0_207 = arith.constant 0 : index
    %145 = vector.load %arg4[%c0_206, %c0_207] : memref<324x128xbf16, #tpu.memory_space<vmem>>, vector<324x128xbf16>
    %cst_208 = arith.constant dense<0.000000e+00> : vector<512x128xf32>
    %146 = tpu.matmul %144, %145, %cst_208 {dimension_numbers = #tpu.dot_dimension_numbers<[1], [0], [0], [1], [0, 0, 1, 1], [], []>} : vector<512x324xbf16>, vector<324x128xbf16>, vector<512x128xf32> -> vector<512x128xf32>
    %c0_209 = arith.constant 0 : index
    %c0_210 = arith.constant 0 : index
    %147 = vector.load %arg5[%c0_209, %c0_210] : memref<1x128xf32, #tpu.memory_space<vmem>>, vector<1x128xf32>
    %148 = vector.broadcast %147 : vector<1x128xf32> to vector<512x128xf32>
    %149 = arith.addf %146, %148 : vector<512x128xf32>
    %150 = vector.extract_strided_slice %149 {offsets = [0, 0], sizes = [512, 32], strides = [1, 1]} : vector<512x128xf32> to vector<512x32xf32>
    %151 = arith.negf %150 : vector<512x32xf32>
    %152 = math.exp %151 : vector<512x32xf32>
    %cst_211 = arith.constant 1.000000e+00 : f32
    %153 = vector.broadcast %cst_211 : f32 to vector<512x32xf32>
    %154 = arith.addf %153, %152 : vector<512x32xf32>
    %155 = arith.divf %153, %154 : vector<512x32xf32>
    %156 = vector.extract_strided_slice %149 {offsets = [0, 32], sizes = [512, 32], strides = [1, 1]} : vector<512x128xf32> to vector<512x32xf32>
    %157 = arith.negf %156 : vector<512x32xf32>
    %158 = math.exp %157 : vector<512x32xf32>
    %cst_212 = arith.constant 1.000000e+00 : f32
    %159 = vector.broadcast %cst_212 : f32 to vector<512x32xf32>
    %160 = arith.addf %159, %158 : vector<512x32xf32>
    %161 = arith.divf %159, %160 : vector<512x32xf32>
    %162 = vector.extract_strided_slice %149 {offsets = [0, 64], sizes = [512, 32], strides = [1, 1]} : vector<512x128xf32> to vector<512x32xf32>
    %163 = math.tanh %162 : vector<512x32xf32>
    %164 = vector.extract_strided_slice %149 {offsets = [0, 96], sizes = [512, 32], strides = [1, 1]} : vector<512x128xf32> to vector<512x32xf32>
    %165 = arith.negf %164 : vector<512x32xf32>
    %166 = math.exp %165 : vector<512x32xf32>
    %cst_213 = arith.constant 1.000000e+00 : f32
    %167 = vector.broadcast %cst_213 : f32 to vector<512x32xf32>
    %168 = arith.addf %167, %166 : vector<512x32xf32>
    %169 = arith.divf %167, %168 : vector<512x32xf32>
    %c0_214 = arith.constant 0 : index
    %c0_215 = arith.constant 0 : index
    %c0_216 = arith.constant 0 : index
    %170 = vector.load %arg3[%c0_214, %c0_215, %c0_216] : memref<2x256x32xf32, #tpu.memory_space<vmem>>, vector<2x256x32xf32>
    %171 = vector.shape_cast %170 : vector<2x256x32xf32> to vector<512x32xf32>
    %172 = arith.mulf %161, %171 : vector<512x32xf32>
    %173 = arith.mulf %155, %163 : vector<512x32xf32>
    %174 = arith.addf %172, %173 : vector<512x32xf32>
    %175 = math.tanh %174 : vector<512x32xf32>
    %176 = arith.mulf %169, %175 : vector<512x32xf32>
    %177 = vector.shape_cast %174 : vector<512x32xf32> to vector<2x256x32xf32>
    %c0_217 = arith.constant 0 : index
    %c0_218 = arith.constant 0 : index
    %c0_219 = arith.constant 0 : index
    %178 = vector.load %arg7[%c0_217, %c0_218, %c0_219] : memref<2x256x32xf32, #tpu.memory_space<vmem>>, vector<2x256x32xf32>
    tpu.vector_store %arg7[%c0_217, %c0_218, %c0_219], %177 {strides = array<i32>} : memref<2x256x32xf32, #tpu.memory_space<vmem>>, vector<2x256x32xf32>,
    %179 = vector.shape_cast %176 : vector<512x32xf32> to vector<2x256x32xf32>
    %c0_220 = arith.constant 0 : index
    %c0_221 = arith.constant 0 : index
    %c0_222 = arith.constant 0 : index
    %180 = vector.load %arg6[%c0_220, %c0_221, %c0_222] : memref<2x256x32xf32, #tpu.memory_space<vmem>>, vector<2x256x32xf32>
    tpu.vector_store %arg6[%c0_220, %c0_221, %c0_222], %179 {strides = array<i32>} : memref<2x256x32xf32, #tpu.memory_space<vmem>>, vector<2x256x32xf32>,
    return
  }
  func.func @transform_0(%arg0: i32) -> (i32, i32, i32, i32) {
    %c0_i32 = arith.constant 0 : i32
    %c0_i32_0 = arith.constant 0 : i32
    %c0_i32_1 = arith.constant 0 : i32
    %c0_i32_2 = arith.constant 0 : i32
    return %arg0, %c0_i32, %c0_i32_0, %c0_i32_1 : i32, i32, i32, i32
  }
  func.func @transform_1(%arg0: i32) -> (i32, i32, i32, i32) {
    %c0_i32 = arith.constant 0 : i32
    %c0_i32_0 = arith.constant 0 : i32
    %c0_i32_1 = arith.constant 0 : i32
    %c0_i32_2 = arith.constant 0 : i32
    return %arg0, %c0_i32, %c0_i32_0, %c0_i32_1 : i32, i32, i32, i32
  }
  func.func @transform_2(%arg0: i32) -> (i32, i32, i32) {
    %c0_i32 = arith.constant 0 : i32
    %c0_i32_0 = arith.constant 0 : i32
    %c0_i32_1 = arith.constant 0 : i32
    return %arg0, %c0_i32, %c0_i32_0 : i32, i32, i32
  }
  func.func @transform_3(%arg0: i32) -> (i32, i32) {
    %c0_i32 = arith.constant 0 : i32
    %c0_i32_0 = arith.constant 0 : i32
    %c0_i32_1 = arith.constant 0 : i32
    return %c0_i32, %c0_i32_0 : i32, i32
  }
  func.func @transform_4(%arg0: i32) -> (i32, i32) {
    %c0_i32 = arith.constant 0 : i32
    %c0_i32_0 = arith.constant 0 : i32
    %c0_i32_1 = arith.constant 0 : i32
    return %c0_i32, %c0_i32_0 : i32, i32
  }
  func.func @transform_5(%arg0: i32) -> (i32, i32, i32) {
    %c0_i32 = arith.constant 0 : i32
    %c0_i32_0 = arith.constant 0 : i32
    %c0_i32_1 = arith.constant 0 : i32
    return %arg0, %c0_i32, %c0_i32_0 : i32, i32, i32
  }
  func.func @transform_6(%arg0: i32) -> (i32, i32, i32) {
    %c0_i32 = arith.constant 0 : i32
    %c0_i32_0 = arith.constant 0 : i32
    %c0_i32_1 = arith.constant 0 : i32
    return %arg0, %c0_i32, %c0_i32_0 : i32, i32, i32
  }
}

</mosaic_0001>

<llo_original>
// kernel: vmrnn_cell.1
$region0: #{vmrnn_cell.1}
  #allocation0 [shape = 'u32[]', space=smem, size = 0x4, offset = 0x4, fixed_abs, tag = 'smem constant byte address 0x4 - core index']
  #allocation1 [shape = 'u32[144,128]{1,0:T(1,128)}', space=vmem, size = 0x12000, scoped, tag = 'internal scratch']
  #allocation2 [shape = 'f32[2,18,18,36]{3,2,1,0:T(8,128)}', space=vmem, size = 0x6c000, scoped, tag = 'scratch operand']
  #allocation3 [shape = 'f32[2,16,16,324]{3,2,1,0:T(8,128)}', space=vmem, size = 0xc0000, scoped, tag = 'scratch operand']
  %s0 = inlined_call_operand.vmem [shape: f32[2,16,16,4], index: 0, kind: input, shape index: {}]
  %s1 = inlined_call_operand.vmem [shape: f32[2,16,16,32], index: 1, kind: input, shape index: {}]
  %s2 = inlined_call_operand.hbm [shape: f32[2,256,32], index: 2, kind: input, shape index: {}]
  %s3 = inlined_call_operand.hbm [shape: bf16[324,128], index: 3, kind: input, shape index: {}]
  %s4 = inlined_call_operand.vmem [shape: f32[1,128], index: 4, kind: input, shape index: {}]
  %s5 = inlined_call_operand.hbm [shape: f32[2,256,32], index: 5, kind: output, shape index: {0}]
  %s6 = inlined_call_operand.hbm [shape: f32[2,256,32], index: 6, kind: output, shape index: {1}]
  %7 = xla_tuple %s5, %s6
  %s8 = sld [smem:[#allocation0]]
  $region46: #{vmrnn_cell.1} parent=0
    _
  %s10 = ssub.s32 1, %s8
  %s11 = scalar_select 0, %s10, %s8
  $region1: #{vmrnn_cell.1} parent=0
    #allocation4 [shape = 'u8[262144]{0}', space=vmem, size = 0x40000, scoped, tag = 'input window, operand 2, single buffered']
    #allocation5 [shape = 's32[1]{0}', space=sflag, size = 0x4, scoped, tag = 'scoped memory for vmrnn_cell.1']
    #allocation6 [shape = 's32[1]{0}', space=sflag, size = 0x4, scoped, tag = 'scoped memory for vmrnn_cell.1']
    #allocation7 [shape = 'u8[83968]{0}', space=vmem, size = 0x14800, scoped, tag = 'input window, operand 3, single buffered']
    #allocation8 [shape = 's32[1]{0}', space=sflag, size = 0x4, scoped, tag = 'scoped memory for vmrnn_cell.1']
    #allocation9 [shape = 'u8[262144]{0}', space=vmem, size = 0x40000, scoped, tag = 'output window, operand 0, single buffered']
    #allocation10 [shape = 'u8[262144]{0}', space=vmem, size = 0x40000, scoped, tag = 'output window, operand 1, single buffered']
    #allocation11 [shape = 's32[1]{0}', space=sflag, size = 0x4, scoped, tag = 'scoped memory for vmrnn_cell.1']
    %12 = vsyncpa [#allocation5], 0
    %13 = vsyncpa [#allocation8], 0
    %14 = vsyncpa [#allocation6], 0
    %15 = vsyncpa [#allocation11], 0
    // Predicated region
    $region2: #{vmrnn_cell.1} parent=1 // pred_check
      _
    $region3: #{vmrnn_cell.1} parent=1 // pred_check_branch
      %17 = sbr.rel (0) target = $region5
    $region4: #{vmrnn_cell.1} parent=1 // pred_region
      _
    $region5: #{vmrnn_cell.1} parent=1 // pred_fallthru
      _
    // Predicated region
    $region6: #{vmrnn_cell.1} parent=1 // pred_check
      _
    $region7: #{vmrnn_cell.1} parent=1 // pred_check_branch
      %19 = sbr.rel (0) target = $region9
    $region8: #{vmrnn_cell.1} parent=1 // pred_region
      _
    $region9: #{vmrnn_cell.1} parent=1 // pred_fallthru
      _
    // Predicated region
    $region10: #{vmrnn_cell.1} parent=1 // pred_check
      _
    $region11: #{vmrnn_cell.1} parent=1 // pred_check_branch
      %21 = sbr.rel (0) target = $region13
    $region12: #{vmrnn_cell.1} parent=1 // pred_region
      %s23 = ssub.s32 8192, 8192
      %24 = vsyncadd [#allocation5], %s23
      %s25 = sshll.u32 [#allocation4], 4
      %s26 = int_to_ptr.vmem [resolvable:$true] %s25
      %31 = dma.hbm_to_vmem [thread:$0]  %s2, 8192, %s26, [#allocation5], 128, 128, 8
    $region13: #{vmrnn_cell.1} parent=1 // pred_fallthru
      _
    // Predicated region
    $region14: #{vmrnn_cell.1} parent=1 // pred_check
      _
    $region15: #{vmrnn_cell.1} parent=1 // pred_check_branch
      %33 = sbr.rel (0) target = $region17
    $region16: #{vmrnn_cell.1} parent=1 // pred_region
      %s35 = ssub.s32 2624, 2624
      %36 = vsyncadd [#allocation8], %s35
      %s37 = sshll.u32 [#allocation7], 4
      %s38 = int_to_ptr.vmem [resolvable:$true] %s37
      %43 = dma.hbm_to_vmem [thread:$0]  %s3, 2624, %s38, [#allocation8], 64, 64, 4
    $region17: #{vmrnn_cell.1} parent=1 // pred_fallthru
      _
    // Predicated region
    $region18: #{vmrnn_cell.1} parent=1 // pred_check
      _
    $region19: #{vmrnn_cell.1} parent=1 // pred_check_branch
      %45 = sbr.rel (0) target = $region21
    $region20: #{vmrnn_cell.1} parent=1 // pred_region
      _
    $region21: #{vmrnn_cell.1} parent=1 // pred_fallthru
      _
    // Predicated region
    $region22: #{vmrnn_cell.1} parent=1 // pred_check
      _
    $region23: #{vmrnn_cell.1} parent=1 // pred_check_branch
      %47 = sbr.rel (0) target = $region25
    $region24: #{vmrnn_cell.1} parent=1 // pred_region
      %48 = dma.done [#allocation5], 8192
    $region25: #{vmrnn_cell.1} parent=1 // pred_fallthru
      _
    // Predicated region
    $region26: #{vmrnn_cell.1} parent=1 // pred_check
      _
    $region27: #{vmrnn_cell.1} parent=1 // pred_check_branch
      %50 = sbr.rel (0) target = $region29
    $region28: #{vmrnn_cell.1} parent=1 // pred_region
      %51 = dma.done [#allocation8], 2624
    $region29: #{vmrnn_cell.1} parent=1 // pred_fallthru
      _
    %vm53 = vcmask 293888
    %54 = vst.msk [vmem:[#allocation2] sm:$0xff] %vm53, 0.0
    %55 = vst.msk [vmem:[#allocation2 + $0x8] sm:$0xff] %vm53, 0.0
    %vm56 = vcmask 287744
    %57 = vst.msk [vmem:[#allocation2 + $0x10] sm:$0x3] %vm56, 0.0
    %s58 = scalar_lea.vmem [#allocation2], 408
    %59 = vst.msk [vmem:[%s58] sm:$0xff] %vm53, 0.0
    %60 = vst.msk [vmem:[%s58 + $0x8] sm:$0xff] %vm53, 0.0
    %61 = vst.msk [vmem:[%s58 + $0x10] sm:$0x3] %vm56, 0.0
    %s62 = scalar_lea.vmem [#allocation2], 24
    %vm63 = vcmask 286720
    %64 = vst.msk [vmem:[%s62] sm:$0x1] %vm63, 0.0
    %65 = vst.msk [vmem:[%s62 + $0x18] sm:$0x1] %vm63, 0.0
    %66 = vst.msk [vmem:[%s62 + $0x30] sm:$0x1] %vm63, 0.0
    %67 = vst.msk [vmem:[%s62 + $0x48] sm:$0x1] %vm63, 0.0
    %68 = vst.msk [vmem:[%s62 + $0x60] sm:$0x1] %vm63, 0.0
    %69 = vst.msk [vmem:[%s62 + $0x78] sm:$0x1] %vm63, 0.0
    %70 = vst.msk [vmem:[%s62 + $0x90] sm:$0x1] %vm63, 0.0
    %71 = vst.msk [vmem:[%s62 + $0xa8] sm:$0x1] %vm63, 0.0
    %72 = vst.msk [vmem:[%s62 + $0xc0] sm:$0x1] %vm63, 0.0
    %73 = vst.msk [vmem:[%s62 + $0xd8] sm:$0x1] %vm63, 0.0
    %74 = vst.msk [vmem:[%s62 + $0xf0] sm:$0x1] %vm63, 0.0
    %75 = vst.msk [vmem:[%s62 + $0x108] sm:$0x1] %vm63, 0.0
    %76 = vst.msk [vmem:[%s62 + $0x120] sm:$0x1] %vm63, 0.0
    %77 = vst.msk [vmem:[%s62 + $0x138] sm:$0x1] %vm63, 0.0
    %78 = vst.msk [vmem:[%s62 + $0x150] sm:$0x1] %vm63, 0.0
    %79 = vst.msk [vmem:[%s62 + $0x168] sm:$0x1] %vm63, 0.0
    %80 = vst.msk [vmem:[%s62 + $0x11] sm:$0x1] %vm63, 0.0
    %81 = vst.msk [vmem:[%s62 + $0x29] sm:$0x1] %vm63, 0.0
    %82 = vst.msk [vmem:[%s62 + $0x41] sm:$0x1] %vm63, 0.0
    %83 = vst.msk [vmem:[%s62 + $0x59] sm:$0x1] %vm63, 0.0
    %84 = vst.msk [vmem:[%s62 + $0x71] sm:$0x1] %vm63, 0.0
    %85 = vst.msk [vmem:[%s62 + $0x89] sm:$0x1] %vm63, 0.0
    %86 = vst.msk [vmem:[%s62 + $0xa1] sm:$0x1] %vm63, 0.0
    %87 = vst.msk [vmem:[%s62 + $0xb9] sm:$0x1] %vm63, 0.0
    %88 = vst.msk [vmem:[%s62 + $0xd1] sm:$0x1] %vm63, 0.0
    %89 = vst.msk [vmem:[%s62 + $0xe9] sm:$0x1] %vm63, 0.0
    %90 = vst.msk [vmem:[%s62 + $0x101] sm:$0x1] %vm63, 0.0
    %91 = vst.msk [vmem:[%s62 + $0x119] sm:$0x1] %vm63, 0.0
    %92 = vst.msk [vmem:[%s62 + $0x131] sm:$0x1] %vm63, 0.0
    %93 = vst.msk [vmem:[%s62 + $0x149] sm:$0x1] %vm63, 0.0
    %94 = vst.msk [vmem:[%s62 + $0x161] sm:$0x1] %vm63, 0.0
    %95 = vst.msk [vmem:[%s62 + $0x179] sm:$0x1] %vm63, 0.0
    %v96 = vld [vmem:[%s0] sm:$0xff]
    %v97 = vld [vmem:[%s0 + $0x8] sm:$0xff]
    %v98 = vld [vmem:[%s0 + $0x10] sm:$0xff]
    %v99 = vld [vmem:[%s0 + $0x18] sm:$0xff]
    %v100 = vld [vmem:[%s0 + $0x20] sm:$0xff]
    %v101 = vld [vmem:[%s0 + $0x28] sm:$0xff]
    %v102 = vld [vmem:[%s0 + $0x30] sm:$0xff]
    %v103 = vld [vmem:[%s0 + $0x38] sm:$0xff]
    %v104 = vld [vmem:[%s0 + $0x40] sm:$0xff]
    %v105 = vld [vmem:[%s0 + $0x48] sm:$0xff]
    %v106 = vld [vmem:[%s0 + $0x50] sm:$0xff]
    %v107 = vld [vmem:[%s0 + $0x58] sm:$0xff]
    %v108 = vld [vmem:[%s0 + $0x60] sm:$0xff]
    %v109 = vld [vmem:[%s0 + $0x68] sm:$0xff]
    %v110 = vld [vmem:[%s0 + $0x70] sm:$0xff]
    %v111 = vld [vmem:[%s0 + $0x78] sm:$0xff]
    %v112 = vld [vmem:[%s0 + $0x80] sm:$0xff]
    %v113 = vld [vmem:[%s0 + $0x88] sm:$0xff]
    %v114 = vld [vmem:[%s0 + $0x90] sm:$0xff]
    %v115 = vld [vmem:[%s0 + $0x98] sm:$0xff]
    %v116 = vld [vmem:[%s0 + $0xa0] sm:$0xff]
    %v117 = vld [vmem:[%s0 + $0xa8] sm:$0xff]
    %v118 = vld [vmem:[%s0 + $0xb0] sm:$0xff]
    %v119 = vld [vmem:[%s0 + $0xb8] sm:$0xff]
    %v120 = vld [vmem:[%s0 + $0xc0] sm:$0xff]
    %v121 = vld [vmem:[%s0 + $0xc8] sm:$0xff]
    %v122 = vld [vmem:[%s0 + $0xd0] sm:$0xff]
    %v123 = vld [vmem:[%s0 + $0xd8] sm:$0xff]
    %v124 = vld [vmem:[%s0 + $0xe0] sm:$0xff]
    %v125 = vld [vmem:[%s0 + $0xe8] sm:$0xff]
    %v126 = vld [vmem:[%s0 + $0xf0] sm:$0xff]
    %v127 = vld [vmem:[%s0 + $0xf8] sm:$0xff]
    %vm128 = vcmask 31744
    %129 = vst.msk [vmem:[%s62 + $0x1] sm:$0xff] %vm128, %v96
    %130 = vst.msk [vmem:[%s62 + $0x9] sm:$0xff] %vm128, %v97
    %131 = vst.msk [vmem:[%s62 + $0x19] sm:$0xff] %vm128, %v98
    %132 = vst.msk [vmem:[%s62 + $0x21] sm:$0xff] %vm128, %v99
    %133 = vst.msk [vmem:[%s62 + $0x31] sm:$0xff] %vm128, %v100
    %134 = vst.msk [vmem:[%s62 + $0x39] sm:$0xff] %vm128, %v101
    %135 = vst.msk [vmem:[%s62 + $0x49] sm:$0xff] %vm128, %v102
    %136 = vst.msk [vmem:[%s62 + $0x51] sm:$0xff] %vm128, %v103
    %137 = vst.msk [vmem:[%s62 + $0x61] sm:$0xff] %vm128, %v104
    %138 = vst.msk [vmem:[%s62 + $0x69] sm:$0xff] %vm128, %v105
    %139 = vst.msk [vmem:[%s62 + $0x79] sm:$0xff] %vm128, %v106
    %140 = vst.msk [vmem:[%s62 + $0x81] sm:$0xff] %vm128, %v107
    %141 = vst.msk [vmem:[%s62 + $0x91] sm:$0xff] %vm128, %v108
    %142 = vst.msk [vmem:[%s62 + $0x99] sm:$0xff] %vm128, %v109
    %143 = vst.msk [vmem:[%s62 + $0xa9] sm:$0xff] %vm128, %v110
    %144 = vst.msk [vmem:[%s62 + $0xb1] sm:$0xff] %vm128, %v111
    %145 = vst.msk [vmem:[%s62 + $0xc1] sm:$0xff] %vm128, %v112
    %146 = vst.msk [vmem:[%s62 + $0xc9] sm:$0xff] %vm128, %v113
    %147 = vst.msk [vmem:[%s62 + $0xd9] sm:$0xff] %vm128, %v114
    %148 = vst.msk [vmem:[%s62 + $0xe1] sm:$0xff] %vm128, %v115
    %149 = vst.msk [vmem:[%s62 + $0xf1] sm:$0xff] %vm128, %v116
    %150 = vst.msk [vmem:[%s62 + $0xf9] sm:$0xff] %vm128, %v117
    %151 = vst.msk [vmem:[%s62 + $0x109] sm:$0xff] %vm128, %v118
    %152 = vst.msk [vmem:[%s62 + $0x111] sm:$0xff] %vm128, %v119
    %153 = vst.msk [vmem:[%s62 + $0x121] sm:$0xff] %vm128, %v120
    %154 = vst.msk [vmem:[%s62 + $0x129] sm:$0xff] %vm128, %v121
    %155 = vst.msk [vmem:[%s62 + $0x139] sm:$0xff] %vm128, %v122
    %156 = vst.msk [vmem:[%s62 + $0x141] sm:$0xff] %vm128, %v123
    %157 = vst.msk [vmem:[%s62 + $0x151] sm:$0xff] %vm128, %v124
    %158 = vst.msk [vmem:[%s62 + $0x159] sm:$0xff] %vm128, %v125
    %159 = vst.msk [vmem:[%s62 + $0x169] sm:$0xff] %vm128, %v126
    %160 = vst.msk [vmem:[%s62 + $0x171] sm:$0xff] %vm128, %v127
    %v161 = vld [vmem:[%s1] sm:$0xff]
    %v162 = vld [vmem:[%s1 + $0x8] sm:$0xff]
    %v163 = vld [vmem:[%s1 + $0x10] sm:$0xff]
    %v164 = vld [vmem:[%s1 + $0x18] sm:$0xff]
    %v165 = vld [vmem:[%s1 + $0x20] sm:$0xff]
    %v166 = vld [vmem:[%s1 + $0x28] sm:$0xff]
    %v167 = vld [vmem:[%s1 + $0x30] sm:$0xff]
    %v168 = vld [vmem:[%s1 + $0x38] sm:$0xff]
    %v169 = vld [vmem:[%s1 + $0x40] sm:$0xff]
    %v170 = vld [vmem:[%s1 + $0x48] sm:$0xff]
    %v171 = vld [vmem:[%s1 + $0x50] sm:$0xff]
    %v172 = vld [vmem:[%s1 + $0x58] sm:$0xff]
    %v173 = vld [vmem:[%s1 + $0x60] sm:$0xff]
    %v174 = vld [vmem:[%s1 + $0x68] sm:$0xff]
    %v175 = vld [vmem:[%s1 + $0x70] sm:$0xff]
    %v176 = vld [vmem:[%s1 + $0x78] sm:$0xff]
    %v177 = vld [vmem:[%s1 + $0x80] sm:$0xff]
    %v178 = vld [vmem:[%s1 + $0x88] sm:$0xff]
    %v179 = vld [vmem:[%s1 + $0x90] sm:$0xff]
    %v180 = vld [vmem:[%s1 + $0x98] sm:$0xff]
    %v181 = vld [vmem:[%s1 + $0xa0] sm:$0xff]
    %v182 = vld [vmem:[%s1 + $0xa8] sm:$0xff]
    %v183 = vld [vmem:[%s1 + $0xb0] sm:$0xff]
    %v184 = vld [vmem:[%s1 + $0xb8] sm:$0xff]
    %v185 = vld [vmem:[%s1 + $0xc0] sm:$0xff]
    %v186 = vld [vmem:[%s1 + $0xc8] sm:$0xff]
    %v187 = vld [vmem:[%s1 + $0xd0] sm:$0xff]
    %v188 = vld [vmem:[%s1 + $0xd8] sm:$0xff]
    %v189 = vld [vmem:[%s1 + $0xe0] sm:$0xff]
    %v190 = vld [vmem:[%s1 + $0xe8] sm:$0xff]
    %v191 = vld [vmem:[%s1 + $0xf0] sm:$0xff]
    %v192 = vld [vmem:[%s1 + $0xf8] sm:$0xff]
    %225 = vrot.lane.b32.xlu0 %v161, 4
    %v226 = vpop.permute.xlu0 %225
    %227 = vrot.lane.b32.xlu0 %v162, 4
    %v228 = vpop.permute.xlu0 %227
    %229 = vrot.lane.b32.xlu0 %v163, 4
    %v230 = vpop.permute.xlu0 %229
    %231 = vrot.lane.b32.xlu0 %v164, 4
    %v232 = vpop.permute.xlu0 %231
    %233 = vrot.lane.b32.xlu0 %v165, 4
    %v234 = vpop.permute.xlu0 %233
    %235 = vrot.lane.b32.xlu0 %v166, 4
    %v236 = vpop.permute.xlu0 %235
    %237 = vrot.lane.b32.xlu0 %v167, 4
    %v238 = vpop.permute.xlu0 %237
    %239 = vrot.lane.b32.xlu0 %v168, 4
    %v240 = vpop.permute.xlu0 %239
    %241 = vrot.lane.b32.xlu0 %v169, 4
    %v242 = vpop.permute.xlu0 %241
    %243 = vrot.lane.b32.xlu0 %v170, 4
    %v244 = vpop.permute.xlu0 %243
    %245 = vrot.lane.b32.xlu0 %v171, 4
    %v246 = vpop.permute.xlu0 %245
    %247 = vrot.lane.b32.xlu0 %v172, 4
    %v248 = vpop.permute.xlu0 %247
    %249 = vrot.lane.b32.xlu0 %v173, 4
    %v250 = vpop.permute.xlu0 %249
    %251 = vrot.lane.b32.xlu0 %v174, 4
    %v252 = vpop.permute.xlu0 %251
    %253 = vrot.lane.b32.xlu0 %v175, 4
    %v254 = vpop.permute.xlu0 %253
    %255 = vrot.lane.b32.xlu0 %v176, 4
    %v256 = vpop.permute.xlu0 %255
    %257 = vrot.lane.b32.xlu0 %v177, 4
    %v258 = vpop.permute.xlu0 %257
    %259 = vrot.lane.b32.xlu0 %v178, 4
    %v260 = vpop.permute.xlu0 %259
    %261 = vrot.lane.b32.xlu0 %v179, 4
    %v262 = vpop.permute.xlu0 %261
    %263 = vrot.lane.b32.xlu0 %v180, 4
    %v264 = vpop.permute.xlu0 %263
    %265 = vrot.lane.b32.xlu0 %v181, 4
    %v266 = vpop.permute.xlu0 %265
    %267 = vrot.lane.b32.xlu0 %v182, 4
    %v268 = vpop.permute.xlu0 %267
    %269 = vrot.lane.b32.xlu0 %v183, 4
    %v270 = vpop.permute.xlu0 %269
    %271 = vrot.lane.b32.xlu0 %v184, 4
    %v272 = vpop.permute.xlu0 %271
    %273 = vrot.lane.b32.xlu0 %v185, 4
    %v274 = vpop.permute.xlu0 %273
    %275 = vrot.lane.b32.xlu0 %v186, 4
    %v276 = vpop.permute.xlu0 %275
    %277 = vrot.lane.b32.xlu0 %v187, 4
    %v278 = vpop.permute.xlu0 %277
    %279 = vrot.lane.b32.xlu0 %v188, 4
    %v280 = vpop.permute.xlu0 %279
    %281 = vrot.lane.b32.xlu0 %v189, 4
    %v282 = vpop.permute.xlu0 %281
    %283 = vrot.lane.b32.xlu0 %v190, 4
    %v284 = vpop.permute.xlu0 %283
    %285 = vrot.lane.b32.xlu0 %v191, 4
    %v286 = vpop.permute.xlu0 %285
    %287 = vrot.lane.b32.xlu0 %v192, 4
    %v288 = vpop.permute.xlu0 %287
    %vm321 = vcmask 293920
    %322 = vst.msk [vmem:[%s62 + $0x1] sm:$0xff] %vm321, %v226
    %323 = vst.msk [vmem:[%s62 + $0x9] sm:$0xff] %vm321, %v228
    %324 = vst.msk [vmem:[%s62 + $0x19] sm:$0xff] %vm321, %v230
    %325 = vst.msk [vmem:[%s62 + $0x21] sm:$0xff] %vm321, %v232
    %326 = vst.msk [vmem:[%s62 + $0x31] sm:$0xff] %vm321, %v234
    %327 = vst.msk [vmem:[%s62 + $0x39] sm:$0xff] %vm321, %v236
    %328 = vst.msk [vmem:[%s62 + $0x49] sm:$0xff] %vm321, %v238
    %329 = vst.msk [vmem:[%s62 + $0x51] sm:$0xff] %vm321, %v240
    %330 = vst.msk [vmem:[%s62 + $0x61] sm:$0xff] %vm321, %v242
    %331 = vst.msk [vmem:[%s62 + $0x69] sm:$0xff] %vm321, %v244
    %332 = vst.msk [vmem:[%s62 + $0x79] sm:$0xff] %vm321, %v246
    %333 = vst.msk [vmem:[%s62 + $0x81] sm:$0xff] %vm321, %v248
    %334 = vst.msk [vmem:[%s62 + $0x91] sm:$0xff] %vm321, %v250
    %335 = vst.msk [vmem:[%s62 + $0x99] sm:$0xff] %vm321, %v252
    %336 = vst.msk [vmem:[%s62 + $0xa9] sm:$0xff] %vm321, %v254
    %337 = vst.msk [vmem:[%s62 + $0xb1] sm:$0xff] %vm321, %v256
    %338 = vst.msk [vmem:[%s62 + $0xc1] sm:$0xff] %vm321, %v258
    %339 = vst.msk [vmem:[%s62 + $0xc9] sm:$0xff] %vm321, %v260
    %340 = vst.msk [vmem:[%s62 + $0xd9] sm:$0xff] %vm321, %v262
    %341 = vst.msk [vmem:[%s62 + $0xe1] sm:$0xff] %vm321, %v264
    %342 = vst.msk [vmem:[%s62 + $0xf1] sm:$0xff] %vm321, %v266
    %343 = vst.msk [vmem:[%s62 + $0xf9] sm:$0xff] %vm321, %v268
    %344 = vst.msk [vmem:[%s62 + $0x109] sm:$0xff] %vm321, %v270
    %345 = vst.msk [vmem:[%s62 + $0x111] sm:$0xff] %vm321, %v272
    %346 = vst.msk [vmem:[%s62 + $0x121] sm:$0xff] %vm321, %v274
    %347 = vst.msk [vmem:[%s62 + $0x129] sm:$0xff] %vm321, %v276
    %348 = vst.msk [vmem:[%s62 + $0x139] sm:$0xff] %vm321, %v278
    %349 = vst.msk [vmem:[%s62 + $0x141] sm:$0xff] %vm321, %v280
    %350 = vst.msk [vmem:[%s62 + $0x151] sm:$0xff] %vm321, %v282
    %351 = vst.msk [vmem:[%s62 + $0x159] sm:$0xff] %vm321, %v284
    %352 = vst.msk [vmem:[%s62 + $0x169] sm:$0xff] %vm321, %v286
    %353 = vst.msk [vmem:[%s62 + $0x171] sm:$0xff] %vm321, %v288
    %s354 = scalar_lea.vmem [#allocation2], 432
    %355 = vst.msk [vmem:[%s354] sm:$0xff] %vm53, 0.0
    %356 = vst.msk [vmem:[%s354 + $0x8] sm:$0xff] %vm53, 0.0
    %357 = vst.msk [vmem:[%s354 + $0x10] sm:$0x3] %vm56, 0.0
    %s358 = scalar_lea.vmem [#allocation2], 840
    %359 = vst.msk [vmem:[%s358] sm:$0xff] %vm53, 0.0
    %360 = vst.msk [vmem:[%s358 + $0x8] sm:$0xff] %vm53, 0.0
    %361 = vst.msk [vmem:[%s358 + $0x10] sm:$0x3] %vm56, 0.0
    %s362 = scalar_lea.vmem [#allocation2], 456
    %363 = vst.msk [vmem:[%s362] sm:$0x1] %vm63, 0.0
    %364 = vst.msk [vmem:[%s362 + $0x18] sm:$0x1] %vm63, 0.0
    %365 = vst.msk [vmem:[%s362 + $0x30] sm:$0x1] %vm63, 0.0
    %366 = vst.msk [vmem:[%s362 + $0x48] sm:$0x1] %vm63, 0.0
    %367 = vst.msk [vmem:[%s362 + $0x60] sm:$0x1] %vm63, 0.0
    %368 = vst.msk [vmem:[%s362 + $0x78] sm:$0x1] %vm63, 0.0
    %369 = vst.msk [vmem:[%s362 + $0x90] sm:$0x1] %vm63, 0.0
    %370 = vst.msk [vmem:[%s362 + $0xa8] sm:$0x1] %vm63, 0.0
    %371 = vst.msk [vmem:[%s362 + $0xc0] sm:$0x1] %vm63, 0.0
    %372 = vst.msk [vmem:[%s362 + $0xd8] sm:$0x1] %vm63, 0.0
    %373 = vst.msk [vmem:[%s362 + $0xf0] sm:$0x1] %vm63, 0.0
    %374 = vst.msk [vmem:[%s362 + $0x108] sm:$0x1] %vm63, 0.0
    %375 = vst.msk [vmem:[%s362 + $0x120] sm:$0x1] %vm63, 0.0
    %376 = vst.msk [vmem:[%s362 + $0x138] sm:$0x1] %vm63, 0.0
    %377 = vst.msk [vmem:[%s362 + $0x150] sm:$0x1] %vm63, 0.0
    %378 = vst.msk [vmem:[%s362 + $0x168] sm:$0x1] %vm63, 0.0
    %379 = vst.msk [vmem:[%s362 + $0x11] sm:$0x1] %vm63, 0.0
    %380 = vst.msk [vmem:[%s362 + $0x29] sm:$0x1] %vm63, 0.0
    %381 = vst.msk [vmem:[%s362 + $0x41] sm:$0x1] %vm63, 0.0
    %382 = vst.msk [vmem:[%s362 + $0x59] sm:$0x1] %vm63, 0.0
    %383 = vst.msk [vmem:[%s362 + $0x71] sm:$0x1] %vm63, 0.0
    %384 = vst.msk [vmem:[%s362 + $0x89] sm:$0x1] %vm63, 0.0
    %385 = vst.msk [vmem:[%s362 + $0xa1] sm:$0x1] %vm63, 0.0
    %386 = vst.msk [vmem:[%s362 + $0xb9] sm:$0x1] %vm63, 0.0
    %387 = vst.msk [vmem:[%s362 + $0xd1] sm:$0x1] %vm63, 0.0
    %388 = vst.msk [vmem:[%s362 + $0xe9] sm:$0x1] %vm63, 0.0
    %389 = vst.msk [vmem:[%s362 + $0x101] sm:$0x1] %vm63, 0.0
    %390 = vst.msk [vmem:[%s362 + $0x119] sm:$0x1] %vm63, 0.0
    %391 = vst.msk [vmem:[%s362 + $0x131] sm:$0x1] %vm63, 0.0
    %392 = vst.msk [vmem:[%s362 + $0x149] sm:$0x1] %vm63, 0.0
    %393 = vst.msk [vmem:[%s362 + $0x161] sm:$0x1] %vm63, 0.0
    %394 = vst.msk [vmem:[%s362 + $0x179] sm:$0x1] %vm63, 0.0
    %s395 = scalar_lea.vmem %s0, 256
    %v396 = vld [vmem:[%s395] sm:$0xff]
    %v397 = vld [vmem:[%s395 + $0x8] sm:$0xff]
    %v398 = vld [vmem:[%s395 + $0x10] sm:$0xff]
    %v399 = vld [vmem:[%s395 + $0x18] sm:$0xff]
    %v400 = vld [vmem:[%s395 + $0x20] sm:$0xff]
    %v401 = vld [vmem:[%s395 + $0x28] sm:$0xff]
    %v402 = vld [vmem:[%s395 + $0x30] sm:$0xff]
    %v403 = vld [vmem:[%s395 + $0x38] sm:$0xff]
    %v404 = vld [vmem:[%s395 + $0x40] sm:$0xff]
    %v405 = vld [vmem:[%s395 + $0x48] sm:$0xff]
    %v406 = vld [vmem:[%s395 + $0x50] sm:$0xff]
    %v407 = vld [vmem:[%s395 + $0x58] sm:$0xff]
    %v408 = vld [vmem:[%s395 + $0x60] sm:$0xff]
    %v409 = vld [vmem:[%s395 + $0x68] sm:$0xff]
    %v410 = vld [vmem:[%s395 + $0x70] sm:$0xff]
    %v411 = vld [vmem:[%s395 + $0x78] sm:$0xff]
    %v412 = vld [vmem:[%s395 + $0x80] sm:$0xff]
    %v413 = vld [vmem:[%s395 + $0x88] sm:$0xff]
    %v414 = vld [vmem:[%s395 + $0x90] sm:$0xff]
    %v415 = vld [vmem:[%s395 + $0x98] sm:$0xff]
    %v416 = vld [vmem:[%s395 + $0xa0] sm:$0xff]
    %v417 = vld [vmem:[%s395 + $0xa8] sm:$0xff]
    %v418 = vld [vmem:[%s395 + $0xb0] sm:$0xff]
    %v419 = vld [vmem:[%s395 + $0xb8] sm:$0xff]
    %v420 = vld [vmem:[%s395 + $0xc0] sm:$0xff]
    %v421 = vld [vmem:[%s395 + $0xc8] sm:$0xff]
    %v422 = vld [vmem:[%s395 + $0xd0] sm:$0xff]
    %v423 = vld [vmem:[%s395 + $0xd8] sm:$0xff]
    %v424 = vld [vmem:[%s395 + $0xe0] sm:$0xff]
    %v425 = vld [vmem:[%s395 + $0xe8] sm:$0xff]
    %v426 = vld [vmem:[%s395 + $0xf0] sm:$0xff]
    %v427 = vld [vmem:[%s395 + $0xf8] sm:$0xff]
    %428 = vst.msk [vmem:[%s362 + $0x1] sm:$0xff] %vm128, %v396
    %429 = vst.msk [vmem:[%s362 + $0x9] sm:$0xff] %vm128, %v397
    %430 = vst.msk [vmem:[%s362 + $0x19] sm:$0xff] %vm128, %v398
    %431 = vst.msk [vmem:[%s362 + $0x21] sm:$0xff] %vm128, %v399
    %432 = vst.msk [vmem:[%s362 + $0x31] sm:$0xff] %vm128, %v400
    %433 = vst.msk [vmem:[%s362 + $0x39] sm:$0xff] %vm128, %v401
    %434 = vst.msk [vmem:[%s362 + $0x49] sm:$0xff] %vm128, %v402
    %435 = vst.msk [vmem:[%s362 + $0x51] sm:$0xff] %vm128, %v403
    %436 = vst.msk [vmem:[%s362 + $0x61] sm:$0xff] %vm128, %v404
    %437 = vst.msk [vmem:[%s362 + $0x69] sm:$0xff] %vm128, %v405
    %438 = vst.msk [vmem:[%s362 + $0x79] sm:$0xff] %vm128, %v406
    %439 = vst.msk [vmem:[%s362 + $0x81] sm:$0xff] %vm128, %v407
    %440 = vst.msk [vmem:[%s362 + $0x91] sm:$0xff] %vm128, %v408
    %441 = vst.msk [vmem:[%s362 + $0x99] sm:$0xff] %vm128, %v409
    %442 = vst.msk [vmem:[%s362 + $0xa9] sm:$0xff] %vm128, %v410
    %443 = vst.msk [vmem:[%s362 + $0xb1] sm:$0xff] %vm128, %v411
    %444 = vst.msk [vmem:[%s362 + $0xc1] sm:$0xff] %vm128, %v412
    %445 = vst.msk [vmem:[%s362 + $0xc9] sm:$0xff] %vm128, %v413
    %446 = vst.msk [vmem:[%s362 + $0xd9] sm:$0xff] %vm128, %v414
    %447 = vst.msk [vmem:[%s362 + $0xe1] sm:$0xff] %vm128, %v415
    %448 = vst.msk [vmem:[%s362 + $0xf1] sm:$0xff] %vm128, %v416
    %449 = vst.msk [vmem:[%s362 + $0xf9] sm:$0xff] %vm128, %v417
    %450 = vst.msk [vmem:[%s362 + $0x109] sm:$0xff] %vm128, %v418
    %451 = vst.msk [vmem:[%s362 + $0x111] sm:$0xff] %vm128, %v419
    %452 = vst.msk [vmem:[%s362 + $0x121] sm:$0xff] %vm128, %v420
    %453 = vst.msk [vmem:[%s362 + $0x129] sm:$0xff] %vm128, %v421
    %454 = vst.msk [vmem:[%s362 + $0x139] sm:$0xff] %vm128, %v422
    %455 = vst.msk [vmem:[%s362 + $0x141] sm:$0xff] %vm128, %v423
    %456 = vst.msk [vmem:[%s362 + $0x151] sm:$0xff] %vm128, %v424
    %457 = vst.msk [vmem:[%s362 + $0x159] sm:$0xff] %vm128, %v425
    %458 = vst.msk [vmem:[%s362 + $0x169] sm:$0xff] %vm128, %v426
    %459 = vst.msk [vmem:[%s362 + $0x171] sm:$0xff] %vm128, %v427
    %s460 = scalar_lea.vmem %s1, 256
    %v461 = vld [vmem:[%s460] sm:$0xff]
    %v462 = vld [vmem:[%s460 + $0x8] sm:$0xff]
    %v463 = vld [vmem:[%s460 + $0x10] sm:$0xff]
    %v464 = vld [vmem:[%s460 + $0x18] sm:$0xff]
    %v465 = vld [vmem:[%s460 + $0x20] sm:$0xff]
    %v466 = vld [vmem:[%s460 + $0x28] sm:$0xff]
    %v467 = vld [vmem:[%s460 + $0x30] sm:$0xff]
    %v468 = vld [vmem:[%s460 + $0x38] sm:$0xff]
    %v469 = vld [vmem:[%s460 + $0x40] sm:$0xff]
    %v470 = vld [vmem:[%s460 + $0x48] sm:$0xff]
    %v471 = vld [vmem:[%s460 + $0x50] sm:$0xff]
    %v472 = vld [vmem:[%s460 + $0x58] sm:$0xff]
    %v473 = vld [vmem:[%s460 + $0x60] sm:$0xff]
    %v474 = vld [vmem:[%s460 + $0x68] sm:$0xff]
    %v475 = vld [vmem:[%s460 + $0x70] sm:$0xff]
    %v476 = vld [vmem:[%s460 + $0x78] sm:$0xff]
    %v477 = vld [vmem:[%s460 + $0x80] sm:$0xff]
    %v478 = vld [vmem:[%s460 + $0x88] sm:$0xff]
    %v479 = vld [vmem:[%s460 + $0x90] sm:$0xff]
    %v480 = vld [vmem:[%s460 + $0x98] sm:$0xff]
    %v481 = vld [vmem:[%s460 + $0xa0] sm:$0xff]
    %v482 = vld [vmem:[%s460 + $0xa8] sm:$0xff]
    %v483 = vld [vmem:[%s460 + $0xb0] sm:$0xff]
    %v484 = vld [vmem:[%s460 + $0xb8] sm:$0xff]
    %v485 = vld [vmem:[%s460 + $0xc0] sm:$0xff]
    %v486 = vld [vmem:[%s460 + $0xc8] sm:$0xff]
    %v487 = vld [vmem:[%s460 + $0xd0] sm:$0xff]
    %v488 = vld [vmem:[%s460 + $0xd8] sm:$0xff]
    %v489 = vld [vmem:[%s460 + $0xe0] sm:$0xff]
    %v490 = vld [vmem:[%s460 + $0xe8] sm:$0xff]
    %v491 = vld [vmem:[%s460 + $0xf0] sm:$0xff]
    %v492 = vld [vmem:[%s460 + $0xf8] sm:$0xff]
    %525 = vrot.lane.b32.xlu0 %v461, 4
    %v526 = vpop.permute.xlu0 %525
    %527 = vrot.lane.b32.xlu0 %v462, 4
    %v528 = vpop.permute.xlu0 %527
    %529 = vrot.lane.b32.xlu0 %v463, 4
    %v530 = vpop.permute.xlu0 %529
    %531 = vrot.lane.b32.xlu0 %v464, 4
    %v532 = vpop.permute.xlu0 %531
    %533 = vrot.lane.b32.xlu0 %v465, 4
    %v534 = vpop.permute.xlu0 %533
    %535 = vrot.lane.b32.xlu0 %v466, 4
    %v536 = vpop.permute.xlu0 %535
    %537 = vrot.lane.b32.xlu0 %v467, 4
    %v538 = vpop.permute.xlu0 %537
    %539 = vrot.lane.b32.xlu0 %v468, 4
    %v540 = vpop.permute.xlu0 %539
    %541 = vrot.lane.b32.xlu0 %v469, 4
    %v542 = vpop.permute.xlu0 %541
    %543 = vrot.lane.b32.xlu0 %v470, 4
    %v544 = vpop.permute.xlu0 %543
    %545 = vrot.lane.b32.xlu0 %v471, 4
    %v546 = vpop.permute.xlu0 %545
    %547 = vrot.lane.b32.xlu0 %v472, 4
    %v548 = vpop.permute.xlu0 %547
    %549 = vrot.lane.b32.xlu0 %v473, 4
    %v550 = vpop.permute.xlu0 %549
    %551 = vrot.lane.b32.xlu0 %v474, 4
    %v552 = vpop.permute.xlu0 %551
    %553 = vrot.lane.b32.xlu0 %v475, 4
    %v554 = vpop.permute.xlu0 %553
    %555 = vrot.lane.b32.xlu0 %v476, 4
    %v556 = vpop.permute.xlu0 %555
    %557 = vrot.lane.b32.xlu0 %v477, 4
    %v558 = vpop.permute.xlu0 %557
    %559 = vrot.lane.b32.xlu0 %v478, 4
    %v560 = vpop.permute.xlu0 %559
    %561 = vrot.lane.b32.xlu0 %v479, 4
    %v562 = vpop.permute.xlu0 %561
    %563 = vrot.lane.b32.xlu0 %v480, 4
    %v564 = vpop.permute.xlu0 %563
    %565 = vrot.lane.b32.xlu0 %v481, 4
    %v566 = vpop.permute.xlu0 %565
    %567 = vrot.lane.b32.xlu0 %v482, 4
    %v568 = vpop.permute.xlu0 %567
    %569 = vrot.lane.b32.xlu0 %v483, 4
    %v570 = vpop.permute.xlu0 %569
    %571 = vrot.lane.b32.xlu0 %v484, 4
    %v572 = vpop.permute.xlu0 %571
    %573 = vrot.lane.b32.xlu0 %v485, 4
    %v574 = vpop.permute.xlu0 %573
    %575 = vrot.lane.b32.xlu0 %v486, 4
    %v576 = vpop.permute.xlu0 %575
    %577 = vrot.lane.b32.xlu0 %v487, 4
    %v578 = vpop.permute.xlu0 %577
    %579 = vrot.lane.b32.xlu0 %v488, 4
    %v580 = vpop.permute.xlu0 %579
    %581 = vrot.lane.b32.xlu0 %v489, 4
    %v582 = vpop.permute.xlu0 %581
    %583 = vrot.lane.b32.xlu0 %v490, 4
    %v584 = vpop.permute.xlu0 %583
    %585 = vrot.lane.b32.xlu0 %v491, 4
    %v586 = vpop.permute.xlu0 %585
    %587 = vrot.lane.b32.xlu0 %v492, 4
    %v588 = vpop.permute.xlu0 %587
    %621 = vst.msk [vmem:[%s362 + $0x1] sm:$0xff] %vm321, %v526
    %622 = vst.msk [vmem:[%s362 + $0x9] sm:$0xff] %vm321, %v528
    %623 = vst.msk [vmem:[%s362 + $0x19] sm:$0xff] %vm321, %v530
    %624 = vst.msk [vmem:[%s362 + $0x21] sm:$0xff] %vm321, %v532
    %625 = vst.msk [vmem:[%s362 + $0x31] sm:$0xff] %vm321, %v534
    %626 = vst.msk [vmem:[%s362 + $0x39] sm:$0xff] %vm321, %v536
    %627 = vst.msk [vmem:[%s362 + $0x49] sm:$0xff] %vm321, %v538
    %628 = vst.msk [vmem:[%s362 + $0x51] sm:$0xff] %vm321, %v540
    %629 = vst.msk [vmem:[%s362 + $0x61] sm:$0xff] %vm321, %v542
    %630 = vst.msk [vmem:[%s362 + $0x69] sm:$0xff] %vm321, %v544
    %631 = vst.msk [vmem:[%s362 + $0x79] sm:$0xff] %vm321, %v546
    %632 = vst.msk [vmem:[%s362 + $0x81] sm:$0xff] %vm321, %v548
    %633 = vst.msk [vmem:[%s362 + $0x91] sm:$0xff] %vm321, %v550
    %634 = vst.msk [vmem:[%s362 + $0x99] sm:$0xff] %vm321, %v552
    %635 = vst.msk [vmem:[%s362 + $0xa9] sm:$0xff] %vm321, %v554
    %636 = vst.msk [vmem:[%s362 + $0xb1] sm:$0xff] %vm321, %v556
    %637 = vst.msk [vmem:[%s362 + $0xc1] sm:$0xff] %vm321, %v558
    %638 = vst.msk [vmem:[%s362 + $0xc9] sm:$0xff] %vm321, %v560
    %639 = vst.msk [vmem:[%s362 + $0xd9] sm:$0xff] %vm321, %v562
    %640 = vst.msk [vmem:[%s362 + $0xe1] sm:$0xff] %vm321, %v564
    %641 = vst.msk [vmem:[%s362 + $0xf1] sm:$0xff] %vm321, %v566
    %642 = vst.msk [vmem:[%s362 + $0xf9] sm:$0xff] %vm321, %v568
    %643 = vst.msk [vmem:[%s362 + $0x109] sm:$0xff] %vm321, %v570
    %644 = vst.msk [vmem:[%s362 + $0x111] sm:$0xff] %vm321, %v572
    %645 = vst.msk [vmem:[%s362 + $0x121] sm:$0xff] %vm321, %v574
    %646 = vst.msk [vmem:[%s362 + $0x129] sm:$0xff] %vm321, %v576
    %647 = vst.msk [vmem:[%s362 + $0x139] sm:$0xff] %vm321, %v578
    %648 = vst.msk [vmem:[%s362 + $0x141] sm:$0xff] %vm321, %v580
    %649 = vst.msk [vmem:[%s362 + $0x151] sm:$0xff] %vm321, %v582
    %650 = vst.msk [vmem:[%s362 + $0x159] sm:$0xff] %vm321, %v584
    %651 = vst.msk [vmem:[%s362 + $0x169] sm:$0xff] %vm321, %v586
    %652 = vst.msk [vmem:[%s362 + $0x171] sm:$0xff] %vm321, %v588
    %v653 = vld [vmem:[#allocation2] sm:$0xff]
    %v654 = vld [vmem:[#allocation2 + $0x8] sm:$0xff]
    %v655 = vld [vmem:[#allocation2 + $0x18] sm:$0xff]
    %v656 = vld [vmem:[#allocation2 + $0x20] sm:$0xff]
    %v657 = vld [vmem:[#allocation2 + $0x30] sm:$0xff]
    %v658 = vld [vmem:[#allocation2 + $0x38] sm:$0xff]
    %v659 = vld [vmem:[#allocation2 + $0x48] sm:$0xff]
    %v660 = vld [vmem:[#allocation2 + $0x50] sm:$0xff]
    %v661 = vld [vmem:[#allocation2 + $0x60] sm:$0xff]
    %v662 = vld [vmem:[#allocation2 + $0x68] sm:$0xff]
    %v663 = vld [vmem:[#allocation2 + $0x78] sm:$0xff]
    %v664 = vld [vmem:[#allocation2 + $0x80] sm:$0xff]
    %v665 = vld [vmem:[#allocation2 + $0x90] sm:$0xff]
    %v666 = vld [vmem:[#allocation2 + $0x98] sm:$0xff]
    %v667 = vld [vmem:[#allocation2 + $0xa8] sm:$0xff]
    %v668 = vld [vmem:[#allocation2 + $0xb0] sm:$0xff]
    %v669 = vld [vmem:[#allocation2 + $0xc0] sm:$0xff]
    %v670 = vld [vmem:[#allocation2 + $0xc8] sm:$0xff]
    %v671 = vld [vmem:[#allocation2 + $0xd8] sm:$0xff]
    %v672 = vld [vmem:[#allocation2 + $0xe0] sm:$0xff]
    %v673 = vld [vmem:[#allocation2 + $0xf0] sm:$0xff]
    %v674 = vld [vmem:[#allocation2 + $0xf8] sm:$0xff]
    %v675 = vld [vmem:[#allocation2 + $0x108] sm:$0xff]
    %v676 = vld [vmem:[#allocation2 + $0x110] sm:$0xff]
    %v677 = vld [vmem:[#allocation2 + $0x120] sm:$0xff]
    %v678 = vld [vmem:[#allocation2 + $0x128] sm:$0xff]
    %v679 = vld [vmem:[#allocation2 + $0x138] sm:$0xff]
    %v680 = vld [vmem:[#allocation2 + $0x140] sm:$0xff]
    %v681 = vld [vmem:[#allocation2 + $0x150] sm:$0xff]
    %v682 = vld [vmem:[#allocation2 + $0x158] sm:$0xff]
    %v683 = vld [vmem:[#allocation2 + $0x168] sm:$0xff]
    %v684 = vld [vmem:[#allocation2 + $0x170] sm:$0xff]
    %685 = vst.msk [vmem:[#allocation3] sm:$0xff] %vm53, %v653
    %686 = vst.msk [vmem:[#allocation3 + $0x18] sm:$0xff] %vm53, %v654
    %687 = vst.msk [vmem:[#allocation3 + $0x30] sm:$0xff] %vm53, %v655
    %688 = vst.msk [vmem:[#allocation3 + $0x48] sm:$0xff] %vm53, %v656
    %689 = vst.msk [vmem:[#allocation3 + $0x60] sm:$0xff] %vm53, %v657
    %690 = vst.msk [vmem:[#allocation3 + $0x78] sm:$0xff] %vm53, %v658
    %691 = vst.msk [vmem:[#allocation3 + $0x90] sm:$0xff] %vm53, %v659
    %692 = vst.msk [vmem:[#allocation3 + $0xa8] sm:$0xff] %vm53, %v660
    %693 = vst.msk [vmem:[#allocation3 + $0xc0] sm:$0xff] %vm53, %v661
    %694 = vst.msk [vmem:[#allocation3 + $0xd8] sm:$0xff] %vm53, %v662
    %695 = vst.msk [vmem:[#allocation3 + $0xf0] sm:$0xff] %vm53, %v663
    %696 = vst.msk [vmem:[#allocation3 + $0x108] sm:$0xff] %vm53, %v664
    %697 = vst.msk [vmem:[#allocation3 + $0x120] sm:$0xff] %vm53, %v665
    %698 = vst.msk [vmem:[#allocation3 + $0x138] sm:$0xff] %vm53, %v666
    %699 = vst.msk [vmem:[#allocation3 + $0x150] sm:$0xff] %vm53, %v667
    %700 = vst.msk [vmem:[#allocation3 + $0x168] sm:$0xff] %vm53, %v668
    %701 = vst.msk [vmem:[#allocation3 + $0x180] sm:$0xff] %vm53, %v669
    %702 = vst.msk [vmem:[#allocation3 + $0x198] sm:$0xff] %vm53, %v670
    %703 = vst.msk [vmem:[#allocation3 + $0x1b0] sm:$0xff] %vm53, %v671
    %704 = vst.msk [vmem:[#allocation3 + $0x1c8] sm:$0xff] %vm53, %v672
    %705 = vst.msk [vmem:[#allocation3 + $0x1e0] sm:$0xff] %vm53, %v673
    %706 = vst.msk [vmem:[#allocation3 + $0x1f8] sm:$0xff] %vm53, %v674
    %707 = vst.msk [vmem:[#allocation3 + $0x210] sm:$0xff] %vm53, %v675
    %708 = vst.msk [vmem:[#allocation3 + $0x228] sm:$0xff] %vm53, %v676
    %709 = vst.msk [vmem:[#allocation3 + $0x240] sm:$0xff] %vm53, %v677
    %710 = vst.msk [vmem:[#allocation3 + $0x258] sm:$0xff] %vm53, %v678
    %711 = vst.msk [vmem:[#allocation3 + $0x270] sm:$0xff] %vm53, %v679
    %712 = vst.msk [vmem:[#allocation3 + $0x288] sm:$0xff] %vm53, %v680
    %713 = vst.msk [vmem:[#allocation3 + $0x2a0] sm:$0xff] %vm53, %v681
    %714 = vst.msk [vmem:[#allocation3 + $0x2b8] sm:$0xff] %vm53, %v682
    %715 = vst.msk [vmem:[#allocation3 + $0x2d0] sm:$0xff] %vm53, %v683
    %716 = vst.msk [vmem:[#allocation3 + $0x2e8] sm:$0xff] %vm53, %v684
    %v717 = vld [vmem:[#allocation2 + $0x1] sm:$0xff]
    %v718 = vld [vmem:[#allocation2 + $0x9] sm:$0xff]
    %v719 = vld [vmem:[#allocation2 + $0x19] sm:$0xff]
    %v720 = vld [vmem:[#allocation2 + $0x21] sm:$0xff]
    %v721 = vld [vmem:[#allocation2 + $0x31] sm:$0xff]
    %v722 = vld [vmem:[#allocation2 + $0x39] sm:$0xff]
    %v723 = vld [vmem:[#allocation2 + $0x49] sm:$0xff]
    %v724 = vld [vmem:[#allocation2 + $0x51] sm:$0xff]
    %v725 = vld [vmem:[#allocation2 + $0x61] sm:$0xff]
    %v726 = vld [vmem:[#allocation2 + $0x69] sm:$0xff]
    %v727 = vld [vmem:[#allocation2 + $0x79] sm:$0xff]
    %v728 = vld [vmem:[#allocation2 + $0x81] sm:$0xff]
    %v729 = vld [vmem:[#allocation2 + $0x91] sm:$0xff]
    %v730 = vld [vmem:[#allocation2 + $0x99] sm:$0xff]
    %v731 = vld [vmem:[#allocation2 + $0xa9] sm:$0xff]
    %v732 = vld [vmem:[#allocation2 + $0xb1] sm:$0xff]
    %v733 = vld [vmem:[#allocation2 + $0xc1] sm:$0xff]
    %v734 = vld [vmem:[#allocation2 + $0xc9] sm:$0xff]
    %v735 = vld [vmem:[#allocation2 + $0xd9] sm:$0xff]
    %v736 = vld [vmem:[#allocation2 + $0xe1] sm:$0xff]
    %v737 = vld [vmem:[#allocation2 + $0xf1] sm:$0xff]
    %v738 = vld [vmem:[#allocation2 + $0xf9] sm:$0xff]
    %v739 = vld [vmem:[#allocation2 + $0x109] sm:$0xff]
    %v740 = vld [vmem:[#allocation2 + $0x111] sm:$0xff]
    %v741 = vld [vmem:[#allocation2 + $0x121] sm:$0xff]
    %v742 = vld [vmem:[#allocation2 + $0x129] sm:$0xff]
    %v743 = vld [vmem:[#allocation2 + $0x139] sm:$0xff]
    %v744 = vld [vmem:[#allocation2 + $0x141] sm:$0xff]
    %v745 = vld [vmem:[#allocation2 + $0x151] sm:$0xff]
    %v746 = vld [vmem:[#allocation2 + $0x159] sm:$0xff]
    %v747 = vld [vmem:[#allocation2 + $0x169] sm:$0xff]
    %v748 = vld [vmem:[#allocation2 + $0x171] sm:$0xff]
    %781 = vrot.lane.b32.xlu0 %v717, 36
    %v782 = vpop.permute.xlu0 %781
    %783 = vrot.lane.b32.xlu0 %v718, 36
    %v784 = vpop.permute.xlu0 %783
    %785 = vrot.lane.b32.xlu0 %v719, 36
    %v786 = vpop.permute.xlu0 %785
    %787 = vrot.lane.b32.xlu0 %v720, 36
    %v788 = vpop.permute.xlu0 %787
    %789 = vrot.lane.b32.xlu0 %v721, 36
    %v790 = vpop.permute.xlu0 %789
    %791 = vrot.lane.b32.xlu0 %v722, 36
    %v792 = vpop.permute.xlu0 %791
    %793 = vrot.lane.b32.xlu0 %v723, 36
    %v794 = vpop.permute.xlu0 %793
    %795 = vrot.lane.b32.xlu0 %v724, 36
    %v796 = vpop.permute.xlu0 %795
    %797 = vrot.lane.b32.xlu0 %v725, 36
    %v798 = vpop.permute.xlu0 %797
    %799 = vrot.lane.b32.xlu0 %v726, 36
    %v800 = vpop.permute.xlu0 %799
    %801 = vrot.lane.b32.xlu0 %v727, 36
    %v802 = vpop.permute.xlu0 %801
    %803 = vrot.lane.b32.xlu0 %v728, 36
    %v804 = vpop.permute.xlu0 %803
    %805 = vrot.lane.b32.xlu0 %v729, 36
    %v806 = vpop.permute.xlu0 %805
    %807 = vrot.lane.b32.xlu0 %v730, 36
    %v808 = vpop.permute.xlu0 %807
    %809 = vrot.lane.b32.xlu0 %v731, 36
    %v810 = vpop.permute.xlu0 %809
    %811 = vrot.lane.b32.xlu0 %v732, 36
    %v812 = vpop.permute.xlu0 %811
    %813 = vrot.lane.b32.xlu0 %v733, 36
    %v814 = vpop.permute.xlu0 %813
    %815 = vrot.lane.b32.xlu0 %v734, 36
    %v816 = vpop.permute.xlu0 %815
    %817 = vrot.lane.b32.xlu0 %v735, 36
    %v818 = vpop.permute.xlu0 %817
    %819 = vrot.lane.b32.xlu0 %v736, 36
    %v820 = vpop.permute.xlu0 %819
    %821 = vrot.lane.b32.xlu0 %v737, 36
    %v822 = vpop.permute.xlu0 %821
    %823 = vrot.lane.b32.xlu0 %v738, 36
    %v824 = vpop.permute.xlu0 %823
    %825 = vrot.lane.b32.xlu0 %v739, 36
    %v826 = vpop.permute.xlu0 %825
    %827 = vrot.lane.b32.xlu0 %v740, 36
    %v828 = vpop.permute.xlu0 %827
    %829 = vrot.lane.b32.xlu0 %v741, 36
    %v830 = vpop.permute.xlu0 %829
    %831 = vrot.lane.b32.xlu0 %v742, 36
    %v832 = vpop.permute.xlu0 %831
    %833 = vrot.lane.b32.xlu0 %v743, 36
    %v834 = vpop.permute.xlu0 %833
    %835 = vrot.lane.b32.xlu0 %v744, 36
    %v836 = vpop.permute.xlu0 %835
    %837 = vrot.lane.b32.xlu0 %v745, 36
    %v838 = vpop.permute.xlu0 %837
    %839 = vrot.lane.b32.xlu0 %v746, 36
    %v840 = vpop.permute.xlu0 %839
    %841 = vrot.lane.b32.xlu0 %v747, 36
    %v842 = vpop.permute.xlu0 %841
    %843 = vrot.lane.b32.xlu0 %v748, 36
    %v844 = vpop.permute.xlu0 %843
    %vm877 = vcmask 589088
    %878 = vst.msk [vmem:[#allocation3] sm:$0xff] %vm877, %v782
    %879 = vst.msk [vmem:[#allocation3 + $0x18] sm:$0xff] %vm877, %v784
    %880 = vst.msk [vmem:[#allocation3 + $0x30] sm:$0xff] %vm877, %v786
    %881 = vst.msk [vmem:[#allocation3 + $0x48] sm:$0xff] %vm877, %v788
    %882 = vst.msk [vmem:[#allocation3 + $0x60] sm:$0xff] %vm877, %v790
    %883 = vst.msk [vmem:[#allocation3 + $0x78] sm:$0xff] %vm877, %v792
    %884 = vst.msk [vmem:[#allocation3 + $0x90] sm:$0xff] %vm877, %v794
    %885 = vst.msk [vmem:[#allocation3 + $0xa8] sm:$0xff] %vm877, %v796
    %886 = vst.msk [vmem:[#allocation3 + $0xc0] sm:$0xff] %vm877, %v798
    %887 = vst.msk [vmem:[#allocation3 + $0xd8] sm:$0xff] %vm877, %v800
    %888 = vst.msk [vmem:[#allocation3 + $0xf0] sm:$0xff] %vm877, %v802
    %889 = vst.msk [vmem:[#allocation3 + $0x108] sm:$0xff] %vm877, %v804
    %890 = vst.msk [vmem:[#allocation3 + $0x120] sm:$0xff] %vm877, %v806
    %891 = vst.msk [vmem:[#allocation3 + $0x138] sm:$0xff] %vm877, %v808
    %892 = vst.msk [vmem:[#allocation3 + $0x150] sm:$0xff] %vm877, %v810
    %893 = vst.msk [vmem:[#allocation3 + $0x168] sm:$0xff] %vm877, %v812
    %894 = vst.msk [vmem:[#allocation3 + $0x180] sm:$0xff] %vm877, %v814
    %895 = vst.msk [vmem:[#allocation3 + $0x198] sm:$0xff] %vm877, %v816
    %896 = vst.msk [vmem:[#allocation3 + $0x1b0] sm:$0xff] %vm877, %v818
    %897 = vst.msk [vmem:[#allocation3 + $0x1c8] sm:$0xff] %vm877, %v820
    %898 = vst.msk [vmem:[#allocation3 + $0x1e0] sm:$0xff] %vm877, %v822
    %899 = vst.msk [vmem:[#allocation3 + $0x1f8] sm:$0xff] %vm877, %v824
    %900 = vst.msk [vmem:[#allocation3 + $0x210] sm:$0xff] %vm877, %v826
    %901 = vst.msk [vmem:[#allocation3 + $0x228] sm:$0xff] %vm877, %v828
    %902 = vst.msk [vmem:[#allocation3 + $0x240] sm:$0xff] %vm877, %v830
    %903 = vst.msk [vmem:[#allocation3 + $0x258] sm:$0xff] %vm877, %v832
    %904 = vst.msk [vmem:[#allocation3 + $0x270] sm:$0xff] %vm877, %v834
    %905 = vst.msk [vmem:[#allocation3 + $0x288] sm:$0xff] %vm877, %v836
    %906 = vst.msk [vmem:[#allocation3 + $0x2a0] sm:$0xff] %vm877, %v838
    %907 = vst.msk [vmem:[#allocation3 + $0x2b8] sm:$0xff] %vm877, %v840
    %908 = vst.msk [vmem:[#allocation3 + $0x2d0] sm:$0xff] %vm877, %v842
    %909 = vst.msk [vmem:[#allocation3 + $0x2e8] sm:$0xff] %vm877, %v844
    %v910 = vld [vmem:[#allocation2 + $0x2] sm:$0xff]
    %v911 = vld [vmem:[#allocation2 + $0xa] sm:$0xff]
    %v912 = vld [vmem:[#allocation2 + $0x1a] sm:$0xff]
    %v913 = vld [vmem:[#allocation2 + $0x22] sm:$0xff]
    %v914 = vld [vmem:[#allocation2 + $0x32] sm:$0xff]
    %v915 = vld [vmem:[#allocation2 + $0x3a] sm:$0xff]
    %v916 = vld [vmem:[#allocation2 + $0x4a] sm:$0xff]
    %v917 = vld [vmem:[#allocation2 + $0x52] sm:$0xff]
    %v918 = vld [vmem:[#allocation2 + $0x62] sm:$0xff]
    %v919 = vld [vmem:[#allocation2 + $0x6a] sm:$0xff]
    %v920 = vld [vmem:[#allocation2 + $0x7a] sm:$0xff]
    %v921 = vld [vmem:[#allocation2 + $0x82] sm:$0xff]
    %v922 = vld [vmem:[#allocation2 + $0x92] sm:$0xff]
    %v923 = vld [vmem:[#allocation2 + $0x9a] sm:$0xff]
    %v924 = vld [vmem:[#allocation2 + $0xaa] sm:$0xff]
    %v925 = vld [vmem:[#allocation2 + $0xb2] sm:$0xff]
    %v926 = vld [vmem:[#allocation2 + $0xc2] sm:$0xff]
    %v927 = vld [vmem:[#allocation2 + $0xca] sm:$0xff]
    %v928 = vld [vmem:[#allocation2 + $0xda] sm:$0xff]
    %v929 = vld [vmem:[#allocation2 + $0xe2] sm:$0xff]
    %v930 = vld [vmem:[#allocation2 + $0xf2] sm:$0xff]
    %v931 = vld [vmem:[#allocation2 + $0xfa] sm:$0xff]
    %v932 = vld [vmem:[#allocation2 + $0x10a] sm:$0xff]
    %v933 = vld [vmem:[#allocation2 + $0x112] sm:$0xff]
    %v934 = vld [vmem:[#allocation2 + $0x122] sm:$0xff]
    %v935 = vld [vmem:[#allocation2 + $0x12a] sm:$0xff]
    %v936 = vld [vmem:[#allocation2 + $0x13a] sm:$0xff]
    %v937 = vld [vmem:[#allocation2 + $0x142] sm:$0xff]
    %v938 = vld [vmem:[#allocation2 + $0x152] sm:$0xff]
    %v939 = vld [vmem:[#allocation2 + $0x15a] sm:$0xff]
    %v940 = vld [vmem:[#allocation2 + $0x16a] sm:$0xff]
    %v941 = vld [vmem:[#allocation2 + $0x172] sm:$0xff]
    %974 = vrot.lane.b32.xlu0 %v910, 72
    %v975 = vpop.permute.xlu0 %974
    %976 = vrot.lane.b32.xlu0 %v911, 72
    %v977 = vpop.permute.xlu0 %976
    %978 = vrot.lane.b32.xlu0 %v912, 72
    %v979 = vpop.permute.xlu0 %978
    %980 = vrot.lane.b32.xlu0 %v913, 72
    %v981 = vpop.permute.xlu0 %980
    %982 = vrot.lane.b32.xlu0 %v914, 72
    %v983 = vpop.permute.xlu0 %982
    %984 = vrot.lane.b32.xlu0 %v915, 72
    %v985 = vpop.permute.xlu0 %984
    %986 = vrot.lane.b32.xlu0 %v916, 72
    %v987 = vpop.permute.xlu0 %986
    %988 = vrot.lane.b32.xlu0 %v917, 72
    %v989 = vpop.permute.xlu0 %988
    %990 = vrot.lane.b32.xlu0 %v918, 72
    %v991 = vpop.permute.xlu0 %990
    %992 = vrot.lane.b32.xlu0 %v919, 72
    %v993 = vpop.permute.xlu0 %992
    %994 = vrot.lane.b32.xlu0 %v920, 72
    %v995 = vpop.permute.xlu0 %994
    %996 = vrot.lane.b32.xlu0 %v921, 72
    %v997 = vpop.permute.xlu0 %996
    %998 = vrot.lane.b32.xlu0 %v922, 72
    %v999 = vpop.permute.xlu0 %998
    %1000 = vrot.lane.b32.xlu0 %v923, 72
    %v1001 = vpop.permute.xlu0 %1000
    %1002 = vrot.lane.b32.xlu0 %v924, 72
    %v1003 = vpop.permute.xlu0 %1002
    %1004 = vrot.lane.b32.xlu0 %v925, 72
    %v1005 = vpop.permute.xlu0 %1004
    %1006 = vrot.lane.b32.xlu0 %v926, 72
    %v1007 = vpop.permute.xlu0 %1006
    %1008 = vrot.lane.b32.xlu0 %v927, 72
    %v1009 = vpop.permute.xlu0 %1008
    %1010 = vrot.lane.b32.xlu0 %v928, 72
    %v1011 = vpop.permute.xlu0 %1010
    %1012 = vrot.lane.b32.xlu0 %v929, 72
    %v1013 = vpop.permute.xlu0 %1012
    %1014 = vrot.lane.b32.xlu0 %v930, 72
    %v1015 = vpop.permute.xlu0 %1014
    %1016 = vrot.lane.b32.xlu0 %v931, 72
    %v1017 = vpop.permute.xlu0 %1016
    %1018 = vrot.lane.b32.xlu0 %v932, 72
    %v1019 = vpop.permute.xlu0 %1018
    %1020 = vrot.lane.b32.xlu0 %v933, 72
    %v1021 = vpop.permute.xlu0 %1020
    %1022 = vrot.lane.b32.xlu0 %v934, 72
    %v1023 = vpop.permute.xlu0 %1022
    %1024 = vrot.lane.b32.xlu0 %v935, 72
    %v1025 = vpop.permute.xlu0 %1024
    %1026 = vrot.lane.b32.xlu0 %v936, 72
    %v1027 = vpop.permute.xlu0 %1026
    %1028 = vrot.lane.b32.xlu0 %v937, 72
    %v1029 = vpop.permute.xlu0 %1028
    %1030 = vrot.lane.b32.xlu0 %v938, 72
    %v1031 = vpop.permute.xlu0 %1030
    %1032 = vrot.lane.b32.xlu0 %v939, 72
    %v1033 = vpop.permute.xlu0 %1032
    %1034 = vrot.lane.b32.xlu0 %v940, 72
    %v1035 = vpop.permute.xlu0 %1034
    %1036 = vrot.lane.b32.xlu0 %v941, 72
    %v1037 = vpop.permute.xlu0 %1036
    %vm1070 = vcmask 884288
    %1071 = vst.msk [vmem:[#allocation3] sm:$0xff] %vm1070, %v975
    %1072 = vst.msk [vmem:[#allocation3 + $0x18] sm:$0xff] %vm1070, %v977
    %1073 = vst.msk [vmem:[#allocation3 + $0x30] sm:$0xff] %vm1070, %v979
    %1074 = vst.msk [vmem:[#allocation3 + $0x48] sm:$0xff] %vm1070, %v981
    %1075 = vst.msk [vmem:[#allocation3 + $0x60] sm:$0xff] %vm1070, %v983
    %1076 = vst.msk [vmem:[#allocation3 + $0x78] sm:$0xff] %vm1070, %v985
    %1077 = vst.msk [vmem:[#allocation3 + $0x90] sm:$0xff] %vm1070, %v987
    %1078 = vst.msk [vmem:[#allocation3 + $0xa8] sm:$0xff] %vm1070, %v989
    %1079 = vst.msk [vmem:[#allocation3 + $0xc0] sm:$0xff] %vm1070, %v991
    %1080 = vst.msk [vmem:[#allocation3 + $0xd8] sm:$0xff] %vm1070, %v993
    %1081 = vst.msk [vmem:[#allocation3 + $0xf0] sm:$0xff] %vm1070, %v995
    %1082 = vst.msk [vmem:[#allocation3 + $0x108] sm:$0xff] %vm1070, %v997
    %1083 = vst.msk [vmem:[#allocation3 + $0x120] sm:$0xff] %vm1070, %v999
    %1084 = vst.msk [vmem:[#allocation3 + $0x138] sm:$0xff] %vm1070, %v1001
    %1085 = vst.msk [vmem:[#allocation3 + $0x150] sm:$0xff] %vm1070, %v1003
    %1086 = vst.msk [vmem:[#allocation3 + $0x168] sm:$0xff] %vm1070, %v1005
    %1087 = vst.msk [vmem:[#allocation3 + $0x180] sm:$0xff] %vm1070, %v1007
    %1088 = vst.msk [vmem:[#allocation3 + $0x198] sm:$0xff] %vm1070, %v1009
    %1089 = vst.msk [vmem:[#allocation3 + $0x1b0] sm:$0xff] %vm1070, %v1011
    %1090 = vst.msk [vmem:[#allocation3 + $0x1c8] sm:$0xff] %vm1070, %v1013
    %1091 = vst.msk [vmem:[#allocation3 + $0x1e0] sm:$0xff] %vm1070, %v1015
    %1092 = vst.msk [vmem:[#allocation3 + $0x1f8] sm:$0xff] %vm1070, %v1017
    %1093 = vst.msk [vmem:[#allocation3 + $0x210] sm:$0xff] %vm1070, %v1019
    %1094 = vst.msk [vmem:[#allocation3 + $0x228] sm:$0xff] %vm1070, %v1021
    %1095 = vst.msk [vmem:[#allocation3 + $0x240] sm:$0xff] %vm1070, %v1023
    %1096 = vst.msk [vmem:[#allocation3 + $0x258] sm:$0xff] %vm1070, %v1025
    %1097 = vst.msk [vmem:[#allocation3 + $0x270] sm:$0xff] %vm1070, %v1027
    %1098 = vst.msk [vmem:[#allocation3 + $0x288] sm:$0xff] %vm1070, %v1029
    %1099 = vst.msk [vmem:[#allocation3 + $0x2a0] sm:$0xff] %vm1070, %v1031
    %1100 = vst.msk [vmem:[#allocation3 + $0x2b8] sm:$0xff] %vm1070, %v1033
    %1101 = vst.msk [vmem:[#allocation3 + $0x2d0] sm:$0xff] %vm1070, %v1035
    %1102 = vst.msk [vmem:[#allocation3 + $0x2e8] sm:$0xff] %vm1070, %v1037
    %v1103 = vld [vmem:[%s62] sm:$0xff]
    %v1104 = vld [vmem:[%s62 + $0x8] sm:$0xff]
    %v1105 = vld [vmem:[%s62 + $0x18] sm:$0xff]
    %v1106 = vld [vmem:[%s62 + $0x20] sm:$0xff]
    %v1107 = vld [vmem:[%s62 + $0x30] sm:$0xff]
    %v1108 = vld [vmem:[%s62 + $0x38] sm:$0xff]
    %v1109 = vld [vmem:[%s62 + $0x48] sm:$0xff]
    %v1110 = vld [vmem:[%s62 + $0x50] sm:$0xff]
    %v1111 = vld [vmem:[%s62 + $0x60] sm:$0xff]
    %v1112 = vld [vmem:[%s62 + $0x68] sm:$0xff]
    %v1113 = vld [vmem:[%s62 + $0x78] sm:$0xff]
    %v1114 = vld [vmem:[%s62 + $0x80] sm:$0xff]
    %v1115 = vld [vmem:[%s62 + $0x90] sm:$0xff]
    %v1116 = vld [vmem:[%s62 + $0x98] sm:$0xff]
    %v1117 = vld [vmem:[%s62 + $0xa8] sm:$0xff]
    %v1118 = vld [vmem:[%s62 + $0xb0] sm:$0xff]
    %v1119 = vld [vmem:[%s62 + $0xc0] sm:$0xff]
    %v1120 = vld [vmem:[%s62 + $0xc8] sm:$0xff]
    %v1121 = vld [vmem:[%s62 + $0xd8] sm:$0xff]
    %v1122 = vld [vmem:[%s62 + $0xe0] sm:$0xff]
    %v1123 = vld [vmem:[%s62 + $0xf0] sm:$0xff]
    %v1124 = vld [vmem:[%s62 + $0xf8] sm:$0xff]
    %v1125 = vld [vmem:[%s62 + $0x108] sm:$0xff]
    %v1126 = vld [vmem:[%s62 + $0x110] sm:$0xff]
    %v1127 = vld [vmem:[%s62 + $0x120] sm:$0xff]
    %v1128 = vld [vmem:[%s62 + $0x128] sm:$0xff]
    %v1129 = vld [vmem:[%s62 + $0x138] sm:$0xff]
    %v1130 = vld [vmem:[%s62 + $0x140] sm:$0xff]
    %v1131 = vld [vmem:[%s62 + $0x150] sm:$0xff]
    %v1132 = vld [vmem:[%s62 + $0x158] sm:$0xff]
    %v1133 = vld [vmem:[%s62 + $0x168] sm:$0xff]
    %v1134 = vld [vmem:[%s62 + $0x170] sm:$0xff]
    %1167 = vrot.lane.b32.xlu0 %v1103, 108
    %v1168 = vpop.permute.xlu0 %1167
    %1169 = vrot.lane.b32.xlu0 %v1104, 108
    %v1170 = vpop.permute.xlu0 %1169
    %1171 = vrot.lane.b32.xlu0 %v1105, 108
    %v1172 = vpop.permute.xlu0 %1171
    %1173 = vrot.lane.b32.xlu0 %v1106, 108
    %v1174 = vpop.permute.xlu0 %1173
    %1175 = vrot.lane.b32.xlu0 %v1107, 108
    %v1176 = vpop.permute.xlu0 %1175
    %1177 = vrot.lane.b32.xlu0 %v1108, 108
    %v1178 = vpop.permute.xlu0 %1177
    %1179 = vrot.lane.b32.xlu0 %v1109, 108
    %v1180 = vpop.permute.xlu0 %1179
    %1181 = vrot.lane.b32.xlu0 %v1110, 108
    %v1182 = vpop.permute.xlu0 %1181
    %1183 = vrot.lane.b32.xlu0 %v1111, 108
    %v1184 = vpop.permute.xlu0 %1183
    %1185 = vrot.lane.b32.xlu0 %v1112, 108
    %v1186 = vpop.permute.xlu0 %1185
    %1187 = vrot.lane.b32.xlu0 %v1113, 108
    %v1188 = vpop.permute.xlu0 %1187
    %1189 = vrot.lane.b32.xlu0 %v1114, 108
    %v1190 = vpop.permute.xlu0 %1189
    %1191 = vrot.lane.b32.xlu0 %v1115, 108
    %v1192 = vpop.permute.xlu0 %1191
    %1193 = vrot.lane.b32.xlu0 %v1116, 108
    %v1194 = vpop.permute.xlu0 %1193
    %1195 = vrot.lane.b32.xlu0 %v1117, 108
    %v1196 = vpop.permute.xlu0 %1195
    %1197 = vrot.lane.b32.xlu0 %v1118, 108
    %v1198 = vpop.permute.xlu0 %1197
    %1199 = vrot.lane.b32.xlu0 %v1119, 108
    %v1200 = vpop.permute.xlu0 %1199
    %1201 = vrot.lane.b32.xlu0 %v1120, 108
    %v1202 = vpop.permute.xlu0 %1201
    %1203 = vrot.lane.b32.xlu0 %v1121, 108
    %v1204 = vpop.permute.xlu0 %1203
    %1205 = vrot.lane.b32.xlu0 %v1122, 108
    %v1206 = vpop.permute.xlu0 %1205
    %1207 = vrot.lane.b32.xlu0 %v1123, 108
    %v1208 = vpop.permute.xlu0 %1207
    %1209 = vrot.lane.b32.xlu0 %v1124, 108
    %v1210 = vpop.permute.xlu0 %1209
    %1211 = vrot.lane.b32.xlu0 %v1125, 108
    %v1212 = vpop.permute.xlu0 %1211
    %1213 = vrot.lane.b32.xlu0 %v1126, 108
    %v1214 = vpop.permute.xlu0 %1213
    %1215 = vrot.lane.b32.xlu0 %v1127, 108
    %v1216 = vpop.permute.xlu0 %1215
    %1217 = vrot.lane.b32.xlu0 %v1128, 108
    %v1218 = vpop.permute.xlu0 %1217
    %1219 = vrot.lane.b32.xlu0 %v1129, 108
    %v1220 = vpop.permute.xlu0 %1219
    %1221 = vrot.lane.b32.xlu0 %v1130, 108
    %v1222 = vpop.permute.xlu0 %1221
    %1223 = vrot.lane.b32.xlu0 %v1131, 108
    %v1224 = vpop.permute.xlu0 %1223
    %1225 = vrot.lane.b32.xlu0 %v1132, 108
    %v1226 = vpop.permute.xlu0 %1225
    %1227 = vrot.lane.b32.xlu0 %v1133, 108
    %v1228 = vpop.permute.xlu0 %1227
    %1229 = vrot.lane.b32.xlu0 %v1134, 108
    %v1230 = vpop.permute.xlu0 %1229
    %vm1263 = vcmask 1048416
    %1264 = vst.msk [vmem:[#allocation3] sm:$0xff] %vm1263, %v1168
    %vm1265 = vcmask 130048
    %1266 = vst.msk [vmem:[#allocation3 + $0x8] sm:$0xff] %vm1265, %v1168
    %1267 = vst.msk [vmem:[#allocation3 + $0x18] sm:$0xff] %vm1263, %v1170
    %1268 = vst.msk [vmem:[#allocation3 + $0x20] sm:$0xff] %vm1265, %v1170
    %1269 = vst.msk [vmem:[#allocation3 + $0x30] sm:$0xff] %vm1263, %v1172
    %1270 = vst.msk [vmem:[#allocation3 + $0x38] sm:$0xff] %vm1265, %v1172
    %1271 = vst.msk [vmem:[#allocation3 + $0x48] sm:$0xff] %vm1263, %v1174
    %1272 = vst.msk [vmem:[#allocation3 + $0x50] sm:$0xff] %vm1265, %v1174
    %1273 = vst.msk [vmem:[#allocation3 + $0x60] sm:$0xff] %vm1263, %v1176
    %1274 = vst.msk [vmem:[#allocation3 + $0x68] sm:$0xff] %vm1265, %v1176
    %1275 = vst.msk [vmem:[#allocation3 + $0x78] sm:$0xff] %vm1263, %v1178
    %1276 = vst.msk [vmem:[#allocation3 + $0x80] sm:$0xff] %vm1265, %v1178
    %1277 = vst.msk [vmem:[#allocation3 + $0x90] sm:$0xff] %vm1263, %v1180
    %1278 = vst.msk [vmem:[#allocation3 + $0x98] sm:$0xff] %vm1265, %v1180
    %1279 = vst.msk [vmem:[#allocation3 + $0xa8] sm:$0xff] %vm1263, %v1182
    %1280 = vst.msk [vmem:[#allocation3 + $0xb0] sm:$0xff] %vm1265, %v1182
    %1281 = vst.msk [vmem:[#allocation3 + $0xc0] sm:$0xff] %vm1263, %v1184
    %1282 = vst.msk [vmem:[#allocation3 + $0xc8] sm:$0xff] %vm1265, %v1184
    %1283 = vst.msk [vmem:[#allocation3 + $0xd8] sm:$0xff] %vm1263, %v1186
    %1284 = vst.msk [vmem:[#allocation3 + $0xe0] sm:$0xff] %vm1265, %v1186
    %1285 = vst.msk [vmem:[#allocation3 + $0xf0] sm:$0xff] %vm1263, %v1188
    %1286 = vst.msk [vmem:[#allocation3 + $0xf8] sm:$0xff] %vm1265, %v1188
    %1287 = vst.msk [vmem:[#allocation3 + $0x108] sm:$0xff] %vm1263, %v1190
    %1288 = vst.msk [vmem:[#allocation3 + $0x110] sm:$0xff] %vm1265, %v1190
    %1289 = vst.msk [vmem:[#allocation3 + $0x120] sm:$0xff] %vm1263, %v1192
    %1290 = vst.msk [vmem:[#allocation3 + $0x128] sm:$0xff] %vm1265, %v1192
    %1291 = vst.msk [vmem:[#allocation3 + $0x138] sm:$0xff] %vm1263, %v1194
    %1292 = vst.msk [vmem:[#allocation3 + $0x140] sm:$0xff] %vm1265, %v1194
    %1293 = vst.msk [vmem:[#allocation3 + $0x150] sm:$0xff] %vm1263, %v1196
    %1294 = vst.msk [vmem:[#allocation3 + $0x158] sm:$0xff] %vm1265, %v1196
    %1295 = vst.msk [vmem:[#allocation3 + $0x168] sm:$0xff] %vm1263, %v1198
    %1296 = vst.msk [vmem:[#allocation3 + $0x170] sm:$0xff] %vm1265, %v1198
    %1297 = vst.msk [vmem:[#allocation3 + $0x180] sm:$0xff] %vm1263, %v1200
    %1298 = vst.msk [vmem:[#allocation3 + $0x188] sm:$0xff] %vm1265, %v1200
    %1299 = vst.msk [vmem:[#allocation3 + $0x198] sm:$0xff] %vm1263, %v1202
    %1300 = vst.msk [vmem:[#allocation3 + $0x1a0] sm:$0xff] %vm1265, %v1202
    %1301 = vst.msk [vmem:[#allocation3 + $0x1b0] sm:$0xff] %vm1263, %v1204
    %1302 = vst.msk [vmem:[#allocation3 + $0x1b8] sm:$0xff] %vm1265, %v1204
    %1303 = vst.msk [vmem:[#allocation3 + $0x1c8] sm:$0xff] %vm1263, %v1206
    %1304 = vst.msk [vmem:[#allocation3 + $0x1d0] sm:$0xff] %vm1265, %v1206
    %1305 = vst.msk [vmem:[#allocation3 + $0x1e0] sm:$0xff] %vm1263, %v1208
    %1306 = vst.msk [vmem:[#allocation3 + $0x1e8] sm:$0xff] %vm1265, %v1208
    %1307 = vst.msk [vmem:[#allocation3 + $0x1f8] sm:$0xff] %vm1263, %v1210
    %1308 = vst.msk [vmem:[#allocation3 + $0x200] sm:$0xff] %vm1265, %v1210
    %1309 = vst.msk [vmem:[#allocation3 + $0x210] sm:$0xff] %vm1263, %v1212
    %1310 = vst.msk [vmem:[#allocation3 + $0x218] sm:$0xff] %vm1265, %v1212
    %1311 = vst.msk [vmem:[#allocation3 + $0x228] sm:$0xff] %vm1263, %v1214
    %1312 = vst.msk [vmem:[#allocation3 + $0x230] sm:$0xff] %vm1265, %v1214
    %1313 = vst.msk [vmem:[#allocation3 + $0x240] sm:$0xff] %vm1263, %v1216
    %1314 = vst.msk [vmem:[#allocation3 + $0x248] sm:$0xff] %vm1265, %v1216
    %1315 = vst.msk [vmem:[#allocation3 + $0x258] sm:$0xff] %vm1263, %v1218
    %1316 = vst.msk [vmem:[#allocation3 + $0x260] sm:$0xff] %vm1265, %v1218
    %1317 = vst.msk [vmem:[#allocation3 + $0x270] sm:$0xff] %vm1263, %v1220
    %1318 = vst.msk [vmem:[#allocation3 + $0x278] sm:$0xff] %vm1265, %v1220
    %1319 = vst.msk [vmem:[#allocation3 + $0x288] sm:$0xff] %vm1263, %v1222
    %1320 = vst.msk [vmem:[#allocation3 + $0x290] sm:$0xff] %vm1265, %v1222
    %1321 = vst.msk [vmem:[#allocation3 + $0x2a0] sm:$0xff] %vm1263, %v1224
    %1322 = vst.msk [vmem:[#allocation3 + $0x2a8] sm:$0xff] %vm1265, %v1224
    %1323 = vst.msk [vmem:[#allocation3 + $0x2b8] sm:$0xff] %vm1263, %v1226
    %1324 = vst.msk [vmem:[#allocation3 + $0x2c0] sm:$0xff] %vm1265, %v1226
    %1325 = vst.msk [vmem:[#allocation3 + $0x2d0] sm:$0xff] %vm1263, %v1228
    %1326 = vst.msk [vmem:[#allocation3 + $0x2d8] sm:$0xff] %vm1265, %v1228
    %1327 = vst.msk [vmem:[#allocation3 + $0x2e8] sm:$0xff] %vm1263, %v1230
    %1328 = vst.msk [vmem:[#allocation3 + $0x2f0] sm:$0xff] %vm1265, %v1230
    %v1329 = vld [vmem:[%s62 + $0x1] sm:$0xff]
    %v1330 = vld [vmem:[%s62 + $0x9] sm:$0xff]
    %v1331 = vld [vmem:[%s62 + $0x19] sm:$0xff]
    %v1332 = vld [vmem:[%s62 + $0x21] sm:$0xff]
    %v1333 = vld [vmem:[%s62 + $0x31] sm:$0xff]
    %v1334 = vld [vmem:[%s62 + $0x39] sm:$0xff]
    %v1335 = vld [vmem:[%s62 + $0x49] sm:$0xff]
    %v1336 = vld [vmem:[%s62 + $0x51] sm:$0xff]
    %v1337 = vld [vmem:[%s62 + $0x61] sm:$0xff]
    %v1338 = vld [vmem:[%s62 + $0x69] sm:$0xff]
    %v1339 = vld [vmem:[%s62 + $0x79] sm:$0xff]
    %v1340 = vld [vmem:[%s62 + $0x81] sm:$0xff]
    %v1341 = vld [vmem:[%s62 + $0x91] sm:$0xff]
    %v1342 = vld [vmem:[%s62 + $0x99] sm:$0xff]
    %v1343 = vld [vmem:[%s62 + $0xa9] sm:$0xff]
    %v1344 = vld [vmem:[%s62 + $0xb1] sm:$0xff]
    %v1345 = vld [vmem:[%s62 + $0xc1] sm:$0xff]
    %v1346 = vld [vmem:[%s62 + $0xc9] sm:$0xff]
    %v1347 = vld [vmem:[%s62 + $0xd9] sm:$0xff]
    %v1348 = vld [vmem:[%s62 + $0xe1] sm:$0xff]
    %v1349 = vld [vmem:[%s62 + $0xf1] sm:$0xff]
    %v1350 = vld [vmem:[%s62 + $0xf9] sm:$0xff]
    %v1351 = vld [vmem:[%s62 + $0x109] sm:$0xff]
    %v1352 = vld [vmem:[%s62 + $0x111] sm:$0xff]
    %v1353 = vld [vmem:[%s62 + $0x121] sm:$0xff]
    %v1354 = vld [vmem:[%s62 + $0x129] sm:$0xff]
    %v1355 = vld [vmem:[%s62 + $0x139] sm:$0xff]
    %v1356 = vld [vmem:[%s62 + $0x141] sm:$0xff]
    %v1357 = vld [vmem:[%s62 + $0x151] sm:$0xff]
    %v1358 = vld [vmem:[%s62 + $0x159] sm:$0xff]
    %v1359 = vld [vmem:[%s62 + $0x169] sm:$0xff]
    %v1360 = vld [vmem:[%s62 + $0x171] sm:$0xff]
    %1393 = vrot.lane.b32.xlu0 %v1329, 16
    %v1394 = vpop.permute.xlu0 %1393
    %1395 = vrot.lane.b32.xlu0 %v1330, 16
    %v1396 = vpop.permute.xlu0 %1395
    %1397 = vrot.lane.b32.xlu0 %v1331, 16
    %v1398 = vpop.permute.xlu0 %1397
    %1399 = vrot.lane.b32.xlu0 %v1332, 16
    %v1400 = vpop.permute.xlu0 %1399
    %1401 = vrot.lane.b32.xlu0 %v1333, 16
    %v1402 = vpop.permute.xlu0 %1401
    %1403 = vrot.lane.b32.xlu0 %v1334, 16
    %v1404 = vpop.permute.xlu0 %1403
    %1405 = vrot.lane.b32.xlu0 %v1335, 16
    %v1406 = vpop.permute.xlu0 %1405
    %1407 = vrot.lane.b32.xlu0 %v1336, 16
    %v1408 = vpop.permute.xlu0 %1407
    %1409 = vrot.lane.b32.xlu0 %v1337, 16
    %v1410 = vpop.permute.xlu0 %1409
    %1411 = vrot.lane.b32.xlu0 %v1338, 16
    %v1412 = vpop.permute.xlu0 %1411
    %1413 = vrot.lane.b32.xlu0 %v1339, 16
    %v1414 = vpop.permute.xlu0 %1413
    %1415 = vrot.lane.b32.xlu0 %v1340, 16
    %v1416 = vpop.permute.xlu0 %1415
    %1417 = vrot.lane.b32.xlu0 %v1341, 16
    %v1418 = vpop.permute.xlu0 %1417
    %1419 = vrot.lane.b32.xlu0 %v1342, 16
    %v1420 = vpop.permute.xlu0 %1419
    %1421 = vrot.lane.b32.xlu0 %v1343, 16
    %v1422 = vpop.permute.xlu0 %1421
    %1423 = vrot.lane.b32.xlu0 %v1344, 16
    %v1424 = vpop.permute.xlu0 %1423
    %1425 = vrot.lane.b32.xlu0 %v1345, 16
    %v1426 = vpop.permute.xlu0 %1425
    %1427 = vrot.lane.b32.xlu0 %v1346, 16
    %v1428 = vpop.permute.xlu0 %1427
    %1429 = vrot.lane.b32.xlu0 %v1347, 16
    %v1430 = vpop.permute.xlu0 %1429
    %1431 = vrot.lane.b32.xlu0 %v1348, 16
    %v1432 = vpop.permute.xlu0 %1431
    %1433 = vrot.lane.b32.xlu0 %v1349, 16
    %v1434 = vpop.permute.xlu0 %1433
    %1435 = vrot.lane.b32.xlu0 %v1350, 16
    %v1436 = vpop.permute.xlu0 %1435
    %1437 = vrot.lane.b32.xlu0 %v1351, 16
    %v1438 = vpop.permute.xlu0 %1437
    %1439 = vrot.lane.b32.xlu0 %v1352, 16
    %v1440 = vpop.permute.xlu0 %1439
    %1441 = vrot.lane.b32.xlu0 %v1353, 16
    %v1442 = vpop.permute.xlu0 %1441
    %1443 = vrot.lane.b32.xlu0 %v1354, 16
    %v1444 = vpop.permute.xlu0 %1443
    %1445 = vrot.lane.b32.xlu0 %v1355, 16
    %v1446 = vpop.permute.xlu0 %1445
    %1447 = vrot.lane.b32.xlu0 %v1356, 16
    %v1448 = vpop.permute.xlu0 %1447
    %1449 = vrot.lane.b32.xlu0 %v1357, 16
    %v1450 = vpop.permute.xlu0 %1449
    %1451 = vrot.lane.b32.xlu0 %v1358, 16
    %v1452 = vpop.permute.xlu0 %1451
    %1453 = vrot.lane.b32.xlu0 %v1359, 16
    %v1454 = vpop.permute.xlu0 %1453
    %1455 = vrot.lane.b32.xlu0 %v1360, 16
    %v1456 = vpop.permute.xlu0 %1455
    %vm1489 = vcmask 425088
    %1490 = vst.msk [vmem:[#allocation3 + $0x8] sm:$0xff] %vm1489, %v1394
    %1491 = vst.msk [vmem:[#allocation3 + $0x20] sm:$0xff] %vm1489, %v1396
    %1492 = vst.msk [vmem:[#allocation3 + $0x38] sm:$0xff] %vm1489, %v1398
    %1493 = vst.msk [vmem:[#allocation3 + $0x50] sm:$0xff] %vm1489, %v1400
    %1494 = vst.msk [vmem:[#allocation3 + $0x68] sm:$0xff] %vm1489, %v1402
    %1495 = vst.msk [vmem:[#allocation3 + $0x80] sm:$0xff] %vm1489, %v1404
    %1496 = vst.msk [vmem:[#allocation3 + $0x98] sm:$0xff] %vm1489, %v1406
    %1497 = vst.msk [vmem:[#allocation3 + $0xb0] sm:$0xff] %vm1489, %v1408
    %1498 = vst.msk [vmem:[#allocation3 + $0xc8] sm:$0xff] %vm1489, %v1410
    %1499 = vst.msk [vmem:[#allocation3 + $0xe0] sm:$0xff] %vm1489, %v1412
    %1500 = vst.msk [vmem:[#allocation3 + $0xf8] sm:$0xff] %vm1489, %v1414
    %1501 = vst.msk [vmem:[#allocation3 + $0x110] sm:$0xff] %vm1489, %v1416
    %1502 = vst.msk [vmem:[#allocation3 + $0x128] sm:$0xff] %vm1489, %v1418
    %1503 = vst.msk [vmem:[#allocation3 + $0x140] sm:$0xff] %vm1489, %v1420
    %1504 = vst.msk [vmem:[#allocation3 + $0x158] sm:$0xff] %vm1489, %v1422
    %1505 = vst.msk [vmem:[#allocation3 + $0x170] sm:$0xff] %vm1489, %v1424
    %1506 = vst.msk [vmem:[#allocation3 + $0x188] sm:$0xff] %vm1489, %v1426
    %1507 = vst.msk [vmem:[#allocation3 + $0x1a0] sm:$0xff] %vm1489, %v1428
    %1508 = vst.msk [vmem:[#allocation3 + $0x1b8] sm:$0xff] %vm1489, %v1430
    %1509 = vst.msk [vmem:[#allocation3 + $0x1d0] sm:$0xff] %vm1489, %v1432
    %1510 = vst.msk [vmem:[#allocation3 + $0x1e8] sm:$0xff] %vm1489, %v1434
    %1511 = vst.msk [vmem:[#allocation3 + $0x200] sm:$0xff] %vm1489, %v1436
    %1512 = vst.msk [vmem:[#allocation3 + $0x218] sm:$0xff] %vm1489, %v1438
    %1513 = vst.msk [vmem:[#allocation3 + $0x230] sm:$0xff] %vm1489, %v1440
    %1514 = vst.msk [vmem:[#allocation3 + $0x248] sm:$0xff] %vm1489, %v1442
    %1515 = vst.msk [vmem:[#allocation3 + $0x260] sm:$0xff] %vm1489, %v1444
    %1516 = vst.msk [vmem:[#allocation3 + $0x278] sm:$0xff] %vm1489, %v1446
    %1517 = vst.msk [vmem:[#allocation3 + $0x290] sm:$0xff] %vm1489, %v1448
    %1518 = vst.msk [vmem:[#allocation3 + $0x2a8] sm:$0xff] %vm1489, %v1450
    %1519 = vst.msk [vmem:[#allocation3 + $0x2c0] sm:$0xff] %vm1489, %v1452
    %1520 = vst.msk [vmem:[#allocation3 + $0x2d8] sm:$0xff] %vm1489, %v1454
    %1521 = vst.msk [vmem:[#allocation3 + $0x2f0] sm:$0xff] %vm1489, %v1456
    %v1522 = vld [vmem:[%s62 + $0x2] sm:$0xff]
    %v1523 = vld [vmem:[%s62 + $0xa] sm:$0xff]
    %v1524 = vld [vmem:[%s62 + $0x1a] sm:$0xff]
    %v1525 = vld [vmem:[%s62 + $0x22] sm:$0xff]
    %v1526 = vld [vmem:[%s62 + $0x32] sm:$0xff]
    %v1527 = vld [vmem:[%s62 + $0x3a] sm:$0xff]
    %v1528 = vld [vmem:[%s62 + $0x4a] sm:$0xff]
    %v1529 = vld [vmem:[%s62 + $0x52] sm:$0xff]
    %v1530 = vld [vmem:[%s62 + $0x62] sm:$0xff]
    %v1531 = vld [vmem:[%s62 + $0x6a] sm:$0xff]
    %v1532 = vld [vmem:[%s62 + $0x7a] sm:$0xff]
    %v1533 = vld [vmem:[%s62 + $0x82] sm:$0xff]
    %v1534 = vld [vmem:[%s62 + $0x92] sm:$0xff]
    %v1535 = vld [vmem:[%s62 + $0x9a] sm:$0xff]
    %v1536 = vld [vmem:[%s62 + $0xaa] sm:$0xff]
    %v1537 = vld [vmem:[%s62 + $0xb2] sm:$0xff]
    %v1538 = vld [vmem:[%s62 + $0xc2] sm:$0xff]
    %v1539 = vld [vmem:[%s62 + $0xca] sm:$0xff]
    %v1540 = vld [vmem:[%s62 + $0xda] sm:$0xff]
    %v1541 = vld [vmem:[%s62 + $0xe2] sm:$0xff]
    %v1542 = vld [vmem:[%s62 + $0xf2] sm:$0xff]
    %v1543 = vld [vmem:[%s62 + $0xfa] sm:$0xff]
    %v1544 = vld [vmem:[%s62 + $0x10a] sm:$0xff]
    %v1545 = vld [vmem:[%s62 + $0x112] sm:$0xff]
    %v1546 = vld [vmem:[%s62 + $0x122] sm:$0xff]
    %v1547 = vld [vmem:[%s62 + $0x12a] sm:$0xff]
    %v1548 = vld [vmem:[%s62 + $0x13a] sm:$0xff]
    %v1549 = vld [vmem:[%s62 + $0x142] sm:$0xff]
    %v1550 = vld [vmem:[%s62 + $0x152] sm:$0xff]
    %v1551 = vld [vmem:[%s62 + $0x15a] sm:$0xff]
    %v1552 = vld [vmem:[%s62 + $0x16a] sm:$0xff]
    %v1553 = vld [vmem:[%s62 + $0x172] sm:$0xff]
    %1586 = vrot.lane.b32.xlu0 %v1522, 52
    %v1587 = vpop.permute.xlu0 %1586
    %1588 = vrot.lane.b32.xlu0 %v1523, 52
    %v1589 = vpop.permute.xlu0 %1588
    %1590 = vrot.lane.b32.xlu0 %v1524, 52
    %v1591 = vpop.permute.xlu0 %1590
    %1592 = vrot.lane.b32.xlu0 %v1525, 52
    %v1593 = vpop.permute.xlu0 %1592
    %1594 = vrot.lane.b32.xlu0 %v1526, 52
    %v1595 = vpop.permute.xlu0 %1594
    %1596 = vrot.lane.b32.xlu0 %v1527, 52
    %v1597 = vpop.permute.xlu0 %1596
    %1598 = vrot.lane.b32.xlu0 %v1528, 52
    %v1599 = vpop.permute.xlu0 %1598
    %1600 = vrot.lane.b32.xlu0 %v1529, 52
    %v1601 = vpop.permute.xlu0 %1600
    %1602 = vrot.lane.b32.xlu0 %v1530, 52
    %v1603 = vpop.permute.xlu0 %1602
    %1604 = vrot.lane.b32.xlu0 %v1531, 52
    %v1605 = vpop.permute.xlu0 %1604
    %1606 = vrot.lane.b32.xlu0 %v1532, 52
    %v1607 = vpop.permute.xlu0 %1606
    %1608 = vrot.lane.b32.xlu0 %v1533, 52
    %v1609 = vpop.permute.xlu0 %1608
    %1610 = vrot.lane.b32.xlu0 %v1534, 52
    %v1611 = vpop.permute.xlu0 %1610
    %1612 = vrot.lane.b32.xlu0 %v1535, 52
    %v1613 = vpop.permute.xlu0 %1612
    %1614 = vrot.lane.b32.xlu0 %v1536, 52
    %v1615 = vpop.permute.xlu0 %1614
    %1616 = vrot.lane.b32.xlu0 %v1537, 52
    %v1617 = vpop.permute.xlu0 %1616
    %1618 = vrot.lane.b32.xlu0 %v1538, 52
    %v1619 = vpop.permute.xlu0 %1618
    %1620 = vrot.lane.b32.xlu0 %v1539, 52
    %v1621 = vpop.permute.xlu0 %1620
    %1622 = vrot.lane.b32.xlu0 %v1540, 52
    %v1623 = vpop.permute.xlu0 %1622
    %1624 = vrot.lane.b32.xlu0 %v1541, 52
    %v1625 = vpop.permute.xlu0 %1624
    %1626 = vrot.lane.b32.xlu0 %v1542, 52
    %v1627 = vpop.permute.xlu0 %1626
    %1628 = vrot.lane.b32.xlu0 %v1543, 52
    %v1629 = vpop.permute.xlu0 %1628
    %1630 = vrot.lane.b32.xlu0 %v1544, 52
    %v1631 = vpop.permute.xlu0 %1630
    %1632 = vrot.lane.b32.xlu0 %v1545, 52
    %v1633 = vpop.permute.xlu0 %1632
    %1634 = vrot.lane.b32.xlu0 %v1546, 52
    %v1635 = vpop.permute.xlu0 %1634
    %1636 = vrot.lane.b32.xlu0 %v1547, 52
    %v1637 = vpop.permute.xlu0 %1636
    %1638 = vrot.lane.b32.xlu0 %v1548, 52
    %v1639 = vpop.permute.xlu0 %1638
    %1640 = vrot.lane.b32.xlu0 %v1549, 52
    %v1641 = vpop.permute.xlu0 %1640
    %1642 = vrot.lane.b32.xlu0 %v1550, 52
    %v1643 = vpop.permute.xlu0 %1642
    %1644 = vrot.lane.b32.xlu0 %v1551, 52
    %v1645 = vpop.permute.xlu0 %1644
    %1646 = vrot.lane.b32.xlu0 %v1552, 52
    %v1647 = vpop.permute.xlu0 %1646
    %1648 = vrot.lane.b32.xlu0 %v1553, 52
    %v1649 = vpop.permute.xlu0 %1648
    %vm1682 = vcmask 720288
    %1683 = vst.msk [vmem:[#allocation3 + $0x8] sm:$0xff] %vm1682, %v1587
    %1684 = vst.msk [vmem:[#allocation3 + $0x20] sm:$0xff] %vm1682, %v1589
    %1685 = vst.msk [vmem:[#allocation3 + $0x38] sm:$0xff] %vm1682, %v1591
    %1686 = vst.msk [vmem:[#allocation3 + $0x50] sm:$0xff] %vm1682, %v1593
    %1687 = vst.msk [vmem:[#allocation3 + $0x68] sm:$0xff] %vm1682, %v1595
    %1688 = vst.msk [vmem:[#allocation3 + $0x80] sm:$0xff] %vm1682, %v1597
    %1689 = vst.msk [vmem:[#allocation3 + $0x98] sm:$0xff] %vm1682, %v1599
    %1690 = vst.msk [vmem:[#allocation3 + $0xb0] sm:$0xff] %vm1682, %v1601
    %1691 = vst.msk [vmem:[#allocation3 + $0xc8] sm:$0xff] %vm1682, %v1603
    %1692 = vst.msk [vmem:[#allocation3 + $0xe0] sm:$0xff] %vm1682, %v1605
    %1693 = vst.msk [vmem:[#allocation3 + $0xf8] sm:$0xff] %vm1682, %v1607
    %1694 = vst.msk [vmem:[#allocation3 + $0x110] sm:$0xff] %vm1682, %v1609
    %1695 = vst.msk [vmem:[#allocation3 + $0x128] sm:$0xff] %vm1682, %v1611
    %1696 = vst.msk [vmem:[#allocation3 + $0x140] sm:$0xff] %vm1682, %v1613
    %1697 = vst.msk [vmem:[#allocation3 + $0x158] sm:$0xff] %vm1682, %v1615
    %1698 = vst.msk [vmem:[#allocation3 + $0x170] sm:$0xff] %vm1682, %v1617
    %1699 = vst.msk [vmem:[#allocation3 + $0x188] sm:$0xff] %vm1682, %v1619
    %1700 = vst.msk [vmem:[#allocation3 + $0x1a0] sm:$0xff] %vm1682, %v1621
    %1701 = vst.msk [vmem:[#allocation3 + $0x1b8] sm:$0xff] %vm1682, %v1623
    %1702 = vst.msk [vmem:[#allocation3 + $0x1d0] sm:$0xff] %vm1682, %v1625
    %1703 = vst.msk [vmem:[#allocation3 + $0x1e8] sm:$0xff] %vm1682, %v1627
    %1704 = vst.msk [vmem:[#allocation3 + $0x200] sm:$0xff] %vm1682, %v1629
    %1705 = vst.msk [vmem:[#allocation3 + $0x218] sm:$0xff] %vm1682, %v1631
    %1706 = vst.msk [vmem:[#allocation3 + $0x230] sm:$0xff] %vm1682, %v1633
    %1707 = vst.msk [vmem:[#allocation3 + $0x248] sm:$0xff] %vm1682, %v1635
    %1708 = vst.msk [vmem:[#allocation3 + $0x260] sm:$0xff] %vm1682, %v1637
    %1709 = vst.msk [vmem:[#allocation3 + $0x278] sm:$0xff] %vm1682, %v1639
    %1710 = vst.msk [vmem:[#allocation3 + $0x290] sm:$0xff] %vm1682, %v1641
    %1711 = vst.msk [vmem:[#allocation3 + $0x2a8] sm:$0xff] %vm1682, %v1643
    %1712 = vst.msk [vmem:[#allocation3 + $0x2c0] sm:$0xff] %vm1682, %v1645
    %1713 = vst.msk [vmem:[#allocation3 + $0x2d8] sm:$0xff] %vm1682, %v1647
    %1714 = vst.msk [vmem:[#allocation3 + $0x2f0] sm:$0xff] %vm1682, %v1649
    %s1715 = scalar_lea.vmem [#allocation2], 48
    %v1716 = vld [vmem:[%s1715] sm:$0xff]
    %v1717 = vld [vmem:[%s1715 + $0x8] sm:$0xff]
    %v1718 = vld [vmem:[%s1715 + $0x18] sm:$0xff]
    %v1719 = vld [vmem:[%s1715 + $0x20] sm:$0xff]
    %v1720 = vld [vmem:[%s1715 + $0x30] sm:$0xff]
    %v1721 = vld [vmem:[%s1715 + $0x38] sm:$0xff]
    %v1722 = vld [vmem:[%s1715 + $0x48] sm:$0xff]
    %v1723 = vld [vmem:[%s1715 + $0x50] sm:$0xff]
    %v1724 = vld [vmem:[%s1715 + $0x60] sm:$0xff]
    %v1725 = vld [vmem:[%s1715 + $0x68] sm:$0xff]
    %v1726 = vld [vmem:[%s1715 + $0x78] sm:$0xff]
    %v1727 = vld [vmem:[%s1715 + $0x80] sm:$0xff]
    %v1728 = vld [vmem:[%s1715 + $0x90] sm:$0xff]
    %v1729 = vld [vmem:[%s1715 + $0x98] sm:$0xff]
    %v1730 = vld [vmem:[%s1715 + $0xa8] sm:$0xff]
    %v1731 = vld [vmem:[%s1715 + $0xb0] sm:$0xff]
    %v1732 = vld [vmem:[%s1715 + $0xc0] sm:$0xff]
    %v1733 = vld [vmem:[%s1715 + $0xc8] sm:$0xff]
    %v1734 = vld [vmem:[%s1715 + $0xd8] sm:$0xff]
    %v1735 = vld [vmem:[%s1715 + $0xe0] sm:$0xff]
    %v1736 = vld [vmem:[%s1715 + $0xf0] sm:$0xff]
    %v1737 = vld [vmem:[%s1715 + $0xf8] sm:$0xff]
    %v1738 = vld [vmem:[%s1715 + $0x108] sm:$0xff]
    %v1739 = vld [vmem:[%s1715 + $0x110] sm:$0xff]
    %v1740 = vld [vmem:[%s1715 + $0x120] sm:$0xff]
    %v1741 = vld [vmem:[%s1715 + $0x128] sm:$0xff]
    %v1742 = vld [vmem:[%s1715 + $0x138] sm:$0xff]
    %v1743 = vld [vmem:[%s1715 + $0x140] sm:$0xff]
    %v1744 = vld [vmem:[%s1715 + $0x150] sm:$0xff]
    %v1745 = vld [vmem:[%s1715 + $0x158] sm:$0xff]
    %v1746 = vld [vmem:[%s1715 + $0x168] sm:$0xff]
    %v1747 = vld [vmem:[%s1715 + $0x170] sm:$0xff]
    %1780 = vrot.lane.b32.xlu0 %v1716, 88
    %v1781 = vpop.permute.xlu0 %1780
    %1782 = vrot.lane.b32.xlu0 %v1717, 88
    %v1783 = vpop.permute.xlu0 %1782
    %1784 = vrot.lane.b32.xlu0 %v1718, 88
    %v1785 = vpop.permute.xlu0 %1784
    %1786 = vrot.lane.b32.xlu0 %v1719, 88
    %v1787 = vpop.permute.xlu0 %1786
    %1788 = vrot.lane.b32.xlu0 %v1720, 88
    %v1789 = vpop.permute.xlu0 %1788
    %1790 = vrot.lane.b32.xlu0 %v1721, 88
    %v1791 = vpop.permute.xlu0 %1790
    %1792 = vrot.lane.b32.xlu0 %v1722, 88
    %v1793 = vpop.permute.xlu0 %1792
    %1794 = vrot.lane.b32.xlu0 %v1723, 88
    %v1795 = vpop.permute.xlu0 %1794
    %1796 = vrot.lane.b32.xlu0 %v1724, 88
    %v1797 = vpop.permute.xlu0 %1796
    %1798 = vrot.lane.b32.xlu0 %v1725, 88
    %v1799 = vpop.permute.xlu0 %1798
    %1800 = vrot.lane.b32.xlu0 %v1726, 88
    %v1801 = vpop.permute.xlu0 %1800
    %1802 = vrot.lane.b32.xlu0 %v1727, 88
    %v1803 = vpop.permute.xlu0 %1802
    %1804 = vrot.lane.b32.xlu0 %v1728, 88
    %v1805 = vpop.permute.xlu0 %1804
    %1806 = vrot.lane.b32.xlu0 %v1729, 88
    %v1807 = vpop.permute.xlu0 %1806
    %1808 = vrot.lane.b32.xlu0 %v1730, 88
    %v1809 = vpop.permute.xlu0 %1808
    %1810 = vrot.lane.b32.xlu0 %v1731, 88
    %v1811 = vpop.permute.xlu0 %1810
    %1812 = vrot.lane.b32.xlu0 %v1732, 88
    %v1813 = vpop.permute.xlu0 %1812
    %1814 = vrot.lane.b32.xlu0 %v1733, 88
    %v1815 = vpop.permute.xlu0 %1814
    %1816 = vrot.lane.b32.xlu0 %v1734, 88
    %v1817 = vpop.permute.xlu0 %1816
    %1818 = vrot.lane.b32.xlu0 %v1735, 88
    %v1819 = vpop.permute.xlu0 %1818
    %1820 = vrot.lane.b32.xlu0 %v1736, 88
    %v1821 = vpop.permute.xlu0 %1820
    %1822 = vrot.lane.b32.xlu0 %v1737, 88
    %v1823 = vpop.permute.xlu0 %1822
    %1824 = vrot.lane.b32.xlu0 %v1738, 88
    %v1825 = vpop.permute.xlu0 %1824
    %1826 = vrot.lane.b32.xlu0 %v1739, 88
    %v1827 = vpop.permute.xlu0 %1826
    %1828 = vrot.lane.b32.xlu0 %v1740, 88
    %v1829 = vpop.permute.xlu0 %1828
    %1830 = vrot.lane.b32.xlu0 %v1741, 88
    %v1831 = vpop.permute.xlu0 %1830
    %1832 = vrot.lane.b32.xlu0 %v1742, 88
    %v1833 = vpop.permute.xlu0 %1832
    %1834 = vrot.lane.b32.xlu0 %v1743, 88
    %v1835 = vpop.permute.xlu0 %1834
    %1836 = vrot.lane.b32.xlu0 %v1744, 88
    %v1837 = vpop.permute.xlu0 %1836
    %1838 = vrot.lane.b32.xlu0 %v1745, 88
    %v1839 = vpop.permute.xlu0 %1838
    %1840 = vrot.lane.b32.xlu0 %v1746, 88
    %v1841 = vpop.permute.xlu0 %1840
    %1842 = vrot.lane.b32.xlu0 %v1747, 88
    %v1843 = vpop.permute.xlu0 %1842
    %vm1876 = vcmask 1015488
    %1877 = vst.msk [vmem:[#allocation3 + $0x8] sm:$0xff] %vm1876, %v1781
    %1878 = vst.msk [vmem:[#allocation3 + $0x20] sm:$0xff] %vm1876, %v1783
    %1879 = vst.msk [vmem:[#allocation3 + $0x38] sm:$0xff] %vm1876, %v1785
    %1880 = vst.msk [vmem:[#allocation3 + $0x50] sm:$0xff] %vm1876, %v1787
    %1881 = vst.msk [vmem:[#allocation3 + $0x68] sm:$0xff] %vm1876, %v1789
    %1882 = vst.msk [vmem:[#allocation3 + $0x80] sm:$0xff] %vm1876, %v1791
    %1883 = vst.msk [vmem:[#allocation3 + $0x98] sm:$0xff] %vm1876, %v1793
    %1884 = vst.msk [vmem:[#allocation3 + $0xb0] sm:$0xff] %vm1876, %v1795
    %1885 = vst.msk [vmem:[#allocation3 + $0xc8] sm:$0xff] %vm1876, %v1797
    %1886 = vst.msk [vmem:[#allocation3 + $0xe0] sm:$0xff] %vm1876, %v1799
    %1887 = vst.msk [vmem:[#allocation3 + $0xf8] sm:$0xff] %vm1876, %v1801
    %1888 = vst.msk [vmem:[#allocation3 + $0x110] sm:$0xff] %vm1876, %v1803
    %1889 = vst.msk [vmem:[#allocation3 + $0x128] sm:$0xff] %vm1876, %v1805
    %1890 = vst.msk [vmem:[#allocation3 + $0x140] sm:$0xff] %vm1876, %v1807
    %1891 = vst.msk [vmem:[#allocation3 + $0x158] sm:$0xff] %vm1876, %v1809
    %1892 = vst.msk [vmem:[#allocation3 + $0x170] sm:$0xff] %vm1876, %v1811
    %1893 = vst.msk [vmem:[#allocation3 + $0x188] sm:$0xff] %vm1876, %v1813
    %1894 = vst.msk [vmem:[#allocation3 + $0x1a0] sm:$0xff] %vm1876, %v1815
    %1895 = vst.msk [vmem:[#allocation3 + $0x1b8] sm:$0xff] %vm1876, %v1817
    %1896 = vst.msk [vmem:[#allocation3 + $0x1d0] sm:$0xff] %vm1876, %v1819
    %1897 = vst.msk [vmem:[#allocation3 + $0x1e8] sm:$0xff] %vm1876, %v1821
    %1898 = vst.msk [vmem:[#allocation3 + $0x200] sm:$0xff] %vm1876, %v1823
    %1899 = vst.msk [vmem:[#allocation3 + $0x218] sm:$0xff] %vm1876, %v1825
    %1900 = vst.msk [vmem:[#allocation3 + $0x230] sm:$0xff] %vm1876, %v1827
    %1901 = vst.msk [vmem:[#allocation3 + $0x248] sm:$0xff] %vm1876, %v1829
    %1902 = vst.msk [vmem:[#allocation3 + $0x260] sm:$0xff] %vm1876, %v1831
    %1903 = vst.msk [vmem:[#allocation3 + $0x278] sm:$0xff] %vm1876, %v1833
    %1904 = vst.msk [vmem:[#allocation3 + $0x290] sm:$0xff] %vm1876, %v1835
    %1905 = vst.msk [vmem:[#allocation3 + $0x2a8] sm:$0xff] %vm1876, %v1837
    %1906 = vst.msk [vmem:[#allocation3 + $0x2c0] sm:$0xff] %vm1876, %v1839
    %1907 = vst.msk [vmem:[#allocation3 + $0x2d8] sm:$0xff] %vm1876, %v1841
    %1908 = vst.msk [vmem:[#allocation3 + $0x2f0] sm:$0xff] %vm1876, %v1843
    %v1909 = vld [vmem:[%s1715 + $0x1] sm:$0xff]
    %v1910 = vld [vmem:[%s1715 + $0x9] sm:$0xff]
    %v1911 = vld [vmem:[%s1715 + $0x19] sm:$0xff]
    %v1912 = vld [vmem:[%s1715 + $0x21] sm:$0xff]
    %v1913 = vld [vmem:[%s1715 + $0x31] sm:$0xff]
    %v1914 = vld [vmem:[%s1715 + $0x39] sm:$0xff]
    %v1915 = vld [vmem:[%s1715 + $0x49] sm:$0xff]
    %v1916 = vld [vmem:[%s1715 + $0x51] sm:$0xff]
    %v1917 = vld [vmem:[%s1715 + $0x61] sm:$0xff]
    %v1918 = vld [vmem:[%s1715 + $0x69] sm:$0xff]
    %v1919 = vld [vmem:[%s1715 + $0x79] sm:$0xff]
    %v1920 = vld [vmem:[%s1715 + $0x81] sm:$0xff]
    %v1921 = vld [vmem:[%s1715 + $0x91] sm:$0xff]
    %v1922 = vld [vmem:[%s1715 + $0x99] sm:$0xff]
    %v1923 = vld [vmem:[%s1715 + $0xa9] sm:$0xff]
    %v1924 = vld [vmem:[%s1715 + $0xb1] sm:$0xff]
    %v1925 = vld [vmem:[%s1715 + $0xc1] sm:$0xff]
    %v1926 = vld [vmem:[%s1715 + $0xc9] sm:$0xff]
    %v1927 = vld [vmem:[%s1715 + $0xd9] sm:$0xff]
    %v1928 = vld [vmem:[%s1715 + $0xe1] sm:$0xff]
    %v1929 = vld [vmem:[%s1715 + $0xf1] sm:$0xff]
    %v1930 = vld [vmem:[%s1715 + $0xf9] sm:$0xff]
    %v1931 = vld [vmem:[%s1715 + $0x109] sm:$0xff]
    %v1932 = vld [vmem:[%s1715 + $0x111] sm:$0xff]
    %v1933 = vld [vmem:[%s1715 + $0x121] sm:$0xff]
    %v1934 = vld [vmem:[%s1715 + $0x129] sm:$0xff]
    %v1935 = vld [vmem:[%s1715 + $0x139] sm:$0xff]
    %v1936 = vld [vmem:[%s1715 + $0x141] sm:$0xff]
    %v1937 = vld [vmem:[%s1715 + $0x151] sm:$0xff]
    %v1938 = vld [vmem:[%s1715 + $0x159] sm:$0xff]
    %v1939 = vld [vmem:[%s1715 + $0x169] sm:$0xff]
    %v1940 = vld [vmem:[%s1715 + $0x171] sm:$0xff]
    %1973 = vrot.lane.b32.xlu0 %v1909, 124
    %v1974 = vpop.permute.xlu0 %1973
    %1975 = vrot.lane.b32.xlu0 %v1910, 124
    %v1976 = vpop.permute.xlu0 %1975
    %1977 = vrot.lane.b32.xlu0 %v1911, 124
    %v1978 = vpop.permute.xlu0 %1977
    %1979 = vrot.lane.b32.xlu0 %v1912, 124
    %v1980 = vpop.permute.xlu0 %1979
    %1981 = vrot.lane.b32.xlu0 %v1913, 124
    %v1982 = vpop.permute.xlu0 %1981
    %1983 = vrot.lane.b32.xlu0 %v1914, 124
    %v1984 = vpop.permute.xlu0 %1983
    %1985 = vrot.lane.b32.xlu0 %v1915, 124
    %v1986 = vpop.permute.xlu0 %1985
    %1987 = vrot.lane.b32.xlu0 %v1916, 124
    %v1988 = vpop.permute.xlu0 %1987
    %1989 = vrot.lane.b32.xlu0 %v1917, 124
    %v1990 = vpop.permute.xlu0 %1989
    %1991 = vrot.lane.b32.xlu0 %v1918, 124
    %v1992 = vpop.permute.xlu0 %1991
    %1993 = vrot.lane.b32.xlu0 %v1919, 124
    %v1994 = vpop.permute.xlu0 %1993
    %1995 = vrot.lane.b32.xlu0 %v1920, 124
    %v1996 = vpop.permute.xlu0 %1995
    %1997 = vrot.lane.b32.xlu0 %v1921, 124
    %v1998 = vpop.permute.xlu0 %1997
    %1999 = vrot.lane.b32.xlu0 %v1922, 124
    %v2000 = vpop.permute.xlu0 %1999
    %2001 = vrot.lane.b32.xlu0 %v1923, 124
    %v2002 = vpop.permute.xlu0 %2001
    %2003 = vrot.lane.b32.xlu0 %v1924, 124
    %v2004 = vpop.permute.xlu0 %2003
    %2005 = vrot.lane.b32.xlu0 %v1925, 124
    %v2006 = vpop.permute.xlu0 %2005
    %2007 = vrot.lane.b32.xlu0 %v1926, 124
    %v2008 = vpop.permute.xlu0 %2007
    %2009 = vrot.lane.b32.xlu0 %v1927, 124
    %v2010 = vpop.permute.xlu0 %2009
    %2011 = vrot.lane.b32.xlu0 %v1928, 124
    %v2012 = vpop.permute.xlu0 %2011
    %2013 = vrot.lane.b32.xlu0 %v1929, 124
    %v2014 = vpop.permute.xlu0 %2013
    %2015 = vrot.lane.b32.xlu0 %v1930, 124
    %v2016 = vpop.permute.xlu0 %2015
    %2017 = vrot.lane.b32.xlu0 %v1931, 124
    %v2018 = vpop.permute.xlu0 %2017
    %2019 = vrot.lane.b32.xlu0 %v1932, 124
    %v2020 = vpop.permute.xlu0 %2019
    %2021 = vrot.lane.b32.xlu0 %v1933, 124
    %v2022 = vpop.permute.xlu0 %2021
    %2023 = vrot.lane.b32.xlu0 %v1934, 124
    %v2024 = vpop.permute.xlu0 %2023
    %2025 = vrot.lane.b32.xlu0 %v1935, 124
    %v2026 = vpop.permute.xlu0 %2025
    %2027 = vrot.lane.b32.xlu0 %v1936, 124
    %v2028 = vpop.permute.xlu0 %2027
    %2029 = vrot.lane.b32.xlu0 %v1937, 124
    %v2030 = vpop.permute.xlu0 %2029
    %2031 = vrot.lane.b32.xlu0 %v1938, 124
    %v2032 = vpop.permute.xlu0 %2031
    %2033 = vrot.lane.b32.xlu0 %v1939, 124
    %v2034 = vpop.permute.xlu0 %2033
    %2035 = vrot.lane.b32.xlu0 %v1940, 124
    %v2036 = vpop.permute.xlu0 %2035
    %vm2069 = vcmask 1048544
    %2070 = vst.msk [vmem:[#allocation3 + $0x8] sm:$0xff] %vm2069, %v1974
    %vm2071 = vcmask 261120
    %2072 = vst.msk [vmem:[#allocation3 + $0x10] sm:$0xff] %vm2071, %v1974
    %2073 = vst.msk [vmem:[#allocation3 + $0x20] sm:$0xff] %vm2069, %v1976
    %2074 = vst.msk [vmem:[#allocation3 + $0x28] sm:$0xff] %vm2071, %v1976
    %2075 = vst.msk [vmem:[#allocation3 + $0x38] sm:$0xff] %vm2069, %v1978
    %2076 = vst.msk [vmem:[#allocation3 + $0x40] sm:$0xff] %vm2071, %v1978
    %2077 = vst.msk [vmem:[#allocation3 + $0x50] sm:$0xff] %vm2069, %v1980
    %2078 = vst.msk [vmem:[#allocation3 + $0x58] sm:$0xff] %vm2071, %v1980
    %2079 = vst.msk [vmem:[#allocation3 + $0x68] sm:$0xff] %vm2069, %v1982
    %2080 = vst.msk [vmem:[#allocation3 + $0x70] sm:$0xff] %vm2071, %v1982
    %2081 = vst.msk [vmem:[#allocation3 + $0x80] sm:$0xff] %vm2069, %v1984
    %2082 = vst.msk [vmem:[#allocation3 + $0x88] sm:$0xff] %vm2071, %v1984
    %2083 = vst.msk [vmem:[#allocation3 + $0x98] sm:$0xff] %vm2069, %v1986
    %2084 = vst.msk [vmem:[#allocation3 + $0xa0] sm:$0xff] %vm2071, %v1986
    %2085 = vst.msk [vmem:[#allocation3 + $0xb0] sm:$0xff] %vm2069, %v1988
    %2086 = vst.msk [vmem:[#allocation3 + $0xb8] sm:$0xff] %vm2071, %v1988
    %2087 = vst.msk [vmem:[#allocation3 + $0xc8] sm:$0xff] %vm2069, %v1990
    %2088 = vst.msk [vmem:[#allocation3 + $0xd0] sm:$0xff] %vm2071, %v1990
    %2089 = vst.msk [vmem:[#allocation3 + $0xe0] sm:$0xff] %vm2069, %v1992
    %2090 = vst.msk [vmem:[#allocation3 + $0xe8] sm:$0xff] %vm2071, %v1992
    %2091 = vst.msk [vmem:[#allocation3 + $0xf8] sm:$0xff] %vm2069, %v1994
    %2092 = vst.msk [vmem:[#allocation3 + $0x100] sm:$0xff] %vm2071, %v1994
    %2093 = vst.msk [vmem:[#allocation3 + $0x110] sm:$0xff] %vm2069, %v1996
    %2094 = vst.msk [vmem:[#allocation3 + $0x118] sm:$0xff] %vm2071, %v1996
    %2095 = vst.msk [vmem:[#allocation3 + $0x128] sm:$0xff] %vm2069, %v1998
    %2096 = vst.msk [vmem:[#allocation3 + $0x130] sm:$0xff] %vm2071, %v1998
    %2097 = vst.msk [vmem:[#allocation3 + $0x140] sm:$0xff] %vm2069, %v2000
    %2098 = vst.msk [vmem:[#allocation3 + $0x148] sm:$0xff] %vm2071, %v2000
    %2099 = vst.msk [vmem:[#allocation3 + $0x158] sm:$0xff] %vm2069, %v2002
    %2100 = vst.msk [vmem:[#allocation3 + $0x160] sm:$0xff] %vm2071, %v2002
    %2101 = vst.msk [vmem:[#allocation3 + $0x170] sm:$0xff] %vm2069, %v2004
    %2102 = vst.msk [vmem:[#allocation3 + $0x178] sm:$0xff] %vm2071, %v2004
    %2103 = vst.msk [vmem:[#allocation3 + $0x188] sm:$0xff] %vm2069, %v2006
    %2104 = vst.msk [vmem:[#allocation3 + $0x190] sm:$0xff] %vm2071, %v2006
    %2105 = vst.msk [vmem:[#allocation3 + $0x1a0] sm:$0xff] %vm2069, %v2008
    %2106 = vst.msk [vmem:[#allocation3 + $0x1a8] sm:$0xff] %vm2071, %v2008
    %2107 = vst.msk [vmem:[#allocation3 + $0x1b8] sm:$0xff] %vm2069, %v2010
    %2108 = vst.msk [vmem:[#allocation3 + $0x1c0] sm:$0xff] %vm2071, %v2010
    %2109 = vst.msk [vmem:[#allocation3 + $0x1d0] sm:$0xff] %vm2069, %v2012
    %2110 = vst.msk [vmem:[#allocation3 + $0x1d8] sm:$0xff] %vm2071, %v2012
    %2111 = vst.msk [vmem:[#allocation3 + $0x1e8] sm:$0xff] %vm2069, %v2014
    %2112 = vst.msk [vmem:[#allocation3 + $0x1f0] sm:$0xff] %vm2071, %v2014
    %2113 = vst.msk [vmem:[#allocation3 + $0x200] sm:$0xff] %vm2069, %v2016
    %2114 = vst.msk [vmem:[#allocation3 + $0x208] sm:$0xff] %vm2071, %v2016
    %2115 = vst.msk [vmem:[#allocation3 + $0x218] sm:$0xff] %vm2069, %v2018
    %2116 = vst.msk [vmem:[#allocation3 + $0x220] sm:$0xff] %vm2071, %v2018
    %2117 = vst.msk [vmem:[#allocation3 + $0x230] sm:$0xff] %vm2069, %v2020
    %2118 = vst.msk [vmem:[#allocation3 + $0x238] sm:$0xff] %vm2071, %v2020
    %2119 = vst.msk [vmem:[#allocation3 + $0x248] sm:$0xff] %vm2069, %v2022
    %2120 = vst.msk [vmem:[#allocation3 + $0x250] sm:$0xff] %vm2071, %v2022
    %2121 = vst.msk [vmem:[#allocation3 + $0x260] sm:$0xff] %vm2069, %v2024
    %2122 = vst.msk [vmem:[#allocation3 + $0x268] sm:$0xff] %vm2071, %v2024
    %2123 = vst.msk [vmem:[#allocation3 + $0x278] sm:$0xff] %vm2069, %v2026
    %2124 = vst.msk [vmem:[#allocation3 + $0x280] sm:$0xff] %vm2071, %v2026
    %2125 = vst.msk [vmem:[#allocation3 + $0x290] sm:$0xff] %vm2069, %v2028
    %2126 = vst.msk [vmem:[#allocation3 + $0x298] sm:$0xff] %vm2071, %v2028
    %2127 = vst.msk [vmem:[#allocation3 + $0x2a8] sm:$0xff] %vm2069, %v2030
    %2128 = vst.msk [vmem:[#allocation3 + $0x2b0] sm:$0xff] %vm2071, %v2030
    %2129 = vst.msk [vmem:[#allocation3 + $0x2c0] sm:$0xff] %vm2069, %v2032
    %2130 = vst.msk [vmem:[#allocation3 + $0x2c8] sm:$0xff] %vm2071, %v2032
    %2131 = vst.msk [vmem:[#allocation3 + $0x2d8] sm:$0xff] %vm2069, %v2034
    %2132 = vst.msk [vmem:[#allocation3 + $0x2e0] sm:$0xff] %vm2071, %v2034
    %2133 = vst.msk [vmem:[#allocation3 + $0x2f0] sm:$0xff] %vm2069, %v2036
    %2134 = vst.msk [vmem:[#allocation3 + $0x2f8] sm:$0xff] %vm2071, %v2036
    %v2135 = vld [vmem:[%s1715 + $0x2] sm:$0xff]
    %v2136 = vld [vmem:[%s1715 + $0xa] sm:$0xff]
    %v2137 = vld [vmem:[%s1715 + $0x1a] sm:$0xff]
    %v2138 = vld [vmem:[%s1715 + $0x22] sm:$0xff]
    %v2139 = vld [vmem:[%s1715 + $0x32] sm:$0xff]
    %v2140 = vld [vmem:[%s1715 + $0x3a] sm:$0xff]
    %v2141 = vld [vmem:[%s1715 + $0x4a] sm:$0xff]
    %v2142 = vld [vmem:[%s1715 + $0x52] sm:$0xff]
    %v2143 = vld [vmem:[%s1715 + $0x62] sm:$0xff]
    %v2144 = vld [vmem:[%s1715 + $0x6a] sm:$0xff]
    %v2145 = vld [vmem:[%s1715 + $0x7a] sm:$0xff]
    %v2146 = vld [vmem:[%s1715 + $0x82] sm:$0xff]
    %v2147 = vld [vmem:[%s1715 + $0x92] sm:$0xff]
    %v2148 = vld [vmem:[%s1715 + $0x9a] sm:$0xff]
    %v2149 = vld [vmem:[%s1715 + $0xaa] sm:$0xff]
    %v2150 = vld [vmem:[%s1715 + $0xb2] sm:$0xff]
    %v2151 = vld [vmem:[%s1715 + $0xc2] sm:$0xff]
    %v2152 = vld [vmem:[%s1715 + $0xca] sm:$0xff]
    %v2153 = vld [vmem:[%s1715 + $0xda] sm:$0xff]
    %v2154 = vld [vmem:[%s1715 + $0xe2] sm:$0xff]
    %v2155 = vld [vmem:[%s1715 + $0xf2] sm:$0xff]
    %v2156 = vld [vmem:[%s1715 + $0xfa] sm:$0xff]
    %v2157 = vld [vmem:[%s1715 + $0x10a] sm:$0xff]
    %v2158 = vld [vmem:[%s1715 + $0x112] sm:$0xff]
    %v2159 = vld [vmem:[%s1715 + $0x122] sm:$0xff]
    %v2160 = vld [vmem:[%s1715 + $0x12a] sm:$0xff]
    %v2161 = vld [vmem:[%s1715 + $0x13a] sm:$0xff]
    %v2162 = vld [vmem:[%s1715 + $0x142] sm:$0xff]
    %v2163 = vld [vmem:[%s1715 + $0x152] sm:$0xff]
    %v2164 = vld [vmem:[%s1715 + $0x15a] sm:$0xff]
    %v2165 = vld [vmem:[%s1715 + $0x16a] sm:$0xff]
    %v2166 = vld [vmem:[%s1715 + $0x172] sm:$0xff]
    %2199 = vrot.lane.b32.xlu0 %v2135, 32
    %v2200 = vpop.permute.xlu0 %2199
    %2201 = vrot.lane.b32.xlu0 %v2136, 32
    %v2202 = vpop.permute.xlu0 %2201
    %2203 = vrot.lane.b32.xlu0 %v2137, 32
    %v2204 = vpop.permute.xlu0 %2203
    %2205 = vrot.lane.b32.xlu0 %v2138, 32
    %v2206 = vpop.permute.xlu0 %2205
    %2207 = vrot.lane.b32.xlu0 %v2139, 32
    %v2208 = vpop.permute.xlu0 %2207
    %2209 = vrot.lane.b32.xlu0 %v2140, 32
    %v2210 = vpop.permute.xlu0 %2209
    %2211 = vrot.lane.b32.xlu0 %v2141, 32
    %v2212 = vpop.permute.xlu0 %2211
    %2213 = vrot.lane.b32.xlu0 %v2142, 32
    %v2214 = vpop.permute.xlu0 %2213
    %2215 = vrot.lane.b32.xlu0 %v2143, 32
    %v2216 = vpop.permute.xlu0 %2215
    %2217 = vrot.lane.b32.xlu0 %v2144, 32
    %v2218 = vpop.permute.xlu0 %2217
    %2219 = vrot.lane.b32.xlu0 %v2145, 32
    %v2220 = vpop.permute.xlu0 %2219
    %2221 = vrot.lane.b32.xlu0 %v2146, 32
    %v2222 = vpop.permute.xlu0 %2221
    %2223 = vrot.lane.b32.xlu0 %v2147, 32
    %v2224 = vpop.permute.xlu0 %2223
    %2225 = vrot.lane.b32.xlu0 %v2148, 32
    %v2226 = vpop.permute.xlu0 %2225
    %2227 = vrot.lane.b32.xlu0 %v2149, 32
    %v2228 = vpop.permute.xlu0 %2227
    %2229 = vrot.lane.b32.xlu0 %v2150, 32
    %v2230 = vpop.permute.xlu0 %2229
    %2231 = vrot.lane.b32.xlu0 %v2151, 32
    %v2232 = vpop.permute.xlu0 %2231
    %2233 = vrot.lane.b32.xlu0 %v2152, 32
    %v2234 = vpop.permute.xlu0 %2233
    %2235 = vrot.lane.b32.xlu0 %v2153, 32
    %v2236 = vpop.permute.xlu0 %2235
    %2237 = vrot.lane.b32.xlu0 %v2154, 32
    %v2238 = vpop.permute.xlu0 %2237
    %2239 = vrot.lane.b32.xlu0 %v2155, 32
    %v2240 = vpop.permute.xlu0 %2239
    %2241 = vrot.lane.b32.xlu0 %v2156, 32
    %v2242 = vpop.permute.xlu0 %2241
    %2243 = vrot.lane.b32.xlu0 %v2157, 32
    %v2244 = vpop.permute.xlu0 %2243
    %2245 = vrot.lane.b32.xlu0 %v2158, 32
    %v2246 = vpop.permute.xlu0 %2245
    %2247 = vrot.lane.b32.xlu0 %v2159, 32
    %v2248 = vpop.permute.xlu0 %2247
    %2249 = vrot.lane.b32.xlu0 %v2160, 32
    %v2250 = vpop.permute.xlu0 %2249
    %2251 = vrot.lane.b32.xlu0 %v2161, 32
    %v2252 = vpop.permute.xlu0 %2251
    %2253 = vrot.lane.b32.xlu0 %v2162, 32
    %v2254 = vpop.permute.xlu0 %2253
    %2255 = vrot.lane.b32.xlu0 %v2163, 32
    %v2256 = vpop.permute.xlu0 %2255
    %2257 = vrot.lane.b32.xlu0 %v2164, 32
    %v2258 = vpop.permute.xlu0 %2257
    %2259 = vrot.lane.b32.xlu0 %v2165, 32
    %v2260 = vpop.permute.xlu0 %2259
    %2261 = vrot.lane.b32.xlu0 %v2166, 32
    %v2262 = vpop.permute.xlu0 %2261
    %vm2295 = vcmask 556288
    %2296 = vst.msk [vmem:[#allocation3 + $0x10] sm:$0xff] %vm2295, %v2200
    %2297 = vst.msk [vmem:[#allocation3 + $0x28] sm:$0xff] %vm2295, %v2202
    %2298 = vst.msk [vmem:[#allocation3 + $0x40] sm:$0xff] %vm2295, %v2204
    %2299 = vst.msk [vmem:[#allocation3 + $0x58] sm:$0xff] %vm2295, %v2206
    %2300 = vst.msk [vmem:[#allocation3 + $0x70] sm:$0xff] %vm2295, %v2208
    %2301 = vst.msk [vmem:[#allocation3 + $0x88] sm:$0xff] %vm2295, %v2210
    %2302 = vst.msk [vmem:[#allocation3 + $0xa0] sm:$0xff] %vm2295, %v2212
    %2303 = vst.msk [vmem:[#allocation3 + $0xb8] sm:$0xff] %vm2295, %v2214
    %2304 = vst.msk [vmem:[#allocation3 + $0xd0] sm:$0xff] %vm2295, %v2216
    %2305 = vst.msk [vmem:[#allocation3 + $0xe8] sm:$0xff] %vm2295, %v2218
    %2306 = vst.msk [vmem:[#allocation3 + $0x100] sm:$0xff] %vm2295, %v2220
    %2307 = vst.msk [vmem:[#allocation3 + $0x118] sm:$0xff] %vm2295, %v2222
    %2308 = vst.msk [vmem:[#allocation3 + $0x130] sm:$0xff] %vm2295, %v2224
    %2309 = vst.msk [vmem:[#allocation3 + $0x148] sm:$0xff] %vm2295, %v2226
    %2310 = vst.msk [vmem:[#allocation3 + $0x160] sm:$0xff] %vm2295, %v2228
    %2311 = vst.msk [vmem:[#allocation3 + $0x178] sm:$0xff] %vm2295, %v2230
    %2312 = vst.msk [vmem:[#allocation3 + $0x190] sm:$0xff] %vm2295, %v2232
    %2313 = vst.msk [vmem:[#allocation3 + $0x1a8] sm:$0xff] %vm2295, %v2234
    %2314 = vst.msk [vmem:[#allocation3 + $0x1c0] sm:$0xff] %vm2295, %v2236
    %2315 = vst.msk [vmem:[#allocation3 + $0x1d8] sm:$0xff] %vm2295, %v2238
    %2316 = vst.msk [vmem:[#allocation3 + $0x1f0] sm:$0xff] %vm2295, %v2240
    %2317 = vst.msk [vmem:[#allocation3 + $0x208] sm:$0xff] %vm2295, %v2242
    %2318 = vst.msk [vmem:[#allocation3 + $0x220] sm:$0xff] %vm2295, %v2244
    %2319 = vst.msk [vmem:[#allocation3 + $0x238] sm:$0xff] %vm2295, %v2246
    %2320 = vst.msk [vmem:[#allocation3 + $0x250] sm:$0xff] %vm2295, %v2248
    %2321 = vst.msk [vmem:[#allocation3 + $0x268] sm:$0xff] %vm2295, %v2250
    %2322 = vst.msk [vmem:[#allocation3 + $0x280] sm:$0xff] %vm2295, %v2252
    %2323 = vst.msk [vmem:[#allocation3 + $0x298] sm:$0xff] %vm2295, %v2254
    %2324 = vst.msk [vmem:[#allocation3 + $0x2b0] sm:$0xff] %vm2295, %v2256
    %2325 = vst.msk [vmem:[#allocation3 + $0x2c8] sm:$0xff] %vm2295, %v2258
    %2326 = vst.msk [vmem:[#allocation3 + $0x2e0] sm:$0xff] %vm2295, %v2260
    %2327 = vst.msk [vmem:[#allocation3 + $0x2f8] sm:$0xff] %vm2295, %v2262
    %v2328 = vld [vmem:[%s354] sm:$0xff]
    %v2329 = vld [vmem:[%s354 + $0x8] sm:$0xff]
    %v2330 = vld [vmem:[%s354 + $0x18] sm:$0xff]
    %v2331 = vld [vmem:[%s354 + $0x20] sm:$0xff]
    %v2332 = vld [vmem:[%s354 + $0x30] sm:$0xff]
    %v2333 = vld [vmem:[%s354 + $0x38] sm:$0xff]
    %v2334 = vld [vmem:[%s354 + $0x48] sm:$0xff]
    %v2335 = vld [vmem:[%s354 + $0x50] sm:$0xff]
    %v2336 = vld [vmem:[%s354 + $0x60] sm:$0xff]
    %v2337 = vld [vmem:[%s354 + $0x68] sm:$0xff]
    %v2338 = vld [vmem:[%s354 + $0x78] sm:$0xff]
    %v2339 = vld [vmem:[%s354 + $0x80] sm:$0xff]
    %v2340 = vld [vmem:[%s354 + $0x90] sm:$0xff]
    %v2341 = vld [vmem:[%s354 + $0x98] sm:$0xff]
    %v2342 = vld [vmem:[%s354 + $0xa8] sm:$0xff]
    %v2343 = vld [vmem:[%s354 + $0xb0] sm:$0xff]
    %v2344 = vld [vmem:[%s354 + $0xc0] sm:$0xff]
    %v2345 = vld [vmem:[%s354 + $0xc8] sm:$0xff]
    %v2346 = vld [vmem:[%s354 + $0xd8] sm:$0xff]
    %v2347 = vld [vmem:[%s354 + $0xe0] sm:$0xff]
    %v2348 = vld [vmem:[%s354 + $0xf0] sm:$0xff]
    %v2349 = vld [vmem:[%s354 + $0xf8] sm:$0xff]
    %v2350 = vld [vmem:[%s354 + $0x108] sm:$0xff]
    %v2351 = vld [vmem:[%s354 + $0x110] sm:$0xff]
    %v2352 = vld [vmem:[%s354 + $0x120] sm:$0xff]
    %v2353 = vld [vmem:[%s354 + $0x128] sm:$0xff]
    %v2354 = vld [vmem:[%s354 + $0x138] sm:$0xff]
    %v2355 = vld [vmem:[%s354 + $0x140] sm:$0xff]
    %v2356 = vld [vmem:[%s354 + $0x150] sm:$0xff]
    %v2357 = vld [vmem:[%s354 + $0x158] sm:$0xff]
    %v2358 = vld [vmem:[%s354 + $0x168] sm:$0xff]
    %v2359 = vld [vmem:[%s354 + $0x170] sm:$0xff]
    %s2360 = scalar_lea.vmem [#allocation3], 768
    %2361 = vst.msk [vmem:[%s2360] sm:$0xff] %vm53, %v2328
    %2362 = vst.msk [vmem:[%s2360 + $0x18] sm:$0xff] %vm53, %v2329
    %2363 = vst.msk [vmem:[%s2360 + $0x30] sm:$0xff] %vm53, %v2330
    %2364 = vst.msk [vmem:[%s2360 + $0x48] sm:$0xff] %vm53, %v2331
    %2365 = vst.msk [vmem:[%s2360 + $0x60] sm:$0xff] %vm53, %v2332
    %2366 = vst.msk [vmem:[%s2360 + $0x78] sm:$0xff] %vm53, %v2333
    %2367 = vst.msk [vmem:[%s2360 + $0x90] sm:$0xff] %vm53, %v2334
    %2368 = vst.msk [vmem:[%s2360 + $0xa8] sm:$0xff] %vm53, %v2335
    %2369 = vst.msk [vmem:[%s2360 + $0xc0] sm:$0xff] %vm53, %v2336
    %2370 = vst.msk [vmem:[%s2360 + $0xd8] sm:$0xff] %vm53, %v2337
    %2371 = vst.msk [vmem:[%s2360 + $0xf0] sm:$0xff] %vm53, %v2338
    %2372 = vst.msk [vmem:[%s2360 + $0x108] sm:$0xff] %vm53, %v2339
    %2373 = vst.msk [vmem:[%s2360 + $0x120] sm:$0xff] %vm53, %v2340
    %2374 = vst.msk [vmem:[%s2360 + $0x138] sm:$0xff] %vm53, %v2341
    %2375 = vst.msk [vmem:[%s2360 + $0x150] sm:$0xff] %vm53, %v2342
    %2376 = vst.msk [vmem:[%s2360 + $0x168] sm:$0xff] %vm53, %v2343
    %2377 = vst.msk [vmem:[%s2360 + $0x180] sm:$0xff] %vm53, %v2344
    %2378 = vst.msk [vmem:[%s2360 + $0x198] sm:$0xff] %vm53, %v2345
    %2379 = vst.msk [vmem:[%s2360 + $0x1b0] sm:$0xff] %vm53, %v2346
    %2380 = vst.msk [vmem:[%s2360 + $0x1c8] sm:$0xff] %vm53, %v2347
    %2381 = vst.msk [vmem:[%s2360 + $0x1e0] sm:$0xff] %vm53, %v2348
    %2382 = vst.msk [vmem:[%s2360 + $0x1f8] sm:$0xff] %vm53, %v2349
    %2383 = vst.msk [vmem:[%s2360 + $0x210] sm:$0xff] %vm53, %v2350
    %2384 = vst.msk [vmem:[%s2360 + $0x228] sm:$0xff] %vm53, %v2351
    %2385 = vst.msk [vmem:[%s2360 + $0x240] sm:$0xff] %vm53, %v2352
    %2386 = vst.msk [vmem:[%s2360 + $0x258] sm:$0xff] %vm53, %v2353
    %2387 = vst.msk [vmem:[%s2360 + $0x270] sm:$0xff] %vm53, %v2354
    %2388 = vst.msk [vmem:[%s2360 + $0x288] sm:$0xff] %vm53, %v2355
    %2389 = vst.msk [vmem:[%s2360 + $0x2a0] sm:$0xff] %vm53, %v2356
    %2390 = vst.msk [vmem:[%s2360 + $0x2b8] sm:$0xff] %vm53, %v2357
    %2391 = vst.msk [vmem:[%s2360 + $0x2d0] sm:$0xff] %vm53, %v2358
    %2392 = vst.msk [vmem:[%s2360 + $0x2e8] sm:$0xff] %vm53, %v2359
    %v2393 = vld [vmem:[%s354 + $0x1] sm:$0xff]
    %v2394 = vld [vmem:[%s354 + $0x9] sm:$0xff]
    %v2395 = vld [vmem:[%s354 + $0x19] sm:$0xff]
    %v2396 = vld [vmem:[%s354 + $0x21] sm:$0xff]
    %v2397 = vld [vmem:[%s354 + $0x31] sm:$0xff]
    %v2398 = vld [vmem:[%s354 + $0x39] sm:$0xff]
    %v2399 = vld [vmem:[%s354 + $0x49] sm:$0xff]
    %v2400 = vld [vmem:[%s354 + $0x51] sm:$0xff]
    %v2401 = vld [vmem:[%s354 + $0x61] sm:$0xff]
    %v2402 = vld [vmem:[%s354 + $0x69] sm:$0xff]
    %v2403 = vld [vmem:[%s354 + $0x79] sm:$0xff]
    %v2404 = vld [vmem:[%s354 + $0x81] sm:$0xff]
    %v2405 = vld [vmem:[%s354 + $0x91] sm:$0xff]
    %v2406 = vld [vmem:[%s354 + $0x99] sm:$0xff]
    %v2407 = vld [vmem:[%s354 + $0xa9] sm:$0xff]
    %v2408 = vld [vmem:[%s354 + $0xb1] sm:$0xff]
    %v2409 = vld [vmem:[%s354 + $0xc1] sm:$0xff]
    %v2410 = vld [vmem:[%s354 + $0xc9] sm:$0xff]
    %v2411 = vld [vmem:[%s354 + $0xd9] sm:$0xff]
    %v2412 = vld [vmem:[%s354 + $0xe1] sm:$0xff]
    %v2413 = vld [vmem:[%s354 + $0xf1] sm:$0xff]
    %v2414 = vld [vmem:[%s354 + $0xf9] sm:$0xff]
    %v2415 = vld [vmem:[%s354 + $0x109] sm:$0xff]
    %v2416 = vld [vmem:[%s354 + $0x111] sm:$0xff]
    %v2417 = vld [vmem:[%s354 + $0x121] sm:$0xff]
    %v2418 = vld [vmem:[%s354 + $0x129] sm:$0xff]
    %v2419 = vld [vmem:[%s354 + $0x139] sm:$0xff]
    %v2420 = vld [vmem:[%s354 + $0x141] sm:$0xff]
    %v2421 = vld [vmem:[%s354 + $0x151] sm:$0xff]
    %v2422 = vld [vmem:[%s354 + $0x159] sm:$0xff]
    %v2423 = vld [vmem:[%s354 + $0x169] sm:$0xff]
    %v2424 = vld [vmem:[%s354 + $0x171] sm:$0xff]
    %2457 = vrot.lane.b32.xlu0 %v2393, 36
    %v2458 = vpop.permute.xlu0 %2457
    %2459 = vrot.lane.b32.xlu0 %v2394, 36
    %v2460 = vpop.permute.xlu0 %2459
    %2461 = vrot.lane.b32.xlu0 %v2395, 36
    %v2462 = vpop.permute.xlu0 %2461
    %2463 = vrot.lane.b32.xlu0 %v2396, 36
    %v2464 = vpop.permute.xlu0 %2463
    %2465 = vrot.lane.b32.xlu0 %v2397, 36
    %v2466 = vpop.permute.xlu0 %2465
    %2467 = vrot.lane.b32.xlu0 %v2398, 36
    %v2468 = vpop.permute.xlu0 %2467
    %2469 = vrot.lane.b32.xlu0 %v2399, 36
    %v2470 = vpop.permute.xlu0 %2469
    %2471 = vrot.lane.b32.xlu0 %v2400, 36
    %v2472 = vpop.permute.xlu0 %2471
    %2473 = vrot.lane.b32.xlu0 %v2401, 36
    %v2474 = vpop.permute.xlu0 %2473
    %2475 = vrot.lane.b32.xlu0 %v2402, 36
    %v2476 = vpop.permute.xlu0 %2475
    %2477 = vrot.lane.b32.xlu0 %v2403, 36
    %v2478 = vpop.permute.xlu0 %2477
    %2479 = vrot.lane.b32.xlu0 %v2404, 36
    %v2480 = vpop.permute.xlu0 %2479
    %2481 = vrot.lane.b32.xlu0 %v2405, 36
    %v2482 = vpop.permute.xlu0 %2481
    %2483 = vrot.lane.b32.xlu0 %v2406, 36
    %v2484 = vpop.permute.xlu0 %2483
    %2485 = vrot.lane.b32.xlu0 %v2407, 36
    %v2486 = vpop.permute.xlu0 %2485
    %2487 = vrot.lane.b32.xlu0 %v2408, 36
    %v2488 = vpop.permute.xlu0 %2487
    %2489 = vrot.lane.b32.xlu0 %v2409, 36
    %v2490 = vpop.permute.xlu0 %2489
    %2491 = vrot.lane.b32.xlu0 %v2410, 36
    %v2492 = vpop.permute.xlu0 %2491
    %2493 = vrot.lane.b32.xlu0 %v2411, 36
    %v2494 = vpop.permute.xlu0 %2493
    %2495 = vrot.lane.b32.xlu0 %v2412, 36
    %v2496 = vpop.permute.xlu0 %2495
    %2497 = vrot.lane.b32.xlu0 %v2413, 36
    %v2498 = vpop.permute.xlu0 %2497
    %2499 = vrot.lane.b32.xlu0 %v2414, 36
    %v2500 = vpop.permute.xlu0 %2499
    %2501 = vrot.lane.b32.xlu0 %v2415, 36
    %v2502 = vpop.permute.xlu0 %2501
    %2503 = vrot.lane.b32.xlu0 %v2416, 36
    %v2504 = vpop.permute.xlu0 %2503
    %2505 = vrot.lane.b32.xlu0 %v2417, 36
    %v2506 = vpop.permute.xlu0 %2505
    %2507 = vrot.lane.b32.xlu0 %v2418, 36
    %v2508 = vpop.permute.xlu0 %2507
    %2509 = vrot.lane.b32.xlu0 %v2419, 36
    %v2510 = vpop.permute.xlu0 %2509
    %2511 = vrot.lane.b32.xlu0 %v2420, 36
    %v2512 = vpop.permute.xlu0 %2511
    %2513 = vrot.lane.b32.xlu0 %v2421, 36
    %v2514 = vpop.permute.xlu0 %2513
    %2515 = vrot.lane.b32.xlu0 %v2422, 36
    %v2516 = vpop.permute.xlu0 %2515
    %2517 = vrot.lane.b32.xlu0 %v2423, 36
    %v2518 = vpop.permute.xlu0 %2517
    %2519 = vrot.lane.b32.xlu0 %v2424, 36
    %v2520 = vpop.permute.xlu0 %2519
    %2553 = vst.msk [vmem:[%s2360] sm:$0xff] %vm877, %v2458
    %2554 = vst.msk [vmem:[%s2360 + $0x18] sm:$0xff] %vm877, %v2460
    %2555 = vst.msk [vmem:[%s2360 + $0x30] sm:$0xff] %vm877, %v2462
    %2556 = vst.msk [vmem:[%s2360 + $0x48] sm:$0xff] %vm877, %v2464
    %2557 = vst.msk [vmem:[%s2360 + $0x60] sm:$0xff] %vm877, %v2466
    %2558 = vst.msk [vmem:[%s2360 + $0x78] sm:$0xff] %vm877, %v2468
    %2559 = vst.msk [vmem:[%s2360 + $0x90] sm:$0xff] %vm877, %v2470
    %2560 = vst.msk [vmem:[%s2360 + $0xa8] sm:$0xff] %vm877, %v2472
    %2561 = vst.msk [vmem:[%s2360 + $0xc0] sm:$0xff] %vm877, %v2474
    %2562 = vst.msk [vmem:[%s2360 + $0xd8] sm:$0xff] %vm877, %v2476
    %2563 = vst.msk [vmem:[%s2360 + $0xf0] sm:$0xff] %vm877, %v2478
    %2564 = vst.msk [vmem:[%s2360 + $0x108] sm:$0xff] %vm877, %v2480
    %2565 = vst.msk [vmem:[%s2360 + $0x120] sm:$0xff] %vm877, %v2482
    %2566 = vst.msk [vmem:[%s2360 + $0x138] sm:$0xff] %vm877, %v2484
    %2567 = vst.msk [vmem:[%s2360 + $0x150] sm:$0xff] %vm877, %v2486
    %2568 = vst.msk [vmem:[%s2360 + $0x168] sm:$0xff] %vm877, %v2488
    %2569 = vst.msk [vmem:[%s2360 + $0x180] sm:$0xff] %vm877, %v2490
    %2570 = vst.msk [vmem:[%s2360 + $0x198] sm:$0xff] %vm877, %v2492
    %2571 = vst.msk [vmem:[%s2360 + $0x1b0] sm:$0xff] %vm877, %v2494
    %2572 = vst.msk [vmem:[%s2360 + $0x1c8] sm:$0xff] %vm877, %v2496
    %2573 = vst.msk [vmem:[%s2360 + $0x1e0] sm:$0xff] %vm877, %v2498
    %2574 = vst.msk [vmem:[%s2360 + $0x1f8] sm:$0xff] %vm877, %v2500
    %2575 = vst.msk [vmem:[%s2360 + $0x210] sm:$0xff] %vm877, %v2502
    %2576 = vst.msk [vmem:[%s2360 + $0x228] sm:$0xff] %vm877, %v2504
    %2577 = vst.msk [vmem:[%s2360 + $0x240] sm:$0xff] %vm877, %v2506
    %2578 = vst.msk [vmem:[%s2360 + $0x258] sm:$0xff] %vm877, %v2508
    %2579 = vst.msk [vmem:[%s2360 + $0x270] sm:$0xff] %vm877, %v2510
    %2580 = vst.msk [vmem:[%s2360 + $0x288] sm:$0xff] %vm877, %v2512
    %2581 = vst.msk [vmem:[%s2360 + $0x2a0] sm:$0xff] %vm877, %v2514
    %2582 = vst.msk [vmem:[%s2360 + $0x2b8] sm:$0xff] %vm877, %v2516
    %2583 = vst.msk [vmem:[%s2360 + $0x2d0] sm:$0xff] %vm877, %v2518
    %2584 = vst.msk [vmem:[%s2360 + $0x2e8] sm:$0xff] %vm877, %v2520
    %v2585 = vld [vmem:[%s354 + $0x2] sm:$0xff]
    %v2586 = vld [vmem:[%s354 + $0xa] sm:$0xff]
    %v2587 = vld [vmem:[%s354 + $0x1a] sm:$0xff]
    %v2588 = vld [vmem:[%s354 + $0x22] sm:$0xff]
    %v2589 = vld [vmem:[%s354 + $0x32] sm:$0xff]
    %v2590 = vld [vmem:[%s354 + $0x3a] sm:$0xff]
    %v2591 = vld [vmem:[%s354 + $0x4a] sm:$0xff]
    %v2592 = vld [vmem:[%s354 + $0x52] sm:$0xff]
    %v2593 = vld [vmem:[%s354 + $0x62] sm:$0xff]
    %v2594 = vld [vmem:[%s354 + $0x6a] sm:$0xff]
    %v2595 = vld [vmem:[%s354 + $0x7a] sm:$0xff]
    %v2596 = vld [vmem:[%s354 + $0x82] sm:$0xff]
    %v2597 = vld [vmem:[%s354 + $0x92] sm:$0xff]
    %v2598 = vld [vmem:[%s354 + $0x9a] sm:$0xff]
    %v2599 = vld [vmem:[%s354 + $0xaa] sm:$0xff]
    %v2600 = vld [vmem:[%s354 + $0xb2] sm:$0xff]
    %v2601 = vld [vmem:[%s354 + $0xc2] sm:$0xff]
    %v2602 = vld [vmem:[%s354 + $0xca] sm:$0xff]
    %v2603 = vld [vmem:[%s354 + $0xda] sm:$0xff]
    %v2604 = vld [vmem:[%s354 + $0xe2] sm:$0xff]
    %v2605 = vld [vmem:[%s354 + $0xf2] sm:$0xff]
    %v2606 = vld [vmem:[%s354 + $0xfa] sm:$0xff]
    %v2607 = vld [vmem:[%s354 + $0x10a] sm:$0xff]
    %v2608 = vld [vmem:[%s354 + $0x112] sm:$0xff]
    %v2609 = vld [vmem:[%s354 + $0x122] sm:$0xff]
    %v2610 = vld [vmem:[%s354 + $0x12a] sm:$0xff]
    %v2611 = vld [vmem:[%s354 + $0x13a] sm:$0xff]
    %v2612 = vld [vmem:[%s354 + $0x142] sm:$0xff]
    %v2613 = vld [vmem:[%s354 + $0x152] sm:$0xff]
    %v2614 = vld [vmem:[%s354 + $0x15a] sm:$0xff]
    %v2615 = vld [vmem:[%s354 + $0x16a] sm:$0xff]
    %v2616 = vld [vmem:[%s354 + $0x172] sm:$0xff]
    %2649 = vrot.lane.b32.xlu0 %v2585, 72
    %v2650 = vpop.permute.xlu0 %2649
    %2651 = vrot.lane.b32.xlu0 %v2586, 72
    %v2652 = vpop.permute.xlu0 %2651
    %2653 = vrot.lane.b32.xlu0 %v2587, 72
    %v2654 = vpop.permute.xlu0 %2653
    %2655 = vrot.lane.b32.xlu0 %v2588, 72
    %v2656 = vpop.permute.xlu0 %2655
    %2657 = vrot.lane.b32.xlu0 %v2589, 72
    %v2658 = vpop.permute.xlu0 %2657
    %2659 = vrot.lane.b32.xlu0 %v2590, 72
    %v2660 = vpop.permute.xlu0 %2659
    %2661 = vrot.lane.b32.xlu0 %v2591, 72
    %v2662 = vpop.permute.xlu0 %2661
    %2663 = vrot.lane.b32.xlu0 %v2592, 72
    %v2664 = vpop.permute.xlu0 %2663
    %2665 = vrot.lane.b32.xlu0 %v2593, 72
    %v2666 = vpop.permute.xlu0 %2665
    %2667 = vrot.lane.b32.xlu0 %v2594, 72
    %v2668 = vpop.permute.xlu0 %2667
    %2669 = vrot.lane.b32.xlu0 %v2595, 72
    %v2670 = vpop.permute.xlu0 %2669
    %2671 = vrot.lane.b32.xlu0 %v2596, 72
    %v2672 = vpop.permute.xlu0 %2671
    %2673 = vrot.lane.b32.xlu0 %v2597, 72
    %v2674 = vpop.permute.xlu0 %2673
    %2675 = vrot.lane.b32.xlu0 %v2598, 72
    %v2676 = vpop.permute.xlu0 %2675
    %2677 = vrot.lane.b32.xlu0 %v2599, 72
    %v2678 = vpop.permute.xlu0 %2677
    %2679 = vrot.lane.b32.xlu0 %v2600, 72
    %v2680 = vpop.permute.xlu0 %2679
    %2681 = vrot.lane.b32.xlu0 %v2601, 72
    %v2682 = vpop.permute.xlu0 %2681
    %2683 = vrot.lane.b32.xlu0 %v2602, 72
    %v2684 = vpop.permute.xlu0 %2683
    %2685 = vrot.lane.b32.xlu0 %v2603, 72
    %v2686 = vpop.permute.xlu0 %2685
    %2687 = vrot.lane.b32.xlu0 %v2604, 72
    %v2688 = vpop.permute.xlu0 %2687
    %2689 = vrot.lane.b32.xlu0 %v2605, 72
    %v2690 = vpop.permute.xlu0 %2689
    %2691 = vrot.lane.b32.xlu0 %v2606, 72
    %v2692 = vpop.permute.xlu0 %2691
    %2693 = vrot.lane.b32.xlu0 %v2607, 72
    %v2694 = vpop.permute.xlu0 %2693
    %2695 = vrot.lane.b32.xlu0 %v2608, 72
    %v2696 = vpop.permute.xlu0 %2695
    %2697 = vrot.lane.b32.xlu0 %v2609, 72
    %v2698 = vpop.permute.xlu0 %2697
    %2699 = vrot.lane.b32.xlu0 %v2610, 72
    %v2700 = vpop.permute.xlu0 %2699
    %2701 = vrot.lane.b32.xlu0 %v2611, 72
    %v2702 = vpop.permute.xlu0 %2701
    %2703 = vrot.lane.b32.xlu0 %v2612, 72
    %v2704 = vpop.permute.xlu0 %2703
    %2705 = vrot.lane.b32.xlu0 %v2613, 72
    %v2706 = vpop.permute.xlu0 %2705
    %2707 = vrot.lane.b32.xlu0 %v2614, 72
    %v2708 = vpop.permute.xlu0 %2707
    %2709 = vrot.lane.b32.xlu0 %v2615, 72
    %v2710 = vpop.permute.xlu0 %2709
    %2711 = vrot.lane.b32.xlu0 %v2616, 72
    %v2712 = vpop.permute.xlu0 %2711
    %2745 = vst.msk [vmem:[%s2360] sm:$0xff] %vm1070, %v2650
    %2746 = vst.msk [vmem:[%s2360 + $0x18] sm:$0xff] %vm1070, %v2652
    %2747 = vst.msk [vmem:[%s2360 + $0x30] sm:$0xff] %vm1070, %v2654
    %2748 = vst.msk [vmem:[%s2360 + $0x48] sm:$0xff] %vm1070, %v2656
    %2749 = vst.msk [vmem:[%s2360 + $0x60] sm:$0xff] %vm1070, %v2658
    %2750 = vst.msk [vmem:[%s2360 + $0x78] sm:$0xff] %vm1070, %v2660
    %2751 = vst.msk [vmem:[%s2360 + $0x90] sm:$0xff] %vm1070, %v2662
    %2752 = vst.msk [vmem:[%s2360 + $0xa8] sm:$0xff] %vm1070, %v2664
    %2753 = vst.msk [vmem:[%s2360 + $0xc0] sm:$0xff] %vm1070, %v2666
    %2754 = vst.msk [vmem:[%s2360 + $0xd8] sm:$0xff] %vm1070, %v2668
    %2755 = vst.msk [vmem:[%s2360 + $0xf0] sm:$0xff] %vm1070, %v2670
    %2756 = vst.msk [vmem:[%s2360 + $0x108] sm:$0xff] %vm1070, %v2672
    %2757 = vst.msk [vmem:[%s2360 + $0x120] sm:$0xff] %vm1070, %v2674
    %2758 = vst.msk [vmem:[%s2360 + $0x138] sm:$0xff] %vm1070, %v2676
    %2759 = vst.msk [vmem:[%s2360 + $0x150] sm:$0xff] %vm1070, %v2678
    %2760 = vst.msk [vmem:[%s2360 + $0x168] sm:$0xff] %vm1070, %v2680
    %2761 = vst.msk [vmem:[%s2360 + $0x180] sm:$0xff] %vm1070, %v2682
    %2762 = vst.msk [vmem:[%s2360 + $0x198] sm:$0xff] %vm1070, %v2684
    %2763 = vst.msk [vmem:[%s2360 + $0x1b0] sm:$0xff] %vm1070, %v2686
    %2764 = vst.msk [vmem:[%s2360 + $0x1c8] sm:$0xff] %vm1070, %v2688
    %2765 = vst.msk [vmem:[%s2360 + $0x1e0] sm:$0xff] %vm1070, %v2690
    %2766 = vst.msk [vmem:[%s2360 + $0x1f8] sm:$0xff] %vm1070, %v2692
    %2767 = vst.msk [vmem:[%s2360 + $0x210] sm:$0xff] %vm1070, %v2694
    %2768 = vst.msk [vmem:[%s2360 + $0x228] sm:$0xff] %vm1070, %v2696
    %2769 = vst.msk [vmem:[%s2360 + $0x240] sm:$0xff] %vm1070, %v2698
    %2770 = vst.msk [vmem:[%s2360 + $0x258] sm:$0xff] %vm1070, %v2700
    %2771 = vst.msk [vmem:[%s2360 + $0x270] sm:$0xff] %vm1070, %v2702
    %2772 = vst.msk [vmem:[%s2360 + $0x288] sm:$0xff] %vm1070, %v2704
    %2773 = vst.msk [vmem:[%s2360 + $0x2a0] sm:$0xff] %vm1070, %v2706
    %2774 = vst.msk [vmem:[%s2360 + $0x2b8] sm:$0xff] %vm1070, %v2708
    %2775 = vst.msk [vmem:[%s2360 + $0x2d0] sm:$0xff] %vm1070, %v2710
    %2776 = vst.msk [vmem:[%s2360 + $0x2e8] sm:$0xff] %vm1070, %v2712
    %v2777 = vld [vmem:[%s362] sm:$0xff]
    %v2778 = vld [vmem:[%s362 + $0x8] sm:$0xff]
    %v2779 = vld [vmem:[%s362 + $0x18] sm:$0xff]
    %v2780 = vld [vmem:[%s362 + $0x20] sm:$0xff]
    %v2781 = vld [vmem:[%s362 + $0x30] sm:$0xff]
    %v2782 = vld [vmem:[%s362 + $0x38] sm:$0xff]
    %v2783 = vld [vmem:[%s362 + $0x48] sm:$0xff]
    %v2784 = vld [vmem:[%s362 + $0x50] sm:$0xff]
    %v2785 = vld [vmem:[%s362 + $0x60] sm:$0xff]
    %v2786 = vld [vmem:[%s362 + $0x68] sm:$0xff]
    %v2787 = vld [vmem:[%s362 + $0x78] sm:$0xff]
    %v2788 = vld [vmem:[%s362 + $0x80] sm:$0xff]
    %v2789 = vld [vmem:[%s362 + $0x90] sm:$0xff]
    %v2790 = vld [vmem:[%s362 + $0x98] sm:$0xff]
    %v2791 = vld [vmem:[%s362 + $0xa8] sm:$0xff]
    %v2792 = vld [vmem:[%s362 + $0xb0] sm:$0xff]
    %v2793 = vld [vmem:[%s362 + $0xc0] sm:$0xff]
    %v2794 = vld [vmem:[%s362 + $0xc8] sm:$0xff]
    %v2795 = vld [vmem:[%s362 + $0xd8] sm:$0xff]
    %v2796 = vld [vmem:[%s362 + $0xe0] sm:$0xff]
    %v2797 = vld [vmem:[%s362 + $0xf0] sm:$0xff]
    %v2798 = vld [vmem:[%s362 + $0xf8] sm:$0xff]
    %v2799 = vld [vmem:[%s362 + $0x108] sm:$0xff]
    %v2800 = vld [vmem:[%s362 + $0x110] sm:$0xff]
    %v2801 = vld [vmem:[%s362 + $0x120] sm:$0xff]
    %v2802 = vld [vmem:[%s362 + $0x128] sm:$0xff]
    %v2803 = vld [vmem:[%s362 + $0x138] sm:$0xff]
    %v2804 = vld [vmem:[%s362 + $0x140] sm:$0xff]
    %v2805 = vld [vmem:[%s362 + $0x150] sm:$0xff]
    %v2806 = vld [vmem:[%s362 + $0x158] sm:$0xff]
    %v2807 = vld [vmem:[%s362 + $0x168] sm:$0xff]
    %v2808 = vld [vmem:[%s362 + $0x170] sm:$0xff]
    %2841 = vrot.lane.b32.xlu0 %v2777, 108
    %v2842 = vpop.permute.xlu0 %2841
    %2843 = vrot.lane.b32.xlu0 %v2778, 108
    %v2844 = vpop.permute.xlu0 %2843
    %2845 = vrot.lane.b32.xlu0 %v2779, 108
    %v2846 = vpop.permute.xlu0 %2845
    %2847 = vrot.lane.b32.xlu0 %v2780, 108
    %v2848 = vpop.permute.xlu0 %2847
    %2849 = vrot.lane.b32.xlu0 %v2781, 108
    %v2850 = vpop.permute.xlu0 %2849
    %2851 = vrot.lane.b32.xlu0 %v2782, 108
    %v2852 = vpop.permute.xlu0 %2851
    %2853 = vrot.lane.b32.xlu0 %v2783, 108
    %v2854 = vpop.permute.xlu0 %2853
    %2855 = vrot.lane.b32.xlu0 %v2784, 108
    %v2856 = vpop.permute.xlu0 %2855
    %2857 = vrot.lane.b32.xlu0 %v2785, 108
    %v2858 = vpop.permute.xlu0 %2857
    %2859 = vrot.lane.b32.xlu0 %v2786, 108
    %v2860 = vpop.permute.xlu0 %2859
    %2861 = vrot.lane.b32.xlu0 %v2787, 108
    %v2862 = vpop.permute.xlu0 %2861
    %2863 = vrot.lane.b32.xlu0 %v2788, 108
    %v2864 = vpop.permute.xlu0 %2863
    %2865 = vrot.lane.b32.xlu0 %v2789, 108
    %v2866 = vpop.permute.xlu0 %2865
    %2867 = vrot.lane.b32.xlu0 %v2790, 108
    %v2868 = vpop.permute.xlu0 %2867
    %2869 = vrot.lane.b32.xlu0 %v2791, 108
    %v2870 = vpop.permute.xlu0 %2869
    %2871 = vrot.lane.b32.xlu0 %v2792, 108
    %v2872 = vpop.permute.xlu0 %2871
    %2873 = vrot.lane.b32.xlu0 %v2793, 108
    %v2874 = vpop.permute.xlu0 %2873
    %2875 = vrot.lane.b32.xlu0 %v2794, 108
    %v2876 = vpop.permute.xlu0 %2875
    %2877 = vrot.lane.b32.xlu0 %v2795, 108
    %v2878 = vpop.permute.xlu0 %2877
    %2879 = vrot.lane.b32.xlu0 %v2796, 108
    %v2880 = vpop.permute.xlu0 %2879
    %2881 = vrot.lane.b32.xlu0 %v2797, 108
    %v2882 = vpop.permute.xlu0 %2881
    %2883 = vrot.lane.b32.xlu0 %v2798, 108
    %v2884 = vpop.permute.xlu0 %2883
    %2885 = vrot.lane.b32.xlu0 %v2799, 108
    %v2886 = vpop.permute.xlu0 %2885
    %2887 = vrot.lane.b32.xlu0 %v2800, 108
    %v2888 = vpop.permute.xlu0 %2887
    %2889 = vrot.lane.b32.xlu0 %v2801, 108
    %v2890 = vpop.permute.xlu0 %2889
    %2891 = vrot.lane.b32.xlu0 %v2802, 108
    %v2892 = vpop.permute.xlu0 %2891
    %2893 = vrot.lane.b32.xlu0 %v2803, 108
    %v2894 = vpop.permute.xlu0 %2893
    %2895 = vrot.lane.b32.xlu0 %v2804, 108
    %v2896 = vpop.permute.xlu0 %2895
    %2897 = vrot.lane.b32.xlu0 %v2805, 108
    %v2898 = vpop.permute.xlu0 %2897
    %2899 = vrot.lane.b32.xlu0 %v2806, 108
    %v2900 = vpop.permute.xlu0 %2899
    %2901 = vrot.lane.b32.xlu0 %v2807, 108
    %v2902 = vpop.permute.xlu0 %2901
    %2903 = vrot.lane.b32.xlu0 %v2808, 108
    %v2904 = vpop.permute.xlu0 %2903
    %2937 = vst.msk [vmem:[%s2360] sm:$0xff] %vm1263, %v2842
    %2938 = vst.msk [vmem:[%s2360 + $0x8] sm:$0xff] %vm1265, %v2842
    %2939 = vst.msk [vmem:[%s2360 + $0x18] sm:$0xff] %vm1263, %v2844
    %2940 = vst.msk [vmem:[%s2360 + $0x20] sm:$0xff] %vm1265, %v2844
    %2941 = vst.msk [vmem:[%s2360 + $0x30] sm:$0xff] %vm1263, %v2846
    %2942 = vst.msk [vmem:[%s2360 + $0x38] sm:$0xff] %vm1265, %v2846
    %2943 = vst.msk [vmem:[%s2360 + $0x48] sm:$0xff] %vm1263, %v2848
    %2944 = vst.msk [vmem:[%s2360 + $0x50] sm:$0xff] %vm1265, %v2848
    %2945 = vst.msk [vmem:[%s2360 + $0x60] sm:$0xff] %vm1263, %v2850
    %2946 = vst.msk [vmem:[%s2360 + $0x68] sm:$0xff] %vm1265, %v2850
    %2947 = vst.msk [vmem:[%s2360 + $0x78] sm:$0xff] %vm1263, %v2852
    %2948 = vst.msk [vmem:[%s2360 + $0x80] sm:$0xff] %vm1265, %v2852
    %2949 = vst.msk [vmem:[%s2360 + $0x90] sm:$0xff] %vm1263, %v2854
    %2950 = vst.msk [vmem:[%s2360 + $0x98] sm:$0xff] %vm1265, %v2854
    %2951 = vst.msk [vmem:[%s2360 + $0xa8] sm:$0xff] %vm1263, %v2856
    %2952 = vst.msk [vmem:[%s2360 + $0xb0] sm:$0xff] %vm1265, %v2856
    %2953 = vst.msk [vmem:[%s2360 + $0xc0] sm:$0xff] %vm1263, %v2858
    %2954 = vst.msk [vmem:[%s2360 + $0xc8] sm:$0xff] %vm1265, %v2858
    %2955 = vst.msk [vmem:[%s2360 + $0xd8] sm:$0xff] %vm1263, %v2860
    %2956 = vst.msk [vmem:[%s2360 + $0xe0] sm:$0xff] %vm1265, %v2860
    %2957 = vst.msk [vmem:[%s2360 + $0xf0] sm:$0xff] %vm1263, %v2862
    %2958 = vst.msk [vmem:[%s2360 + $0xf8] sm:$0xff] %vm1265, %v2862
    %2959 = vst.msk [vmem:[%s2360 + $0x108] sm:$0xff] %vm1263, %v2864
    %2960 = vst.msk [vmem:[%s2360 + $0x110] sm:$0xff] %vm1265, %v2864
    %2961 = vst.msk [vmem:[%s2360 + $0x120] sm:$0xff] %vm1263, %v2866
    %2962 = vst.msk [vmem:[%s2360 + $0x128] sm:$0xff] %vm1265, %v2866
    %2963 = vst.msk [vmem:[%s2360 + $0x138] sm:$0xff] %vm1263, %v2868
    %2964 = vst.msk [vmem:[%s2360 + $0x140] sm:$0xff] %vm1265, %v2868
    %2965 = vst.msk [vmem:[%s2360 + $0x150] sm:$0xff] %vm1263, %v2870
    %2966 = vst.msk [vmem:[%s2360 + $0x158] sm:$0xff] %vm1265, %v2870
    %2967 = vst.msk [vmem:[%s2360 + $0x168] sm:$0xff] %vm1263, %v2872
    %2968 = vst.msk [vmem:[%s2360 + $0x170] sm:$0xff] %vm1265, %v2872
    %2969 = vst.msk [vmem:[%s2360 + $0x180] sm:$0xff] %vm1263, %v2874
    %2970 = vst.msk [vmem:[%s2360 + $0x188] sm:$0xff] %vm1265, %v2874
    %2971 = vst.msk [vmem:[%s2360 + $0x198] sm:$0xff] %vm1263, %v2876
    %2972 = vst.msk [vmem:[%s2360 + $0x1a0] sm:$0xff] %vm1265, %v2876
    %2973 = vst.msk [vmem:[%s2360 + $0x1b0] sm:$0xff] %vm1263, %v2878
    %2974 = vst.msk [vmem:[%s2360 + $0x1b8] sm:$0xff] %vm1265, %v2878
    %2975 = vst.msk [vmem:[%s2360 + $0x1c8] sm:$0xff] %vm1263, %v2880
    %2976 = vst.msk [vmem:[%s2360 + $0x1d0] sm:$0xff] %vm1265, %v2880
    %2977 = vst.msk [vmem:[%s2360 + $0x1e0] sm:$0xff] %vm1263, %v2882
    %2978 = vst.msk [vmem:[%s2360 + $0x1e8] sm:$0xff] %vm1265, %v2882
    %2979 = vst.msk [vmem:[%s2360 + $0x1f8] sm:$0xff] %vm1263, %v2884
    %2980 = vst.msk [vmem:[%s2360 + $0x200] sm:$0xff] %vm1265, %v2884
    %2981 = vst.msk [vmem:[%s2360 + $0x210] sm:$0xff] %vm1263, %v2886
    %2982 = vst.msk [vmem:[%s2360 + $0x218] sm:$0xff] %vm1265, %v2886
    %2983 = vst.msk [vmem:[%s2360 + $0x228] sm:$0xff] %vm1263, %v2888
    %2984 = vst.msk [vmem:[%s2360 + $0x230] sm:$0xff] %vm1265, %v2888
    %2985 = vst.msk [vmem:[%s2360 + $0x240] sm:$0xff] %vm1263, %v2890
    %2986 = vst.msk [vmem:[%s2360 + $0x248] sm:$0xff] %vm1265, %v2890
    %2987 = vst.msk [vmem:[%s2360 + $0x258] sm:$0xff] %vm1263, %v2892
    %2988 = vst.msk [vmem:[%s2360 + $0x260] sm:$0xff] %vm1265, %v2892
    %2989 = vst.msk [vmem:[%s2360 + $0x270] sm:$0xff] %vm1263, %v2894
    %2990 = vst.msk [vmem:[%s2360 + $0x278] sm:$0xff] %vm1265, %v2894
    %2991 = vst.msk [vmem:[%s2360 + $0x288] sm:$0xff] %vm1263, %v2896
    %2992 = vst.msk [vmem:[%s2360 + $0x290] sm:$0xff] %vm1265, %v2896
    %2993 = vst.msk [vmem:[%s2360 + $0x2a0] sm:$0xff] %vm1263, %v2898
    %2994 = vst.msk [vmem:[%s2360 + $0x2a8] sm:$0xff] %vm1265, %v2898
    %2995 = vst.msk [vmem:[%s2360 + $0x2b8] sm:$0xff] %vm1263, %v2900
    %2996 = vst.msk [vmem:[%s2360 + $0x2c0] sm:$0xff] %vm1265, %v2900
    %2997 = vst.msk [vmem:[%s2360 + $0x2d0] sm:$0xff] %vm1263, %v2902
    %2998 = vst.msk [vmem:[%s2360 + $0x2d8] sm:$0xff] %vm1265, %v2902
    %2999 = vst.msk [vmem:[%s2360 + $0x2e8] sm:$0xff] %vm1263, %v2904
    %3000 = vst.msk [vmem:[%s2360 + $0x2f0] sm:$0xff] %vm1265, %v2904
    %v3001 = vld [vmem:[%s362 + $0x1] sm:$0xff]
    %v3002 = vld [vmem:[%s362 + $0x9] sm:$0xff]
    %v3003 = vld [vmem:[%s362 + $0x19] sm:$0xff]
    %v3004 = vld [vmem:[%s362 + $0x21] sm:$0xff]
    %v3005 = vld [vmem:[%s362 + $0x31] sm:$0xff]
    %v3006 = vld [vmem:[%s362 + $0x39] sm:$0xff]
    %v3007 = vld [vmem:[%s362 + $0x49] sm:$0xff]
    %v3008 = vld [vmem:[%s362 + $0x51] sm:$0xff]
    %v3009 = vld [vmem:[%s362 + $0x61] sm:$0xff]
    %v3010 = vld [vmem:[%s362 + $0x69] sm:$0xff]
    %v3011 = vld [vmem:[%s362 + $0x79] sm:$0xff]
    %v3012 = vld [vmem:[%s362 + $0x81] sm:$0xff]
    %v3013 = vld [vmem:[%s362 + $0x91] sm:$0xff]
    %v3014 = vld [vmem:[%s362 + $0x99] sm:$0xff]
    %v3015 = vld [vmem:[%s362 + $0xa9] sm:$0xff]
    %v3016 = vld [vmem:[%s362 + $0xb1] sm:$0xff]
    %v3017 = vld [vmem:[%s362 + $0xc1] sm:$0xff]
    %v3018 = vld [vmem:[%s362 + $0xc9] sm:$0xff]
    %v3019 = vld [vmem:[%s362 + $0xd9] sm:$0xff]
    %v3020 = vld [vmem:[%s362 + $0xe1] sm:$0xff]
    %v3021 = vld [vmem:[%s362 + $0xf1] sm:$0xff]
    %v3022 = vld [vmem:[%s362 + $0xf9] sm:$0xff]
    %v3023 = vld [vmem:[%s362 + $0x109] sm:$0xff]
    %v3024 = vld [vmem:[%s362 + $0x111] sm:$0xff]
    %v3025 = vld [vmem:[%s362 + $0x121] sm:$0xff]
    %v3026 = vld [vmem:[%s362 + $0x129] sm:$0xff]
    %v3027 = vld [vmem:[%s362 + $0x139] sm:$0xff]
    %v3028 = vld [vmem:[%s362 + $0x141] sm:$0xff]
    %v3029 = vld [vmem:[%s362 + $0x151] sm:$0xff]
    %v3030 = vld [vmem:[%s362 + $0x159] sm:$0xff]
    %v3031 = vld [vmem:[%s362 + $0x169] sm:$0xff]
    %v3032 = vld [vmem:[%s362 + $0x171] sm:$0xff]
    %3065 = vrot.lane.b32.xlu0 %v3001, 16
    %v3066 = vpop.permute.xlu0 %3065
    %3067 = vrot.lane.b32.xlu0 %v3002, 16
    %v3068 = vpop.permute.xlu0 %3067
    %3069 = vrot.lane.b32.xlu0 %v3003, 16
    %v3070 = vpop.permute.xlu0 %3069
    %3071 = vrot.lane.b32.xlu0 %v3004, 16
    %v3072 = vpop.permute.xlu0 %3071
    %3073 = vrot.lane.b32.xlu0 %v3005, 16
    %v3074 = vpop.permute.xlu0 %3073
    %3075 = vrot.lane.b32.xlu0 %v3006, 16
    %v3076 = vpop.permute.xlu0 %3075
    %3077 = vrot.lane.b32.xlu0 %v3007, 16
    %v3078 = vpop.permute.xlu0 %3077
    %3079 = vrot.lane.b32.xlu0 %v3008, 16
    %v3080 = vpop.permute.xlu0 %3079
    %3081 = vrot.lane.b32.xlu0 %v3009, 16
    %v3082 = vpop.permute.xlu0 %3081
    %3083 = vrot.lane.b32.xlu0 %v3010, 16
    %v3084 = vpop.permute.xlu0 %3083
    %3085 = vrot.lane.b32.xlu0 %v3011, 16
    %v3086 = vpop.permute.xlu0 %3085
    %3087 = vrot.lane.b32.xlu0 %v3012, 16
    %v3088 = vpop.permute.xlu0 %3087
    %3089 = vrot.lane.b32.xlu0 %v3013, 16
    %v3090 = vpop.permute.xlu0 %3089
    %3091 = vrot.lane.b32.xlu0 %v3014, 16
    %v3092 = vpop.permute.xlu0 %3091
    %3093 = vrot.lane.b32.xlu0 %v3015, 16
    %v3094 = vpop.permute.xlu0 %3093
    %3095 = vrot.lane.b32.xlu0 %v3016, 16
    %v3096 = vpop.permute.xlu0 %3095
    %3097 = vrot.lane.b32.xlu0 %v3017, 16
    %v3098 = vpop.permute.xlu0 %3097
    %3099 = vrot.lane.b32.xlu0 %v3018, 16
    %v3100 = vpop.permute.xlu0 %3099
    %3101 = vrot.lane.b32.xlu0 %v3019, 16
    %v3102 = vpop.permute.xlu0 %3101
    %3103 = vrot.lane.b32.xlu0 %v3020, 16
    %v3104 = vpop.permute.xlu0 %3103
    %3105 = vrot.lane.b32.xlu0 %v3021, 16
    %v3106 = vpop.permute.xlu0 %3105
    %3107 = vrot.lane.b32.xlu0 %v3022, 16
    %v3108 = vpop.permute.xlu0 %3107
    %3109 = vrot.lane.b32.xlu0 %v3023, 16
    %v3110 = vpop.permute.xlu0 %3109
    %3111 = vrot.lane.b32.xlu0 %v3024, 16
    %v3112 = vpop.permute.xlu0 %3111
    %3113 = vrot.lane.b32.xlu0 %v3025, 16
    %v3114 = vpop.permute.xlu0 %3113
    %3115 = vrot.lane.b32.xlu0 %v3026, 16
    %v3116 = vpop.permute.xlu0 %3115
    %3117 = vrot.lane.b32.xlu0 %v3027, 16
    %v3118 = vpop.permute.xlu0 %3117
    %3119 = vrot.lane.b32.xlu0 %v3028, 16
    %v3120 = vpop.permute.xlu0 %3119
    %3121 = vrot.lane.b32.xlu0 %v3029, 16
    %v3122 = vpop.permute.xlu0 %3121
    %3123 = vrot.lane.b32.xlu0 %v3030, 16
    %v3124 = vpop.permute.xlu0 %3123
    %3125 = vrot.lane.b32.xlu0 %v3031, 16
    %v3126 = vpop.permute.xlu0 %3125
    %3127 = vrot.lane.b32.xlu0 %v3032, 16
    %v3128 = vpop.permute.xlu0 %3127
    %3161 = vst.msk [vmem:[%s2360 + $0x8] sm:$0xff] %vm1489, %v3066
    %3162 = vst.msk [vmem:[%s2360 + $0x20] sm:$0xff] %vm1489, %v3068
    %3163 = vst.msk [vmem:[%s2360 + $0x38] sm:$0xff] %vm1489, %v3070
    %3164 = vst.msk [vmem:[%s2360 + $0x50] sm:$0xff] %vm1489, %v3072
    %3165 = vst.msk [vmem:[%s2360 + $0x68] sm:$0xff] %vm1489, %v3074
    %3166 = vst.msk [vmem:[%s2360 + $0x80] sm:$0xff] %vm1489, %v3076
    %3167 = vst.msk [vmem:[%s2360 + $0x98] sm:$0xff] %vm1489, %v3078
    %3168 = vst.msk [vmem:[%s2360 + $0xb0] sm:$0xff] %vm1489, %v3080
    %3169 = vst.msk [vmem:[%s2360 + $0xc8] sm:$0xff] %vm1489, %v3082
    %3170 = vst.msk [vmem:[%s2360 + $0xe0] sm:$0xff] %vm1489, %v3084
    %3171 = vst.msk [vmem:[%s2360 + $0xf8] sm:$0xff] %vm1489, %v3086
    %3172 = vst.msk [vmem:[%s2360 + $0x110] sm:$0xff] %vm1489, %v3088
    %3173 = vst.msk [vmem:[%s2360 + $0x128] sm:$0xff] %vm1489, %v3090
    %3174 = vst.msk [vmem:[%s2360 + $0x140] sm:$0xff] %vm1489, %v3092
    %3175 = vst.msk [vmem:[%s2360 + $0x158] sm:$0xff] %vm1489, %v3094
    %3176 = vst.msk [vmem:[%s2360 + $0x170] sm:$0xff] %vm1489, %v3096
    %3177 = vst.msk [vmem:[%s2360 + $0x188] sm:$0xff] %vm1489, %v3098
    %3178 = vst.msk [vmem:[%s2360 + $0x1a0] sm:$0xff] %vm1489, %v3100
    %3179 = vst.msk [vmem:[%s2360 + $0x1b8] sm:$0xff] %vm1489, %v3102
    %3180 = vst.msk [vmem:[%s2360 + $0x1d0] sm:$0xff] %vm1489, %v3104
    %3181 = vst.msk [vmem:[%s2360 + $0x1e8] sm:$0xff] %vm1489, %v3106
    %3182 = vst.msk [vmem:[%s2360 + $0x200] sm:$0xff] %vm1489, %v3108
    %3183 = vst.msk [vmem:[%s2360 + $0x218] sm:$0xff] %vm1489, %v3110
    %3184 = vst.msk [vmem:[%s2360 + $0x230] sm:$0xff] %vm1489, %v3112
    %3185 = vst.msk [vmem:[%s2360 + $0x248] sm:$0xff] %vm1489, %v3114
    %3186 = vst.msk [vmem:[%s2360 + $0x260] sm:$0xff] %vm1489, %v3116
    %3187 = vst.msk [vmem:[%s2360 + $0x278] sm:$0xff] %vm1489, %v3118
    %3188 = vst.msk [vmem:[%s2360 + $0x290] sm:$0xff] %vm1489, %v3120
    %3189 = vst.msk [vmem:[%s2360 + $0x2a8] sm:$0xff] %vm1489, %v3122
    %3190 = vst.msk [vmem:[%s2360 + $0x2c0] sm:$0xff] %vm1489, %v3124
    %3191 = vst.msk [vmem:[%s2360 + $0x2d8] sm:$0xff] %vm1489, %v3126
    %3192 = vst.msk [vmem:[%s2360 + $0x2f0] sm:$0xff] %vm1489, %v3128
    %v3193 = vld [vmem:[%s362 + $0x2] sm:$0xff]
    %v3194 = vld [vmem:[%s362 + $0xa] sm:$0xff]
    %v3195 = vld [vmem:[%s362 + $0x1a] sm:$0xff]
    %v3196 = vld [vmem:[%s362 + $0x22] sm:$0xff]
    %v3197 = vld [vmem:[%s362 + $0x32] sm:$0xff]
    %v3198 = vld [vmem:[%s362 + $0x3a] sm:$0xff]
    %v3199 = vld [vmem:[%s362 + $0x4a] sm:$0xff]
    %v3200 = vld [vmem:[%s362 + $0x52] sm:$0xff]
    %v3201 = vld [vmem:[%s362 + $0x62] sm:$0xff]
    %v3202 = vld [vmem:[%s362 + $0x6a] sm:$0xff]
    %v3203 = vld [vmem:[%s362 + $0x7a] sm:$0xff]
    %v3204 = vld [vmem:[%s362 + $0x82] sm:$0xff]
    %v3205 = vld [vmem:[%s362 + $0x92] sm:$0xff]
    %v3206 = vld [vmem:[%s362 + $0x9a] sm:$0xff]
    %v3207 = vld [vmem:[%s362 + $0xaa] sm:$0xff]
    %v3208 = vld [vmem:[%s362 + $0xb2] sm:$0xff]
    %v3209 = vld [vmem:[%s362 + $0xc2] sm:$0xff]
    %v3210 = vld [vmem:[%s362 + $0xca] sm:$0xff]
    %v3211 = vld [vmem:[%s362 + $0xda] sm:$0xff]
    %v3212 = vld [vmem:[%s362 + $0xe2] sm:$0xff]
    %v3213 = vld [vmem:[%s362 + $0xf2] sm:$0xff]
    %v3214 = vld [vmem:[%s362 + $0xfa] sm:$0xff]
    %v3215 = vld [vmem:[%s362 + $0x10a] sm:$0xff]
    %v3216 = vld [vmem:[%s362 + $0x112] sm:$0xff]
    %v3217 = vld [vmem:[%s362 + $0x122] sm:$0xff]
    %v3218 = vld [vmem:[%s362 + $0x12a] sm:$0xff]
    %v3219 = vld [vmem:[%s362 + $0x13a] sm:$0xff]
    %v3220 = vld [vmem:[%s362 + $0x142] sm:$0xff]
    %v3221 = vld [vmem:[%s362 + $0x152] sm:$0xff]
    %v3222 = vld [vmem:[%s362 + $0x15a] sm:$0xff]
    %v3223 = vld [vmem:[%s362 + $0x16a] sm:$0xff]
    %v3224 = vld [vmem:[%s362 + $0x172] sm:$0xff]
    %3257 = vrot.lane.b32.xlu0 %v3193, 52
    %v3258 = vpop.permute.xlu0 %3257
    %3259 = vrot.lane.b32.xlu0 %v3194, 52
    %v3260 = vpop.permute.xlu0 %3259
    %3261 = vrot.lane.b32.xlu0 %v3195, 52
    %v3262 = vpop.permute.xlu0 %3261
    %3263 = vrot.lane.b32.xlu0 %v3196, 52
    %v3264 = vpop.permute.xlu0 %3263
    %3265 = vrot.lane.b32.xlu0 %v3197, 52
    %v3266 = vpop.permute.xlu0 %3265
    %3267 = vrot.lane.b32.xlu0 %v3198, 52
    %v3268 = vpop.permute.xlu0 %3267
    %3269 = vrot.lane.b32.xlu0 %v3199, 52
    %v3270 = vpop.permute.xlu0 %3269
    %3271 = vrot.lane.b32.xlu0 %v3200, 52
    %v3272 = vpop.permute.xlu0 %3271
    %3273 = vrot.lane.b32.xlu0 %v3201, 52
    %v3274 = vpop.permute.xlu0 %3273
    %3275 = vrot.lane.b32.xlu0 %v3202, 52
    %v3276 = vpop.permute.xlu0 %3275
    %3277 = vrot.lane.b32.xlu0 %v3203, 52
    %v3278 = vpop.permute.xlu0 %3277
    %3279 = vrot.lane.b32.xlu0 %v3204, 52
    %v3280 = vpop.permute.xlu0 %3279
    %3281 = vrot.lane.b32.xlu0 %v3205, 52
    %v3282 = vpop.permute.xlu0 %3281
    %3283 = vrot.lane.b32.xlu0 %v3206, 52
    %v3284 = vpop.permute.xlu0 %3283
    %3285 = vrot.lane.b32.xlu0 %v3207, 52
    %v3286 = vpop.permute.xlu0 %3285
    %3287 = vrot.lane.b32.xlu0 %v3208, 52
    %v3288 = vpop.permute.xlu0 %3287
    %3289 = vrot.lane.b32.xlu0 %v3209, 52
    %v3290 = vpop.permute.xlu0 %3289
    %3291 = vrot.lane.b32.xlu0 %v3210, 52
    %v3292 = vpop.permute.xlu0 %3291
    %3293 = vrot.lane.b32.xlu0 %v3211, 52
    %v3294 = vpop.permute.xlu0 %3293
    %3295 = vrot.lane.b32.xlu0 %v3212, 52
    %v3296 = vpop.permute.xlu0 %3295
    %3297 = vrot.lane.b32.xlu0 %v3213, 52
    %v3298 = vpop.permute.xlu0 %3297
    %3299 = vrot.lane.b32.xlu0 %v3214, 52
    %v3300 = vpop.permute.xlu0 %3299
    %3301 = vrot.lane.b32.xlu0 %v3215, 52
    %v3302 = vpop.permute.xlu0 %3301
    %3303 = vrot.lane.b32.xlu0 %v3216, 52
    %v3304 = vpop.permute.xlu0 %3303
    %3305 = vrot.lane.b32.xlu0 %v3217, 52
    %v3306 = vpop.permute.xlu0 %3305
    %3307 = vrot.lane.b32.xlu0 %v3218, 52
    %v3308 = vpop.permute.xlu0 %3307
    %3309 = vrot.lane.b32.xlu0 %v3219, 52
    %v3310 = vpop.permute.xlu0 %3309
    %3311 = vrot.lane.b32.xlu0 %v3220, 52
    %v3312 = vpop.permute.xlu0 %3311
    %3313 = vrot.lane.b32.xlu0 %v3221, 52
    %v3314 = vpop.permute.xlu0 %3313
    %3315 = vrot.lane.b32.xlu0 %v3222, 52
    %v3316 = vpop.permute.xlu0 %3315
    %3317 = vrot.lane.b32.xlu0 %v3223, 52
    %v3318 = vpop.permute.xlu0 %3317
    %3319 = vrot.lane.b32.xlu0 %v3224, 52
    %v3320 = vpop.permute.xlu0 %3319
    %3353 = vst.msk [vmem:[%s2360 + $0x8] sm:$0xff] %vm1682, %v3258
    %3354 = vst.msk [vmem:[%s2360 + $0x20] sm:$0xff] %vm1682, %v3260
    %3355 = vst.msk [vmem:[%s2360 + $0x38] sm:$0xff] %vm1682, %v3262
    %3356 = vst.msk [vmem:[%s2360 + $0x50] sm:$0xff] %vm1682, %v3264
    %3357 = vst.msk [vmem:[%s2360 + $0x68] sm:$0xff] %vm1682, %v3266
    %3358 = vst.msk [vmem:[%s2360 + $0x80] sm:$0xff] %vm1682, %v3268
    %3359 = vst.msk [vmem:[%s2360 + $0x98] sm:$0xff] %vm1682, %v3270
    %3360 = vst.msk [vmem:[%s2360 + $0xb0] sm:$0xff] %vm1682, %v3272
    %3361 = vst.msk [vmem:[%s2360 + $0xc8] sm:$0xff] %vm1682, %v3274
    %3362 = vst.msk [vmem:[%s2360 + $0xe0] sm:$0xff] %vm1682, %v3276
    %3363 = vst.msk [vmem:[%s2360 + $0xf8] sm:$0xff] %vm1682, %v3278
    %3364 = vst.msk [vmem:[%s2360 + $0x110] sm:$0xff] %vm1682, %v3280
    %3365 = vst.msk [vmem:[%s2360 + $0x128] sm:$0xff] %vm1682, %v3282
    %3366 = vst.msk [vmem:[%s2360 + $0x140] sm:$0xff] %vm1682, %v3284
    %3367 = vst.msk [vmem:[%s2360 + $0x158] sm:$0xff] %vm1682, %v3286
    %3368 = vst.msk [vmem:[%s2360 + $0x170] sm:$0xff] %vm1682, %v3288
    %3369 = vst.msk [vmem:[%s2360 + $0x188] sm:$0xff] %vm1682, %v3290
    %3370 = vst.msk [vmem:[%s2360 + $0x1a0] sm:$0xff] %vm1682, %v3292
    %3371 = vst.msk [vmem:[%s2360 + $0x1b8] sm:$0xff] %vm1682, %v3294
    %3372 = vst.msk [vmem:[%s2360 + $0x1d0] sm:$0xff] %vm1682, %v3296
    %3373 = vst.msk [vmem:[%s2360 + $0x1e8] sm:$0xff] %vm1682, %v3298
    %3374 = vst.msk [vmem:[%s2360 + $0x200] sm:$0xff] %vm1682, %v3300
    %3375 = vst.msk [vmem:[%s2360 + $0x218] sm:$0xff] %vm1682, %v3302
    %3376 = vst.msk [vmem:[%s2360 + $0x230] sm:$0xff] %vm1682, %v3304
    %3377 = vst.msk [vmem:[%s2360 + $0x248] sm:$0xff] %vm1682, %v3306
    %3378 = vst.msk [vmem:[%s2360 + $0x260] sm:$0xff] %vm1682, %v3308
    %3379 = vst.msk [vmem:[%s2360 + $0x278] sm:$0xff] %vm1682, %v3310
    %3380 = vst.msk [vmem:[%s2360 + $0x290] sm:$0xff] %vm1682, %v3312
    %3381 = vst.msk [vmem:[%s2360 + $0x2a8] sm:$0xff] %vm1682, %v3314
    %3382 = vst.msk [vmem:[%s2360 + $0x2c0] sm:$0xff] %vm1682, %v3316
    %3383 = vst.msk [vmem:[%s2360 + $0x2d8] sm:$0xff] %vm1682, %v3318
    %3384 = vst.msk [vmem:[%s2360 + $0x2f0] sm:$0xff] %vm1682, %v3320
    %s3385 = scalar_lea.vmem [#allocation2], 480
    %v3386 = vld [vmem:[%s3385] sm:$0xff]
    %v3387 = vld [vmem:[%s3385 + $0x8] sm:$0xff]
    %v3388 = vld [vmem:[%s3385 + $0x18] sm:$0xff]
    %v3389 = vld [vmem:[%s3385 + $0x20] sm:$0xff]
    %v3390 = vld [vmem:[%s3385 + $0x30] sm:$0xff]
    %v3391 = vld [vmem:[%s3385 + $0x38] sm:$0xff]
    %v3392 = vld [vmem:[%s3385 + $0x48] sm:$0xff]
    %v3393 = vld [vmem:[%s3385 + $0x50] sm:$0xff]
    %v3394 = vld [vmem:[%s3385 + $0x60] sm:$0xff]
    %v3395 = vld [vmem:[%s3385 + $0x68] sm:$0xff]
    %v3396 = vld [vmem:[%s3385 + $0x78] sm:$0xff]
    %v3397 = vld [vmem:[%s3385 + $0x80] sm:$0xff]
    %v3398 = vld [vmem:[%s3385 + $0x90] sm:$0xff]
    %v3399 = vld [vmem:[%s3385 + $0x98] sm:$0xff]
    %v3400 = vld [vmem:[%s3385 + $0xa8] sm:$0xff]
    %v3401 = vld [vmem:[%s3385 + $0xb0] sm:$0xff]
    %v3402 = vld [vmem:[%s3385 + $0xc0] sm:$0xff]
    %v3403 = vld [vmem:[%s3385 + $0xc8] sm:$0xff]
    %v3404 = vld [vmem:[%s3385 + $0xd8] sm:$0xff]
    %v3405 = vld [vmem:[%s3385 + $0xe0] sm:$0xff]
    %v3406 = vld [vmem:[%s3385 + $0xf0] sm:$0xff]
    %v3407 = vld [vmem:[%s3385 + $0xf8] sm:$0xff]
    %v3408 = vld [vmem:[%s3385 + $0x108] sm:$0xff]
    %v3409 = vld [vmem:[%s3385 + $0x110] sm:$0xff]
    %v3410 = vld [vmem:[%s3385 + $0x120] sm:$0xff]
    %v3411 = vld [vmem:[%s3385 + $0x128] sm:$0xff]
    %v3412 = vld [vmem:[%s3385 + $0x138] sm:$0xff]
    %v3413 = vld [vmem:[%s3385 + $0x140] sm:$0xff]
    %v3414 = vld [vmem:[%s3385 + $0x150] sm:$0xff]
    %v3415 = vld [vmem:[%s3385 + $0x158] sm:$0xff]
    %v3416 = vld [vmem:[%s3385 + $0x168] sm:$0xff]
    %v3417 = vld [vmem:[%s3385 + $0x170] sm:$0xff]
    %3450 = vrot.lane.b32.xlu0 %v3386, 88
    %v3451 = vpop.permute.xlu0 %3450
    %3452 = vrot.lane.b32.xlu0 %v3387, 88
    %v3453 = vpop.permute.xlu0 %3452
    %3454 = vrot.lane.b32.xlu0 %v3388, 88
    %v3455 = vpop.permute.xlu0 %3454
    %3456 = vrot.lane.b32.xlu0 %v3389, 88
    %v3457 = vpop.permute.xlu0 %3456
    %3458 = vrot.lane.b32.xlu0 %v3390, 88
    %v3459 = vpop.permute.xlu0 %3458
    %3460 = vrot.lane.b32.xlu0 %v3391, 88
    %v3461 = vpop.permute.xlu0 %3460
    %3462 = vrot.lane.b32.xlu0 %v3392, 88
    %v3463 = vpop.permute.xlu0 %3462
    %3464 = vrot.lane.b32.xlu0 %v3393, 88
    %v3465 = vpop.permute.xlu0 %3464
    %3466 = vrot.lane.b32.xlu0 %v3394, 88
    %v3467 = vpop.permute.xlu0 %3466
    %3468 = vrot.lane.b32.xlu0 %v3395, 88
    %v3469 = vpop.permute.xlu0 %3468
    %3470 = vrot.lane.b32.xlu0 %v3396, 88
    %v3471 = vpop.permute.xlu0 %3470
    %3472 = vrot.lane.b32.xlu0 %v3397, 88
    %v3473 = vpop.permute.xlu0 %3472
    %3474 = vrot.lane.b32.xlu0 %v3398, 88
    %v3475 = vpop.permute.xlu0 %3474
    %3476 = vrot.lane.b32.xlu0 %v3399, 88
    %v3477 = vpop.permute.xlu0 %3476
    %3478 = vrot.lane.b32.xlu0 %v3400, 88
    %v3479 = vpop.permute.xlu0 %3478
    %3480 = vrot.lane.b32.xlu0 %v3401, 88
    %v3481 = vpop.permute.xlu0 %3480
    %3482 = vrot.lane.b32.xlu0 %v3402, 88
    %v3483 = vpop.permute.xlu0 %3482
    %3484 = vrot.lane.b32.xlu0 %v3403, 88
    %v3485 = vpop.permute.xlu0 %3484
    %3486 = vrot.lane.b32.xlu0 %v3404, 88
    %v3487 = vpop.permute.xlu0 %3486
    %3488 = vrot.lane.b32.xlu0 %v3405, 88
    %v3489 = vpop.permute.xlu0 %3488
    %3490 = vrot.lane.b32.xlu0 %v3406, 88
    %v3491 = vpop.permute.xlu0 %3490
    %3492 = vrot.lane.b32.xlu0 %v3407, 88
    %v3493 = vpop.permute.xlu0 %3492
    %3494 = vrot.lane.b32.xlu0 %v3408, 88
    %v3495 = vpop.permute.xlu0 %3494
    %3496 = vrot.lane.b32.xlu0 %v3409, 88
    %v3497 = vpop.permute.xlu0 %3496
    %3498 = vrot.lane.b32.xlu0 %v3410, 88
    %v3499 = vpop.permute.xlu0 %3498
    %3500 = vrot.lane.b32.xlu0 %v3411, 88
    %v3501 = vpop.permute.xlu0 %3500
    %3502 = vrot.lane.b32.xlu0 %v3412, 88
    %v3503 = vpop.permute.xlu0 %3502
    %3504 = vrot.lane.b32.xlu0 %v3413, 88
    %v3505 = vpop.permute.xlu0 %3504
    %3506 = vrot.lane.b32.xlu0 %v3414, 88
    %v3507 = vpop.permute.xlu0 %3506
    %3508 = vrot.lane.b32.xlu0 %v3415, 88
    %v3509 = vpop.permute.xlu0 %3508
    %3510 = vrot.lane.b32.xlu0 %v3416, 88
    %v3511 = vpop.permute.xlu0 %3510
    %3512 = vrot.lane.b32.xlu0 %v3417, 88
    %v3513 = vpop.permute.xlu0 %3512
    %3546 = vst.msk [vmem:[%s2360 + $0x8] sm:$0xff] %vm1876, %v3451
    %3547 = vst.msk [vmem:[%s2360 + $0x20] sm:$0xff] %vm1876, %v3453
    %3548 = vst.msk [vmem:[%s2360 + $0x38] sm:$0xff] %vm1876, %v3455
    %3549 = vst.msk [vmem:[%s2360 + $0x50] sm:$0xff] %vm1876, %v3457
    %3550 = vst.msk [vmem:[%s2360 + $0x68] sm:$0xff] %vm1876, %v3459
    %3551 = vst.msk [vmem:[%s2360 + $0x80] sm:$0xff] %vm1876, %v3461
    %3552 = vst.msk [vmem:[%s2360 + $0x98] sm:$0xff] %vm1876, %v3463
    %3553 = vst.msk [vmem:[%s2360 + $0xb0] sm:$0xff] %vm1876, %v3465
    %3554 = vst.msk [vmem:[%s2360 + $0xc8] sm:$0xff] %vm1876, %v3467
    %3555 = vst.msk [vmem:[%s2360 + $0xe0] sm:$0xff] %vm1876, %v3469
    %3556 = vst.msk [vmem:[%s2360 + $0xf8] sm:$0xff] %vm1876, %v3471
    %3557 = vst.msk [vmem:[%s2360 + $0x110] sm:$0xff] %vm1876, %v3473
    %3558 = vst.msk [vmem:[%s2360 + $0x128] sm:$0xff] %vm1876, %v3475
    %3559 = vst.msk [vmem:[%s2360 + $0x140] sm:$0xff] %vm1876, %v3477
    %3560 = vst.msk [vmem:[%s2360 + $0x158] sm:$0xff] %vm1876, %v3479
    %3561 = vst.msk [vmem:[%s2360 + $0x170] sm:$0xff] %vm1876, %v3481
    %3562 = vst.msk [vmem:[%s2360 + $0x188] sm:$0xff] %vm1876, %v3483
    %3563 = vst.msk [vmem:[%s2360 + $0x1a0] sm:$0xff] %vm1876, %v3485
    %3564 = vst.msk [vmem:[%s2360 + $0x1b8] sm:$0xff] %vm1876, %v3487
    %3565 = vst.msk [vmem:[%s2360 + $0x1d0] sm:$0xff] %vm1876, %v3489
    %3566 = vst.msk [vmem:[%s2360 + $0x1e8] sm:$0xff] %vm1876, %v3491
    %3567 = vst.msk [vmem:[%s2360 + $0x200] sm:$0xff] %vm1876, %v3493
    %3568 = vst.msk [vmem:[%s2360 + $0x218] sm:$0xff] %vm1876, %v3495
    %3569 = vst.msk [vmem:[%s2360 + $0x230] sm:$0xff] %vm1876, %v3497
    %3570 = vst.msk [vmem:[%s2360 + $0x248] sm:$0xff] %vm1876, %v3499
    %3571 = vst.msk [vmem:[%s2360 + $0x260] sm:$0xff] %vm1876, %v3501
    %3572 = vst.msk [vmem:[%s2360 + $0x278] sm:$0xff] %vm1876, %v3503
    %3573 = vst.msk [vmem:[%s2360 + $0x290] sm:$0xff] %vm1876, %v3505
    %3574 = vst.msk [vmem:[%s2360 + $0x2a8] sm:$0xff] %vm1876, %v3507
    %3575 = vst.msk [vmem:[%s2360 + $0x2c0] sm:$0xff] %vm1876, %v3509
    %3576 = vst.msk [vmem:[%s2360 + $0x2d8] sm:$0xff] %vm1876, %v3511
    %3577 = vst.msk [vmem:[%s2360 + $0x2f0] sm:$0xff] %vm1876, %v3513
    %v3578 = vld [vmem:[%s3385 + $0x1] sm:$0xff]
    %v3579 = vld [vmem:[%s3385 + $0x9] sm:$0xff]
    %v3580 = vld [vmem:[%s3385 + $0x19] sm:$0xff]
    %v3581 = vld [vmem:[%s3385 + $0x21] sm:$0xff]
    %v3582 = vld [vmem:[%s3385 + $0x31] sm:$0xff]
    %v3583 = vld [vmem:[%s3385 + $0x39] sm:$0xff]
    %v3584 = vld [vmem:[%s3385 + $0x49] sm:$0xff]
    %v3585 = vld [vmem:[%s3385 + $0x51] sm:$0xff]
    %v3586 = vld [vmem:[%s3385 + $0x61] sm:$0xff]
    %v3587 = vld [vmem:[%s3385 + $0x69] sm:$0xff]
    %v3588 = vld [vmem:[%s3385 + $0x79] sm:$0xff]
    %v3589 = vld [vmem:[%s3385 + $0x81] sm:$0xff]
    %v3590 = vld [vmem:[%s3385 + $0x91] sm:$0xff]
    %v3591 = vld [vmem:[%s3385 + $0x99] sm:$0xff]
    %v3592 = vld [vmem:[%s3385 + $0xa9] sm:$0xff]
    %v3593 = vld [vmem:[%s3385 + $0xb1] sm:$0xff]
    %v3594 = vld [vmem:[%s3385 + $0xc1] sm:$0xff]
    %v3595 = vld [vmem:[%s3385 + $0xc9] sm:$0xff]
    %v3596 = vld [vmem:[%s3385 + $0xd9] sm:$0xff]
    %v3597 = vld [vmem:[%s3385 + $0xe1] sm:$0xff]
    %v3598 = vld [vmem:[%s3385 + $0xf1] sm:$0xff]
    %v3599 = vld [vmem:[%s3385 + $0xf9] sm:$0xff]
    %v3600 = vld [vmem:[%s3385 + $0x109] sm:$0xff]
    %v3601 = vld [vmem:[%s3385 + $0x111] sm:$0xff]
    %v3602 = vld [vmem:[%s3385 + $0x121] sm:$0xff]
    %v3603 = vld [vmem:[%s3385 + $0x129] sm:$0xff]
    %v3604 = vld [vmem:[%s3385 + $0x139] sm:$0xff]
    %v3605 = vld [vmem:[%s3385 + $0x141] sm:$0xff]
    %v3606 = vld [vmem:[%s3385 + $0x151] sm:$0xff]
    %v3607 = vld [vmem:[%s3385 + $0x159] sm:$0xff]
    %v3608 = vld [vmem:[%s3385 + $0x169] sm:$0xff]
    %v3609 = vld [vmem:[%s3385 + $0x171] sm:$0xff]
    %3642 = vrot.lane.b32.xlu0 %v3578, 124
    %v3643 = vpop.permute.xlu0 %3642
    %3644 = vrot.lane.b32.xlu0 %v3579, 124
    %v3645 = vpop.permute.xlu0 %3644
    %3646 = vrot.lane.b32.xlu0 %v3580, 124
    %v3647 = vpop.permute.xlu0 %3646
    %3648 = vrot.lane.b32.xlu0 %v3581, 124
    %v3649 = vpop.permute.xlu0 %3648
    %3650 = vrot.lane.b32.xlu0 %v3582, 124
    %v3651 = vpop.permute.xlu0 %3650
    %3652 = vrot.lane.b32.xlu0 %v3583, 124
    %v3653 = vpop.permute.xlu0 %3652
    %3654 = vrot.lane.b32.xlu0 %v3584, 124
    %v3655 = vpop.permute.xlu0 %3654
    %3656 = vrot.lane.b32.xlu0 %v3585, 124
    %v3657 = vpop.permute.xlu0 %3656
    %3658 = vrot.lane.b32.xlu0 %v3586, 124
    %v3659 = vpop.permute.xlu0 %3658
    %3660 = vrot.lane.b32.xlu0 %v3587, 124
    %v3661 = vpop.permute.xlu0 %3660
    %3662 = vrot.lane.b32.xlu0 %v3588, 124
    %v3663 = vpop.permute.xlu0 %3662
    %3664 = vrot.lane.b32.xlu0 %v3589, 124
    %v3665 = vpop.permute.xlu0 %3664
    %3666 = vrot.lane.b32.xlu0 %v3590, 124
    %v3667 = vpop.permute.xlu0 %3666
    %3668 = vrot.lane.b32.xlu0 %v3591, 124
    %v3669 = vpop.permute.xlu0 %3668
    %3670 = vrot.lane.b32.xlu0 %v3592, 124
    %v3671 = vpop.permute.xlu0 %3670
    %3672 = vrot.lane.b32.xlu0 %v3593, 124
    %v3673 = vpop.permute.xlu0 %3672
    %3674 = vrot.lane.b32.xlu0 %v3594, 124
    %v3675 = vpop.permute.xlu0 %3674
    %3676 = vrot.lane.b32.xlu0 %v3595, 124
    %v3677 = vpop.permute.xlu0 %3676
    %3678 = vrot.lane.b32.xlu0 %v3596, 124
    %v3679 = vpop.permute.xlu0 %3678
    %3680 = vrot.lane.b32.xlu0 %v3597, 124
    %v3681 = vpop.permute.xlu0 %3680
    %3682 = vrot.lane.b32.xlu0 %v3598, 124
    %v3683 = vpop.permute.xlu0 %3682
    %3684 = vrot.lane.b32.xlu0 %v3599, 124
    %v3685 = vpop.permute.xlu0 %3684
    %3686 = vrot.lane.b32.xlu0 %v3600, 124
    %v3687 = vpop.permute.xlu0 %3686
    %3688 = vrot.lane.b32.xlu0 %v3601, 124
    %v3689 = vpop.permute.xlu0 %3688
    %3690 = vrot.lane.b32.xlu0 %v3602, 124
    %v3691 = vpop.permute.xlu0 %3690
    %3692 = vrot.lane.b32.xlu0 %v3603, 124
    %v3693 = vpop.permute.xlu0 %3692
    %3694 = vrot.lane.b32.xlu0 %v3604, 124
    %v3695 = vpop.permute.xlu0 %3694
    %3696 = vrot.lane.b32.xlu0 %v3605, 124
    %v3697 = vpop.permute.xlu0 %3696
    %3698 = vrot.lane.b32.xlu0 %v3606, 124
    %v3699 = vpop.permute.xlu0 %3698
    %3700 = vrot.lane.b32.xlu0 %v3607, 124
    %v3701 = vpop.permute.xlu0 %3700
    %3702 = vrot.lane.b32.xlu0 %v3608, 124
    %v3703 = vpop.permute.xlu0 %3702
    %3704 = vrot.lane.b32.xlu0 %v3609, 124
    %v3705 = vpop.permute.xlu0 %3704
    %3738 = vst.msk [vmem:[%s2360 + $0x8] sm:$0xff] %vm2069, %v3643
    %3739 = vst.msk [vmem:[%s2360 + $0x10] sm:$0xff] %vm2071, %v3643
    %3740 = vst.msk [vmem:[%s2360 + $0x20] sm:$0xff] %vm2069, %v3645
    %3741 = vst.msk [vmem:[%s2360 + $0x28] sm:$0xff] %vm2071, %v3645
    %3742 = vst.msk [vmem:[%s2360 + $0x38] sm:$0xff] %vm2069, %v3647
    %3743 = vst.msk [vmem:[%s2360 + $0x40] sm:$0xff] %vm2071, %v3647
    %3744 = vst.msk [vmem:[%s2360 + $0x50] sm:$0xff] %vm2069, %v3649
    %3745 = vst.msk [vmem:[%s2360 + $0x58] sm:$0xff] %vm2071, %v3649
    %3746 = vst.msk [vmem:[%s2360 + $0x68] sm:$0xff] %vm2069, %v3651
    %3747 = vst.msk [vmem:[%s2360 + $0x70] sm:$0xff] %vm2071, %v3651
    %3748 = vst.msk [vmem:[%s2360 + $0x80] sm:$0xff] %vm2069, %v3653
    %3749 = vst.msk [vmem:[%s2360 + $0x88] sm:$0xff] %vm2071, %v3653
    %3750 = vst.msk [vmem:[%s2360 + $0x98] sm:$0xff] %vm2069, %v3655
    %3751 = vst.msk [vmem:[%s2360 + $0xa0] sm:$0xff] %vm2071, %v3655
    %3752 = vst.msk [vmem:[%s2360 + $0xb0] sm:$0xff] %vm2069, %v3657
    %3753 = vst.msk [vmem:[%s2360 + $0xb8] sm:$0xff] %vm2071, %v3657
    %3754 = vst.msk [vmem:[%s2360 + $0xc8] sm:$0xff] %vm2069, %v3659
    %3755 = vst.msk [vmem:[%s2360 + $0xd0] sm:$0xff] %vm2071, %v3659
    %3756 = vst.msk [vmem:[%s2360 + $0xe0] sm:$0xff] %vm2069, %v3661
    %3757 = vst.msk [vmem:[%s2360 + $0xe8] sm:$0xff] %vm2071, %v3661
    %3758 = vst.msk [vmem:[%s2360 + $0xf8] sm:$0xff] %vm2069, %v3663
    %3759 = vst.msk [vmem:[%s2360 + $0x100] sm:$0xff] %vm2071, %v3663
    %3760 = vst.msk [vmem:[%s2360 + $0x110] sm:$0xff] %vm2069, %v3665
    %3761 = vst.msk [vmem:[%s2360 + $0x118] sm:$0xff] %vm2071, %v3665
    %3762 = vst.msk [vmem:[%s2360 + $0x128] sm:$0xff] %vm2069, %v3667
    %3763 = vst.msk [vmem:[%s2360 + $0x130] sm:$0xff] %vm2071, %v3667
    %3764 = vst.msk [vmem:[%s2360 + $0x140] sm:$0xff] %vm2069, %v3669
    %3765 = vst.msk [vmem:[%s2360 + $0x148] sm:$0xff] %vm2071, %v3669
    %3766 = vst.msk [vmem:[%s2360 + $0x158] sm:$0xff] %vm2069, %v3671
    %3767 = vst.msk [vmem:[%s2360 + $0x160] sm:$0xff] %vm2071, %v3671
    %3768 = vst.msk [vmem:[%s2360 + $0x170] sm:$0xff] %vm2069, %v3673
    %3769 = vst.msk [vmem:[%s2360 + $0x178] sm:$0xff] %vm2071, %v3673
    %3770 = vst.msk [vmem:[%s2360 + $0x188] sm:$0xff] %vm2069, %v3675
    %3771 = vst.msk [vmem:[%s2360 + $0x190] sm:$0xff] %vm2071, %v3675
    %3772 = vst.msk [vmem:[%s2360 + $0x1a0] sm:$0xff] %vm2069, %v3677
    %3773 = vst.msk [vmem:[%s2360 + $0x1a8] sm:$0xff] %vm2071, %v3677
    %3774 = vst.msk [vmem:[%s2360 + $0x1b8] sm:$0xff] %vm2069, %v3679
    %3775 = vst.msk [vmem:[%s2360 + $0x1c0] sm:$0xff] %vm2071, %v3679
    %3776 = vst.msk [vmem:[%s2360 + $0x1d0] sm:$0xff] %vm2069, %v3681
    %3777 = vst.msk [vmem:[%s2360 + $0x1d8] sm:$0xff] %vm2071, %v3681
    %3778 = vst.msk [vmem:[%s2360 + $0x1e8] sm:$0xff] %vm2069, %v3683
    %3779 = vst.msk [vmem:[%s2360 + $0x1f0] sm:$0xff] %vm2071, %v3683
    %3780 = vst.msk [vmem:[%s2360 + $0x200] sm:$0xff] %vm2069, %v3685
    %3781 = vst.msk [vmem:[%s2360 + $0x208] sm:$0xff] %vm2071, %v3685
    %3782 = vst.msk [vmem:[%s2360 + $0x218] sm:$0xff] %vm2069, %v3687
    %3783 = vst.msk [vmem:[%s2360 + $0x220] sm:$0xff] %vm2071, %v3687
    %3784 = vst.msk [vmem:[%s2360 + $0x230] sm:$0xff] %vm2069, %v3689
    %3785 = vst.msk [vmem:[%s2360 + $0x238] sm:$0xff] %vm2071, %v3689
    %3786 = vst.msk [vmem:[%s2360 + $0x248] sm:$0xff] %vm2069, %v3691
    %3787 = vst.msk [vmem:[%s2360 + $0x250] sm:$0xff] %vm2071, %v3691
    %3788 = vst.msk [vmem:[%s2360 + $0x260] sm:$0xff] %vm2069, %v3693
    %3789 = vst.msk [vmem:[%s2360 + $0x268] sm:$0xff] %vm2071, %v3693
    %3790 = vst.msk [vmem:[%s2360 + $0x278] sm:$0xff] %vm2069, %v3695
    %3791 = vst.msk [vmem:[%s2360 + $0x280] sm:$0xff] %vm2071, %v3695
    %3792 = vst.msk [vmem:[%s2360 + $0x290] sm:$0xff] %vm2069, %v3697
    %3793 = vst.msk [vmem:[%s2360 + $0x298] sm:$0xff] %vm2071, %v3697
    %3794 = vst.msk [vmem:[%s2360 + $0x2a8] sm:$0xff] %vm2069, %v3699
    %3795 = vst.msk [vmem:[%s2360 + $0x2b0] sm:$0xff] %vm2071, %v3699
    %3796 = vst.msk [vmem:[%s2360 + $0x2c0] sm:$0xff] %vm2069, %v3701
    %3797 = vst.msk [vmem:[%s2360 + $0x2c8] sm:$0xff] %vm2071, %v3701
    %3798 = vst.msk [vmem:[%s2360 + $0x2d8] sm:$0xff] %vm2069, %v3703
    %3799 = vst.msk [vmem:[%s2360 + $0x2e0] sm:$0xff] %vm2071, %v3703
    %3800 = vst.msk [vmem:[%s2360 + $0x2f0] sm:$0xff] %vm2069, %v3705
    %3801 = vst.msk [vmem:[%s2360 + $0x2f8] sm:$0xff] %vm2071, %v3705
    %v3802 = vld [vmem:[%s3385 + $0x2] sm:$0xff]
    %v3803 = vld [vmem:[%s3385 + $0xa] sm:$0xff]
    %v3804 = vld [vmem:[%s3385 + $0x1a] sm:$0xff]
    %v3805 = vld [vmem:[%s3385 + $0x22] sm:$0xff]
    %v3806 = vld [vmem:[%s3385 + $0x32] sm:$0xff]
    %v3807 = vld [vmem:[%s3385 + $0x3a] sm:$0xff]
    %v3808 = vld [vmem:[%s3385 + $0x4a] sm:$0xff]
    %v3809 = vld [vmem:[%s3385 + $0x52] sm:$0xff]
    %v3810 = vld [vmem:[%s3385 + $0x62] sm:$0xff]
    %v3811 = vld [vmem:[%s3385 + $0x6a] sm:$0xff]
    %v3812 = vld [vmem:[%s3385 + $0x7a] sm:$0xff]
    %v3813 = vld [vmem:[%s3385 + $0x82] sm:$0xff]
    %v3814 = vld [vmem:[%s3385 + $0x92] sm:$0xff]
    %v3815 = vld [vmem:[%s3385 + $0x9a] sm:$0xff]
    %v3816 = vld [vmem:[%s3385 + $0xaa] sm:$0xff]
    %v3817 = vld [vmem:[%s3385 + $0xb2] sm:$0xff]
    %v3818 = vld [vmem:[%s3385 + $0xc2] sm:$0xff]
    %v3819 = vld [vmem:[%s3385 + $0xca] sm:$0xff]
    %v3820 = vld [vmem:[%s3385 + $0xda] sm:$0xff]
    %v3821 = vld [vmem:[%s3385 + $0xe2] sm:$0xff]
    %v3822 = vld [vmem:[%s3385 + $0xf2] sm:$0xff]
    %v3823 = vld [vmem:[%s3385 + $0xfa] sm:$0xff]
    %v3824 = vld [vmem:[%s3385 + $0x10a] sm:$0xff]
    %v3825 = vld [vmem:[%s3385 + $0x112] sm:$0xff]
    %v3826 = vld [vmem:[%s3385 + $0x122] sm:$0xff]
    %v3827 = vld [vmem:[%s3385 + $0x12a] sm:$0xff]
    %v3828 = vld [vmem:[%s3385 + $0x13a] sm:$0xff]
    %v3829 = vld [vmem:[%s3385 + $0x142] sm:$0xff]
    %v3830 = vld [vmem:[%s3385 + $0x152] sm:$0xff]
    %v3831 = vld [vmem:[%s3385 + $0x15a] sm:$0xff]
    %v3832 = vld [vmem:[%s3385 + $0x16a] sm:$0xff]
    %v3833 = vld [vmem:[%s3385 + $0x172] sm:$0xff]
    %3866 = vrot.lane.b32.xlu0 %v3802, 32
    %v3867 = vpop.permute.xlu0 %3866
    %3868 = vrot.lane.b32.xlu0 %v3803, 32
    %v3869 = vpop.permute.xlu0 %3868
    %3870 = vrot.lane.b32.xlu0 %v3804, 32
    %v3871 = vpop.permute.xlu0 %3870
    %3872 = vrot.lane.b32.xlu0 %v3805, 32
    %v3873 = vpop.permute.xlu0 %3872
    %3874 = vrot.lane.b32.xlu0 %v3806, 32
    %v3875 = vpop.permute.xlu0 %3874
    %3876 = vrot.lane.b32.xlu0 %v3807, 32
    %v3877 = vpop.permute.xlu0 %3876
    %3878 = vrot.lane.b32.xlu0 %v3808, 32
    %v3879 = vpop.permute.xlu0 %3878
    %3880 = vrot.lane.b32.xlu0 %v3809, 32
    %v3881 = vpop.permute.xlu0 %3880
    %3882 = vrot.lane.b32.xlu0 %v3810, 32
    %v3883 = vpop.permute.xlu0 %3882
    %3884 = vrot.lane.b32.xlu0 %v3811, 32
    %v3885 = vpop.permute.xlu0 %3884
    %3886 = vrot.lane.b32.xlu0 %v3812, 32
    %v3887 = vpop.permute.xlu0 %3886
    %3888 = vrot.lane.b32.xlu0 %v3813, 32
    %v3889 = vpop.permute.xlu0 %3888
    %3890 = vrot.lane.b32.xlu0 %v3814, 32
    %v3891 = vpop.permute.xlu0 %3890
    %3892 = vrot.lane.b32.xlu0 %v3815, 32
    %v3893 = vpop.permute.xlu0 %3892
    %3894 = vrot.lane.b32.xlu0 %v3816, 32
    %v3895 = vpop.permute.xlu0 %3894
    %3896 = vrot.lane.b32.xlu0 %v3817, 32
    %v3897 = vpop.permute.xlu0 %3896
    %3898 = vrot.lane.b32.xlu0 %v3818, 32
    %v3899 = vpop.permute.xlu0 %3898
    %3900 = vrot.lane.b32.xlu0 %v3819, 32
    %v3901 = vpop.permute.xlu0 %3900
    %3902 = vrot.lane.b32.xlu0 %v3820, 32
    %v3903 = vpop.permute.xlu0 %3902
    %3904 = vrot.lane.b32.xlu0 %v3821, 32
    %v3905 = vpop.permute.xlu0 %3904
    %3906 = vrot.lane.b32.xlu0 %v3822, 32
    %v3907 = vpop.permute.xlu0 %3906
    %3908 = vrot.lane.b32.xlu0 %v3823, 32
    %v3909 = vpop.permute.xlu0 %3908
    %3910 = vrot.lane.b32.xlu0 %v3824, 32
    %v3911 = vpop.permute.xlu0 %3910
    %3912 = vrot.lane.b32.xlu0 %v3825, 32
    %v3913 = vpop.permute.xlu0 %3912
    %3914 = vrot.lane.b32.xlu0 %v3826, 32
    %v3915 = vpop.permute.xlu0 %3914
    %3916 = vrot.lane.b32.xlu0 %v3827, 32
    %v3917 = vpop.permute.xlu0 %3916
    %3918 = vrot.lane.b32.xlu0 %v3828, 32
    %v3919 = vpop.permute.xlu0 %3918
    %3920 = vrot.lane.b32.xlu0 %v3829, 32
    %v3921 = vpop.permute.xlu0 %3920
    %3922 = vrot.lane.b32.xlu0 %v3830, 32
    %v3923 = vpop.permute.xlu0 %3922
    %3924 = vrot.lane.b32.xlu0 %v3831, 32
    %v3925 = vpop.permute.xlu0 %3924
    %3926 = vrot.lane.b32.xlu0 %v3832, 32
    %v3927 = vpop.permute.xlu0 %3926
    %3928 = vrot.lane.b32.xlu0 %v3833, 32
    %v3929 = vpop.permute.xlu0 %3928
    %3962 = vst.msk [vmem:[%s2360 + $0x10] sm:$0xff] %vm2295, %v3867
    %3963 = vst.msk [vmem:[%s2360 + $0x28] sm:$0xff] %vm2295, %v3869
    %3964 = vst.msk [vmem:[%s2360 + $0x40] sm:$0xff] %vm2295, %v3871
    %3965 = vst.msk [vmem:[%s2360 + $0x58] sm:$0xff] %vm2295, %v3873
    %3966 = vst.msk [vmem:[%s2360 + $0x70] sm:$0xff] %vm2295, %v3875
    %3967 = vst.msk [vmem:[%s2360 + $0x88] sm:$0xff] %vm2295, %v3877
    %3968 = vst.msk [vmem:[%s2360 + $0xa0] sm:$0xff] %vm2295, %v3879
    %3969 = vst.msk [vmem:[%s2360 + $0xb8] sm:$0xff] %vm2295, %v3881
    %3970 = vst.msk [vmem:[%s2360 + $0xd0] sm:$0xff] %vm2295, %v3883
    %3971 = vst.msk [vmem:[%s2360 + $0xe8] sm:$0xff] %vm2295, %v3885
    %3972 = vst.msk [vmem:[%s2360 + $0x100] sm:$0xff] %vm2295, %v3887
    %3973 = vst.msk [vmem:[%s2360 + $0x118] sm:$0xff] %vm2295, %v3889
    %3974 = vst.msk [vmem:[%s2360 + $0x130] sm:$0xff] %vm2295, %v3891
    %3975 = vst.msk [vmem:[%s2360 + $0x148] sm:$0xff] %vm2295, %v3893
    %3976 = vst.msk [vmem:[%s2360 + $0x160] sm:$0xff] %vm2295, %v3895
    %3977 = vst.msk [vmem:[%s2360 + $0x178] sm:$0xff] %vm2295, %v3897
    %3978 = vst.msk [vmem:[%s2360 + $0x190] sm:$0xff] %vm2295, %v3899
    %3979 = vst.msk [vmem:[%s2360 + $0x1a8] sm:$0xff] %vm2295, %v3901
    %3980 = vst.msk [vmem:[%s2360 + $0x1c0] sm:$0xff] %vm2295, %v3903
    %3981 = vst.msk [vmem:[%s2360 + $0x1d8] sm:$0xff] %vm2295, %v3905
    %3982 = vst.msk [vmem:[%s2360 + $0x1f0] sm:$0xff] %vm2295, %v3907
    %3983 = vst.msk [vmem:[%s2360 + $0x208] sm:$0xff] %vm2295, %v3909
    %3984 = vst.msk [vmem:[%s2360 + $0x220] sm:$0xff] %vm2295, %v3911
    %3985 = vst.msk [vmem:[%s2360 + $0x238] sm:$0xff] %vm2295, %v3913
    %3986 = vst.msk [vmem:[%s2360 + $0x250] sm:$0xff] %vm2295, %v3915
    %3987 = vst.msk [vmem:[%s2360 + $0x268] sm:$0xff] %vm2295, %v3917
    %3988 = vst.msk [vmem:[%s2360 + $0x280] sm:$0xff] %vm2295, %v3919
    %3989 = vst.msk [vmem:[%s2360 + $0x298] sm:$0xff] %vm2295, %v3921
    %3990 = vst.msk [vmem:[%s2360 + $0x2b0] sm:$0xff] %vm2295, %v3923
    %3991 = vst.msk [vmem:[%s2360 + $0x2c8] sm:$0xff] %vm2295, %v3925
    %3992 = vst.msk [vmem:[%s2360 + $0x2e0] sm:$0xff] %vm2295, %v3927
    %3993 = vst.msk [vmem:[%s2360 + $0x2f8] sm:$0xff] %vm2295, %v3929
    %v3994 = vld [vmem:[#allocation3] sm:$0xff]
    %v3995 = vld [vmem:[#allocation3 + $0x8] sm:$0xff]
    %v3996 = vld [vmem:[#allocation3 + $0x10] sm:$0xff]
    %v3997 = vld [vmem:[#allocation3 + $0x18] sm:$0xff]
    %v3998 = vld [vmem:[#allocation3 + $0x20] sm:$0xff]
    %v3999 = vld [vmem:[#allocation3 + $0x28] sm:$0xff]
    %v4000 = vld [vmem:[#allocation3 + $0x30] sm:$0xff]
    %v4001 = vld [vmem:[#allocation3 + $0x38] sm:$0xff]
    %v4002 = vld [vmem:[#allocation3 + $0x40] sm:$0xff]
    %v4003 = vld [vmem:[#allocation3 + $0x48] sm:$0xff]
    %v4004 = vld [vmem:[#allocation3 + $0x50] sm:$0xff]
    %v4005 = vld [vmem:[#allocation3 + $0x58] sm:$0xff]
    %v4006 = vld [vmem:[#allocation3 + $0x60] sm:$0xff]
    %v4007 = vld [vmem:[#allocation3 + $0x68] sm:$0xff]
    %v4008 = vld [vmem:[#allocation3 + $0x70] sm:$0xff]
    %v4009 = vld [vmem:[#allocation3 + $0x78] sm:$0xff]
    %v4010 = vld [vmem:[#allocation3 + $0x80] sm:$0xff]
    %v4011 = vld [vmem:[#allocation3 + $0x88] sm:$0xff]
    %v4012 = vld [vmem:[#allocation3 + $0x90] sm:$0xff]
    %v4013 = vld [vmem:[#allocation3 + $0x98] sm:$0xff]
    %v4014 = vld [vmem:[#allocation3 + $0xa0] sm:$0xff]
    %v4015 = vld [vmem:[#allocation3 + $0xa8] sm:$0xff]
    %v4016 = vld [vmem:[#allocation3 + $0xb0] sm:$0xff]
    %v4017 = vld [vmem:[#allocation3 + $0xb8] sm:$0xff]
    %v4018 = vld [vmem:[#allocation3 + $0xc0] sm:$0xff]
    %v4019 = vld [vmem:[#allocation3 + $0xc8] sm:$0xff]
    %v4020 = vld [vmem:[#allocation3 + $0xd0] sm:$0xff]
    %v4021 = vld [vmem:[#allocation3 + $0xd8] sm:$0xff]
    %v4022 = vld [vmem:[#allocation3 + $0xe0] sm:$0xff]
    %v4023 = vld [vmem:[#allocation3 + $0xe8] sm:$0xff]
    %v4024 = vld [vmem:[#allocation3 + $0xf0] sm:$0xff]
    %v4025 = vld [vmem:[#allocation3 + $0xf8] sm:$0xff]
    %v4026 = vld [vmem:[#allocation3 + $0x100] sm:$0xff]
    %v4027 = vld [vmem:[#allocation3 + $0x108] sm:$0xff]
    %v4028 = vld [vmem:[#allocation3 + $0x110] sm:$0xff]
    %v4029 = vld [vmem:[#allocation3 + $0x118] sm:$0xff]
    %v4030 = vld [vmem:[#allocation3 + $0x120] sm:$0xff]
    %v4031 = vld [vmem:[#allocation3 + $0x128] sm:$0xff]
    %v4032 = vld [vmem:[#allocation3 + $0x130] sm:$0xff]
    %v4033 = vld [vmem:[#allocation3 + $0x138] sm:$0xff]
    %v4034 = vld [vmem:[#allocation3 + $0x140] sm:$0xff]
    %v4035 = vld [vmem:[#allocation3 + $0x148] sm:$0xff]
    %v4036 = vld [vmem:[#allocation3 + $0x150] sm:$0xff]
    %v4037 = vld [vmem:[#allocation3 + $0x158] sm:$0xff]
    %v4038 = vld [vmem:[#allocation3 + $0x160] sm:$0xff]
    %v4039 = vld [vmem:[#allocation3 + $0x168] sm:$0xff]
    %v4040 = vld [vmem:[#allocation3 + $0x170] sm:$0xff]
    %v4041 = vld [vmem:[#allocation3 + $0x178] sm:$0xff]
    %v4042 = vld [vmem:[#allocation3 + $0x180] sm:$0xff]
    %v4043 = vld [vmem:[#allocation3 + $0x188] sm:$0xff]
    %v4044 = vld [vmem:[#allocation3 + $0x190] sm:$0xff]
    %v4045 = vld [vmem:[#allocation3 + $0x198] sm:$0xff]
    %v4046 = vld [vmem:[#allocation3 + $0x1a0] sm:$0xff]
    %v4047 = vld [vmem:[#allocation3 + $0x1a8] sm:$0xff]
    %v4048 = vld [vmem:[#allocation3 + $0x1b0] sm:$0xff]
    %v4049 = vld [vmem:[#allocation3 + $0x1b8] sm:$0xff]
    %v4050 = vld [vmem:[#allocation3 + $0x1c0] sm:$0xff]
    %v4051 = vld [vmem:[#allocation3 + $0x1c8] sm:$0xff]
    %v4052 = vld [vmem:[#allocation3 + $0x1d0] sm:$0xff]
    %v4053 = vld [vmem:[#allocation3 + $0x1d8] sm:$0xff]
    %v4054 = vld [vmem:[#allocation3 + $0x1e0] sm:$0xff]
    %v4055 = vld [vmem:[#allocation3 + $0x1e8] sm:$0xff]
    %v4056 = vld [vmem:[#allocation3 + $0x1f0] sm:$0xff]
    %v4057 = vld [vmem:[#allocation3 + $0x1f8] sm:$0xff]
    %v4058 = vld [vmem:[#allocation3 + $0x200] sm:$0xff]
    %v4059 = vld [vmem:[#allocation3 + $0x208] sm:$0xff]
    %v4060 = vld [vmem:[#allocation3 + $0x210] sm:$0xff]
    %v4061 = vld [vmem:[#allocation3 + $0x218] sm:$0xff]
    %v4062 = vld [vmem:[#allocation3 + $0x220] sm:$0xff]
    %v4063 = vld [vmem:[#allocation3 + $0x228] sm:$0xff]
    %v4064 = vld [vmem:[#allocation3 + $0x230] sm:$0xff]
    %v4065 = vld [vmem:[#allocation3 + $0x238] sm:$0xff]
    %v4066 = vld [vmem:[#allocation3 + $0x240] sm:$0xff]
    %v4067 = vld [vmem:[#allocation3 + $0x248] sm:$0xff]
    %v4068 = vld [vmem:[#allocation3 + $0x250] sm:$0xff]
    %v4069 = vld [vmem:[#allocation3 + $0x258] sm:$0xff]
    %v4070 = vld [vmem:[#allocation3 + $0x260] sm:$0xff]
    %v4071 = vld [vmem:[#allocation3 + $0x268] sm:$0xff]
    %v4072 = vld [vmem:[#allocation3 + $0x270] sm:$0xff]
    %v4073 = vld [vmem:[#allocation3 + $0x278] sm:$0xff]
    %v4074 = vld [vmem:[#allocation3 + $0x280] sm:$0xff]
    %v4075 = vld [vmem:[#allocation3 + $0x288] sm:$0xff]
    %v4076 = vld [vmem:[#allocation3 + $0x290] sm:$0xff]
    %v4077 = vld [vmem:[#allocation3 + $0x298] sm:$0xff]
    %v4078 = vld [vmem:[#allocation3 + $0x2a0] sm:$0xff]
    %v4079 = vld [vmem:[#allocation3 + $0x2a8] sm:$0xff]
    %v4080 = vld [vmem:[#allocation3 + $0x2b0] sm:$0xff]
    %v4081 = vld [vmem:[#allocation3 + $0x2b8] sm:$0xff]
    %v4082 = vld [vmem:[#allocation3 + $0x2c0] sm:$0xff]
    %v4083 = vld [vmem:[#allocation3 + $0x2c8] sm:$0xff]
    %v4084 = vld [vmem:[#allocation3 + $0x2d0] sm:$0xff]
    %v4085 = vld [vmem:[#allocation3 + $0x2d8] sm:$0xff]
    %v4086 = vld [vmem:[#allocation3 + $0x2e0] sm:$0xff]
    %v4087 = vld [vmem:[#allocation3 + $0x2e8] sm:$0xff]
    %v4088 = vld [vmem:[#allocation3 + $0x2f0] sm:$0xff]
    %v4089 = vld [vmem:[#allocation3 + $0x2f8] sm:$0xff]
    %v4090 = vld [vmem:[#allocation3 + $0x300] sm:$0xff]
    %v4091 = vld [vmem:[#allocation3 + $0x308] sm:$0xff]
    %v4092 = vld [vmem:[#allocation3 + $0x310] sm:$0xff]
    %v4093 = vld [vmem:[#allocation3 + $0x318] sm:$0xff]
    %v4094 = vld [vmem:[#allocation3 + $0x320] sm:$0xff]
    %v4095 = vld [vmem:[#allocation3 + $0x328] sm:$0xff]
    %v4096 = vld [vmem:[#allocation3 + $0x330] sm:$0xff]
    %v4097 = vld [vmem:[#allocation3 + $0x338] sm:$0xff]
    %v4098 = vld [vmem:[#allocation3 + $0x340] sm:$0xff]
    %v4099 = vld [vmem:[#allocation3 + $0x348] sm:$0xff]
    %v4100 = vld [vmem:[#allocation3 + $0x350] sm:$0xff]
    %v4101 = vld [vmem:[#allocation3 + $0x358] sm:$0xff]
    %v4102 = vld [vmem:[#allocation3 + $0x360] sm:$0xff]
    %v4103 = vld [vmem:[#allocation3 + $0x368] sm:$0xff]
    %v4104 = vld [vmem:[#allocation3 + $0x370] sm:$0xff]
    %v4105 = vld [vmem:[#allocation3 + $0x378] sm:$0xff]
    %v4106 = vld [vmem:[#allocation3 + $0x380] sm:$0xff]
    %v4107 = vld [vmem:[#allocation3 + $0x388] sm:$0xff]
    %v4108 = vld [vmem:[#allocation3 + $0x390] sm:$0xff]
    %v4109 = vld [vmem:[#allocation3 + $0x398] sm:$0xff]
    %v4110 = vld [vmem:[#allocation3 + $0x3a0] sm:$0xff]
    %v4111 = vld [vmem:[#allocation3 + $0x3a8] sm:$0xff]
    %v4112 = vld [vmem:[#allocation3 + $0x3b0] sm:$0xff]
    %v4113 = vld [vmem:[#allocation3 + $0x3b8] sm:$0xff]
    %v4114 = vld [vmem:[#allocation3 + $0x3c0] sm:$0xff]
    %v4115 = vld [vmem:[#allocation3 + $0x3c8] sm:$0xff]
    %v4116 = vld [vmem:[#allocation3 + $0x3d0] sm:$0xff]
    %v4117 = vld [vmem:[#allocation3 + $0x3d8] sm:$0xff]
    %v4118 = vld [vmem:[#allocation3 + $0x3e0] sm:$0xff]
    %v4119 = vld [vmem:[#allocation3 + $0x3e8] sm:$0xff]
    %v4120 = vld [vmem:[#allocation3 + $0x3f0] sm:$0xff]
    %v4121 = vld [vmem:[#allocation3 + $0x3f8] sm:$0xff]
    %v4122 = vld [vmem:[#allocation3 + $0x400] sm:$0xff]
    %v4123 = vld [vmem:[#allocation3 + $0x408] sm:$0xff]
    %v4124 = vld [vmem:[#allocation3 + $0x410] sm:$0xff]
    %v4125 = vld [vmem:[#allocation3 + $0x418] sm:$0xff]
    %v4126 = vld [vmem:[#allocation3 + $0x420] sm:$0xff]
    %v4127 = vld [vmem:[#allocation3 + $0x428] sm:$0xff]
    %v4128 = vld [vmem:[#allocation3 + $0x430] sm:$0xff]
    %v4129 = vld [vmem:[#allocation3 + $0x438] sm:$0xff]
    %v4130 = vld [vmem:[#allocation3 + $0x440] sm:$0xff]
    %v4131 = vld [vmem:[#allocation3 + $0x448] sm:$0xff]
    %v4132 = vld [vmem:[#allocation3 + $0x450] sm:$0xff]
    %v4133 = vld [vmem:[#allocation3 + $0x458] sm:$0xff]
    %v4134 = vld [vmem:[#allocation3 + $0x460] sm:$0xff]
    %v4135 = vld [vmem:[#allocation3 + $0x468] sm:$0xff]
    %v4136 = vld [vmem:[#allocation3 + $0x470] sm:$0xff]
    %v4137 = vld [vmem:[#allocation3 + $0x478] sm:$0xff]
    %v4138 = vld [vmem:[#allocation3 + $0x480] sm:$0xff]
    %v4139 = vld [vmem:[#allocation3 + $0x488] sm:$0xff]
    %v4140 = vld [vmem:[#allocation3 + $0x490] sm:$0xff]
    %v4141 = vld [vmem:[#allocation3 + $0x498] sm:$0xff]
    %v4142 = vld [vmem:[#allocation3 + $0x4a0] sm:$0xff]
    %v4143 = vld [vmem:[#allocation3 + $0x4a8] sm:$0xff]
    %v4144 = vld [vmem:[#allocation3 + $0x4b0] sm:$0xff]
    %v4145 = vld [vmem:[#allocation3 + $0x4b8] sm:$0xff]
    %v4146 = vld [vmem:[#allocation3 + $0x4c0] sm:$0xff]
    %v4147 = vld [vmem:[#allocation3 + $0x4c8] sm:$0xff]
    %v4148 = vld [vmem:[#allocation3 + $0x4d0] sm:$0xff]
    %v4149 = vld [vmem:[#allocation3 + $0x4d8] sm:$0xff]
    %v4150 = vld [vmem:[#allocation3 + $0x4e0] sm:$0xff]
    %v4151 = vld [vmem:[#allocation3 + $0x4e8] sm:$0xff]
    %v4152 = vld [vmem:[#allocation3 + $0x4f0] sm:$0xff]
    %v4153 = vld [vmem:[#allocation3 + $0x4f8] sm:$0xff]
    %v4154 = vld [vmem:[#allocation3 + $0x500] sm:$0xff]
    %v4155 = vld [vmem:[#allocation3 + $0x508] sm:$0xff]
    %v4156 = vld [vmem:[#allocation3 + $0x510] sm:$0xff]
    %v4157 = vld [vmem:[#allocation3 + $0x518] sm:$0xff]
    %v4158 = vld [vmem:[#allocation3 + $0x520] sm:$0xff]
    %v4159 = vld [vmem:[#allocation3 + $0x528] sm:$0xff]
    %v4160 = vld [vmem:[#allocation3 + $0x530] sm:$0xff]
    %v4161 = vld [vmem:[#allocation3 + $0x538] sm:$0xff]
    %v4162 = vld [vmem:[#allocation3 + $0x540] sm:$0xff]
    %v4163 = vld [vmem:[#allocation3 + $0x548] sm:$0xff]
    %v4164 = vld [vmem:[#allocation3 + $0x550] sm:$0xff]
    %v4165 = vld [vmem:[#allocation3 + $0x558] sm:$0xff]
    %v4166 = vld [vmem:[#allocation3 + $0x560] sm:$0xff]
    %v4167 = vld [vmem:[#allocation3 + $0x568] sm:$0xff]
    %v4168 = vld [vmem:[#allocation3 + $0x570] sm:$0xff]
    %v4169 = vld [vmem:[#allocation3 + $0x578] sm:$0xff]
    %v4170 = vld [vmem:[#allocation3 + $0x580] sm:$0xff]
    %v4171 = vld [vmem:[#allocation3 + $0x588] sm:$0xff]
    %v4172 = vld [vmem:[#allocation3 + $0x590] sm:$0xff]
    %v4173 = vld [vmem:[#allocation3 + $0x598] sm:$0xff]
    %v4174 = vld [vmem:[#allocation3 + $0x5a0] sm:$0xff]
    %v4175 = vld [vmem:[#allocation3 + $0x5a8] sm:$0xff]
    %v4176 = vld [vmem:[#allocation3 + $0x5b0] sm:$0xff]
    %v4177 = vld [vmem:[#allocation3 + $0x5b8] sm:$0xff]
    %v4178 = vld [vmem:[#allocation3 + $0x5c0] sm:$0xff]
    %v4179 = vld [vmem:[#allocation3 + $0x5c8] sm:$0xff]
    %v4180 = vld [vmem:[#allocation3 + $0x5d0] sm:$0xff]
    %v4181 = vld [vmem:[#allocation3 + $0x5d8] sm:$0xff]
    %v4182 = vld [vmem:[#allocation3 + $0x5e0] sm:$0xff]
    %v4183 = vld [vmem:[#allocation3 + $0x5e8] sm:$0xff]
    %v4184 = vld [vmem:[#allocation3 + $0x5f0] sm:$0xff]
    %v4185 = vld [vmem:[#allocation3 + $0x5f8] sm:$0xff]
    %v4186 = vpack.c.bf16 %v3997, %v3994
    %v4187 = vpack.c.bf16 %v3998, %v3995
    %v4188 = vpack.c.bf16 %v3999, %v3996
    %v4189 = vpack.c.bf16 %v4003, %v4000
    %v4190 = vpack.c.bf16 %v4004, %v4001
    %v4191 = vpack.c.bf16 %v4005, %v4002
    %v4192 = vpack.c.bf16 %v4009, %v4006
    %v4193 = vpack.c.bf16 %v4010, %v4007
    %v4194 = vpack.c.bf16 %v4011, %v4008
    %v4195 = vpack.c.bf16 %v4015, %v4012
    %v4196 = vpack.c.bf16 %v4016, %v4013
    %v4197 = vpack.c.bf16 %v4017, %v4014
    %v4198 = vpack.c.bf16 %v4021, %v4018
    %v4199 = vpack.c.bf16 %v4022, %v4019
    %v4200 = vpack.c.bf16 %v4023, %v4020
    %v4201 = vpack.c.bf16 %v4027, %v4024
    %v4202 = vpack.c.bf16 %v4028, %v4025
    %v4203 = vpack.c.bf16 %v4029, %v4026
    %v4204 = vpack.c.bf16 %v4033, %v4030
    %v4205 = vpack.c.bf16 %v4034, %v4031
    %v4206 = vpack.c.bf16 %v4035, %v4032
    %v4207 = vpack.c.bf16 %v4039, %v4036
    %v4208 = vpack.c.bf16 %v4040, %v4037
    %v4209 = vpack.c.bf16 %v4041, %v4038
    %v4210 = vpack.c.bf16 %v4045, %v4042
    %v4211 = vpack.c.bf16 %v4046, %v4043
    %v4212 = vpack.c.bf16 %v4047, %v4044
    %v4213 = vpack.c.bf16 %v4051, %v4048
    %v4214 = vpack.c.bf16 %v4052, %v4049
    %v4215 = vpack.c.bf16 %v4053, %v4050
    %v4216 = vpack.c.bf16 %v4057, %v4054
    %v4217 = vpack.c.bf16 %v4058, %v4055
    %v4218 = vpack.c.bf16 %v4059, %v4056
    %v4219 = vpack.c.bf16 %v4063, %v4060
    %v4220 = vpack.c.bf16 %v4064, %v4061
    %v4221 = vpack.c.bf16 %v4065, %v4062
    %v4222 = vpack.c.bf16 %v4069, %v4066
    %v4223 = vpack.c.bf16 %v4070, %v4067
    %v4224 = vpack.c.bf16 %v4071, %v4068
    %v4225 = vpack.c.bf16 %v4075, %v4072
    %v4226 = vpack.c.bf16 %v4076, %v4073
    %v4227 = vpack.c.bf16 %v4077, %v4074
    %v4228 = vpack.c.bf16 %v4081, %v4078
    %v4229 = vpack.c.bf16 %v4082, %v4079
    %v4230 = vpack.c.bf16 %v4083, %v4080
    %v4231 = vpack.c.bf16 %v4087, %v4084
    %v4232 = vpack.c.bf16 %v4088, %v4085
    %v4233 = vpack.c.bf16 %v4089, %v4086
    %v4234 = vpack.c.bf16 %v4093, %v4090
    %v4235 = vpack.c.bf16 %v4094, %v4091
    %v4236 = vpack.c.bf16 %v4095, %v4092
    %v4237 = vpack.c.bf16 %v4099, %v4096
    %v4238 = vpack.c.bf16 %v4100, %v4097
    %v4239 = vpack.c.bf16 %v4101, %v4098
    %v4240 = vpack.c.bf16 %v4105, %v4102
    %v4241 = vpack.c.bf16 %v4106, %v4103
    %v4242 = vpack.c.bf16 %v4107, %v4104
    %v4243 = vpack.c.bf16 %v4111, %v4108
    %v4244 = vpack.c.bf16 %v4112, %v4109
    %v4245 = vpack.c.bf16 %v4113, %v4110
    %v4246 = vpack.c.bf16 %v4117, %v4114
    %v4247 = vpack.c.bf16 %v4118, %v4115
    %v4248 = vpack.c.bf16 %v4119, %v4116
    %v4249 = vpack.c.bf16 %v4123, %v4120
    %v4250 = vpack.c.bf16 %v4124, %v4121
    %v4251 = vpack.c.bf16 %v4125, %v4122
    %v4252 = vpack.c.bf16 %v4129, %v4126
    %v4253 = vpack.c.bf16 %v4130, %v4127
    %v4254 = vpack.c.bf16 %v4131, %v4128
    %v4255 = vpack.c.bf16 %v4135, %v4132
    %v4256 = vpack.c.bf16 %v4136, %v4133
    %v4257 = vpack.c.bf16 %v4137, %v4134
    %v4258 = vpack.c.bf16 %v4141, %v4138
    %v4259 = vpack.c.bf16 %v4142, %v4139
    %v4260 = vpack.c.bf16 %v4143, %v4140
    %v4261 = vpack.c.bf16 %v4147, %v4144
    %v4262 = vpack.c.bf16 %v4148, %v4145
    %v4263 = vpack.c.bf16 %v4149, %v4146
    %v4264 = vpack.c.bf16 %v4153, %v4150
    %v4265 = vpack.c.bf16 %v4154, %v4151
    %v4266 = vpack.c.bf16 %v4155, %v4152
    %v4267 = vpack.c.bf16 %v4159, %v4156
    %v4268 = vpack.c.bf16 %v4160, %v4157
    %v4269 = vpack.c.bf16 %v4161, %v4158
    %v4270 = vpack.c.bf16 %v4165, %v4162
    %v4271 = vpack.c.bf16 %v4166, %v4163
    %v4272 = vpack.c.bf16 %v4167, %v4164
    %v4273 = vpack.c.bf16 %v4171, %v4168
    %v4274 = vpack.c.bf16 %v4172, %v4169
    %v4275 = vpack.c.bf16 %v4173, %v4170
    %v4276 = vpack.c.bf16 %v4177, %v4174
    %v4277 = vpack.c.bf16 %v4178, %v4175
    %v4278 = vpack.c.bf16 %v4179, %v4176
    %v4279 = vpack.c.bf16 %v4183, %v4180
    %v4280 = vpack.c.bf16 %v4184, %v4181
    %v4281 = vpack.c.bf16 %v4185, %v4182
    %v4282 = vld [vmem:[#allocation7] sm:$0xf]
    %v4283 = vld [vmem:[#allocation7 + $0x4] sm:$0xf]
    %v4284 = vld [vmem:[#allocation7 + $0x8] sm:$0xf]
    %v4285 = vld [vmem:[#allocation7 + $0xc] sm:$0xf]
    %v4286 = vld [vmem:[#allocation7 + $0x10] sm:$0xf]
    %v4287 = vld [vmem:[#allocation7 + $0x14] sm:$0xf]
    %v4288 = vld [vmem:[#allocation7 + $0x18] sm:$0xf]
    %v4289 = vld [vmem:[#allocation7 + $0x1c] sm:$0xf]
    %v4290 = vld [vmem:[#allocation7 + $0x20] sm:$0xf]
    %v4291 = vld [vmem:[#allocation7 + $0x24] sm:$0xf]
    %v4292 = vld [vmem:[#allocation7 + $0x28] sm:$0xf]
    %v4293 = vld [vmem:[#allocation7 + $0x2c] sm:$0xf]
    %v4294 = vld [vmem:[#allocation7 + $0x30] sm:$0xf]
    %v4295 = vld [vmem:[#allocation7 + $0x34] sm:$0xf]
    %v4296 = vld [vmem:[#allocation7 + $0x38] sm:$0xf]
    %v4297 = vld [vmem:[#allocation7 + $0x3c] sm:$0xf]
    %v4298 = vld [vmem:[#allocation7 + $0x40] sm:$0xf]
    %v4299 = vld [vmem:[#allocation7 + $0x44] sm:$0xf]
    %v4300 = vld [vmem:[#allocation7 + $0x48] sm:$0xf]
    %v4301 = vld [vmem:[#allocation7 + $0x4c] sm:$0xf]
    %v4302 = vld [vmem:[#allocation7 + $0x50] sm:$0xf]
    %v4303 = vld [vmem:[#allocation7 + $0x54] sm:$0xf]
    %v4304 = vld [vmem:[#allocation7 + $0x58] sm:$0xf]
    %v4305 = vld [vmem:[#allocation7 + $0x5c] sm:$0xf]
    %v4306 = vld [vmem:[#allocation7 + $0x60] sm:$0xf]
    %v4307 = vld [vmem:[#allocation7 + $0x64] sm:$0xf]
    %v4308 = vld [vmem:[#allocation7 + $0x68] sm:$0xf]
    %v4309 = vld [vmem:[#allocation7 + $0x6c] sm:$0xf]
    %v4310 = vld [vmem:[#allocation7 + $0x70] sm:$0xf]
    %v4311 = vld [vmem:[#allocation7 + $0x74] sm:$0xf]
    %v4312 = vld [vmem:[#allocation7 + $0x78] sm:$0xf]
    %v4313 = vld [vmem:[#allocation7 + $0x7c] sm:$0xf]
    %v4314 = vld [vmem:[#allocation7 + $0x80] sm:$0xf]
    %v4315 = vld [vmem:[#allocation7 + $0x84] sm:$0xf]
    %v4316 = vld [vmem:[#allocation7 + $0x88] sm:$0xf]
    %v4317 = vld [vmem:[#allocation7 + $0x8c] sm:$0xf]
    %v4318 = vld [vmem:[#allocation7 + $0x90] sm:$0xf]
    %v4319 = vld [vmem:[#allocation7 + $0x94] sm:$0xf]
    %v4320 = vld [vmem:[#allocation7 + $0x98] sm:$0xf]
    %v4321 = vld [vmem:[#allocation7 + $0x9c] sm:$0xf]
    %v4322 = vld [vmem:[#allocation7 + $0xa0] sm:$0x3]
    %v4323 = vld [vmem:[%s4] sm:$0x1]
    %v4325 = vlaneseq
    %v4326 = vshrl.u32 %v4325, 7
    %v4327 = vsub.s32 0, %v4326
    %v4328 = vrot.slane %v4323, %v4327
    %v4371 = vunpack.c.l.b16 %v4282
    %v4372 = vunpack.c.l.b16 %v4283
    %v4373 = vunpack.c.l.b16 %v4284
    %v4374 = vunpack.c.l.b16 %v4285
    %v4375 = vunpack.c.l.b16 %v4286
    %v4376 = vunpack.c.l.b16 %v4287
    %v4377 = vunpack.c.l.b16 %v4288
    %v4378 = vunpack.c.l.b16 %v4289
    %v4379 = vunpack.c.l.b16 %v4290
    %v4380 = vunpack.c.l.b16 %v4291
    %v4381 = vunpack.c.l.b16 %v4292
    %v4382 = vunpack.c.l.b16 %v4293
    %v4383 = vunpack.c.l.b16 %v4294
    %v4384 = vunpack.c.l.b16 %v4295
    %v4385 = vunpack.c.l.b16 %v4296
    %v4386 = vunpack.c.l.b16 %v4297
    %v4387 = vunpack.c.l.b16 %v4298
    %v4388 = vunpack.c.l.b16 %v4299
    %v4389 = vunpack.c.l.b16 %v4300
    %v4390 = vunpack.c.l.b16 %v4301
    %v4391 = vunpack.c.l.b16 %v4302
    %v4392 = vunpack.c.l.b16 %v4303
    %v4393 = vunpack.c.l.b16 %v4304
    %v4394 = vunpack.c.l.b16 %v4305
    %v4395 = vunpack.c.l.b16 %v4306
    %v4396 = vunpack.c.l.b16 %v4307
    %v4397 = vunpack.c.l.b16 %v4308
    %v4398 = vunpack.c.l.b16 %v4309
    %v4399 = vunpack.c.l.b16 %v4310
    %v4400 = vunpack.c.l.b16 %v4311
    %v4401 = vunpack.c.l.b16 %v4312
    %v4402 = vunpack.c.l.b16 %v4313
    %v4403 = vunpack.c.l.b16 %v4314
    %v4404 = vunpack.c.l.b16 %v4315
    %v4405 = vunpack.c.l.b16 %v4316
    %v4406 = vunpack.c.l.b16 %v4317
    %v4407 = vunpack.c.l.b16 %v4318
    %v4408 = vunpack.c.l.b16 %v4319
    %v4409 = vunpack.c.l.b16 %v4320
    %v4410 = vunpack.c.l.b16 %v4321
    %v4411 = vunpack.c.l.b16 %v4322
    %v4412 = vpack.c.b16 %v4372, %v4371
    %v4413 = vpack.c.b16 %v4374, %v4373
    %v4414 = vpack.c.b16 %v4376, %v4375
    %v4415 = vpack.c.b16 %v4378, %v4377
    %v4416 = vpack.c.b16 %v4380, %v4379
    %v4417 = vpack.c.b16 %v4382, %v4381
    %v4418 = vpack.c.b16 %v4384, %v4383
    %v4419 = vpack.c.b16 %v4386, %v4385
    %v4420 = vpack.c.b16 %v4388, %v4387
    %v4421 = vpack.c.b16 %v4390, %v4389
    %v4422 = vpack.c.b16 %v4392, %v4391
    %v4423 = vpack.c.b16 %v4394, %v4393
    %v4424 = vpack.c.b16 %v4396, %v4395
    %v4425 = vpack.c.b16 %v4398, %v4397
    %v4426 = vpack.c.b16 %v4400, %v4399
    %v4427 = vpack.c.b16 %v4402, %v4401
    %v4428 = vpack.c.b16 %v4404, %v4403
    %v4429 = vpack.c.b16 %v4406, %v4405
    %v4430 = vpack.c.b16 %v4408, %v4407
    %v4431 = vpack.c.b16 %v4410, %v4409
    %v4432 = vpack.c.b16 %v4411, %v4411
    %vm4453 = vcmask 556032
    %v4455 = vsel %vm4453, %v4188, 0
    %v4458 = vsel %vm4453, %v4191, 0
    %v4461 = vsel %vm4453, %v4194, 0
    %v4464 = vsel %vm4453, %v4197, 0
    %v4467 = vsel %vm4453, %v4200, 0
    %v4470 = vsel %vm4453, %v4203, 0
    %v4473 = vsel %vm4453, %v4206, 0
    %v4476 = vsel %vm4453, %v4209, 0
    %v4479 = vsel %vm4453, %v4212, 0
    %v4482 = vsel %vm4453, %v4215, 0
    %v4485 = vsel %vm4453, %v4218, 0
    %v4488 = vsel %vm4453, %v4221, 0
    %v4491 = vsel %vm4453, %v4224, 0
    %v4494 = vsel %vm4453, %v4227, 0
    %v4497 = vsel %vm4453, %v4230, 0
    %v4500 = vsel %vm4453, %v4233, 0
    %v4503 = vsel %vm4453, %v4236, 0
    %v4506 = vsel %vm4453, %v4239, 0
    %v4509 = vsel %vm4453, %v4242, 0
    %v4512 = vsel %vm4453, %v4245, 0
    %v4515 = vsel %vm4453, %v4248, 0
    %v4518 = vsel %vm4453, %v4251, 0
    %v4521 = vsel %vm4453, %v4254, 0
    %v4524 = vsel %vm4453, %v4257, 0
    %v4527 = vsel %vm4453, %v4260, 0
    %v4530 = vsel %vm4453, %v4263, 0
    %v4533 = vsel %vm4453, %v4266, 0
    %v4536 = vsel %vm4453, %v4269, 0
    %v4539 = vsel %vm4453, %v4272, 0
    %v4542 = vsel %vm4453, %v4275, 0
    %v4545 = vsel %vm4453, %v4278, 0
    %v4548 = vsel %vm4453, %v4281, 0
    %vm4550 = vcmask 1041408
    %v4552 = vsel %vm4550, %v4432, 0
    %4554 = vmatprep.subr.bf16.mxu0 0
    %4555 = vmatpush1.bf16.msra.mxu0 %v4419
    %4556 = vmatprep.subr.bf16.mxu0 0
    %4557 = vmatpush1.bf16.msra.mxu0 %v4418
    %4558 = vmatprep.subr.bf16.mxu0 0
    %4559 = vmatpush1.bf16.msra.mxu0 %v4417
    %4560 = vmatprep.subr.bf16.mxu0 0
    %4561 = vmatpush1.bf16.msra.mxu0 %v4416
    %4562 = vmatprep.subr.bf16.mxu0 0
    %4563 = vmatpush1.bf16.msra.mxu0 %v4415
    %4564 = vmatprep.subr.bf16.mxu0 0
    %4565 = vmatpush1.bf16.msra.mxu0 %v4414
    %4566 = vmatprep.subr.bf16.mxu0 0
    %4567 = vmatpush1.bf16.msra.mxu0 %v4413
    %4568 = vmatprep.subr.bf16.mxu0 0
    %4569 = vmatpush1.bf16.msra.mxu0 %v4412
    %4570 = vmatprep.subr.bf16.mxu0 0
    %4571 = vmatpush2.bf16.msra.mxu0 %v4427
    %4572 = vmatprep.subr.bf16.mxu0 0
    %4573 = vmatpush2.bf16.msra.mxu0 %v4426
    %4574 = vmatprep.subr.bf16.mxu0 0
    %4575 = vmatpush2.bf16.msra.mxu0 %v4425
    %4576 = vmatprep.subr.bf16.mxu0 0
    %4577 = vmatpush2.bf16.msra.mxu0 %v4424
    %4578 = vmatprep.subr.bf16.mxu0 0
    %4579 = vmatpush2.bf16.msra.mxu0 %v4423
    %4580 = vmatprep.subr.bf16.mxu0 0
    %4581 = vmatpush2.bf16.msra.mxu0 %v4422
    %4582 = vmatprep.subr.bf16.mxu0 0
    %4583 = vmatpush2.bf16.msra.mxu0 %v4421
    %4584 = vmatprep.subr.bf16.mxu0 0
    %4585 = vmatpush2.bf16.msra.mxu0 %v4420
    %4586 = vmatprep.mubr.bf16.mxu0 %v4187
    %4587 = vmatmul.mubr.bf16.gmra.mxu0 %v4186
    %v4588 = vpop.f32.mrf.mxu0
    %v4589 = vadd.f32 %v4328, %v4588
    %v4590 = vpop.f32.mrf.mxu0
    %v4591 = vpop.f32.mrf.mxu0
    %v4592 = vadd.f32 %v4328, %v4591
    %v4593 = vpop.f32.mrf.mxu0
    %4594 = vmatprep.mubr.bf16.mxu0 %v4190
    %4595 = vmatmul.mubr.bf16.gmra.mxu0 %v4189
    %v4596 = vpop.f32.mrf.mxu0
    %v4597 = vadd.f32 %v4328, %v4596
    %v4598 = vpop.f32.mrf.mxu0
    %v4599 = vpop.f32.mrf.mxu0
    %v4600 = vadd.f32 %v4328, %v4599
    %v4601 = vpop.f32.mrf.mxu0
    %4602 = vmatprep.mubr.bf16.mxu0 %v4193
    %4603 = vmatmul.mubr.bf16.gmra.mxu0 %v4192
    %v4604 = vpop.f32.mrf.mxu0
    %v4605 = vadd.f32 %v4328, %v4604
    %v4606 = vpop.f32.mrf.mxu0
    %v4607 = vpop.f32.mrf.mxu0
    %v4608 = vadd.f32 %v4328, %v4607
    %v4609 = vpop.f32.mrf.mxu0
    %4610 = vmatprep.mubr.bf16.mxu0 %v4196
    %4611 = vmatmul.mubr.bf16.gmra.mxu0 %v4195
    %v4612 = vpop.f32.mrf.mxu0
    %v4613 = vadd.f32 %v4328, %v4612
    %v4614 = vpop.f32.mrf.mxu0
    %v4615 = vpop.f32.mrf.mxu0
    %v4616 = vadd.f32 %v4328, %v4615
    %v4617 = vpop.f32.mrf.mxu0
    %4618 = vmatprep.mubr.bf16.mxu0 %v4199
    %4619 = vmatmul.mubr.bf16.gmra.mxu0 %v4198
    %v4620 = vpop.f32.mrf.mxu0
    %v4621 = vadd.f32 %v4328, %v4620
    %v4622 = vpop.f32.mrf.mxu0
    %v4623 = vpop.f32.mrf.mxu0
    %v4624 = vadd.f32 %v4328, %v4623
    %v4625 = vpop.f32.mrf.mxu0
    %4626 = vmatprep.mubr.bf16.mxu0 %v4202
    %4627 = vmatmul.mubr.bf16.gmra.mxu0 %v4201
    %v4628 = vpop.f32.mrf.mxu0
    %v4629 = vadd.f32 %v4328, %v4628
    %v4630 = vpop.f32.mrf.mxu0
    %v4631 = vpop.f32.mrf.mxu0
    %v4632 = vadd.f32 %v4328, %v4631
    %v4633 = vpop.f32.mrf.mxu0
    %4634 = vmatprep.mubr.bf16.mxu0 %v4205
    %4635 = vmatmul.mubr.bf16.gmra.mxu0 %v4204
    %v4636 = vpop.f32.mrf.mxu0
    %v4637 = vadd.f32 %v4328, %v4636
    %v4638 = vpop.f32.mrf.mxu0
    %v4639 = vpop.f32.mrf.mxu0
    %v4640 = vadd.f32 %v4328, %v4639
    %v4641 = vpop.f32.mrf.mxu0
    %4642 = vmatprep.mubr.bf16.mxu0 %v4208
    %4643 = vmatmul.mubr.bf16.gmra.mxu0 %v4207
    %v4644 = vpop.f32.mrf.mxu0
    %v4645 = vadd.f32 %v4328, %v4644
    %v4646 = vpop.f32.mrf.mxu0
    %v4647 = vpop.f32.mrf.mxu0
    %v4648 = vadd.f32 %v4328, %v4647
    %v4649 = vpop.f32.mrf.mxu0
    %4650 = vmatprep.mubr.bf16.mxu0 %v4211
    %4651 = vmatmul.mubr.bf16.gmra.mxu0 %v4210
    %v4652 = vpop.f32.mrf.mxu0
    %v4653 = vadd.f32 %v4328, %v4652
    %v4654 = vpop.f32.mrf.mxu0
    %v4655 = vpop.f32.mrf.mxu0
    %v4656 = vadd.f32 %v4328, %v4655
    %v4657 = vpop.f32.mrf.mxu0
    %4658 = vmatprep.mubr.bf16.mxu0 %v4214
    %4659 = vmatmul.mubr.bf16.gmra.mxu0 %v4213
    %v4660 = vpop.f32.mrf.mxu0
    %v4661 = vadd.f32 %v4328, %v4660
    %v4662 = vpop.f32.mrf.mxu0
    %v4663 = vpop.f32.mrf.mxu0
    %v4664 = vadd.f32 %v4328, %v4663
    %v4665 = vpop.f32.mrf.mxu0
    %4666 = vmatprep.mubr.bf16.mxu0 %v4217
    %4667 = vmatmul.mubr.bf16.gmra.mxu0 %v4216
    %v4668 = vpop.f32.mrf.mxu0
    %v4669 = vadd.f32 %v4328, %v4668
    %v4670 = vpop.f32.mrf.mxu0
    %v4671 = vpop.f32.mrf.mxu0
    %v4672 = vadd.f32 %v4328, %v4671
    %v4673 = vpop.f32.mrf.mxu0
    %4674 = vmatprep.mubr.bf16.mxu0 %v4220
    %4675 = vmatmul.mubr.bf16.gmra.mxu0 %v4219
    %v4676 = vpop.f32.mrf.mxu0
    %v4677 = vadd.f32 %v4328, %v4676
    %v4678 = vpop.f32.mrf.mxu0
    %v4679 = vpop.f32.mrf.mxu0
    %v4680 = vadd.f32 %v4328, %v4679
    %v4681 = vpop.f32.mrf.mxu0
    %4682 = vmatprep.mubr.bf16.mxu0 %v4223
    %4683 = vmatmul.mubr.bf16.gmra.mxu0 %v4222
    %v4684 = vpop.f32.mrf.mxu0
    %v4685 = vadd.f32 %v4328, %v4684
    %v4686 = vpop.f32.mrf.mxu0
    %v4687 = vpop.f32.mrf.mxu0
    %v4688 = vadd.f32 %v4328, %v4687
    %v4689 = vpop.f32.mrf.mxu0
    %4690 = vmatprep.mubr.bf16.mxu0 %v4226
    %4691 = vmatmul.mubr.bf16.gmra.mxu0 %v4225
    %v4692 = vpop.f32.mrf.mxu0
    %v4693 = vadd.f32 %v4328, %v4692
    %v4694 = vpop.f32.mrf.mxu0
    %v4695 = vpop.f32.mrf.mxu0
    %v4696 = vadd.f32 %v4328, %v4695
    %v4697 = vpop.f32.mrf.mxu0
    %4698 = vmatprep.mubr.bf16.mxu0 %v4229
    %4699 = vmatmul.mubr.bf16.gmra.mxu0 %v4228
    %v4700 = vpop.f32.mrf.mxu0
    %v4701 = vadd.f32 %v4328, %v4700
    %v4702 = vpop.f32.mrf.mxu0
    %v4703 = vpop.f32.mrf.mxu0
    %v4704 = vadd.f32 %v4328, %v4703
    %v4705 = vpop.f32.mrf.mxu0
    %4706 = vmatprep.mubr.bf16.mxu0 %v4232
    %4707 = vmatmul.mubr.bf16.gmra.mxu0 %v4231
    %v4708 = vpop.f32.mrf.mxu0
    %v4709 = vadd.f32 %v4328, %v4708
    %v4710 = vpop.f32.mrf.mxu0
    %v4711 = vpop.f32.mrf.mxu0
    %v4712 = vadd.f32 %v4328, %v4711
    %v4713 = vpop.f32.mrf.mxu0
    %4714 = vmatprep.mubr.bf16.mxu0 %v4235
    %4715 = vmatmul.mubr.bf16.gmra.mxu0 %v4234
    %v4716 = vpop.f32.mrf.mxu0
    %v4717 = vadd.f32 %v4328, %v4716
    %v4718 = vpop.f32.mrf.mxu0
    %v4719 = vpop.f32.mrf.mxu0
    %v4720 = vadd.f32 %v4328, %v4719
    %v4721 = vpop.f32.mrf.mxu0
    %4722 = vmatprep.mubr.bf16.mxu0 %v4238
    %4723 = vmatmul.mubr.bf16.gmra.mxu0 %v4237
    %v4724 = vpop.f32.mrf.mxu0
    %v4725 = vadd.f32 %v4328, %v4724
    %v4726 = vpop.f32.mrf.mxu0
    %v4727 = vpop.f32.mrf.mxu0
    %v4728 = vadd.f32 %v4328, %v4727
    %v4729 = vpop.f32.mrf.mxu0
    %4730 = vmatprep.mubr.bf16.mxu0 %v4241
    %4731 = vmatmul.mubr.bf16.gmra.mxu0 %v4240
    %v4732 = vpop.f32.mrf.mxu0
    %v4733 = vadd.f32 %v4328, %v4732
    %v4734 = vpop.f32.mrf.mxu0
    %v4735 = vpop.f32.mrf.mxu0
    %v4736 = vadd.f32 %v4328, %v4735
    %v4737 = vpop.f32.mrf.mxu0
    %4738 = vmatprep.mubr.bf16.mxu0 %v4244
    %4739 = vmatmul.mubr.bf16.gmra.mxu0 %v4243
    %v4740 = vpop.f32.mrf.mxu0
    %v4741 = vadd.f32 %v4328, %v4740
    %v4742 = vpop.f32.mrf.mxu0
    %v4743 = vpop.f32.mrf.mxu0
    %v4744 = vadd.f32 %v4328, %v4743
    %v4745 = vpop.f32.mrf.mxu0
    %4746 = vmatprep.mubr.bf16.mxu0 %v4247
    %4747 = vmatmul.mubr.bf16.gmra.mxu0 %v4246
    %v4748 = vpop.f32.mrf.mxu0
    %v4749 = vadd.f32 %v4328, %v4748
    %v4750 = vpop.f32.mrf.mxu0
    %v4751 = vpop.f32.mrf.mxu0
    %v4752 = vadd.f32 %v4328, %v4751
    %v4753 = vpop.f32.mrf.mxu0
    %4754 = vmatprep.mubr.bf16.mxu0 %v4250
    %4755 = vmatmul.mubr.bf16.gmra.mxu0 %v4249
    %v4756 = vpop.f32.mrf.mxu0
    %v4757 = vadd.f32 %v4328, %v4756
    %v4758 = vpop.f32.mrf.mxu0
    %v4759 = vpop.f32.mrf.mxu0
    %v4760 = vadd.f32 %v4328, %v4759
    %v4761 = vpop.f32.mrf.mxu0
    %4762 = vmatprep.mubr.bf16.mxu0 %v4253
    %4763 = vmatmul.mubr.bf16.gmra.mxu0 %v4252
    %v4764 = vpop.f32.mrf.mxu0
    %v4765 = vadd.f32 %v4328, %v4764
    %v4766 = vpop.f32.mrf.mxu0
    %v4767 = vpop.f32.mrf.mxu0
    %v4768 = vadd.f32 %v4328, %v4767
    %v4769 = vpop.f32.mrf.mxu0
    %4770 = vmatprep.mubr.bf16.mxu0 %v4256
    %4771 = vmatmul.mubr.bf16.gmra.mxu0 %v4255
    %v4772 = vpop.f32.mrf.mxu0
    %v4773 = vadd.f32 %v4328, %v4772
    %v4774 = vpop.f32.mrf.mxu0
    %v4775 = vpop.f32.mrf.mxu0
    %v4776 = vadd.f32 %v4328, %v4775
    %v4777 = vpop.f32.mrf.mxu0
    %4778 = vmatprep.mubr.bf16.mxu0 %v4259
    %4779 = vmatmul.mubr.bf16.gmra.mxu0 %v4258
    %v4780 = vpop.f32.mrf.mxu0
    %v4781 = vadd.f32 %v4328, %v4780
    %v4782 = vpop.f32.mrf.mxu0
    %v4783 = vpop.f32.mrf.mxu0
    %v4784 = vadd.f32 %v4328, %v4783
    %v4785 = vpop.f32.mrf.mxu0
    %4786 = vmatprep.mubr.bf16.mxu0 %v4262
    %4787 = vmatmul.mubr.bf16.gmra.mxu0 %v4261
    %v4788 = vpop.f32.mrf.mxu0
    %v4789 = vadd.f32 %v4328, %v4788
    %v4790 = vpop.f32.mrf.mxu0
    %v4791 = vpop.f32.mrf.mxu0
    %v4792 = vadd.f32 %v4328, %v4791
    %v4793 = vpop.f32.mrf.mxu0
    %4794 = vmatprep.mubr.bf16.mxu0 %v4265
    %4795 = vmatmul.mubr.bf16.gmra.mxu0 %v4264
    %v4796 = vpop.f32.mrf.mxu0
    %v4797 = vadd.f32 %v4328, %v4796
    %v4798 = vpop.f32.mrf.mxu0
    %v4799 = vpop.f32.mrf.mxu0
    %v4800 = vadd.f32 %v4328, %v4799
    %v4801 = vpop.f32.mrf.mxu0
    %4802 = vmatprep.mubr.bf16.mxu0 %v4268
    %4803 = vmatmul.mubr.bf16.gmra.mxu0 %v4267
    %v4804 = vpop.f32.mrf.mxu0
    %v4805 = vadd.f32 %v4328, %v4804
    %v4806 = vpop.f32.mrf.mxu0
    %v4807 = vpop.f32.mrf.mxu0
    %v4808 = vadd.f32 %v4328, %v4807
    %v4809 = vpop.f32.mrf.mxu0
    %4810 = vmatprep.mubr.bf16.mxu0 %v4271
    %4811 = vmatmul.mubr.bf16.gmra.mxu0 %v4270
    %v4812 = vpop.f32.mrf.mxu0
    %v4813 = vadd.f32 %v4328, %v4812
    %v4814 = vpop.f32.mrf.mxu0
    %v4815 = vpop.f32.mrf.mxu0
    %v4816 = vadd.f32 %v4328, %v4815
    %v4817 = vpop.f32.mrf.mxu0
    %4818 = vmatprep.mubr.bf16.mxu0 %v4274
    %4819 = vmatmul.mubr.bf16.gmra.mxu0 %v4273
    %v4820 = vpop.f32.mrf.mxu0
    %v4821 = vadd.f32 %v4328, %v4820
    %v4822 = vpop.f32.mrf.mxu0
    %v4823 = vpop.f32.mrf.mxu0
    %v4824 = vadd.f32 %v4328, %v4823
    %v4825 = vpop.f32.mrf.mxu0
    %4826 = vmatprep.mubr.bf16.mxu0 %v4277
    %4827 = vmatmul.mubr.bf16.gmra.mxu0 %v4276
    %v4828 = vpop.f32.mrf.mxu0
    %v4829 = vadd.f32 %v4328, %v4828
    %v4830 = vpop.f32.mrf.mxu0
    %v4831 = vpop.f32.mrf.mxu0
    %v4832 = vadd.f32 %v4328, %v4831
    %v4833 = vpop.f32.mrf.mxu0
    %4834 = vmatprep.mubr.bf16.mxu0 %v4280
    %4835 = vmatmul.mubr.bf16.gmra.mxu0 %v4279
    %v4836 = vpop.f32.mrf.mxu0
    %v4837 = vadd.f32 %v4328, %v4836
    %v4838 = vpop.f32.mrf.mxu0
    %v4839 = vpop.f32.mrf.mxu0
    %v4840 = vadd.f32 %v4328, %v4839
    %v4841 = vpop.f32.mrf.mxu0
    %4842 = vdwg.mxu0
    %4843 = vmatprep.subr.bf16.mxu0 0
    %4844 = vmatpush1.bf16.msra.mxu0 0
    %4845 = vmatprep.subr.bf16.mxu0 0
    %4846 = vmatpush1.bf16.msra.mxu0 0
    %4847 = vmatprep.subr.bf16.mxu0 0
    %4848 = vmatpush1.bf16.msra.mxu0 0
    %4849 = vmatprep.subr.bf16.mxu0 0
    %4850 = vmatpush1.bf16.msra.mxu0 %v4552
    %4851 = vmatprep.subr.bf16.mxu0 0
    %4852 = vmatpush1.bf16.msra.mxu0 %v4431
    %4853 = vmatprep.subr.bf16.mxu0 0
    %4854 = vmatpush1.bf16.msra.mxu0 %v4430
    %4855 = vmatprep.subr.bf16.mxu0 0
    %4856 = vmatpush1.bf16.msra.mxu0 %v4429
    %4857 = vmatprep.subr.bf16.mxu0 0
    %4858 = vmatpush1.bf16.msra.mxu0 %v4428
    %4859 = vmatprep.subr.bf16.mxu0 0
    %4860 = vmatpush2.bf16.msra.mxu0 0
    %4861 = vmatprep.subr.bf16.mxu0 0
    %4862 = vmatpush2.bf16.msra.mxu0 0
    %4863 = vmatprep.subr.bf16.mxu0 0
    %4864 = vmatpush2.bf16.msra.mxu0 0
    %4865 = vmatprep.subr.bf16.mxu0 0
    %4866 = vmatpush2.bf16.msra.mxu0 0
    %4867 = vmatprep.subr.bf16.mxu0 0
    %4868 = vmatpush2.bf16.msra.mxu0 0
    %4869 = vmatprep.subr.bf16.mxu0 0
    %4870 = vmatpush2.bf16.msra.mxu0 0
    %4871 = vmatprep.subr.bf16.mxu0 0
    %4872 = vmatpush2.bf16.msra.mxu0 0
    %4873 = vmatprep.subr.bf16.mxu0 0
    %4874 = vmatpush2.bf16.msra.mxu0 0
    %4875 = vmatprep.mubr.bf16.mxu0 0
    %4876 = vmatmul.mubr.bf16.gmra.mxu0 %v4455
    %v4877 = vpop.f32.mrf.mxu0
    %v4878 = vadd.f32 %v4589, %v4877
    %v4879 = vpop.f32.mrf.mxu0
    %v4880 = vpop.f32.mrf.mxu0
    %v4881 = vadd.f32 %v4592, %v4880
    %v4882 = vpop.f32.mrf.mxu0
    %4883 = vmatprep.mubr.bf16.mxu0 0
    %4884 = vmatmul.mubr.bf16.gmra.mxu0 %v4458
    %v4885 = vpop.f32.mrf.mxu0
    %v4886 = vadd.f32 %v4597, %v4885
    %v4887 = vpop.f32.mrf.mxu0
    %v4888 = vpop.f32.mrf.mxu0
    %v4889 = vadd.f32 %v4600, %v4888
    %v4890 = vpop.f32.mrf.mxu0
    %4891 = vmatprep.mubr.bf16.mxu0 0
    %4892 = vmatmul.mubr.bf16.gmra.mxu0 %v4461
    %v4893 = vpop.f32.mrf.mxu0
    %v4894 = vadd.f32 %v4605, %v4893
    %v4895 = vpop.f32.mrf.mxu0
    %v4896 = vpop.f32.mrf.mxu0
    %v4897 = vadd.f32 %v4608, %v4896
    %v4898 = vpop.f32.mrf.mxu0
    %4899 = vmatprep.mubr.bf16.mxu0 0
    %4900 = vmatmul.mubr.bf16.gmra.mxu0 %v4464
    %v4901 = vpop.f32.mrf.mxu0
    %v4902 = vadd.f32 %v4613, %v4901
    %v4903 = vpop.f32.mrf.mxu0
    %v4904 = vpop.f32.mrf.mxu0
    %v4905 = vadd.f32 %v4616, %v4904
    %v4906 = vpop.f32.mrf.mxu0
    %4907 = vmatprep.mubr.bf16.mxu0 0
    %4908 = vmatmul.mubr.bf16.gmra.mxu0 %v4467
    %v4909 = vpop.f32.mrf.mxu0
    %v4910 = vadd.f32 %v4621, %v4909
    %v4911 = vpop.f32.mrf.mxu0
    %v4912 = vpop.f32.mrf.mxu0
    %v4913 = vadd.f32 %v4624, %v4912
    %v4914 = vpop.f32.mrf.mxu0
    %4915 = vmatprep.mubr.bf16.mxu0 0
    %4916 = vmatmul.mubr.bf16.gmra.mxu0 %v4470
    %v4917 = vpop.f32.mrf.mxu0
    %v4918 = vadd.f32 %v4629, %v4917
    %v4919 = vpop.f32.mrf.mxu0
    %v4920 = vpop.f32.mrf.mxu0
    %v4921 = vadd.f32 %v4632, %v4920
    %v4922 = vpop.f32.mrf.mxu0
    %4923 = vmatprep.mubr.bf16.mxu0 0
    %4924 = vmatmul.mubr.bf16.gmra.mxu0 %v4473
    %v4925 = vpop.f32.mrf.mxu0
    %v4926 = vadd.f32 %v4637, %v4925
    %v4927 = vpop.f32.mrf.mxu0
    %v4928 = vpop.f32.mrf.mxu0
    %v4929 = vadd.f32 %v4640, %v4928
    %v4930 = vpop.f32.mrf.mxu0
    %4931 = vmatprep.mubr.bf16.mxu0 0
    %4932 = vmatmul.mubr.bf16.gmra.mxu0 %v4476
    %v4933 = vpop.f32.mrf.mxu0
    %v4934 = vadd.f32 %v4645, %v4933
    %v4935 = vpop.f32.mrf.mxu0
    %v4936 = vpop.f32.mrf.mxu0
    %v4937 = vadd.f32 %v4648, %v4936
    %v4938 = vpop.f32.mrf.mxu0
    %4939 = vmatprep.mubr.bf16.mxu0 0
    %4940 = vmatmul.mubr.bf16.gmra.mxu0 %v4479
    %v4941 = vpop.f32.mrf.mxu0
    %v4942 = vadd.f32 %v4653, %v4941
    %v4943 = vpop.f32.mrf.mxu0
    %v4944 = vpop.f32.mrf.mxu0
    %v4945 = vadd.f32 %v4656, %v4944
    %v4946 = vpop.f32.mrf.mxu0
    %4947 = vmatprep.mubr.bf16.mxu0 0
    %4948 = vmatmul.mubr.bf16.gmra.mxu0 %v4482
    %v4949 = vpop.f32.mrf.mxu0
    %v4950 = vadd.f32 %v4661, %v4949
    %v4951 = vpop.f32.mrf.mxu0
    %v4952 = vpop.f32.mrf.mxu0
    %v4953 = vadd.f32 %v4664, %v4952
    %v4954 = vpop.f32.mrf.mxu0
    %4955 = vmatprep.mubr.bf16.mxu0 0
    %4956 = vmatmul.mubr.bf16.gmra.mxu0 %v4485
    %v4957 = vpop.f32.mrf.mxu0
    %v4958 = vadd.f32 %v4669, %v4957
    %v4959 = vpop.f32.mrf.mxu0
    %v4960 = vpop.f32.mrf.mxu0
    %v4961 = vadd.f32 %v4672, %v4960
    %v4962 = vpop.f32.mrf.mxu0
    %4963 = vmatprep.mubr.bf16.mxu0 0
    %4964 = vmatmul.mubr.bf16.gmra.mxu0 %v4488
    %v4965 = vpop.f32.mrf.mxu0
    %v4966 = vadd.f32 %v4677, %v4965
    %v4967 = vpop.f32.mrf.mxu0
    %v4968 = vpop.f32.mrf.mxu0
    %v4969 = vadd.f32 %v4680, %v4968
    %v4970 = vpop.f32.mrf.mxu0
    %4971 = vmatprep.mubr.bf16.mxu0 0
    %4972 = vmatmul.mubr.bf16.gmra.mxu0 %v4491
    %v4973 = vpop.f32.mrf.mxu0
    %v4974 = vadd.f32 %v4685, %v4973
    %v4975 = vpop.f32.mrf.mxu0
    %v4976 = vpop.f32.mrf.mxu0
    %v4977 = vadd.f32 %v4688, %v4976
    %v4978 = vpop.f32.mrf.mxu0
    %4979 = vmatprep.mubr.bf16.mxu0 0
    %4980 = vmatmul.mubr.bf16.gmra.mxu0 %v4494
    %v4981 = vpop.f32.mrf.mxu0
    %v4982 = vadd.f32 %v4693, %v4981
    %v4983 = vpop.f32.mrf.mxu0
    %v4984 = vpop.f32.mrf.mxu0
    %v4985 = vadd.f32 %v4696, %v4984
    %v4986 = vpop.f32.mrf.mxu0
    %4987 = vmatprep.mubr.bf16.mxu0 0
    %4988 = vmatmul.mubr.bf16.gmra.mxu0 %v4497
    %v4989 = vpop.f32.mrf.mxu0
    %v4990 = vadd.f32 %v4701, %v4989
    %v4991 = vpop.f32.mrf.mxu0
    %v4992 = vpop.f32.mrf.mxu0
    %v4993 = vadd.f32 %v4704, %v4992
    %v4994 = vpop.f32.mrf.mxu0
    %4995 = vmatprep.mubr.bf16.mxu0 0
    %4996 = vmatmul.mubr.bf16.gmra.mxu0 %v4500
    %v4997 = vpop.f32.mrf.mxu0
    %v4998 = vadd.f32 %v4709, %v4997
    %v4999 = vpop.f32.mrf.mxu0
    %v5000 = vpop.f32.mrf.mxu0
    %v5001 = vadd.f32 %v4712, %v5000
    %v5002 = vpop.f32.mrf.mxu0
    %5003 = vmatprep.mubr.bf16.mxu0 0
    %5004 = vmatmul.mubr.bf16.gmra.mxu0 %v4503
    %v5005 = vpop.f32.mrf.mxu0
    %v5006 = vadd.f32 %v4717, %v5005
    %v5007 = vpop.f32.mrf.mxu0
    %v5008 = vpop.f32.mrf.mxu0
    %v5009 = vadd.f32 %v4720, %v5008
    %v5010 = vpop.f32.mrf.mxu0
    %5011 = vmatprep.mubr.bf16.mxu0 0
    %5012 = vmatmul.mubr.bf16.gmra.mxu0 %v4506
    %v5013 = vpop.f32.mrf.mxu0
    %v5014 = vadd.f32 %v4725, %v5013
    %v5015 = vpop.f32.mrf.mxu0
    %v5016 = vpop.f32.mrf.mxu0
    %v5017 = vadd.f32 %v4728, %v5016
    %v5018 = vpop.f32.mrf.mxu0
    %5019 = vmatprep.mubr.bf16.mxu0 0
    %5020 = vmatmul.mubr.bf16.gmra.mxu0 %v4509
    %v5021 = vpop.f32.mrf.mxu0
    %v5022 = vadd.f32 %v4733, %v5021
    %v5023 = vpop.f32.mrf.mxu0
    %v5024 = vpop.f32.mrf.mxu0
    %v5025 = vadd.f32 %v4736, %v5024
    %v5026 = vpop.f32.mrf.mxu0
    %5027 = vmatprep.mubr.bf16.mxu0 0
    %5028 = vmatmul.mubr.bf16.gmra.mxu0 %v4512
    %v5029 = vpop.f32.mrf.mxu0
    %v5030 = vadd.f32 %v4741, %v5029
    %v5031 = vpop.f32.mrf.mxu0
    %v5032 = vpop.f32.mrf.mxu0
    %v5033 = vadd.f32 %v4744, %v5032
    %v5034 = vpop.f32.mrf.mxu0
    %5035 = vmatprep.mubr.bf16.mxu0 0
    %5036 = vmatmul.mubr.bf16.gmra.mxu0 %v4515
    %v5037 = vpop.f32.mrf.mxu0
    %v5038 = vadd.f32 %v4749, %v5037
    %v5039 = vpop.f32.mrf.mxu0
    %v5040 = vpop.f32.mrf.mxu0
    %v5041 = vadd.f32 %v4752, %v5040
    %v5042 = vpop.f32.mrf.mxu0
    %5043 = vmatprep.mubr.bf16.mxu0 0
    %5044 = vmatmul.mubr.bf16.gmra.mxu0 %v4518
    %v5045 = vpop.f32.mrf.mxu0
    %v5046 = vadd.f32 %v4757, %v5045
    %v5047 = vpop.f32.mrf.mxu0
    %v5048 = vpop.f32.mrf.mxu0
    %v5049 = vadd.f32 %v4760, %v5048
    %v5050 = vpop.f32.mrf.mxu0
    %5051 = vmatprep.mubr.bf16.mxu0 0
    %5052 = vmatmul.mubr.bf16.gmra.mxu0 %v4521
    %v5053 = vpop.f32.mrf.mxu0
    %v5054 = vadd.f32 %v4765, %v5053
    %v5055 = vpop.f32.mrf.mxu0
    %v5056 = vpop.f32.mrf.mxu0
    %v5057 = vadd.f32 %v4768, %v5056
    %v5058 = vpop.f32.mrf.mxu0
    %5059 = vmatprep.mubr.bf16.mxu0 0
    %5060 = vmatmul.mubr.bf16.gmra.mxu0 %v4524
    %v5061 = vpop.f32.mrf.mxu0
    %v5062 = vadd.f32 %v4773, %v5061
    %v5063 = vpop.f32.mrf.mxu0
    %v5064 = vpop.f32.mrf.mxu0
    %v5065 = vadd.f32 %v4776, %v5064
    %v5066 = vpop.f32.mrf.mxu0
    %5067 = vmatprep.mubr.bf16.mxu0 0
    %5068 = vmatmul.mubr.bf16.gmra.mxu0 %v4527
    %v5069 = vpop.f32.mrf.mxu0
    %v5070 = vadd.f32 %v4781, %v5069
    %v5071 = vpop.f32.mrf.mxu0
    %v5072 = vpop.f32.mrf.mxu0
    %v5073 = vadd.f32 %v4784, %v5072
    %v5074 = vpop.f32.mrf.mxu0
    %5075 = vmatprep.mubr.bf16.mxu0 0
    %5076 = vmatmul.mubr.bf16.gmra.mxu0 %v4530
    %v5077 = vpop.f32.mrf.mxu0
    %v5078 = vadd.f32 %v4789, %v5077
    %v5079 = vpop.f32.mrf.mxu0
    %v5080 = vpop.f32.mrf.mxu0
    %v5081 = vadd.f32 %v4792, %v5080
    %v5082 = vpop.f32.mrf.mxu0
    %5083 = vmatprep.mubr.bf16.mxu0 0
    %5084 = vmatmul.mubr.bf16.gmra.mxu0 %v4533
    %v5085 = vpop.f32.mrf.mxu0
    %v5086 = vadd.f32 %v4797, %v5085
    %v5087 = vpop.f32.mrf.mxu0
    %v5088 = vpop.f32.mrf.mxu0
    %v5089 = vadd.f32 %v4800, %v5088
    %v5090 = vpop.f32.mrf.mxu0
    %5091 = vmatprep.mubr.bf16.mxu0 0
    %5092 = vmatmul.mubr.bf16.gmra.mxu0 %v4536
    %v5093 = vpop.f32.mrf.mxu0
    %v5094 = vadd.f32 %v4805, %v5093
    %v5095 = vpop.f32.mrf.mxu0
    %v5096 = vpop.f32.mrf.mxu0
    %v5097 = vadd.f32 %v4808, %v5096
    %v5098 = vpop.f32.mrf.mxu0
    %5099 = vmatprep.mubr.bf16.mxu0 0
    %5100 = vmatmul.mubr.bf16.gmra.mxu0 %v4539
    %v5101 = vpop.f32.mrf.mxu0
    %v5102 = vadd.f32 %v4813, %v5101
    %v5103 = vpop.f32.mrf.mxu0
    %v5104 = vpop.f32.mrf.mxu0
    %v5105 = vadd.f32 %v4816, %v5104
    %v5106 = vpop.f32.mrf.mxu0
    %5107 = vmatprep.mubr.bf16.mxu0 0
    %5108 = vmatmul.mubr.bf16.gmra.mxu0 %v4542
    %v5109 = vpop.f32.mrf.mxu0
    %v5110 = vadd.f32 %v4821, %v5109
    %v5111 = vpop.f32.mrf.mxu0
    %v5112 = vpop.f32.mrf.mxu0
    %v5113 = vadd.f32 %v4824, %v5112
    %v5114 = vpop.f32.mrf.mxu0
    %5115 = vmatprep.mubr.bf16.mxu0 0
    %5116 = vmatmul.mubr.bf16.gmra.mxu0 %v4545
    %v5117 = vpop.f32.mrf.mxu0
    %v5118 = vadd.f32 %v4829, %v5117
    %v5119 = vpop.f32.mrf.mxu0
    %v5120 = vpop.f32.mrf.mxu0
    %v5121 = vadd.f32 %v4832, %v5120
    %v5122 = vpop.f32.mrf.mxu0
    %5123 = vmatprep.mubr.bf16.mxu0 0
    %5124 = vmatmul.mubr.bf16.gmra.mxu0 %v4548
    %v5125 = vpop.f32.mrf.mxu0
    %v5126 = vadd.f32 %v4837, %v5125
    %v5127 = vpop.f32.mrf.mxu0
    %v5128 = vpop.f32.mrf.mxu0
    %v5129 = vadd.f32 %v4840, %v5128
    %v5130 = vpop.f32.mrf.mxu0
    %5131 = vdwg.mxu0
    %v5132 = vxor.u32 %v4878, 2147483648
    %v5133 = vxor.u32 %v4881, 2147483648
    %v5134 = vxor.u32 %v4886, 2147483648
    %v5135 = vxor.u32 %v4889, 2147483648
    %v5136 = vxor.u32 %v4894, 2147483648
    %v5137 = vxor.u32 %v4897, 2147483648
    %v5138 = vxor.u32 %v4902, 2147483648
    %v5139 = vxor.u32 %v4905, 2147483648
    %v5140 = vxor.u32 %v4910, 2147483648
    %v5141 = vxor.u32 %v4913, 2147483648
    %v5142 = vxor.u32 %v4918, 2147483648
    %v5143 = vxor.u32 %v4921, 2147483648
    %v5144 = vxor.u32 %v4926, 2147483648
    %v5145 = vxor.u32 %v4929, 2147483648
    %v5146 = vxor.u32 %v4934, 2147483648
    %v5147 = vxor.u32 %v4937, 2147483648
    %v5148 = vxor.u32 %v4942, 2147483648
    %v5149 = vxor.u32 %v4945, 2147483648
    %v5150 = vxor.u32 %v4950, 2147483648
    %v5151 = vxor.u32 %v4953, 2147483648
    %v5152 = vxor.u32 %v4958, 2147483648
    %v5153 = vxor.u32 %v4961, 2147483648
    %v5154 = vxor.u32 %v4966, 2147483648
    %v5155 = vxor.u32 %v4969, 2147483648
    %v5156 = vxor.u32 %v4974, 2147483648
    %v5157 = vxor.u32 %v4977, 2147483648
    %v5158 = vxor.u32 %v4982, 2147483648
    %v5159 = vxor.u32 %v4985, 2147483648
    %v5160 = vxor.u32 %v4990, 2147483648
    %v5161 = vxor.u32 %v4993, 2147483648
    %v5162 = vxor.u32 %v4998, 2147483648
    %v5163 = vxor.u32 %v5001, 2147483648
    %v5164 = vxor.u32 %v5006, 2147483648
    %v5165 = vxor.u32 %v5009, 2147483648
    %v5166 = vxor.u32 %v5014, 2147483648
    %v5167 = vxor.u32 %v5017, 2147483648
    %v5168 = vxor.u32 %v5022, 2147483648
    %v5169 = vxor.u32 %v5025, 2147483648
    %v5170 = vxor.u32 %v5030, 2147483648
    %v5171 = vxor.u32 %v5033, 2147483648
    %v5172 = vxor.u32 %v5038, 2147483648
    %v5173 = vxor.u32 %v5041, 2147483648
    %v5174 = vxor.u32 %v5046, 2147483648
    %v5175 = vxor.u32 %v5049, 2147483648
    %v5176 = vxor.u32 %v5054, 2147483648
    %v5177 = vxor.u32 %v5057, 2147483648
    %v5178 = vxor.u32 %v5062, 2147483648
    %v5179 = vxor.u32 %v5065, 2147483648
    %v5180 = vxor.u32 %v5070, 2147483648
    %v5181 = vxor.u32 %v5073, 2147483648
    %v5182 = vxor.u32 %v5078, 2147483648
    %v5183 = vxor.u32 %v5081, 2147483648
    %v5184 = vxor.u32 %v5086, 2147483648
    %v5185 = vxor.u32 %v5089, 2147483648
    %v5186 = vxor.u32 %v5094, 2147483648
    %v5187 = vxor.u32 %v5097, 2147483648
    %v5188 = vxor.u32 %v5102, 2147483648
    %v5189 = vxor.u32 %v5105, 2147483648
    %v5190 = vxor.u32 %v5110, 2147483648
    %v5191 = vxor.u32 %v5113, 2147483648
    %v5192 = vxor.u32 %v5118, 2147483648
    %v5193 = vxor.u32 %v5121, 2147483648
    %v5194 = vxor.u32 %v5126, 2147483648
    %v5195 = vxor.u32 %v5129, 2147483648
    %v5196 = vmul.f32 %v5132, 1.442695
    %v5197 = vpow.pop %v5196
    %v5198 = vmul.f32 %v5133, 1.442695
    %v5199 = vpow.pop %v5198
    %v5200 = vmul.f32 %v5134, 1.442695
    %v5201 = vpow.pop %v5200
    %v5202 = vmul.f32 %v5135, 1.442695
    %v5203 = vpow.pop %v5202
    %v5204 = vmul.f32 %v5136, 1.442695
    %v5205 = vpow.pop %v5204
    %v5206 = vmul.f32 %v5137, 1.442695
    %v5207 = vpow.pop %v5206
    %v5208 = vmul.f32 %v5138, 1.442695
    %v5209 = vpow.pop %v5208
    %v5210 = vmul.f32 %v5139, 1.442695
    %v5211 = vpow.pop %v5210
    %v5212 = vmul.f32 %v5140, 1.442695
    %v5213 = vpow.pop %v5212
    %v5214 = vmul.f32 %v5141, 1.442695
    %v5215 = vpow.pop %v5214
    %v5216 = vmul.f32 %v5142, 1.442695
    %v5217 = vpow.pop %v5216
    %v5218 = vmul.f32 %v5143, 1.442695
    %v5219 = vpow.pop %v5218
    %v5220 = vmul.f32 %v5144, 1.442695
    %v5221 = vpow.pop %v5220
    %v5222 = vmul.f32 %v5145, 1.442695
    %v5223 = vpow.pop %v5222
    %v5224 = vmul.f32 %v5146, 1.442695
    %v5225 = vpow.pop %v5224
    %v5226 = vmul.f32 %v5147, 1.442695
    %v5227 = vpow.pop %v5226
    %v5228 = vmul.f32 %v5148, 1.442695
    %v5229 = vpow.pop %v5228
    %v5230 = vmul.f32 %v5149, 1.442695
    %v5231 = vpow.pop %v5230
    %v5232 = vmul.f32 %v5150, 1.442695
    %v5233 = vpow.pop %v5232
    %v5234 = vmul.f32 %v5151, 1.442695
    %v5235 = vpow.pop %v5234
    %v5236 = vmul.f32 %v5152, 1.442695
    %v5237 = vpow.pop %v5236
    %v5238 = vmul.f32 %v5153, 1.442695
    %v5239 = vpow.pop %v5238
    %v5240 = vmul.f32 %v5154, 1.442695
    %v5241 = vpow.pop %v5240
    %v5242 = vmul.f32 %v5155, 1.442695
    %v5243 = vpow.pop %v5242
    %v5244 = vmul.f32 %v5156, 1.442695
    %v5245 = vpow.pop %v5244
    %v5246 = vmul.f32 %v5157, 1.442695
    %v5247 = vpow.pop %v5246
    %v5248 = vmul.f32 %v5158, 1.442695
    %v5249 = vpow.pop %v5248
    %v5250 = vmul.f32 %v5159, 1.442695
    %v5251 = vpow.pop %v5250
    %v5252 = vmul.f32 %v5160, 1.442695
    %v5253 = vpow.pop %v5252
    %v5254 = vmul.f32 %v5161, 1.442695
    %v5255 = vpow.pop %v5254
    %v5256 = vmul.f32 %v5162, 1.442695
    %v5257 = vpow.pop %v5256
    %v5258 = vmul.f32 %v5163, 1.442695
    %v5259 = vpow.pop %v5258
    %v5260 = vmul.f32 %v5164, 1.442695
    %v5261 = vpow.pop %v5260
    %v5262 = vmul.f32 %v5165, 1.442695
    %v5263 = vpow.pop %v5262
    %v5264 = vmul.f32 %v5166, 1.442695
    %v5265 = vpow.pop %v5264
    %v5266 = vmul.f32 %v5167, 1.442695
    %v5267 = vpow.pop %v5266
    %v5268 = vmul.f32 %v5168, 1.442695
    %v5269 = vpow.pop %v5268
    %v5270 = vmul.f32 %v5169, 1.442695
    %v5271 = vpow.pop %v5270
    %v5272 = vmul.f32 %v5170, 1.442695
    %v5273 = vpow.pop %v5272
    %v5274 = vmul.f32 %v5171, 1.442695
    %v5275 = vpow.pop %v5274
    %v5276 = vmul.f32 %v5172, 1.442695
    %v5277 = vpow.pop %v5276
    %v5278 = vmul.f32 %v5173, 1.442695
    %v5279 = vpow.pop %v5278
    %v5280 = vmul.f32 %v5174, 1.442695
    %v5281 = vpow.pop %v5280
    %v5282 = vmul.f32 %v5175, 1.442695
    %v5283 = vpow.pop %v5282
    %v5284 = vmul.f32 %v5176, 1.442695
    %v5285 = vpow.pop %v5284
    %v5286 = vmul.f32 %v5177, 1.442695
    %v5287 = vpow.pop %v5286
    %v5288 = vmul.f32 %v5178, 1.442695
    %v5289 = vpow.pop %v5288
    %v5290 = vmul.f32 %v5179, 1.442695
    %v5291 = vpow.pop %v5290
    %v5292 = vmul.f32 %v5180, 1.442695
    %v5293 = vpow.pop %v5292
    %v5294 = vmul.f32 %v5181, 1.442695
    %v5295 = vpow.pop %v5294
    %v5296 = vmul.f32 %v5182, 1.442695
    %v5297 = vpow.pop %v5296
    %v5298 = vmul.f32 %v5183, 1.442695
    %v5299 = vpow.pop %v5298
    %v5300 = vmul.f32 %v5184, 1.442695
    %v5301 = vpow.pop %v5300
    %v5302 = vmul.f32 %v5185, 1.442695
    %v5303 = vpow.pop %v5302
    %v5304 = vmul.f32 %v5186, 1.442695
    %v5305 = vpow.pop %v5304
    %v5306 = vmul.f32 %v5187, 1.442695
    %v5307 = vpow.pop %v5306
    %v5308 = vmul.f32 %v5188, 1.442695
    %v5309 = vpow.pop %v5308
    %v5310 = vmul.f32 %v5189, 1.442695
    %v5311 = vpow.pop %v5310
    %v5312 = vmul.f32 %v5190, 1.442695
    %v5313 = vpow.pop %v5312
    %v5314 = vmul.f32 %v5191, 1.442695
    %v5315 = vpow.pop %v5314
    %v5316 = vmul.f32 %v5192, 1.442695
    %v5317 = vpow.pop %v5316
    %v5318 = vmul.f32 %v5193, 1.442695
    %v5319 = vpow.pop %v5318
    %v5320 = vmul.f32 %v5194, 1.442695
    %v5321 = vpow.pop %v5320
    %v5322 = vmul.f32 %v5195, 1.442695
    %v5323 = vpow.pop %v5322
    %v5324 = vadd.f32 %v5197, 1.0
    %v5325 = vadd.f32 %v5199, 1.0
    %v5326 = vadd.f32 %v5201, 1.0
    %v5327 = vadd.f32 %v5203, 1.0
    %v5328 = vadd.f32 %v5205, 1.0
    %v5329 = vadd.f32 %v5207, 1.0
    %v5330 = vadd.f32 %v5209, 1.0
    %v5331 = vadd.f32 %v5211, 1.0
    %v5332 = vadd.f32 %v5213, 1.0
    %v5333 = vadd.f32 %v5215, 1.0
    %v5334 = vadd.f32 %v5217, 1.0
    %v5335 = vadd.f32 %v5219, 1.0
    %v5336 = vadd.f32 %v5221, 1.0
    %v5337 = vadd.f32 %v5223, 1.0
    %v5338 = vadd.f32 %v5225, 1.0
    %v5339 = vadd.f32 %v5227, 1.0
    %v5340 = vadd.f32 %v5229, 1.0
    %v5341 = vadd.f32 %v5231, 1.0
    %v5342 = vadd.f32 %v5233, 1.0
    %v5343 = vadd.f32 %v5235, 1.0
    %v5344 = vadd.f32 %v5237, 1.0
    %v5345 = vadd.f32 %v5239, 1.0
    %v5346 = vadd.f32 %v5241, 1.0
    %v5347 = vadd.f32 %v5243, 1.0
    %v5348 = vadd.f32 %v5245, 1.0
    %v5349 = vadd.f32 %v5247, 1.0
    %v5350 = vadd.f32 %v5249, 1.0
    %v5351 = vadd.f32 %v5251, 1.0
    %v5352 = vadd.f32 %v5253, 1.0
    %v5353 = vadd.f32 %v5255, 1.0
    %v5354 = vadd.f32 %v5257, 1.0
    %v5355 = vadd.f32 %v5259, 1.0
    %v5356 = vadd.f32 %v5261, 1.0
    %v5357 = vadd.f32 %v5263, 1.0
    %v5358 = vadd.f32 %v5265, 1.0
    %v5359 = vadd.f32 %v5267, 1.0
    %v5360 = vadd.f32 %v5269, 1.0
    %v5361 = vadd.f32 %v5271, 1.0
    %v5362 = vadd.f32 %v5273, 1.0
    %v5363 = vadd.f32 %v5275, 1.0
    %v5364 = vadd.f32 %v5277, 1.0
    %v5365 = vadd.f32 %v5279, 1.0
    %v5366 = vadd.f32 %v5281, 1.0
    %v5367 = vadd.f32 %v5283, 1.0
    %v5368 = vadd.f32 %v5285, 1.0
    %v5369 = vadd.f32 %v5287, 1.0
    %v5370 = vadd.f32 %v5289, 1.0
    %v5371 = vadd.f32 %v5291, 1.0
    %v5372 = vadd.f32 %v5293, 1.0
    %v5373 = vadd.f32 %v5295, 1.0
    %v5374 = vadd.f32 %v5297, 1.0
    %v5375 = vadd.f32 %v5299, 1.0
    %v5376 = vadd.f32 %v5301, 1.0
    %v5377 = vadd.f32 %v5303, 1.0
    %v5378 = vadd.f32 %v5305, 1.0
    %v5379 = vadd.f32 %v5307, 1.0
    %v5380 = vadd.f32 %v5309, 1.0
    %v5381 = vadd.f32 %v5311, 1.0
    %v5382 = vadd.f32 %v5313, 1.0
    %v5383 = vadd.f32 %v5315, 1.0
    %v5384 = vadd.f32 %v5317, 1.0
    %v5385 = vadd.f32 %v5319, 1.0
    %v5386 = vadd.f32 %v5321, 1.0
    %v5387 = vadd.f32 %v5323, 1.0
    %v5388 = vrcp.pop %v5324
    %v5389 = vmul.f32 1.0, %v5388
    %v5390 = vrcp.pop %v5325
    %v5391 = vmul.f32 1.0, %v5390
    %v5392 = vrcp.pop %v5326
    %v5393 = vmul.f32 1.0, %v5392
    %v5394 = vrcp.pop %v5327
    %v5395 = vmul.f32 1.0, %v5394
    %v5396 = vrcp.pop %v5328
    %v5397 = vmul.f32 1.0, %v5396
    %v5398 = vrcp.pop %v5329
    %v5399 = vmul.f32 1.0, %v5398
    %v5400 = vrcp.pop %v5330
    %v5401 = vmul.f32 1.0, %v5400
    %v5402 = vrcp.pop %v5331
    %v5403 = vmul.f32 1.0, %v5402
    %v5404 = vrcp.pop %v5332
    %v5405 = vmul.f32 1.0, %v5404
    %v5406 = vrcp.pop %v5333
    %v5407 = vmul.f32 1.0, %v5406
    %v5408 = vrcp.pop %v5334
    %v5409 = vmul.f32 1.0, %v5408
    %v5410 = vrcp.pop %v5335
    %v5411 = vmul.f32 1.0, %v5410
    %v5412 = vrcp.pop %v5336
    %v5413 = vmul.f32 1.0, %v5412
    %v5414 = vrcp.pop %v5337
    %v5415 = vmul.f32 1.0, %v5414
    %v5416 = vrcp.pop %v5338
    %v5417 = vmul.f32 1.0, %v5416
    %v5418 = vrcp.pop %v5339
    %v5419 = vmul.f32 1.0, %v5418
    %v5420 = vrcp.pop %v5340
    %v5421 = vmul.f32 1.0, %v5420
    %v5422 = vrcp.pop %v5341
    %v5423 = vmul.f32 1.0, %v5422
    %v5424 = vrcp.pop %v5342
    %v5425 = vmul.f32 1.0, %v5424
    %v5426 = vrcp.pop %v5343
    %v5427 = vmul.f32 1.0, %v5426
    %v5428 = vrcp.pop %v5344
    %v5429 = vmul.f32 1.0, %v5428
    %v5430 = vrcp.pop %v5345
    %v5431 = vmul.f32 1.0, %v5430
    %v5432 = vrcp.pop %v5346
    %v5433 = vmul.f32 1.0, %v5432
    %v5434 = vrcp.pop %v5347
    %v5435 = vmul.f32 1.0, %v5434
    %v5436 = vrcp.pop %v5348
    %v5437 = vmul.f32 1.0, %v5436
    %v5438 = vrcp.pop %v5349
    %v5439 = vmul.f32 1.0, %v5438
    %v5440 = vrcp.pop %v5350
    %v5441 = vmul.f32 1.0, %v5440
    %v5442 = vrcp.pop %v5351
    %v5443 = vmul.f32 1.0, %v5442
    %v5444 = vrcp.pop %v5352
    %v5445 = vmul.f32 1.0, %v5444
    %v5446 = vrcp.pop %v5353
    %v5447 = vmul.f32 1.0, %v5446
    %v5448 = vrcp.pop %v5354
    %v5449 = vmul.f32 1.0, %v5448
    %v5450 = vrcp.pop %v5355
    %v5451 = vmul.f32 1.0, %v5450
    %v5452 = vrcp.pop %v5356
    %v5453 = vmul.f32 1.0, %v5452
    %v5454 = vrcp.pop %v5357
    %v5455 = vmul.f32 1.0, %v5454
    %v5456 = vrcp.pop %v5358
    %v5457 = vmul.f32 1.0, %v5456
    %v5458 = vrcp.pop %v5359
    %v5459 = vmul.f32 1.0, %v5458
    %v5460 = vrcp.pop %v5360
    %v5461 = vmul.f32 1.0, %v5460
    %v5462 = vrcp.pop %v5361
    %v5463 = vmul.f32 1.0, %v5462
    %v5464 = vrcp.pop %v5362
    %v5465 = vmul.f32 1.0, %v5464
    %v5466 = vrcp.pop %v5363
    %v5467 = vmul.f32 1.0, %v5466
    %v5468 = vrcp.pop %v5364
    %v5469 = vmul.f32 1.0, %v5468
    %v5470 = vrcp.pop %v5365
    %v5471 = vmul.f32 1.0, %v5470
    %v5472 = vrcp.pop %v5366
    %v5473 = vmul.f32 1.0, %v5472
    %v5474 = vrcp.pop %v5367
    %v5475 = vmul.f32 1.0, %v5474
    %v5476 = vrcp.pop %v5368
    %v5477 = vmul.f32 1.0, %v5476
    %v5478 = vrcp.pop %v5369
    %v5479 = vmul.f32 1.0, %v5478
    %v5480 = vrcp.pop %v5370
    %v5481 = vmul.f32 1.0, %v5480
    %v5482 = vrcp.pop %v5371
    %v5483 = vmul.f32 1.0, %v5482
    %v5484 = vrcp.pop %v5372
    %v5485 = vmul.f32 1.0, %v5484
    %v5486 = vrcp.pop %v5373
    %v5487 = vmul.f32 1.0, %v5486
    %v5488 = vrcp.pop %v5374
    %v5489 = vmul.f32 1.0, %v5488
    %v5490 = vrcp.pop %v5375
    %v5491 = vmul.f32 1.0, %v5490
    %v5492 = vrcp.pop %v5376
    %v5493 = vmul.f32 1.0, %v5492
    %v5494 = vrcp.pop %v5377
    %v5495 = vmul.f32 1.0, %v5494
    %v5496 = vrcp.pop %v5378
    %v5497 = vmul.f32 1.0, %v5496
    %v5498 = vrcp.pop %v5379
    %v5499 = vmul.f32 1.0, %v5498
    %v5500 = vrcp.pop %v5380
    %v5501 = vmul.f32 1.0, %v5500
    %v5502 = vrcp.pop %v5381
    %v5503 = vmul.f32 1.0, %v5502
    %v5504 = vrcp.pop %v5382
    %v5505 = vmul.f32 1.0, %v5504
    %v5506 = vrcp.pop %v5383
    %v5507 = vmul.f32 1.0, %v5506
    %v5508 = vrcp.pop %v5384
    %v5509 = vmul.f32 1.0, %v5508
    %v5510 = vrcp.pop %v5385
    %v5511 = vmul.f32 1.0, %v5510
    %v5512 = vrcp.pop %v5386
    %v5513 = vmul.f32 1.0, %v5512
    %v5514 = vrcp.pop %v5387
    %v5515 = vmul.f32 1.0, %v5514
    %v5516 = vtanh.pop %v4878
    %v5517 = vtanh.pop %v4881
    %v5518 = vtanh.pop %v4886
    %v5519 = vtanh.pop %v4889
    %v5520 = vtanh.pop %v4894
    %v5521 = vtanh.pop %v4897
    %v5522 = vtanh.pop %v4902
    %v5523 = vtanh.pop %v4905
    %v5524 = vtanh.pop %v4910
    %v5525 = vtanh.pop %v4913
    %v5526 = vtanh.pop %v4918
    %v5527 = vtanh.pop %v4921
    %v5528 = vtanh.pop %v4926
    %v5529 = vtanh.pop %v4929
    %v5530 = vtanh.pop %v4934
    %v5531 = vtanh.pop %v4937
    %v5532 = vtanh.pop %v4942
    %v5533 = vtanh.pop %v4945
    %v5534 = vtanh.pop %v4950
    %v5535 = vtanh.pop %v4953
    %v5536 = vtanh.pop %v4958
    %v5537 = vtanh.pop %v4961
    %v5538 = vtanh.pop %v4966
    %v5539 = vtanh.pop %v4969
    %v5540 = vtanh.pop %v4974
    %v5541 = vtanh.pop %v4977
    %v5542 = vtanh.pop %v4982
    %v5543 = vtanh.pop %v4985
    %v5544 = vtanh.pop %v4990
    %v5545 = vtanh.pop %v4993
    %v5546 = vtanh.pop %v4998
    %v5547 = vtanh.pop %v5001
    %v5548 = vtanh.pop %v5006
    %v5549 = vtanh.pop %v5009
    %v5550 = vtanh.pop %v5014
    %v5551 = vtanh.pop %v5017
    %v5552 = vtanh.pop %v5022
    %v5553 = vtanh.pop %v5025
    %v5554 = vtanh.pop %v5030
    %v5555 = vtanh.pop %v5033
    %v5556 = vtanh.pop %v5038
    %v5557 = vtanh.pop %v5041
    %v5558 = vtanh.pop %v5046
    %v5559 = vtanh.pop %v5049
    %v5560 = vtanh.pop %v5054
    %v5561 = vtanh.pop %v5057
    %v5562 = vtanh.pop %v5062
    %v5563 = vtanh.pop %v5065
    %v5564 = vtanh.pop %v5070
    %v5565 = vtanh.pop %v5073
    %v5566 = vtanh.pop %v5078
    %v5567 = vtanh.pop %v5081
    %v5568 = vtanh.pop %v5086
    %v5569 = vtanh.pop %v5089
    %v5570 = vtanh.pop %v5094
    %v5571 = vtanh.pop %v5097
    %v5572 = vtanh.pop %v5102
    %v5573 = vtanh.pop %v5105
    %v5574 = vtanh.pop %v5110
    %v5575 = vtanh.pop %v5113
    %v5576 = vtanh.pop %v5118
    %v5577 = vtanh.pop %v5121
    %v5578 = vtanh.pop %v5126
    %v5579 = vtanh.pop %v5129
    %v5580 = vld [vmem:[#allocation4] sm:$0xff]
    %v5581 = vld [vmem:[#allocation4 + $0x8] sm:$0xff]
    %v5582 = vld [vmem:[#allocation4 + $0x10] sm:$0xff]
    %v5583 = vld [vmem:[#allocation4 + $0x18] sm:$0xff]
    %v5584 = vld [vmem:[#allocation4 + $0x20] sm:$0xff]
    %v5585 = vld [vmem:[#allocation4 + $0x28] sm:$0xff]
    %v5586 = vld [vmem:[#allocation4 + $0x30] sm:$0xff]
    %v5587 = vld [vmem:[#allocation4 + $0x38] sm:$0xff]
    %v5588 = vld [vmem:[#allocation4 + $0x40] sm:$0xff]
    %v5589 = vld [vmem:[#allocation4 + $0x48] sm:$0xff]
    %v5590 = vld [vmem:[#allocation4 + $0x50] sm:$0xff]
    %v5591 = vld [vmem:[#allocation4 + $0x58] sm:$0xff]
    %v5592 = vld [vmem:[#allocation4 + $0x60] sm:$0xff]
    %v5593 = vld [vmem:[#allocation4 + $0x68] sm:$0xff]
    %v5594 = vld [vmem:[#allocation4 + $0x70] sm:$0xff]
    %v5595 = vld [vmem:[#allocation4 + $0x78] sm:$0xff]
    %v5596 = vld [vmem:[#allocation4 + $0x80] sm:$0xff]
    %v5597 = vld [vmem:[#allocation4 + $0x88] sm:$0xff]
    %v5598 = vld [vmem:[#allocation4 + $0x90] sm:$0xff]
    %v5599 = vld [vmem:[#allocation4 + $0x98] sm:$0xff]
    %v5600 = vld [vmem:[#allocation4 + $0xa0] sm:$0xff]
    %v5601 = vld [vmem:[#allocation4 + $0xa8] sm:$0xff]
    %v5602 = vld [vmem:[#allocation4 + $0xb0] sm:$0xff]
    %v5603 = vld [vmem:[#allocation4 + $0xb8] sm:$0xff]
    %v5604 = vld [vmem:[#allocation4 + $0xc0] sm:$0xff]
    %v5605 = vld [vmem:[#allocation4 + $0xc8] sm:$0xff]
    %v5606 = vld [vmem:[#allocation4 + $0xd0] sm:$0xff]
    %v5607 = vld [vmem:[#allocation4 + $0xd8] sm:$0xff]
    %v5608 = vld [vmem:[#allocation4 + $0xe0] sm:$0xff]
    %v5609 = vld [vmem:[#allocation4 + $0xe8] sm:$0xff]
    %v5610 = vld [vmem:[#allocation4 + $0xf0] sm:$0xff]
    %v5611 = vld [vmem:[#allocation4 + $0xf8] sm:$0xff]
    %v5612 = vld [vmem:[#allocation4 + $0x100] sm:$0xff]
    %v5613 = vld [vmem:[#allocation4 + $0x108] sm:$0xff]
    %v5614 = vld [vmem:[#allocation4 + $0x110] sm:$0xff]
    %v5615 = vld [vmem:[#allocation4 + $0x118] sm:$0xff]
    %v5616 = vld [vmem:[#allocation4 + $0x120] sm:$0xff]
    %v5617 = vld [vmem:[#allocation4 + $0x128] sm:$0xff]
    %v5618 = vld [vmem:[#allocation4 + $0x130] sm:$0xff]
    %v5619 = vld [vmem:[#allocation4 + $0x138] sm:$0xff]
    %v5620 = vld [vmem:[#allocation4 + $0x140] sm:$0xff]
    %v5621 = vld [vmem:[#allocation4 + $0x148] sm:$0xff]
    %v5622 = vld [vmem:[#allocation4 + $0x150] sm:$0xff]
    %v5623 = vld [vmem:[#allocation4 + $0x158] sm:$0xff]
    %v5624 = vld [vmem:[#allocation4 + $0x160] sm:$0xff]
    %v5625 = vld [vmem:[#allocation4 + $0x168] sm:$0xff]
    %v5626 = vld [vmem:[#allocation4 + $0x170] sm:$0xff]
    %v5627 = vld [vmem:[#allocation4 + $0x178] sm:$0xff]
    %v5628 = vld [vmem:[#allocation4 + $0x180] sm:$0xff]
    %v5629 = vld [vmem:[#allocation4 + $0x188] sm:$0xff]
    %v5630 = vld [vmem:[#allocation4 + $0x190] sm:$0xff]
    %v5631 = vld [vmem:[#allocation4 + $0x198] sm:$0xff]
    %v5632 = vld [vmem:[#allocation4 + $0x1a0] sm:$0xff]
    %v5633 = vld [vmem:[#allocation4 + $0x1a8] sm:$0xff]
    %v5634 = vld [vmem:[#allocation4 + $0x1b0] sm:$0xff]
    %v5635 = vld [vmem:[#allocation4 + $0x1b8] sm:$0xff]
    %v5636 = vld [vmem:[#allocation4 + $0x1c0] sm:$0xff]
    %v5637 = vld [vmem:[#allocation4 + $0x1c8] sm:$0xff]
    %v5638 = vld [vmem:[#allocation4 + $0x1d0] sm:$0xff]
    %v5639 = vld [vmem:[#allocation4 + $0x1d8] sm:$0xff]
    %v5640 = vld [vmem:[#allocation4 + $0x1e0] sm:$0xff]
    %v5641 = vld [vmem:[#allocation4 + $0x1e8] sm:$0xff]
    %v5642 = vld [vmem:[#allocation4 + $0x1f0] sm:$0xff]
    %v5643 = vld [vmem:[#allocation4 + $0x1f8] sm:$0xff]
    %5708 = vrot.lane.b32.xlu0 %v5580, 32
    %v5709 = vpop.permute.xlu0 %5708
    %5710 = vrot.lane.b32.xlu0 %v5581, 32
    %v5711 = vpop.permute.xlu0 %5710
    %5712 = vrot.lane.b32.xlu0 %v5582, 32
    %v5713 = vpop.permute.xlu0 %5712
    %5714 = vrot.lane.b32.xlu0 %v5583, 32
    %v5715 = vpop.permute.xlu0 %5714
    %5716 = vrot.lane.b32.xlu0 %v5584, 32
    %v5717 = vpop.permute.xlu0 %5716
    %5718 = vrot.lane.b32.xlu0 %v5585, 32
    %v5719 = vpop.permute.xlu0 %5718
    %5720 = vrot.lane.b32.xlu0 %v5586, 32
    %v5721 = vpop.permute.xlu0 %5720
    %5722 = vrot.lane.b32.xlu0 %v5587, 32
    %v5723 = vpop.permute.xlu0 %5722
    %5724 = vrot.lane.b32.xlu0 %v5588, 32
    %v5725 = vpop.permute.xlu0 %5724
    %5726 = vrot.lane.b32.xlu0 %v5589, 32
    %v5727 = vpop.permute.xlu0 %5726
    %5728 = vrot.lane.b32.xlu0 %v5590, 32
    %v5729 = vpop.permute.xlu0 %5728
    %5730 = vrot.lane.b32.xlu0 %v5591, 32
    %v5731 = vpop.permute.xlu0 %5730
    %5732 = vrot.lane.b32.xlu0 %v5592, 32
    %v5733 = vpop.permute.xlu0 %5732
    %5734 = vrot.lane.b32.xlu0 %v5593, 32
    %v5735 = vpop.permute.xlu0 %5734
    %5736 = vrot.lane.b32.xlu0 %v5594, 32
    %v5737 = vpop.permute.xlu0 %5736
    %5738 = vrot.lane.b32.xlu0 %v5595, 32
    %v5739 = vpop.permute.xlu0 %5738
    %5740 = vrot.lane.b32.xlu0 %v5596, 32
    %v5741 = vpop.permute.xlu0 %5740
    %5742 = vrot.lane.b32.xlu0 %v5597, 32
    %v5743 = vpop.permute.xlu0 %5742
    %5744 = vrot.lane.b32.xlu0 %v5598, 32
    %v5745 = vpop.permute.xlu0 %5744
    %5746 = vrot.lane.b32.xlu0 %v5599, 32
    %v5747 = vpop.permute.xlu0 %5746
    %5748 = vrot.lane.b32.xlu0 %v5600, 32
    %v5749 = vpop.permute.xlu0 %5748
    %5750 = vrot.lane.b32.xlu0 %v5601, 32
    %v5751 = vpop.permute.xlu0 %5750
    %5752 = vrot.lane.b32.xlu0 %v5602, 32
    %v5753 = vpop.permute.xlu0 %5752
    %5754 = vrot.lane.b32.xlu0 %v5603, 32
    %v5755 = vpop.permute.xlu0 %5754
    %5756 = vrot.lane.b32.xlu0 %v5604, 32
    %v5757 = vpop.permute.xlu0 %5756
    %5758 = vrot.lane.b32.xlu0 %v5605, 32
    %v5759 = vpop.permute.xlu0 %5758
    %5760 = vrot.lane.b32.xlu0 %v5606, 32
    %v5761 = vpop.permute.xlu0 %5760
    %5762 = vrot.lane.b32.xlu0 %v5607, 32
    %v5763 = vpop.permute.xlu0 %5762
    %5764 = vrot.lane.b32.xlu0 %v5608, 32
    %v5765 = vpop.permute.xlu0 %5764
    %5766 = vrot.lane.b32.xlu0 %v5609, 32
    %v5767 = vpop.permute.xlu0 %5766
    %5768 = vrot.lane.b32.xlu0 %v5610, 32
    %v5769 = vpop.permute.xlu0 %5768
    %5770 = vrot.lane.b32.xlu0 %v5611, 32
    %v5771 = vpop.permute.xlu0 %5770
    %5772 = vrot.lane.b32.xlu0 %v5612, 32
    %v5773 = vpop.permute.xlu0 %5772
    %5774 = vrot.lane.b32.xlu0 %v5613, 32
    %v5775 = vpop.permute.xlu0 %5774
    %5776 = vrot.lane.b32.xlu0 %v5614, 32
    %v5777 = vpop.permute.xlu0 %5776
    %5778 = vrot.lane.b32.xlu0 %v5615, 32
    %v5779 = vpop.permute.xlu0 %5778
    %5780 = vrot.lane.b32.xlu0 %v5616, 32
    %v5781 = vpop.permute.xlu0 %5780
    %5782 = vrot.lane.b32.xlu0 %v5617, 32
    %v5783 = vpop.permute.xlu0 %5782
    %5784 = vrot.lane.b32.xlu0 %v5618, 32
    %v5785 = vpop.permute.xlu0 %5784
    %5786 = vrot.lane.b32.xlu0 %v5619, 32
    %v5787 = vpop.permute.xlu0 %5786
    %5788 = vrot.lane.b32.xlu0 %v5620, 32
    %v5789 = vpop.permute.xlu0 %5788
    %5790 = vrot.lane.b32.xlu0 %v5621, 32
    %v5791 = vpop.permute.xlu0 %5790
    %5792 = vrot.lane.b32.xlu0 %v5622, 32
    %v5793 = vpop.permute.xlu0 %5792
    %5794 = vrot.lane.b32.xlu0 %v5623, 32
    %v5795 = vpop.permute.xlu0 %5794
    %5796 = vrot.lane.b32.xlu0 %v5624, 32
    %v5797 = vpop.permute.xlu0 %5796
    %5798 = vrot.lane.b32.xlu0 %v5625, 32
    %v5799 = vpop.permute.xlu0 %5798
    %5800 = vrot.lane.b32.xlu0 %v5626, 32
    %v5801 = vpop.permute.xlu0 %5800
    %5802 = vrot.lane.b32.xlu0 %v5627, 32
    %v5803 = vpop.permute.xlu0 %5802
    %5804 = vrot.lane.b32.xlu0 %v5628, 32
    %v5805 = vpop.permute.xlu0 %5804
    %5806 = vrot.lane.b32.xlu0 %v5629, 32
    %v5807 = vpop.permute.xlu0 %5806
    %5808 = vrot.lane.b32.xlu0 %v5630, 32
    %v5809 = vpop.permute.xlu0 %5808
    %5810 = vrot.lane.b32.xlu0 %v5631, 32
    %v5811 = vpop.permute.xlu0 %5810
    %5812 = vrot.lane.b32.xlu0 %v5632, 32
    %v5813 = vpop.permute.xlu0 %5812
    %5814 = vrot.lane.b32.xlu0 %v5633, 32
    %v5815 = vpop.permute.xlu0 %5814
    %5816 = vrot.lane.b32.xlu0 %v5634, 32
    %v5817 = vpop.permute.xlu0 %5816
    %5818 = vrot.lane.b32.xlu0 %v5635, 32
    %v5819 = vpop.permute.xlu0 %5818
    %5820 = vrot.lane.b32.xlu0 %v5636, 32
    %v5821 = vpop.permute.xlu0 %5820
    %5822 = vrot.lane.b32.xlu0 %v5637, 32
    %v5823 = vpop.permute.xlu0 %5822
    %5824 = vrot.lane.b32.xlu0 %v5638, 32
    %v5825 = vpop.permute.xlu0 %5824
    %5826 = vrot.lane.b32.xlu0 %v5639, 32
    %v5827 = vpop.permute.xlu0 %5826
    %5828 = vrot.lane.b32.xlu0 %v5640, 32
    %v5829 = vpop.permute.xlu0 %5828
    %5830 = vrot.lane.b32.xlu0 %v5641, 32
    %v5831 = vpop.permute.xlu0 %5830
    %5832 = vrot.lane.b32.xlu0 %v5642, 32
    %v5833 = vpop.permute.xlu0 %5832
    %5834 = vrot.lane.b32.xlu0 %v5643, 32
    %v5835 = vpop.permute.xlu0 %5834
    %v5900 = vmul.f32 %v5389, %v5709
    %v5901 = vmul.f32 %v5391, %v5711
    %v5902 = vmul.f32 %v5393, %v5713
    %v5903 = vmul.f32 %v5395, %v5715
    %v5904 = vmul.f32 %v5397, %v5717
    %v5905 = vmul.f32 %v5399, %v5719
    %v5906 = vmul.f32 %v5401, %v5721
    %v5907 = vmul.f32 %v5403, %v5723
    %v5908 = vmul.f32 %v5405, %v5725
    %v5909 = vmul.f32 %v5407, %v5727
    %v5910 = vmul.f32 %v5409, %v5729
    %v5911 = vmul.f32 %v5411, %v5731
    %v5912 = vmul.f32 %v5413, %v5733
    %v5913 = vmul.f32 %v5415, %v5735
    %v5914 = vmul.f32 %v5417, %v5737
    %v5915 = vmul.f32 %v5419, %v5739
    %v5916 = vmul.f32 %v5421, %v5741
    %v5917 = vmul.f32 %v5423, %v5743
    %v5918 = vmul.f32 %v5425, %v5745
    %v5919 = vmul.f32 %v5427, %v5747
    %v5920 = vmul.f32 %v5429, %v5749
    %v5921 = vmul.f32 %v5431, %v5751
    %v5922 = vmul.f32 %v5433, %v5753
    %v5923 = vmul.f32 %v5435, %v5755
    %v5924 = vmul.f32 %v5437, %v5757
    %v5925 = vmul.f32 %v5439, %v5759
    %v5926 = vmul.f32 %v5441, %v5761
    %v5927 = vmul.f32 %v5443, %v5763
    %v5928 = vmul.f32 %v5445, %v5765
    %v5929 = vmul.f32 %v5447, %v5767
    %v5930 = vmul.f32 %v5449, %v5769
    %v5931 = vmul.f32 %v5451, %v5771
    %v5932 = vmul.f32 %v5453, %v5773
    %v5933 = vmul.f32 %v5455, %v5775
    %v5934 = vmul.f32 %v5457, %v5777
    %v5935 = vmul.f32 %v5459, %v5779
    %v5936 = vmul.f32 %v5461, %v5781
    %v5937 = vmul.f32 %v5463, %v5783
    %v5938 = vmul.f32 %v5465, %v5785
    %v5939 = vmul.f32 %v5467, %v5787
    %v5940 = vmul.f32 %v5469, %v5789
    %v5941 = vmul.f32 %v5471, %v5791
    %v5942 = vmul.f32 %v5473, %v5793
    %v5943 = vmul.f32 %v5475, %v5795
    %v5944 = vmul.f32 %v5477, %v5797
    %v5945 = vmul.f32 %v5479, %v5799
    %v5946 = vmul.f32 %v5481, %v5801
    %v5947 = vmul.f32 %v5483, %v5803
    %v5948 = vmul.f32 %v5485, %v5805
    %v5949 = vmul.f32 %v5487, %v5807
    %v5950 = vmul.f32 %v5489, %v5809
    %v5951 = vmul.f32 %v5491, %v5811
    %v5952 = vmul.f32 %v5493, %v5813
    %v5953 = vmul.f32 %v5495, %v5815
    %v5954 = vmul.f32 %v5497, %v5817
    %v5955 = vmul.f32 %v5499, %v5819
    %v5956 = vmul.f32 %v5501, %v5821
    %v5957 = vmul.f32 %v5503, %v5823
    %v5958 = vmul.f32 %v5505, %v5825
    %v5959 = vmul.f32 %v5507, %v5827
    %v5960 = vmul.f32 %v5509, %v5829
    %v5961 = vmul.f32 %v5511, %v5831
    %v5962 = vmul.f32 %v5513, %v5833
    %v5963 = vmul.f32 %v5515, %v5835
    %6028 = vrot.lane.b32.xlu0 %v5516, 64
    %v6029 = vpop.permute.xlu0 %6028
    %6030 = vrot.lane.b32.xlu0 %v5517, 64
    %v6031 = vpop.permute.xlu0 %6030
    %6032 = vrot.lane.b32.xlu0 %v5518, 64
    %v6033 = vpop.permute.xlu0 %6032
    %6034 = vrot.lane.b32.xlu0 %v5519, 64
    %v6035 = vpop.permute.xlu0 %6034
    %6036 = vrot.lane.b32.xlu0 %v5520, 64
    %v6037 = vpop.permute.xlu0 %6036
    %6038 = vrot.lane.b32.xlu0 %v5521, 64
    %v6039 = vpop.permute.xlu0 %6038
    %6040 = vrot.lane.b32.xlu0 %v5522, 64
    %v6041 = vpop.permute.xlu0 %6040
    %6042 = vrot.lane.b32.xlu0 %v5523, 64
    %v6043 = vpop.permute.xlu0 %6042
    %6044 = vrot.lane.b32.xlu0 %v5524, 64
    %v6045 = vpop.permute.xlu0 %6044
    %6046 = vrot.lane.b32.xlu0 %v5525, 64
    %v6047 = vpop.permute.xlu0 %6046
    %6048 = vrot.lane.b32.xlu0 %v5526, 64
    %v6049 = vpop.permute.xlu0 %6048
    %6050 = vrot.lane.b32.xlu0 %v5527, 64
    %v6051 = vpop.permute.xlu0 %6050
    %6052 = vrot.lane.b32.xlu0 %v5528, 64
    %v6053 = vpop.permute.xlu0 %6052
    %6054 = vrot.lane.b32.xlu0 %v5529, 64
    %v6055 = vpop.permute.xlu0 %6054
    %6056 = vrot.lane.b32.xlu0 %v5530, 64
    %v6057 = vpop.permute.xlu0 %6056
    %6058 = vrot.lane.b32.xlu0 %v5531, 64
    %v6059 = vpop.permute.xlu0 %6058
    %6060 = vrot.lane.b32.xlu0 %v5532, 64
    %v6061 = vpop.permute.xlu0 %6060
    %6062 = vrot.lane.b32.xlu0 %v5533, 64
    %v6063 = vpop.permute.xlu0 %6062
    %6064 = vrot.lane.b32.xlu0 %v5534, 64
    %v6065 = vpop.permute.xlu0 %6064
    %6066 = vrot.lane.b32.xlu0 %v5535, 64
    %v6067 = vpop.permute.xlu0 %6066
    %6068 = vrot.lane.b32.xlu0 %v5536, 64
    %v6069 = vpop.permute.xlu0 %6068
    %6070 = vrot.lane.b32.xlu0 %v5537, 64
    %v6071 = vpop.permute.xlu0 %6070
    %6072 = vrot.lane.b32.xlu0 %v5538, 64
    %v6073 = vpop.permute.xlu0 %6072
    %6074 = vrot.lane.b32.xlu0 %v5539, 64
    %v6075 = vpop.permute.xlu0 %6074
    %6076 = vrot.lane.b32.xlu0 %v5540, 64
    %v6077 = vpop.permute.xlu0 %6076
    %6078 = vrot.lane.b32.xlu0 %v5541, 64
    %v6079 = vpop.permute.xlu0 %6078
    %6080 = vrot.lane.b32.xlu0 %v5542, 64
    %v6081 = vpop.permute.xlu0 %6080
    %6082 = vrot.lane.b32.xlu0 %v5543, 64
    %v6083 = vpop.permute.xlu0 %6082
    %6084 = vrot.lane.b32.xlu0 %v5544, 64
    %v6085 = vpop.permute.xlu0 %6084
    %6086 = vrot.lane.b32.xlu0 %v5545, 64
    %v6087 = vpop.permute.xlu0 %6086
    %6088 = vrot.lane.b32.xlu0 %v5546, 64
    %v6089 = vpop.permute.xlu0 %6088
    %6090 = vrot.lane.b32.xlu0 %v5547, 64
    %v6091 = vpop.permute.xlu0 %6090
    %6092 = vrot.lane.b32.xlu0 %v5548, 64
    %v6093 = vpop.permute.xlu0 %6092
    %6094 = vrot.lane.b32.xlu0 %v5549, 64
    %v6095 = vpop.permute.xlu0 %6094
    %6096 = vrot.lane.b32.xlu0 %v5550, 64
    %v6097 = vpop.permute.xlu0 %6096
    %6098 = vrot.lane.b32.xlu0 %v5551, 64
    %v6099 = vpop.permute.xlu0 %6098
    %6100 = vrot.lane.b32.xlu0 %v5552, 64
    %v6101 = vpop.permute.xlu0 %6100
    %6102 = vrot.lane.b32.xlu0 %v5553, 64
    %v6103 = vpop.permute.xlu0 %6102
    %6104 = vrot.lane.b32.xlu0 %v5554, 64
    %v6105 = vpop.permute.xlu0 %6104
    %6106 = vrot.lane.b32.xlu0 %v5555, 64
    %v6107 = vpop.permute.xlu0 %6106
    %6108 = vrot.lane.b32.xlu0 %v5556, 64
    %v6109 = vpop.permute.xlu0 %6108
    %6110 = vrot.lane.b32.xlu0 %v5557, 64
    %v6111 = vpop.permute.xlu0 %6110
    %6112 = vrot.lane.b32.xlu0 %v5558, 64
    %v6113 = vpop.permute.xlu0 %6112
    %6114 = vrot.lane.b32.xlu0 %v5559, 64
    %v6115 = vpop.permute.xlu0 %6114
    %6116 = vrot.lane.b32.xlu0 %v5560, 64
    %v6117 = vpop.permute.xlu0 %6116
    %6118 = vrot.lane.b32.xlu0 %v5561, 64
    %v6119 = vpop.permute.xlu0 %6118
    %6120 = vrot.lane.b32.xlu0 %v5562, 64
    %v6121 = vpop.permute.xlu0 %6120
    %6122 = vrot.lane.b32.xlu0 %v5563, 64
    %v6123 = vpop.permute.xlu0 %6122
    %6124 = vrot.lane.b32.xlu0 %v5564, 64
    %v6125 = vpop.permute.xlu0 %6124
    %6126 = vrot.lane.b32.xlu0 %v5565, 64
    %v6127 = vpop.permute.xlu0 %6126
    %6128 = vrot.lane.b32.xlu0 %v5566, 64
    %v6129 = vpop.permute.xlu0 %6128
    %6130 = vrot.lane.b32.xlu0 %v5567, 64
    %v6131 = vpop.permute.xlu0 %6130
    %6132 = vrot.lane.b32.xlu0 %v5568, 64
    %v6133 = vpop.permute.xlu0 %6132
    %6134 = vrot.lane.b32.xlu0 %v5569, 64
    %v6135 = vpop.permute.xlu0 %6134
    %6136 = vrot.lane.b32.xlu0 %v5570, 64
    %v6137 = vpop.permute.xlu0 %6136
    %6138 = vrot.lane.b32.xlu0 %v5571, 64
    %v6139 = vpop.permute.xlu0 %6138
    %6140 = vrot.lane.b32.xlu0 %v5572, 64
    %v6141 = vpop.permute.xlu0 %6140
    %6142 = vrot.lane.b32.xlu0 %v5573, 64
    %v6143 = vpop.permute.xlu0 %6142
    %6144 = vrot.lane.b32.xlu0 %v5574, 64
    %v6145 = vpop.permute.xlu0 %6144
    %6146 = vrot.lane.b32.xlu0 %v5575, 64
    %v6147 = vpop.permute.xlu0 %6146
    %6148 = vrot.lane.b32.xlu0 %v5576, 64
    %v6149 = vpop.permute.xlu0 %6148
    %6150 = vrot.lane.b32.xlu0 %v5577, 64
    %v6151 = vpop.permute.xlu0 %6150
    %6152 = vrot.lane.b32.xlu0 %v5578, 64
    %v6153 = vpop.permute.xlu0 %6152
    %6154 = vrot.lane.b32.xlu0 %v5579, 64
    %v6155 = vpop.permute.xlu0 %6154
    %v6220 = vmul.f32 %v5389, %v6029
    %v6221 = vmul.f32 %v5391, %v6031
    %v6222 = vmul.f32 %v5393, %v6033
    %v6223 = vmul.f32 %v5395, %v6035
    %v6224 = vmul.f32 %v5397, %v6037
    %v6225 = vmul.f32 %v5399, %v6039
    %v6226 = vmul.f32 %v5401, %v6041
    %v6227 = vmul.f32 %v5403, %v6043
    %v6228 = vmul.f32 %v5405, %v6045
    %v6229 = vmul.f32 %v5407, %v6047
    %v6230 = vmul.f32 %v5409, %v6049
    %v6231 = vmul.f32 %v5411, %v6051
    %v6232 = vmul.f32 %v5413, %v6053
    %v6233 = vmul.f32 %v5415, %v6055
    %v6234 = vmul.f32 %v5417, %v6057
    %v6235 = vmul.f32 %v5419, %v6059
    %v6236 = vmul.f32 %v5421, %v6061
    %v6237 = vmul.f32 %v5423, %v6063
    %v6238 = vmul.f32 %v5425, %v6065
    %v6239 = vmul.f32 %v5427, %v6067
    %v6240 = vmul.f32 %v5429, %v6069
    %v6241 = vmul.f32 %v5431, %v6071
    %v6242 = vmul.f32 %v5433, %v6073
    %v6243 = vmul.f32 %v5435, %v6075
    %v6244 = vmul.f32 %v5437, %v6077
    %v6245 = vmul.f32 %v5439, %v6079
    %v6246 = vmul.f32 %v5441, %v6081
    %v6247 = vmul.f32 %v5443, %v6083
    %v6248 = vmul.f32 %v5445, %v6085
    %v6249 = vmul.f32 %v5447, %v6087
    %v6250 = vmul.f32 %v5449, %v6089
    %v6251 = vmul.f32 %v5451, %v6091
    %v6252 = vmul.f32 %v5453, %v6093
    %v6253 = vmul.f32 %v5455, %v6095
    %v6254 = vmul.f32 %v5457, %v6097
    %v6255 = vmul.f32 %v5459, %v6099
    %v6256 = vmul.f32 %v5461, %v6101
    %v6257 = vmul.f32 %v5463, %v6103
    %v6258 = vmul.f32 %v5465, %v6105
    %v6259 = vmul.f32 %v5467, %v6107
    %v6260 = vmul.f32 %v5469, %v6109
    %v6261 = vmul.f32 %v5471, %v6111
    %v6262 = vmul.f32 %v5473, %v6113
    %v6263 = vmul.f32 %v5475, %v6115
    %v6264 = vmul.f32 %v5477, %v6117
    %v6265 = vmul.f32 %v5479, %v6119
    %v6266 = vmul.f32 %v5481, %v6121
    %v6267 = vmul.f32 %v5483, %v6123
    %v6268 = vmul.f32 %v5485, %v6125
    %v6269 = vmul.f32 %v5487, %v6127
    %v6270 = vmul.f32 %v5489, %v6129
    %v6271 = vmul.f32 %v5491, %v6131
    %v6272 = vmul.f32 %v5493, %v6133
    %v6273 = vmul.f32 %v5495, %v6135
    %v6274 = vmul.f32 %v5497, %v6137
    %v6275 = vmul.f32 %v5499, %v6139
    %v6276 = vmul.f32 %v5501, %v6141
    %v6277 = vmul.f32 %v5503, %v6143
    %v6278 = vmul.f32 %v5505, %v6145
    %v6279 = vmul.f32 %v5507, %v6147
    %v6280 = vmul.f32 %v5509, %v6149
    %v6281 = vmul.f32 %v5511, %v6151
    %v6282 = vmul.f32 %v5513, %v6153
    %v6283 = vmul.f32 %v5515, %v6155
    %6348 = vrot.lane.b32.xlu0 %v6220, 32
    %v6349 = vpop.permute.xlu0 %6348
    %6350 = vrot.lane.b32.xlu0 %v6221, 32
    %v6351 = vpop.permute.xlu0 %6350
    %6352 = vrot.lane.b32.xlu0 %v6222, 32
    %v6353 = vpop.permute.xlu0 %6352
    %6354 = vrot.lane.b32.xlu0 %v6223, 32
    %v6355 = vpop.permute.xlu0 %6354
    %6356 = vrot.lane.b32.xlu0 %v6224, 32
    %v6357 = vpop.permute.xlu0 %6356
    %6358 = vrot.lane.b32.xlu0 %v6225, 32
    %v6359 = vpop.permute.xlu0 %6358
    %6360 = vrot.lane.b32.xlu0 %v6226, 32
    %v6361 = vpop.permute.xlu0 %6360
    %6362 = vrot.lane.b32.xlu0 %v6227, 32
    %v6363 = vpop.permute.xlu0 %6362
    %6364 = vrot.lane.b32.xlu0 %v6228, 32
    %v6365 = vpop.permute.xlu0 %6364
    %6366 = vrot.lane.b32.xlu0 %v6229, 32
    %v6367 = vpop.permute.xlu0 %6366
    %6368 = vrot.lane.b32.xlu0 %v6230, 32
    %v6369 = vpop.permute.xlu0 %6368
    %6370 = vrot.lane.b32.xlu0 %v6231, 32
    %v6371 = vpop.permute.xlu0 %6370
    %6372 = vrot.lane.b32.xlu0 %v6232, 32
    %v6373 = vpop.permute.xlu0 %6372
    %6374 = vrot.lane.b32.xlu0 %v6233, 32
    %v6375 = vpop.permute.xlu0 %6374
    %6376 = vrot.lane.b32.xlu0 %v6234, 32
    %v6377 = vpop.permute.xlu0 %6376
    %6378 = vrot.lane.b32.xlu0 %v6235, 32
    %v6379 = vpop.permute.xlu0 %6378
    %6380 = vrot.lane.b32.xlu0 %v6236, 32
    %v6381 = vpop.permute.xlu0 %6380
    %6382 = vrot.lane.b32.xlu0 %v6237, 32
    %v6383 = vpop.permute.xlu0 %6382
    %6384 = vrot.lane.b32.xlu0 %v6238, 32
    %v6385 = vpop.permute.xlu0 %6384
    %6386 = vrot.lane.b32.xlu0 %v6239, 32
    %v6387 = vpop.permute.xlu0 %6386
    %6388 = vrot.lane.b32.xlu0 %v6240, 32
    %v6389 = vpop.permute.xlu0 %6388
    %6390 = vrot.lane.b32.xlu0 %v6241, 32
    %v6391 = vpop.permute.xlu0 %6390
    %6392 = vrot.lane.b32.xlu0 %v6242, 32
    %v6393 = vpop.permute.xlu0 %6392
    %6394 = vrot.lane.b32.xlu0 %v6243, 32
    %v6395 = vpop.permute.xlu0 %6394
    %6396 = vrot.lane.b32.xlu0 %v6244, 32
    %v6397 = vpop.permute.xlu0 %6396
    %6398 = vrot.lane.b32.xlu0 %v6245, 32
    %v6399 = vpop.permute.xlu0 %6398
    %6400 = vrot.lane.b32.xlu0 %v6246, 32
    %v6401 = vpop.permute.xlu0 %6400
    %6402 = vrot.lane.b32.xlu0 %v6247, 32
    %v6403 = vpop.permute.xlu0 %6402
    %6404 = vrot.lane.b32.xlu0 %v6248, 32
    %v6405 = vpop.permute.xlu0 %6404
    %6406 = vrot.lane.b32.xlu0 %v6249, 32
    %v6407 = vpop.permute.xlu0 %6406
    %6408 = vrot.lane.b32.xlu0 %v6250, 32
    %v6409 = vpop.permute.xlu0 %6408
    %6410 = vrot.lane.b32.xlu0 %v6251, 32
    %v6411 = vpop.permute.xlu0 %6410
    %6412 = vrot.lane.b32.xlu0 %v6252, 32
    %v6413 = vpop.permute.xlu0 %6412
    %6414 = vrot.lane.b32.xlu0 %v6253, 32
    %v6415 = vpop.permute.xlu0 %6414
    %6416 = vrot.lane.b32.xlu0 %v6254, 32
    %v6417 = vpop.permute.xlu0 %6416
    %6418 = vrot.lane.b32.xlu0 %v6255, 32
    %v6419 = vpop.permute.xlu0 %6418
    %6420 = vrot.lane.b32.xlu0 %v6256, 32
    %v6421 = vpop.permute.xlu0 %6420
    %6422 = vrot.lane.b32.xlu0 %v6257, 32
    %v6423 = vpop.permute.xlu0 %6422
    %6424 = vrot.lane.b32.xlu0 %v6258, 32
    %v6425 = vpop.permute.xlu0 %6424
    %6426 = vrot.lane.b32.xlu0 %v6259, 32
    %v6427 = vpop.permute.xlu0 %6426
    %6428 = vrot.lane.b32.xlu0 %v6260, 32
    %v6429 = vpop.permute.xlu0 %6428
    %6430 = vrot.lane.b32.xlu0 %v6261, 32
    %v6431 = vpop.permute.xlu0 %6430
    %6432 = vrot.lane.b32.xlu0 %v6262, 32
    %v6433 = vpop.permute.xlu0 %6432
    %6434 = vrot.lane.b32.xlu0 %v6263, 32
    %v6435 = vpop.permute.xlu0 %6434
    %6436 = vrot.lane.b32.xlu0 %v6264, 32
    %v6437 = vpop.permute.xlu0 %6436
    %6438 = vrot.lane.b32.xlu0 %v6265, 32
    %v6439 = vpop.permute.xlu0 %6438
    %6440 = vrot.lane.b32.xlu0 %v6266, 32
    %v6441 = vpop.permute.xlu0 %6440
    %6442 = vrot.lane.b32.xlu0 %v6267, 32
    %v6443 = vpop.permute.xlu0 %6442
    %6444 = vrot.lane.b32.xlu0 %v6268, 32
    %v6445 = vpop.permute.xlu0 %6444
    %6446 = vrot.lane.b32.xlu0 %v6269, 32
    %v6447 = vpop.permute.xlu0 %6446
    %6448 = vrot.lane.b32.xlu0 %v6270, 32
    %v6449 = vpop.permute.xlu0 %6448
    %6450 = vrot.lane.b32.xlu0 %v6271, 32
    %v6451 = vpop.permute.xlu0 %6450
    %6452 = vrot.lane.b32.xlu0 %v6272, 32
    %v6453 = vpop.permute.xlu0 %6452
    %6454 = vrot.lane.b32.xlu0 %v6273, 32
    %v6455 = vpop.permute.xlu0 %6454
    %6456 = vrot.lane.b32.xlu0 %v6274, 32
    %v6457 = vpop.permute.xlu0 %6456
    %6458 = vrot.lane.b32.xlu0 %v6275, 32
    %v6459 = vpop.permute.xlu0 %6458
    %6460 = vrot.lane.b32.xlu0 %v6276, 32
    %v6461 = vpop.permute.xlu0 %6460
    %6462 = vrot.lane.b32.xlu0 %v6277, 32
    %v6463 = vpop.permute.xlu0 %6462
    %6464 = vrot.lane.b32.xlu0 %v6278, 32
    %v6465 = vpop.permute.xlu0 %6464
    %6466 = vrot.lane.b32.xlu0 %v6279, 32
    %v6467 = vpop.permute.xlu0 %6466
    %6468 = vrot.lane.b32.xlu0 %v6280, 32
    %v6469 = vpop.permute.xlu0 %6468
    %6470 = vrot.lane.b32.xlu0 %v6281, 32
    %v6471 = vpop.permute.xlu0 %6470
    %6472 = vrot.lane.b32.xlu0 %v6282, 32
    %v6473 = vpop.permute.xlu0 %6472
    %6474 = vrot.lane.b32.xlu0 %v6283, 32
    %v6475 = vpop.permute.xlu0 %6474
    %v6540 = vadd.f32 %v5900, %v6349
    %v6541 = vadd.f32 %v5901, %v6351
    %v6542 = vadd.f32 %v5902, %v6353
    %v6543 = vadd.f32 %v5903, %v6355
    %v6544 = vadd.f32 %v5904, %v6357
    %v6545 = vadd.f32 %v5905, %v6359
    %v6546 = vadd.f32 %v5906, %v6361
    %v6547 = vadd.f32 %v5907, %v6363
    %v6548 = vadd.f32 %v5908, %v6365
    %v6549 = vadd.f32 %v5909, %v6367
    %v6550 = vadd.f32 %v5910, %v6369
    %v6551 = vadd.f32 %v5911, %v6371
    %v6552 = vadd.f32 %v5912, %v6373
    %v6553 = vadd.f32 %v5913, %v6375
    %v6554 = vadd.f32 %v5914, %v6377
    %v6555 = vadd.f32 %v5915, %v6379
    %v6556 = vadd.f32 %v5916, %v6381
    %v6557 = vadd.f32 %v5917, %v6383
    %v6558 = vadd.f32 %v5918, %v6385
    %v6559 = vadd.f32 %v5919, %v6387
    %v6560 = vadd.f32 %v5920, %v6389
    %v6561 = vadd.f32 %v5921, %v6391
    %v6562 = vadd.f32 %v5922, %v6393
    %v6563 = vadd.f32 %v5923, %v6395
    %v6564 = vadd.f32 %v5924, %v6397
    %v6565 = vadd.f32 %v5925, %v6399
    %v6566 = vadd.f32 %v5926, %v6401
    %v6567 = vadd.f32 %v5927, %v6403
    %v6568 = vadd.f32 %v5928, %v6405
    %v6569 = vadd.f32 %v5929, %v6407
    %v6570 = vadd.f32 %v5930, %v6409
    %v6571 = vadd.f32 %v5931, %v6411
    %v6572 = vadd.f32 %v5932, %v6413
    %v6573 = vadd.f32 %v5933, %v6415
    %v6574 = vadd.f32 %v5934, %v6417
    %v6575 = vadd.f32 %v5935, %v6419
    %v6576 = vadd.f32 %v5936, %v6421
    %v6577 = vadd.f32 %v5937, %v6423
    %v6578 = vadd.f32 %v5938, %v6425
    %v6579 = vadd.f32 %v5939, %v6427
    %v6580 = vadd.f32 %v5940, %v6429
    %v6581 = vadd.f32 %v5941, %v6431
    %v6582 = vadd.f32 %v5942, %v6433
    %v6583 = vadd.f32 %v5943, %v6435
    %v6584 = vadd.f32 %v5944, %v6437
    %v6585 = vadd.f32 %v5945, %v6439
    %v6586 = vadd.f32 %v5946, %v6441
    %v6587 = vadd.f32 %v5947, %v6443
    %v6588 = vadd.f32 %v5948, %v6445
    %v6589 = vadd.f32 %v5949, %v6447
    %v6590 = vadd.f32 %v5950, %v6449
    %v6591 = vadd.f32 %v5951, %v6451
    %v6592 = vadd.f32 %v5952, %v6453
    %v6593 = vadd.f32 %v5953, %v6455
    %v6594 = vadd.f32 %v5954, %v6457
    %v6595 = vadd.f32 %v5955, %v6459
    %v6596 = vadd.f32 %v5956, %v6461
    %v6597 = vadd.f32 %v5957, %v6463
    %v6598 = vadd.f32 %v5958, %v6465
    %v6599 = vadd.f32 %v5959, %v6467
    %v6600 = vadd.f32 %v5960, %v6469
    %v6601 = vadd.f32 %v5961, %v6471
    %v6602 = vadd.f32 %v5962, %v6473
    %v6603 = vadd.f32 %v5963, %v6475
    %v6604 = vtanh.pop %v6540
    %v6605 = vtanh.pop %v6541
    %v6606 = vtanh.pop %v6542
    %v6607 = vtanh.pop %v6543
    %v6608 = vtanh.pop %v6544
    %v6609 = vtanh.pop %v6545
    %v6610 = vtanh.pop %v6546
    %v6611 = vtanh.pop %v6547
    %v6612 = vtanh.pop %v6548
    %v6613 = vtanh.pop %v6549
    %v6614 = vtanh.pop %v6550
    %v6615 = vtanh.pop %v6551
    %v6616 = vtanh.pop %v6552
    %v6617 = vtanh.pop %v6553
    %v6618 = vtanh.pop %v6554
    %v6619 = vtanh.pop %v6555
    %v6620 = vtanh.pop %v6556
    %v6621 = vtanh.pop %v6557
    %v6622 = vtanh.pop %v6558
    %v6623 = vtanh.pop %v6559
    %v6624 = vtanh.pop %v6560
    %v6625 = vtanh.pop %v6561
    %v6626 = vtanh.pop %v6562
    %v6627 = vtanh.pop %v6563
    %v6628 = vtanh.pop %v6564
    %v6629 = vtanh.pop %v6565
    %v6630 = vtanh.pop %v6566
    %v6631 = vtanh.pop %v6567
    %v6632 = vtanh.pop %v6568
    %v6633 = vtanh.pop %v6569
    %v6634 = vtanh.pop %v6570
    %v6635 = vtanh.pop %v6571
    %v6636 = vtanh.pop %v6572
    %v6637 = vtanh.pop %v6573
    %v6638 = vtanh.pop %v6574
    %v6639 = vtanh.pop %v6575
    %v6640 = vtanh.pop %v6576
    %v6641 = vtanh.pop %v6577
    %v6642 = vtanh.pop %v6578
    %v6643 = vtanh.pop %v6579
    %v6644 = vtanh.pop %v6580
    %v6645 = vtanh.pop %v6581
    %v6646 = vtanh.pop %v6582
    %v6647 = vtanh.pop %v6583
    %v6648 = vtanh.pop %v6584
    %v6649 = vtanh.pop %v6585
    %v6650 = vtanh.pop %v6586
    %v6651 = vtanh.pop %v6587
    %v6652 = vtanh.pop %v6588
    %v6653 = vtanh.pop %v6589
    %v6654 = vtanh.pop %v6590
    %v6655 = vtanh.pop %v6591
    %v6656 = vtanh.pop %v6592
    %v6657 = vtanh.pop %v6593
    %v6658 = vtanh.pop %v6594
    %v6659 = vtanh.pop %v6595
    %v6660 = vtanh.pop %v6596
    %v6661 = vtanh.pop %v6597
    %v6662 = vtanh.pop %v6598
    %v6663 = vtanh.pop %v6599
    %v6664 = vtanh.pop %v6600
    %v6665 = vtanh.pop %v6601
    %v6666 = vtanh.pop %v6602
    %v6667 = vtanh.pop %v6603
    %6732 = vrot.lane.b32.xlu0 %v6604, 64
    %v6733 = vpop.permute.xlu0 %6732
    %6734 = vrot.lane.b32.xlu0 %v6605, 64
    %v6735 = vpop.permute.xlu0 %6734
    %6736 = vrot.lane.b32.xlu0 %v6606, 64
    %v6737 = vpop.permute.xlu0 %6736
    %6738 = vrot.lane.b32.xlu0 %v6607, 64
    %v6739 = vpop.permute.xlu0 %6738
    %6740 = vrot.lane.b32.xlu0 %v6608, 64
    %v6741 = vpop.permute.xlu0 %6740
    %6742 = vrot.lane.b32.xlu0 %v6609, 64
    %v6743 = vpop.permute.xlu0 %6742
    %6744 = vrot.lane.b32.xlu0 %v6610, 64
    %v6745 = vpop.permute.xlu0 %6744
    %6746 = vrot.lane.b32.xlu0 %v6611, 64
    %v6747 = vpop.permute.xlu0 %6746
    %6748 = vrot.lane.b32.xlu0 %v6612, 64
    %v6749 = vpop.permute.xlu0 %6748
    %6750 = vrot.lane.b32.xlu0 %v6613, 64
    %v6751 = vpop.permute.xlu0 %6750
    %6752 = vrot.lane.b32.xlu0 %v6614, 64
    %v6753 = vpop.permute.xlu0 %6752
    %6754 = vrot.lane.b32.xlu0 %v6615, 64
    %v6755 = vpop.permute.xlu0 %6754
    %6756 = vrot.lane.b32.xlu0 %v6616, 64
    %v6757 = vpop.permute.xlu0 %6756
    %6758 = vrot.lane.b32.xlu0 %v6617, 64
    %v6759 = vpop.permute.xlu0 %6758
    %6760 = vrot.lane.b32.xlu0 %v6618, 64
    %v6761 = vpop.permute.xlu0 %6760
    %6762 = vrot.lane.b32.xlu0 %v6619, 64
    %v6763 = vpop.permute.xlu0 %6762
    %6764 = vrot.lane.b32.xlu0 %v6620, 64
    %v6765 = vpop.permute.xlu0 %6764
    %6766 = vrot.lane.b32.xlu0 %v6621, 64
    %v6767 = vpop.permute.xlu0 %6766
    %6768 = vrot.lane.b32.xlu0 %v6622, 64
    %v6769 = vpop.permute.xlu0 %6768
    %6770 = vrot.lane.b32.xlu0 %v6623, 64
    %v6771 = vpop.permute.xlu0 %6770
    %6772 = vrot.lane.b32.xlu0 %v6624, 64
    %v6773 = vpop.permute.xlu0 %6772
    %6774 = vrot.lane.b32.xlu0 %v6625, 64
    %v6775 = vpop.permute.xlu0 %6774
    %6776 = vrot.lane.b32.xlu0 %v6626, 64
    %v6777 = vpop.permute.xlu0 %6776
    %6778 = vrot.lane.b32.xlu0 %v6627, 64
    %v6779 = vpop.permute.xlu0 %6778
    %6780 = vrot.lane.b32.xlu0 %v6628, 64
    %v6781 = vpop.permute.xlu0 %6780
    %6782 = vrot.lane.b32.xlu0 %v6629, 64
    %v6783 = vpop.permute.xlu0 %6782
    %6784 = vrot.lane.b32.xlu0 %v6630, 64
    %v6785 = vpop.permute.xlu0 %6784
    %6786 = vrot.lane.b32.xlu0 %v6631, 64
    %v6787 = vpop.permute.xlu0 %6786
    %6788 = vrot.lane.b32.xlu0 %v6632, 64
    %v6789 = vpop.permute.xlu0 %6788
    %6790 = vrot.lane.b32.xlu0 %v6633, 64
    %v6791 = vpop.permute.xlu0 %6790
    %6792 = vrot.lane.b32.xlu0 %v6634, 64
    %v6793 = vpop.permute.xlu0 %6792
    %6794 = vrot.lane.b32.xlu0 %v6635, 64
    %v6795 = vpop.permute.xlu0 %6794
    %6796 = vrot.lane.b32.xlu0 %v6636, 64
    %v6797 = vpop.permute.xlu0 %6796
    %6798 = vrot.lane.b32.xlu0 %v6637, 64
    %v6799 = vpop.permute.xlu0 %6798
    %6800 = vrot.lane.b32.xlu0 %v6638, 64
    %v6801 = vpop.permute.xlu0 %6800
    %6802 = vrot.lane.b32.xlu0 %v6639, 64
    %v6803 = vpop.permute.xlu0 %6802
    %6804 = vrot.lane.b32.xlu0 %v6640, 64
    %v6805 = vpop.permute.xlu0 %6804
    %6806 = vrot.lane.b32.xlu0 %v6641, 64
    %v6807 = vpop.permute.xlu0 %6806
    %6808 = vrot.lane.b32.xlu0 %v6642, 64
    %v6809 = vpop.permute.xlu0 %6808
    %6810 = vrot.lane.b32.xlu0 %v6643, 64
    %v6811 = vpop.permute.xlu0 %6810
    %6812 = vrot.lane.b32.xlu0 %v6644, 64
    %v6813 = vpop.permute.xlu0 %6812
    %6814 = vrot.lane.b32.xlu0 %v6645, 64
    %v6815 = vpop.permute.xlu0 %6814
    %6816 = vrot.lane.b32.xlu0 %v6646, 64
    %v6817 = vpop.permute.xlu0 %6816
    %6818 = vrot.lane.b32.xlu0 %v6647, 64
    %v6819 = vpop.permute.xlu0 %6818
    %6820 = vrot.lane.b32.xlu0 %v6648, 64
    %v6821 = vpop.permute.xlu0 %6820
    %6822 = vrot.lane.b32.xlu0 %v6649, 64
    %v6823 = vpop.permute.xlu0 %6822
    %6824 = vrot.lane.b32.xlu0 %v6650, 64
    %v6825 = vpop.permute.xlu0 %6824
    %6826 = vrot.lane.b32.xlu0 %v6651, 64
    %v6827 = vpop.permute.xlu0 %6826
    %6828 = vrot.lane.b32.xlu0 %v6652, 64
    %v6829 = vpop.permute.xlu0 %6828
    %6830 = vrot.lane.b32.xlu0 %v6653, 64
    %v6831 = vpop.permute.xlu0 %6830
    %6832 = vrot.lane.b32.xlu0 %v6654, 64
    %v6833 = vpop.permute.xlu0 %6832
    %6834 = vrot.lane.b32.xlu0 %v6655, 64
    %v6835 = vpop.permute.xlu0 %6834
    %6836 = vrot.lane.b32.xlu0 %v6656, 64
    %v6837 = vpop.permute.xlu0 %6836
    %6838 = vrot.lane.b32.xlu0 %v6657, 64
    %v6839 = vpop.permute.xlu0 %6838
    %6840 = vrot.lane.b32.xlu0 %v6658, 64
    %v6841 = vpop.permute.xlu0 %6840
    %6842 = vrot.lane.b32.xlu0 %v6659, 64
    %v6843 = vpop.permute.xlu0 %6842
    %6844 = vrot.lane.b32.xlu0 %v6660, 64
    %v6845 = vpop.permute.xlu0 %6844
    %6846 = vrot.lane.b32.xlu0 %v6661, 64
    %v6847 = vpop.permute.xlu0 %6846
    %6848 = vrot.lane.b32.xlu0 %v6662, 64
    %v6849 = vpop.permute.xlu0 %6848
    %6850 = vrot.lane.b32.xlu0 %v6663, 64
    %v6851 = vpop.permute.xlu0 %6850
    %6852 = vrot.lane.b32.xlu0 %v6664, 64
    %v6853 = vpop.permute.xlu0 %6852
    %6854 = vrot.lane.b32.xlu0 %v6665, 64
    %v6855 = vpop.permute.xlu0 %6854
    %6856 = vrot.lane.b32.xlu0 %v6666, 64
    %v6857 = vpop.permute.xlu0 %6856
    %6858 = vrot.lane.b32.xlu0 %v6667, 64
    %v6859 = vpop.permute.xlu0 %6858
    %v6924 = vmul.f32 %v5389, %v6733
    %v6925 = vmul.f32 %v5391, %v6735
    %v6926 = vmul.f32 %v5393, %v6737
    %v6927 = vmul.f32 %v5395, %v6739
    %v6928 = vmul.f32 %v5397, %v6741
    %v6929 = vmul.f32 %v5399, %v6743
    %v6930 = vmul.f32 %v5401, %v6745
    %v6931 = vmul.f32 %v5403, %v6747
    %v6932 = vmul.f32 %v5405, %v6749
    %v6933 = vmul.f32 %v5407, %v6751
    %v6934 = vmul.f32 %v5409, %v6753
    %v6935 = vmul.f32 %v5411, %v6755
    %v6936 = vmul.f32 %v5413, %v6757
    %v6937 = vmul.f32 %v5415, %v6759
    %v6938 = vmul.f32 %v5417, %v6761
    %v6939 = vmul.f32 %v5419, %v6763
    %v6940 = vmul.f32 %v5421, %v6765
    %v6941 = vmul.f32 %v5423, %v6767
    %v6942 = vmul.f32 %v5425, %v6769
    %v6943 = vmul.f32 %v5427, %v6771
    %v6944 = vmul.f32 %v5429, %v6773
    %v6945 = vmul.f32 %v5431, %v6775
    %v6946 = vmul.f32 %v5433, %v6777
    %v6947 = vmul.f32 %v5435, %v6779
    %v6948 = vmul.f32 %v5437, %v6781
    %v6949 = vmul.f32 %v5439, %v6783
    %v6950 = vmul.f32 %v5441, %v6785
    %v6951 = vmul.f32 %v5443, %v6787
    %v6952 = vmul.f32 %v5445, %v6789
    %v6953 = vmul.f32 %v5447, %v6791
    %v6954 = vmul.f32 %v5449, %v6793
    %v6955 = vmul.f32 %v5451, %v6795
    %v6956 = vmul.f32 %v5453, %v6797
    %v6957 = vmul.f32 %v5455, %v6799
    %v6958 = vmul.f32 %v5457, %v6801
    %v6959 = vmul.f32 %v5459, %v6803
    %v6960 = vmul.f32 %v5461, %v6805
    %v6961 = vmul.f32 %v5463, %v6807
    %v6962 = vmul.f32 %v5465, %v6809
    %v6963 = vmul.f32 %v5467, %v6811
    %v6964 = vmul.f32 %v5469, %v6813
    %v6965 = vmul.f32 %v5471, %v6815
    %v6966 = vmul.f32 %v5473, %v6817
    %v6967 = vmul.f32 %v5475, %v6819
    %v6968 = vmul.f32 %v5477, %v6821
    %v6969 = vmul.f32 %v5479, %v6823
    %v6970 = vmul.f32 %v5481, %v6825
    %v6971 = vmul.f32 %v5483, %v6827
    %v6972 = vmul.f32 %v5485, %v6829
    %v6973 = vmul.f32 %v5487, %v6831
    %v6974 = vmul.f32 %v5489, %v6833
    %v6975 = vmul.f32 %v5491, %v6835
    %v6976 = vmul.f32 %v5493, %v6837
    %v6977 = vmul.f32 %v5495, %v6839
    %v6978 = vmul.f32 %v5497, %v6841
    %v6979 = vmul.f32 %v5499, %v6843
    %v6980 = vmul.f32 %v5501, %v6845
    %v6981 = vmul.f32 %v5503, %v6847
    %v6982 = vmul.f32 %v5505, %v6849
    %v6983 = vmul.f32 %v5507, %v6851
    %v6984 = vmul.f32 %v5509, %v6853
    %v6985 = vmul.f32 %v5511, %v6855
    %v6986 = vmul.f32 %v5513, %v6857
    %v6987 = vmul.f32 %v5515, %v6859
    %7052 = vrot.lane.b32.xlu0 %v6540, 96
    %v7053 = vpop.permute.xlu0 %7052
    %7054 = vrot.lane.b32.xlu0 %v6541, 96
    %v7055 = vpop.permute.xlu0 %7054
    %7056 = vrot.lane.b32.xlu0 %v6542, 96
    %v7057 = vpop.permute.xlu0 %7056
    %7058 = vrot.lane.b32.xlu0 %v6543, 96
    %v7059 = vpop.permute.xlu0 %7058
    %7060 = vrot.lane.b32.xlu0 %v6544, 96
    %v7061 = vpop.permute.xlu0 %7060
    %7062 = vrot.lane.b32.xlu0 %v6545, 96
    %v7063 = vpop.permute.xlu0 %7062
    %7064 = vrot.lane.b32.xlu0 %v6546, 96
    %v7065 = vpop.permute.xlu0 %7064
    %7066 = vrot.lane.b32.xlu0 %v6547, 96
    %v7067 = vpop.permute.xlu0 %7066
    %7068 = vrot.lane.b32.xlu0 %v6548, 96
    %v7069 = vpop.permute.xlu0 %7068
    %7070 = vrot.lane.b32.xlu0 %v6549, 96
    %v7071 = vpop.permute.xlu0 %7070
    %7072 = vrot.lane.b32.xlu0 %v6550, 96
    %v7073 = vpop.permute.xlu0 %7072
    %7074 = vrot.lane.b32.xlu0 %v6551, 96
    %v7075 = vpop.permute.xlu0 %7074
    %7076 = vrot.lane.b32.xlu0 %v6552, 96
    %v7077 = vpop.permute.xlu0 %7076
    %7078 = vrot.lane.b32.xlu0 %v6553, 96
    %v7079 = vpop.permute.xlu0 %7078
    %7080 = vrot.lane.b32.xlu0 %v6554, 96
    %v7081 = vpop.permute.xlu0 %7080
    %7082 = vrot.lane.b32.xlu0 %v6555, 96
    %v7083 = vpop.permute.xlu0 %7082
    %7084 = vrot.lane.b32.xlu0 %v6556, 96
    %v7085 = vpop.permute.xlu0 %7084
    %7086 = vrot.lane.b32.xlu0 %v6557, 96
    %v7087 = vpop.permute.xlu0 %7086
    %7088 = vrot.lane.b32.xlu0 %v6558, 96
    %v7089 = vpop.permute.xlu0 %7088
    %7090 = vrot.lane.b32.xlu0 %v6559, 96
    %v7091 = vpop.permute.xlu0 %7090
    %7092 = vrot.lane.b32.xlu0 %v6560, 96
    %v7093 = vpop.permute.xlu0 %7092
    %7094 = vrot.lane.b32.xlu0 %v6561, 96
    %v7095 = vpop.permute.xlu0 %7094
    %7096 = vrot.lane.b32.xlu0 %v6562, 96
    %v7097 = vpop.permute.xlu0 %7096
    %7098 = vrot.lane.b32.xlu0 %v6563, 96
    %v7099 = vpop.permute.xlu0 %7098
    %7100 = vrot.lane.b32.xlu0 %v6564, 96
    %v7101 = vpop.permute.xlu0 %7100
    %7102 = vrot.lane.b32.xlu0 %v6565, 96
    %v7103 = vpop.permute.xlu0 %7102
    %7104 = vrot.lane.b32.xlu0 %v6566, 96
    %v7105 = vpop.permute.xlu0 %7104
    %7106 = vrot.lane.b32.xlu0 %v6567, 96
    %v7107 = vpop.permute.xlu0 %7106
    %7108 = vrot.lane.b32.xlu0 %v6568, 96
    %v7109 = vpop.permute.xlu0 %7108
    %7110 = vrot.lane.b32.xlu0 %v6569, 96
    %v7111 = vpop.permute.xlu0 %7110
    %7112 = vrot.lane.b32.xlu0 %v6570, 96
    %v7113 = vpop.permute.xlu0 %7112
    %7114 = vrot.lane.b32.xlu0 %v6571, 96
    %v7115 = vpop.permute.xlu0 %7114
    %7116 = vrot.lane.b32.xlu0 %v6572, 96
    %v7117 = vpop.permute.xlu0 %7116
    %7118 = vrot.lane.b32.xlu0 %v6573, 96
    %v7119 = vpop.permute.xlu0 %7118
    %7120 = vrot.lane.b32.xlu0 %v6574, 96
    %v7121 = vpop.permute.xlu0 %7120
    %7122 = vrot.lane.b32.xlu0 %v6575, 96
    %v7123 = vpop.permute.xlu0 %7122
    %7124 = vrot.lane.b32.xlu0 %v6576, 96
    %v7125 = vpop.permute.xlu0 %7124
    %7126 = vrot.lane.b32.xlu0 %v6577, 96
    %v7127 = vpop.permute.xlu0 %7126
    %7128 = vrot.lane.b32.xlu0 %v6578, 96
    %v7129 = vpop.permute.xlu0 %7128
    %7130 = vrot.lane.b32.xlu0 %v6579, 96
    %v7131 = vpop.permute.xlu0 %7130
    %7132 = vrot.lane.b32.xlu0 %v6580, 96
    %v7133 = vpop.permute.xlu0 %7132
    %7134 = vrot.lane.b32.xlu0 %v6581, 96
    %v7135 = vpop.permute.xlu0 %7134
    %7136 = vrot.lane.b32.xlu0 %v6582, 96
    %v7137 = vpop.permute.xlu0 %7136
    %7138 = vrot.lane.b32.xlu0 %v6583, 96
    %v7139 = vpop.permute.xlu0 %7138
    %7140 = vrot.lane.b32.xlu0 %v6584, 96
    %v7141 = vpop.permute.xlu0 %7140
    %7142 = vrot.lane.b32.xlu0 %v6585, 96
    %v7143 = vpop.permute.xlu0 %7142
    %7144 = vrot.lane.b32.xlu0 %v6586, 96
    %v7145 = vpop.permute.xlu0 %7144
    %7146 = vrot.lane.b32.xlu0 %v6587, 96
    %v7147 = vpop.permute.xlu0 %7146
    %7148 = vrot.lane.b32.xlu0 %v6588, 96
    %v7149 = vpop.permute.xlu0 %7148
    %7150 = vrot.lane.b32.xlu0 %v6589, 96
    %v7151 = vpop.permute.xlu0 %7150
    %7152 = vrot.lane.b32.xlu0 %v6590, 96
    %v7153 = vpop.permute.xlu0 %7152
    %7154 = vrot.lane.b32.xlu0 %v6591, 96
    %v7155 = vpop.permute.xlu0 %7154
    %7156 = vrot.lane.b32.xlu0 %v6592, 96
    %v7157 = vpop.permute.xlu0 %7156
    %7158 = vrot.lane.b32.xlu0 %v6593, 96
    %v7159 = vpop.permute.xlu0 %7158
    %7160 = vrot.lane.b32.xlu0 %v6594, 96
    %v7161 = vpop.permute.xlu0 %7160
    %7162 = vrot.lane.b32.xlu0 %v6595, 96
    %v7163 = vpop.permute.xlu0 %7162
    %7164 = vrot.lane.b32.xlu0 %v6596, 96
    %v7165 = vpop.permute.xlu0 %7164
    %7166 = vrot.lane.b32.xlu0 %v6597, 96
    %v7167 = vpop.permute.xlu0 %7166
    %7168 = vrot.lane.b32.xlu0 %v6598, 96
    %v7169 = vpop.permute.xlu0 %7168
    %7170 = vrot.lane.b32.xlu0 %v6599, 96
    %v7171 = vpop.permute.xlu0 %7170
    %7172 = vrot.lane.b32.xlu0 %v6600, 96
    %v7173 = vpop.permute.xlu0 %7172
    %7174 = vrot.lane.b32.xlu0 %v6601, 96
    %v7175 = vpop.permute.xlu0 %7174
    %7176 = vrot.lane.b32.xlu0 %v6602, 96
    %v7177 = vpop.permute.xlu0 %7176
    %7178 = vrot.lane.b32.xlu0 %v6603, 96
    %v7179 = vpop.permute.xlu0 %7178
    %7244 = vst.msk [vmem:[#allocation10] sm:$0xff] %vm2071, %v7053
    %7245 = vst.msk [vmem:[#allocation10 + $0x8] sm:$0xff] %vm2071, %v7055
    %7246 = vst.msk [vmem:[#allocation10 + $0x10] sm:$0xff] %vm2071, %v7057
    %7247 = vst.msk [vmem:[#allocation10 + $0x18] sm:$0xff] %vm2071, %v7059
    %7248 = vst.msk [vmem:[#allocation10 + $0x20] sm:$0xff] %vm2071, %v7061
    %7249 = vst.msk [vmem:[#allocation10 + $0x28] sm:$0xff] %vm2071, %v7063
    %7250 = vst.msk [vmem:[#allocation10 + $0x30] sm:$0xff] %vm2071, %v7065
    %7251 = vst.msk [vmem:[#allocation10 + $0x38] sm:$0xff] %vm2071, %v7067
    %7252 = vst.msk [vmem:[#allocation10 + $0x40] sm:$0xff] %vm2071, %v7069
    %7253 = vst.msk [vmem:[#allocation10 + $0x48] sm:$0xff] %vm2071, %v7071
    %7254 = vst.msk [vmem:[#allocation10 + $0x50] sm:$0xff] %vm2071, %v7073
    %7255 = vst.msk [vmem:[#allocation10 + $0x58] sm:$0xff] %vm2071, %v7075
    %7256 = vst.msk [vmem:[#allocation10 + $0x60] sm:$0xff] %vm2071, %v7077
    %7257 = vst.msk [vmem:[#allocation10 + $0x68] sm:$0xff] %vm2071, %v7079
    %7258 = vst.msk [vmem:[#allocation10 + $0x70] sm:$0xff] %vm2071, %v7081
    %7259 = vst.msk [vmem:[#allocation10 + $0x78] sm:$0xff] %vm2071, %v7083
    %7260 = vst.msk [vmem:[#allocation10 + $0x80] sm:$0xff] %vm2071, %v7085
    %7261 = vst.msk [vmem:[#allocation10 + $0x88] sm:$0xff] %vm2071, %v7087
    %7262 = vst.msk [vmem:[#allocation10 + $0x90] sm:$0xff] %vm2071, %v7089
    %7263 = vst.msk [vmem:[#allocation10 + $0x98] sm:$0xff] %vm2071, %v7091
    %7264 = vst.msk [vmem:[#allocation10 + $0xa0] sm:$0xff] %vm2071, %v7093
    %7265 = vst.msk [vmem:[#allocation10 + $0xa8] sm:$0xff] %vm2071, %v7095
    %7266 = vst.msk [vmem:[#allocation10 + $0xb0] sm:$0xff] %vm2071, %v7097
    %7267 = vst.msk [vmem:[#allocation10 + $0xb8] sm:$0xff] %vm2071, %v7099
    %7268 = vst.msk [vmem:[#allocation10 + $0xc0] sm:$0xff] %vm2071, %v7101
    %7269 = vst.msk [vmem:[#allocation10 + $0xc8] sm:$0xff] %vm2071, %v7103
    %7270 = vst.msk [vmem:[#allocation10 + $0xd0] sm:$0xff] %vm2071, %v7105
    %7271 = vst.msk [vmem:[#allocation10 + $0xd8] sm:$0xff] %vm2071, %v7107
    %7272 = vst.msk [vmem:[#allocation10 + $0xe0] sm:$0xff] %vm2071, %v7109
    %7273 = vst.msk [vmem:[#allocation10 + $0xe8] sm:$0xff] %vm2071, %v7111
    %7274 = vst.msk [vmem:[#allocation10 + $0xf0] sm:$0xff] %vm2071, %v7113
    %7275 = vst.msk [vmem:[#allocation10 + $0xf8] sm:$0xff] %vm2071, %v7115
    %7276 = vst.msk [vmem:[#allocation10 + $0x100] sm:$0xff] %vm2071, %v7117
    %7277 = vst.msk [vmem:[#allocation10 + $0x108] sm:$0xff] %vm2071, %v7119
    %7278 = vst.msk [vmem:[#allocation10 + $0x110] sm:$0xff] %vm2071, %v7121
    %7279 = vst.msk [vmem:[#allocation10 + $0x118] sm:$0xff] %vm2071, %v7123
    %7280 = vst.msk [vmem:[#allocation10 + $0x120] sm:$0xff] %vm2071, %v7125
    %7281 = vst.msk [vmem:[#allocation10 + $0x128] sm:$0xff] %vm2071, %v7127
    %7282 = vst.msk [vmem:[#allocation10 + $0x130] sm:$0xff] %vm2071, %v7129
    %7283 = vst.msk [vmem:[#allocation10 + $0x138] sm:$0xff] %vm2071, %v7131
    %7284 = vst.msk [vmem:[#allocation10 + $0x140] sm:$0xff] %vm2071, %v7133
    %7285 = vst.msk [vmem:[#allocation10 + $0x148] sm:$0xff] %vm2071, %v7135
    %7286 = vst.msk [vmem:[#allocation10 + $0x150] sm:$0xff] %vm2071, %v7137
    %7287 = vst.msk [vmem:[#allocation10 + $0x158] sm:$0xff] %vm2071, %v7139
    %7288 = vst.msk [vmem:[#allocation10 + $0x160] sm:$0xff] %vm2071, %v7141
    %7289 = vst.msk [vmem:[#allocation10 + $0x168] sm:$0xff] %vm2071, %v7143
    %7290 = vst.msk [vmem:[#allocation10 + $0x170] sm:$0xff] %vm2071, %v7145
    %7291 = vst.msk [vmem:[#allocation10 + $0x178] sm:$0xff] %vm2071, %v7147
    %7292 = vst.msk [vmem:[#allocation10 + $0x180] sm:$0xff] %vm2071, %v7149
    %7293 = vst.msk [vmem:[#allocation10 + $0x188] sm:$0xff] %vm2071, %v7151
    %7294 = vst.msk [vmem:[#allocation10 + $0x190] sm:$0xff] %vm2071, %v7153
    %7295 = vst.msk [vmem:[#allocation10 + $0x198] sm:$0xff] %vm2071, %v7155
    %7296 = vst.msk [vmem:[#allocation10 + $0x1a0] sm:$0xff] %vm2071, %v7157
    %7297 = vst.msk [vmem:[#allocation10 + $0x1a8] sm:$0xff] %vm2071, %v7159
    %7298 = vst.msk [vmem:[#allocation10 + $0x1b0] sm:$0xff] %vm2071, %v7161
    %7299 = vst.msk [vmem:[#allocation10 + $0x1b8] sm:$0xff] %vm2071, %v7163
    %7300 = vst.msk [vmem:[#allocation10 + $0x1c0] sm:$0xff] %vm2071, %v7165
    %7301 = vst.msk [vmem:[#allocation10 + $0x1c8] sm:$0xff] %vm2071, %v7167
    %7302 = vst.msk [vmem:[#allocation10 + $0x1d0] sm:$0xff] %vm2071, %v7169
    %7303 = vst.msk [vmem:[#allocation10 + $0x1d8] sm:$0xff] %vm2071, %v7171
    %7304 = vst.msk [vmem:[#allocation10 + $0x1e0] sm:$0xff] %vm2071, %v7173
    %7305 = vst.msk [vmem:[#allocation10 + $0x1e8] sm:$0xff] %vm2071, %v7175
    %7306 = vst.msk [vmem:[#allocation10 + $0x1f0] sm:$0xff] %vm2071, %v7177
    %7307 = vst.msk [vmem:[#allocation10 + $0x1f8] sm:$0xff] %vm2071, %v7179
    %7372 = vrot.lane.b32.xlu0 %v6924, 32
    %v7373 = vpop.permute.xlu0 %7372
    %7374 = vrot.lane.b32.xlu0 %v6925, 32
    %v7375 = vpop.permute.xlu0 %7374
    %7376 = vrot.lane.b32.xlu0 %v6926, 32
    %v7377 = vpop.permute.xlu0 %7376
    %7378 = vrot.lane.b32.xlu0 %v6927, 32
    %v7379 = vpop.permute.xlu0 %7378
    %7380 = vrot.lane.b32.xlu0 %v6928, 32
    %v7381 = vpop.permute.xlu0 %7380
    %7382 = vrot.lane.b32.xlu0 %v6929, 32
    %v7383 = vpop.permute.xlu0 %7382
    %7384 = vrot.lane.b32.xlu0 %v6930, 32
    %v7385 = vpop.permute.xlu0 %7384
    %7386 = vrot.lane.b32.xlu0 %v6931, 32
    %v7387 = vpop.permute.xlu0 %7386
    %7388 = vrot.lane.b32.xlu0 %v6932, 32
    %v7389 = vpop.permute.xlu0 %7388
    %7390 = vrot.lane.b32.xlu0 %v6933, 32
    %v7391 = vpop.permute.xlu0 %7390
    %7392 = vrot.lane.b32.xlu0 %v6934, 32
    %v7393 = vpop.permute.xlu0 %7392
    %7394 = vrot.lane.b32.xlu0 %v6935, 32
    %v7395 = vpop.permute.xlu0 %7394
    %7396 = vrot.lane.b32.xlu0 %v6936, 32
    %v7397 = vpop.permute.xlu0 %7396
    %7398 = vrot.lane.b32.xlu0 %v6937, 32
    %v7399 = vpop.permute.xlu0 %7398
    %7400 = vrot.lane.b32.xlu0 %v6938, 32
    %v7401 = vpop.permute.xlu0 %7400
    %7402 = vrot.lane.b32.xlu0 %v6939, 32
    %v7403 = vpop.permute.xlu0 %7402
    %7404 = vrot.lane.b32.xlu0 %v6940, 32
    %v7405 = vpop.permute.xlu0 %7404
    %7406 = vrot.lane.b32.xlu0 %v6941, 32
    %v7407 = vpop.permute.xlu0 %7406
    %7408 = vrot.lane.b32.xlu0 %v6942, 32
    %v7409 = vpop.permute.xlu0 %7408
    %7410 = vrot.lane.b32.xlu0 %v6943, 32
    %v7411 = vpop.permute.xlu0 %7410
    %7412 = vrot.lane.b32.xlu0 %v6944, 32
    %v7413 = vpop.permute.xlu0 %7412
    %7414 = vrot.lane.b32.xlu0 %v6945, 32
    %v7415 = vpop.permute.xlu0 %7414
    %7416 = vrot.lane.b32.xlu0 %v6946, 32
    %v7417 = vpop.permute.xlu0 %7416
    %7418 = vrot.lane.b32.xlu0 %v6947, 32
    %v7419 = vpop.permute.xlu0 %7418
    %7420 = vrot.lane.b32.xlu0 %v6948, 32
    %v7421 = vpop.permute.xlu0 %7420
    %7422 = vrot.lane.b32.xlu0 %v6949, 32
    %v7423 = vpop.permute.xlu0 %7422
    %7424 = vrot.lane.b32.xlu0 %v6950, 32
    %v7425 = vpop.permute.xlu0 %7424
    %7426 = vrot.lane.b32.xlu0 %v6951, 32
    %v7427 = vpop.permute.xlu0 %7426
    %7428 = vrot.lane.b32.xlu0 %v6952, 32
    %v7429 = vpop.permute.xlu0 %7428
    %7430 = vrot.lane.b32.xlu0 %v6953, 32
    %v7431 = vpop.permute.xlu0 %7430
    %7432 = vrot.lane.b32.xlu0 %v6954, 32
    %v7433 = vpop.permute.xlu0 %7432
    %7434 = vrot.lane.b32.xlu0 %v6955, 32
    %v7435 = vpop.permute.xlu0 %7434
    %7436 = vrot.lane.b32.xlu0 %v6956, 32
    %v7437 = vpop.permute.xlu0 %7436
    %7438 = vrot.lane.b32.xlu0 %v6957, 32
    %v7439 = vpop.permute.xlu0 %7438
    %7440 = vrot.lane.b32.xlu0 %v6958, 32
    %v7441 = vpop.permute.xlu0 %7440
    %7442 = vrot.lane.b32.xlu0 %v6959, 32
    %v7443 = vpop.permute.xlu0 %7442
    %7444 = vrot.lane.b32.xlu0 %v6960, 32
    %v7445 = vpop.permute.xlu0 %7444
    %7446 = vrot.lane.b32.xlu0 %v6961, 32
    %v7447 = vpop.permute.xlu0 %7446
    %7448 = vrot.lane.b32.xlu0 %v6962, 32
    %v7449 = vpop.permute.xlu0 %7448
    %7450 = vrot.lane.b32.xlu0 %v6963, 32
    %v7451 = vpop.permute.xlu0 %7450
    %7452 = vrot.lane.b32.xlu0 %v6964, 32
    %v7453 = vpop.permute.xlu0 %7452
    %7454 = vrot.lane.b32.xlu0 %v6965, 32
    %v7455 = vpop.permute.xlu0 %7454
    %7456 = vrot.lane.b32.xlu0 %v6966, 32
    %v7457 = vpop.permute.xlu0 %7456
    %7458 = vrot.lane.b32.xlu0 %v6967, 32
    %v7459 = vpop.permute.xlu0 %7458
    %7460 = vrot.lane.b32.xlu0 %v6968, 32
    %v7461 = vpop.permute.xlu0 %7460
    %7462 = vrot.lane.b32.xlu0 %v6969, 32
    %v7463 = vpop.permute.xlu0 %7462
    %7464 = vrot.lane.b32.xlu0 %v6970, 32
    %v7465 = vpop.permute.xlu0 %7464
    %7466 = vrot.lane.b32.xlu0 %v6971, 32
    %v7467 = vpop.permute.xlu0 %7466
    %7468 = vrot.lane.b32.xlu0 %v6972, 32
    %v7469 = vpop.permute.xlu0 %7468
    %7470 = vrot.lane.b32.xlu0 %v6973, 32
    %v7471 = vpop.permute.xlu0 %7470
    %7472 = vrot.lane.b32.xlu0 %v6974, 32
    %v7473 = vpop.permute.xlu0 %7472
    %7474 = vrot.lane.b32.xlu0 %v6975, 32
    %v7475 = vpop.permute.xlu0 %7474
    %7476 = vrot.lane.b32.xlu0 %v6976, 32
    %v7477 = vpop.permute.xlu0 %7476
    %7478 = vrot.lane.b32.xlu0 %v6977, 32
    %v7479 = vpop.permute.xlu0 %7478
    %7480 = vrot.lane.b32.xlu0 %v6978, 32
    %v7481 = vpop.permute.xlu0 %7480
    %7482 = vrot.lane.b32.xlu0 %v6979, 32
    %v7483 = vpop.permute.xlu0 %7482
    %7484 = vrot.lane.b32.xlu0 %v6980, 32
    %v7485 = vpop.permute.xlu0 %7484
    %7486 = vrot.lane.b32.xlu0 %v6981, 32
    %v7487 = vpop.permute.xlu0 %7486
    %7488 = vrot.lane.b32.xlu0 %v6982, 32
    %v7489 = vpop.permute.xlu0 %7488
    %7490 = vrot.lane.b32.xlu0 %v6983, 32
    %v7491 = vpop.permute.xlu0 %7490
    %7492 = vrot.lane.b32.xlu0 %v6984, 32
    %v7493 = vpop.permute.xlu0 %7492
    %7494 = vrot.lane.b32.xlu0 %v6985, 32
    %v7495 = vpop.permute.xlu0 %7494
    %7496 = vrot.lane.b32.xlu0 %v6986, 32
    %v7497 = vpop.permute.xlu0 %7496
    %7498 = vrot.lane.b32.xlu0 %v6987, 32
    %v7499 = vpop.permute.xlu0 %7498
    %7564 = vst.msk [vmem:[#allocation9] sm:$0xff] %vm2071, %v7373
    %7565 = vst.msk [vmem:[#allocation9 + $0x8] sm:$0xff] %vm2071, %v7375
    %7566 = vst.msk [vmem:[#allocation9 + $0x10] sm:$0xff] %vm2071, %v7377
    %7567 = vst.msk [vmem:[#allocation9 + $0x18] sm:$0xff] %vm2071, %v7379
    %7568 = vst.msk [vmem:[#allocation9 + $0x20] sm:$0xff] %vm2071, %v7381
    %7569 = vst.msk [vmem:[#allocation9 + $0x28] sm:$0xff] %vm2071, %v7383
    %7570 = vst.msk [vmem:[#allocation9 + $0x30] sm:$0xff] %vm2071, %v7385
    %7571 = vst.msk [vmem:[#allocation9 + $0x38] sm:$0xff] %vm2071, %v7387
    %7572 = vst.msk [vmem:[#allocation9 + $0x40] sm:$0xff] %vm2071, %v7389
    %7573 = vst.msk [vmem:[#allocation9 + $0x48] sm:$0xff] %vm2071, %v7391
    %7574 = vst.msk [vmem:[#allocation9 + $0x50] sm:$0xff] %vm2071, %v7393
    %7575 = vst.msk [vmem:[#allocation9 + $0x58] sm:$0xff] %vm2071, %v7395
    %7576 = vst.msk [vmem:[#allocation9 + $0x60] sm:$0xff] %vm2071, %v7397
    %7577 = vst.msk [vmem:[#allocation9 + $0x68] sm:$0xff] %vm2071, %v7399
    %7578 = vst.msk [vmem:[#allocation9 + $0x70] sm:$0xff] %vm2071, %v7401
    %7579 = vst.msk [vmem:[#allocation9 + $0x78] sm:$0xff] %vm2071, %v7403
    %7580 = vst.msk [vmem:[#allocation9 + $0x80] sm:$0xff] %vm2071, %v7405
    %7581 = vst.msk [vmem:[#allocation9 + $0x88] sm:$0xff] %vm2071, %v7407
    %7582 = vst.msk [vmem:[#allocation9 + $0x90] sm:$0xff] %vm2071, %v7409
    %7583 = vst.msk [vmem:[#allocation9 + $0x98] sm:$0xff] %vm2071, %v7411
    %7584 = vst.msk [vmem:[#allocation9 + $0xa0] sm:$0xff] %vm2071, %v7413
    %7585 = vst.msk [vmem:[#allocation9 + $0xa8] sm:$0xff] %vm2071, %v7415
    %7586 = vst.msk [vmem:[#allocation9 + $0xb0] sm:$0xff] %vm2071, %v7417
    %7587 = vst.msk [vmem:[#allocation9 + $0xb8] sm:$0xff] %vm2071, %v7419
    %7588 = vst.msk [vmem:[#allocation9 + $0xc0] sm:$0xff] %vm2071, %v7421
    %7589 = vst.msk [vmem:[#allocation9 + $0xc8] sm:$0xff] %vm2071, %v7423
    %7590 = vst.msk [vmem:[#allocation9 + $0xd0] sm:$0xff] %vm2071, %v7425
    %7591 = vst.msk [vmem:[#allocation9 + $0xd8] sm:$0xff] %vm2071, %v7427
    %7592 = vst.msk [vmem:[#allocation9 + $0xe0] sm:$0xff] %vm2071, %v7429
    %7593 = vst.msk [vmem:[#allocation9 + $0xe8] sm:$0xff] %vm2071, %v7431
    %7594 = vst.msk [vmem:[#allocation9 + $0xf0] sm:$0xff] %vm2071, %v7433
    %7595 = vst.msk [vmem:[#allocation9 + $0xf8] sm:$0xff] %vm2071, %v7435
    %7596 = vst.msk [vmem:[#allocation9 + $0x100] sm:$0xff] %vm2071, %v7437
    %7597 = vst.msk [vmem:[#allocation9 + $0x108] sm:$0xff] %vm2071, %v7439
    %7598 = vst.msk [vmem:[#allocation9 + $0x110] sm:$0xff] %vm2071, %v7441
    %7599 = vst.msk [vmem:[#allocation9 + $0x118] sm:$0xff] %vm2071, %v7443
    %7600 = vst.msk [vmem:[#allocation9 + $0x120] sm:$0xff] %vm2071, %v7445
    %7601 = vst.msk [vmem:[#allocation9 + $0x128] sm:$0xff] %vm2071, %v7447
    %7602 = vst.msk [vmem:[#allocation9 + $0x130] sm:$0xff] %vm2071, %v7449
    %7603 = vst.msk [vmem:[#allocation9 + $0x138] sm:$0xff] %vm2071, %v7451
    %7604 = vst.msk [vmem:[#allocation9 + $0x140] sm:$0xff] %vm2071, %v7453
    %7605 = vst.msk [vmem:[#allocation9 + $0x148] sm:$0xff] %vm2071, %v7455
    %7606 = vst.msk [vmem:[#allocation9 + $0x150] sm:$0xff] %vm2071, %v7457
    %7607 = vst.msk [vmem:[#allocation9 + $0x158] sm:$0xff] %vm2071, %v7459
    %7608 = vst.msk [vmem:[#allocation9 + $0x160] sm:$0xff] %vm2071, %v7461
    %7609 = vst.msk [vmem:[#allocation9 + $0x168] sm:$0xff] %vm2071, %v7463
    %7610 = vst.msk [vmem:[#allocation9 + $0x170] sm:$0xff] %vm2071, %v7465
    %7611 = vst.msk [vmem:[#allocation9 + $0x178] sm:$0xff] %vm2071, %v7467
    %7612 = vst.msk [vmem:[#allocation9 + $0x180] sm:$0xff] %vm2071, %v7469
    %7613 = vst.msk [vmem:[#allocation9 + $0x188] sm:$0xff] %vm2071, %v7471
    %7614 = vst.msk [vmem:[#allocation9 + $0x190] sm:$0xff] %vm2071, %v7473
    %7615 = vst.msk [vmem:[#allocation9 + $0x198] sm:$0xff] %vm2071, %v7475
    %7616 = vst.msk [vmem:[#allocation9 + $0x1a0] sm:$0xff] %vm2071, %v7477
    %7617 = vst.msk [vmem:[#allocation9 + $0x1a8] sm:$0xff] %vm2071, %v7479
    %7618 = vst.msk [vmem:[#allocation9 + $0x1b0] sm:$0xff] %vm2071, %v7481
    %7619 = vst.msk [vmem:[#allocation9 + $0x1b8] sm:$0xff] %vm2071, %v7483
    %7620 = vst.msk [vmem:[#allocation9 + $0x1c0] sm:$0xff] %vm2071, %v7485
    %7621 = vst.msk [vmem:[#allocation9 + $0x1c8] sm:$0xff] %vm2071, %v7487
    %7622 = vst.msk [vmem:[#allocation9 + $0x1d0] sm:$0xff] %vm2071, %v7489
    %7623 = vst.msk [vmem:[#allocation9 + $0x1d8] sm:$0xff] %vm2071, %v7491
    %7624 = vst.msk [vmem:[#allocation9 + $0x1e0] sm:$0xff] %vm2071, %v7493
    %7625 = vst.msk [vmem:[#allocation9 + $0x1e8] sm:$0xff] %vm2071, %v7495
    %7626 = vst.msk [vmem:[#allocation9 + $0x1f0] sm:$0xff] %vm2071, %v7497
    %7627 = vst.msk [vmem:[#allocation9 + $0x1f8] sm:$0xff] %vm2071, %v7499
    // Predicated region
    $region30: #{vmrnn_cell.1} parent=1 // pred_check
      _
    $region31: #{vmrnn_cell.1} parent=1 // pred_check_branch
      %7629 = sbr.rel (0) target = $region33
    $region32: #{vmrnn_cell.1} parent=1 // pred_region
      %s7631 = ssub.s32 8192, 8192
      %7632 = vsyncadd [#allocation6], %s7631
      %s7633 = sshll.u32 [#allocation9], 4
      %s7634 = int_to_ptr.vmem [resolvable:$true] %s7633
      %7639 = dma.vmem_to_hbm [thread:$0]  %s7634, 8192, %s5, [#allocation6], 128, 128, 8
    $region33: #{vmrnn_cell.1} parent=1 // pred_fallthru
      _
    // Predicated region
    $region34: #{vmrnn_cell.1} parent=1 // pred_check
      _
    $region35: #{vmrnn_cell.1} parent=1 // pred_check_branch
      %7641 = sbr.rel (0) target = $region37
    $region36: #{vmrnn_cell.1} parent=1 // pred_region
      %s7643 = ssub.s32 8192, 8192
      %7644 = vsyncadd [#allocation11], %s7643
      %s7645 = sshll.u32 [#allocation10], 4
      %s7646 = int_to_ptr.vmem [resolvable:$true] %s7645
      %7651 = dma.vmem_to_hbm [thread:$0]  %s7646, 8192, %s6, [#allocation11], 128, 128, 8
    $region37: #{vmrnn_cell.1} parent=1 // pred_fallthru
      _
    // Predicated region
    $region38: #{vmrnn_cell.1} parent=1 // pred_check
      _
    $region39: #{vmrnn_cell.1} parent=1 // pred_check_branch
      %7653 = sbr.rel (0) target = $region41
    $region40: #{vmrnn_cell.1} parent=1 // pred_region
      %7654 = dma.done [#allocation6], 8192
    $region41: #{vmrnn_cell.1} parent=1 // pred_fallthru
      _
    // Predicated region
    $region42: #{vmrnn_cell.1} parent=1 // pred_check
      _
    $region43: #{vmrnn_cell.1} parent=1 // pred_check_branch
      %7656 = sbr.rel (0) target = $region45
    $region44: #{vmrnn_cell.1} parent=1 // pred_region
      %7657 = dma.done [#allocation11], 8192
    $region45: #{vmrnn_cell.1} parent=1 // pred_fallthru
      _
    %7658 = vsyncpa [#allocation5], 1
    %7659 = vsyncpa [#allocation8], 1
    %7660 = vsyncpa [#allocation6], 1
    %7661 = vsyncpa [#allocation11], 1

</llo_original>
